<compile_context>
chip_gen: v7x
topology: tpu7x:2x2x1
jax: 0.10.0
libtpu: 0.0.40
codegen_flags: <defaults>
</compile_context>

<pallas_src>
import functools

import numpy as np
import jax
import jax.numpy as jnp
from jax import lax
from jax.experimental import pallas as pl
from jax.experimental.pallas import tpu as pltpu

TM = 256  # row tile for the flat [M, C] passes (>= 2 grid steps enforced)


def _round_up(x, m):
    return ((x + m - 1) // m) * m


def _row_tile(m):
    """Row tile that is a multiple of 8, <= TM, and gives >= 2 grid steps."""
    return min(TM, _round_up(max((m + 1) // 2, 8), 8))


# ----------------------------- Pallas kernels ------------------------------

def _conv_taps_kernel(x_ref, w_ref, sc_ref, sh_ref, y_ref, s1_ref, s2_ref,
                      *, kh, kw, ho, wo, apply_act):
    """Fused-im2col conv on one (1, Hp, Wp, Cin) image block.

    * accumulates the kh*kw tap matmuls in-kernel (shifted static slices)
    * optionally applies the producer's BN scale/shift + ReLU to the loaded
      tile (BN is per-channel, so it commutes with the spatial padding)
    * emits per-channel sum / sum-of-squares of the raw conv output as
      8-sublane partials (host sums the tiny partial rows afterwards).
    """
    x = x_ref[0]                                          # (Hp, Wp, Cin)
    if apply_act:
        sc = sc_ref[...].reshape(1, 1, -1)
        sh = sh_ref[...].reshape(1, 1, -1)
        x = jnp.maximum(x.astype(jnp.float32) * sc + sh, 0.0)
        x = x.astype(jnp.bfloat16)
    cin = x.shape[-1]
    cout = y_ref.shape[-1]
    acc = jnp.zeros((ho * wo, cout), jnp.float32)
    for t in range(kh * kw):
        i, j = t // kw, t % kw
        patch = x[i:i + ho, j:j + wo, :].reshape(ho * wo, cin)
        acc = acc + jnp.dot(patch, w_ref[t],
                            preferred_element_type=jnp.float32)
    y_ref[...] = acc.astype(y_ref.dtype)
    s1_ref[...] = acc.reshape(-1, 8, cout).sum(axis=0)
    s2_ref[...] = (acc * acc).reshape(-1, 8, cout).sum(axis=0)


def _skip_cat_kernel(up_ref, sk_ref, w_ref, o_ref, s1_ref, s2_ref):
    """Fused skip 1x1 conv + channel concat with the raw up branch.

    out[:, :c_up] = raw ConvTranspose output (pass-through, bf16)
    out[:, c_up:] = skip @ w_skip (raw 1x1 conv output)
    BN + ReLU of both branches is deferred into conv1's kernel.
    """
    c_sk = w_ref.shape[-1]
    y = jnp.dot(sk_ref[...], w_ref[...], preferred_element_type=jnp.float32)
    o_ref[...] = jnp.concatenate([up_ref[...], y.astype(o_ref.dtype)], axis=-1)
    s1_ref[...] = y.reshape(-1, 8, c_sk).sum(axis=0)
    s2_ref[...] = (y * y).reshape(-1, 8, c_sk).sum(axis=0)


def _residual_bn_relu_kernel(y1_ref, y2_ref, s1_ref, t1_ref, s2_ref, t2_ref,
                             o_ref):
    """out = ReLU(BN1(y1)) + ReLU(BN2(y2)); out1 is recomputed here from y1
    so it is never written to HBM."""
    y1 = y1_ref[...].astype(jnp.float32)
    y2 = y2_ref[...].astype(jnp.float32)
    o_ref[...] = (jnp.maximum(y1 * s1_ref[...] + t1_ref[...], 0.0) +
                  jnp.maximum(y2 * s2_ref[...] + t2_ref[...], 0.0))


# ----------------------------- Pallas wrappers ------------------------------

def conv_taps(x_pad, w, scale, shift, *, ho, wo, apply_act,
              out_dtype=jnp.bfloat16):
    """x_pad: (N, Hp, Wp, Cin) bf16, spatially pre-padded.
       w: (kh*kw, Cin, Cout) bf16 (tap-major).  scale/shift: (1, Cin) f32.
       Returns y (N*ho*wo, Cout), ch_sum (Cout,), ch_ssq (Cout,)."""
    N, Hp, Wp, Cin = x_pad.shape
    kh, kw = Hp - ho + 1, Wp - wo + 1
    ntaps, wcin, Cout = w.shape
    assert ntaps == kh * kw and wcin == Cin
    rows = ho * wo
    assert rows % 8 == 0, "per-image output rows must be a multiple of 8"
    kern = functools.partial(_conv_taps_kernel, kh=kh, kw=kw, ho=ho, wo=wo,
                             apply_act=apply_act)
    y, s1, s2 = pl.pallas_call(
        kern,
        grid=(N,),
        in_specs=[pl.BlockSpec((1, Hp, Wp, Cin), lambda n: (n, 0, 0, 0)),
                  pl.BlockSpec((ntaps, Cin, Cout), lambda n: (0, 0, 0)),
                  pl.BlockSpec((1, Cin), lambda n: (0, 0)),
                  pl.BlockSpec((1, Cin), lambda n: (0, 0))],
        out_shape=(jax.ShapeDtypeStruct((N * rows, Cout), out_dtype),
                   jax.ShapeDtypeStruct((N * 8, Cout), jnp.float32),
                   jax.ShapeDtypeStruct((N * 8, Cout), jnp.float32)),
        out_specs=(pl.BlockSpec((rows, Cout), lambda n: (n, 0)),
                   pl.BlockSpec((8, Cout), lambda n: (n, 0)),
                   pl.BlockSpec((8, Cout), lambda n: (n, 0))),
        compiler_params=pltpu.CompilerParams(
            dimension_semantics=("parallel",)),
    )(x_pad, w, scale, shift)
    return (y, s1.reshape(N, 8, Cout).sum((0, 1)),
            s2.reshape(N, 8, Cout).sum((0, 1)))


def skip_cat(up_flat, sk_flat, w_skip):
    """up_flat: (M, c_up) bf16 raw up output; sk_flat: (M, c_in) bf16 skip.
       Returns cat_raw (M, c_up + c_sk) bf16, skip ch_sum / ch_ssq (c_sk,)."""
    M, c_up = up_flat.shape
    _, c_in = sk_flat.shape
    c_sk = w_skip.shape[-1]
    tm = _row_tile(M)
    Mp = _round_up(M, tm)
    if Mp != M:  # zero rows do not perturb the statistics
        up_flat = jnp.pad(up_flat, ((0, Mp - M), (0, 0)))
        sk_flat = jnp.pad(sk_flat, ((0, Mp - M), (0, 0)))
    nt = Mp // tm
    out, s1, s2 = pl.pallas_call(
        _skip_cat_kernel,
        grid=(nt,),
        in_specs=[pl.BlockSpec((tm, c_up), lambda i: (i, 0)),
                  pl.BlockSpec((tm, c_in), lambda i: (i, 0)),
                  pl.BlockSpec((c_in, c_sk), lambda i: (0, 0))],
        out_shape=(jax.ShapeDtypeStruct((Mp, c_up + c_sk), jnp.bfloat16),
                   jax.ShapeDtypeStruct((nt * 8, c_sk), jnp.float32),
                   jax.ShapeDtypeStruct((nt * 8, c_sk), jnp.float32)),
        out_specs=(pl.BlockSpec((tm, c_up + c_sk), lambda i: (i, 0)),
                   pl.BlockSpec((8, c_sk), lambda i: (i, 0)),
                   pl.BlockSpec((8, c_sk), lambda i: (i, 0))),
        compiler_params=pltpu.CompilerParams(
            dimension_semantics=("parallel",)),
    )(up_flat, sk_flat, w_skip)
    return (out[:M], s1.reshape(nt, 8, c_sk).sum((0, 1)),
            s2.reshape(nt, 8, c_sk).sum((0, 1)))


def residual_bn_relu(y1, y2, sc1, sh1, sc2, sh2):
    """out = ReLU(y1*sc1+sh1) + ReLU(y2*sc2+sh2), f32 [M, C]."""
    M, C = y1.shape
    tm = _row_tile(M)
    Mp = _round_up(M, tm)
    if Mp != M:
        y1 = jnp.pad(y1, ((0, Mp - M), (0, 0)))
        y2 = jnp.pad(y2, ((0, Mp - M), (0, 0)))
    nt = Mp // tm
    row_spec = pl.BlockSpec((tm, C), lambda i: (i, 0))
    vec_spec = pl.BlockSpec((1, C), lambda i: (0, 0))
    out = pl.pallas_call(
        _residual_bn_relu_kernel,
        grid=(nt,),
        in_specs=[row_spec, row_spec, vec_spec, vec_spec, vec_spec, vec_spec],
        out_shape=jax.ShapeDtypeStruct((Mp, C), jnp.float32),
        out_specs=row_spec,
        compiler_params=pltpu.CompilerParams(
            dimension_semantics=("parallel",)),
    )(y1, y2, sc1, sh1, sc2, sh2)
    return out[:M]


# ------------------------- BN fold & weight prep -----------------------------

def _bn_scale_shift(ch_sum, ch_ssq, count, gamma, beta, eps=1e-5):
    """Training-mode BatchNorm (batch mean, biased variance) folded into a
    per-channel scale & shift.  NOTE: E[x^2]-E[x]^2 in f32; cancellation only
    matters if |mean| >> std, which BN-fed conv outputs do not exhibit here."""
    mean = ch_sum / count
    var = jnp.maximum(ch_ssq / count - mean * mean, 0.0)
    scale = gamma * lax.rsqrt(var + eps)
    shift = beta - mean * scale
    return scale, shift


def _subpixel_offsets(k, s, p):
    offs = sorted({(a + p - ki) // s
                   for a in range(s) for ki in range(k)
                   if (a + p - ki) % s == 0})
    return offs[0], offs[-1]


def _subpixel_weight(w_t, k, s, p):
    """ConvTranspose2d(k, s, p) weight (ci, co, k, k) -> equivalent stride-1
    conv weight (ww*ww, ci, s*s*co) over the zero-padded input.  The s*s
    output column groups are the output-pixel parities (depth-to-space after
    the matmul recovers the upsampled map — no col2im scatter)."""
    ci, co = w_t.shape[0], w_t.shape[1]
    dmin, dmax = _subpixel_offsets(k, s, p)
    ww = dmax - dmin + 1
    w_np = np.asarray(w_t, dtype=np.float32)
    w_conv = np.zeros((ww, ww, ci, s * s * co), np.float32)
    for a in range(s):
        for ki in range(k):
            if (a + p - ki) % s:
                continue
            wi = (a + p - ki) // s - dmin
            for b in range(s):
                for kj in range(k):
                    if (b + p - kj) % s:
                        continue
                    wj = (b + p - kj) // s - dmin
                    col = (a * s + b) * co
                    w_conv[wi, wj, :, col:col + co] = w_np[:, :, ki, kj]
    return jnp.asarray(w_conv.reshape(ww * ww, ci, s * s * co))


def prepare_params(params, d_in, d_out, d, k, s, p):
    """One-time weight preparation (hoisted out of the forward path).
    Conv biases are dropped: every conv feeds training-mode BatchNorm which
    subtracts the batch mean, so the bias cancels exactly."""
    prep = {
        'w_up': _subpixel_weight(params['up_w'], k, s, p).astype(jnp.bfloat16),
        'w_skip': params['skip_w'][:, :, 0, 0].T.astype(jnp.bfloat16),
        'w_c1': jnp.transpose(params['c1_w'], (2, 3, 1, 0))
                   .reshape(9, d_out + d, d_out).astype(jnp.bfloat16),
        'w_c2': jnp.transpose(params['c2_w'], (2, 3, 1, 0))
                   .reshape(9, d_out, d_out).astype(jnp.bfloat16),
    }
    for name in ('skip_bn_g', 'skip_bn_b', 'up_bn_g', 'up_bn_b',
                 'c1_bn_g', 'c1_bn_b', 'c2_bn_g', 'c2_bn_b'):
        prep[name] = params[name].astype(jnp.float32)
    return prep


# ------------------------------ UpConvBlock ---------------------------------

@functools.partial(jax.jit, static_argnames=('d_out', 'd', 'k', 's', 'p'))
def upconvblock_forward(prep, x_nchw, skip_nchw, *, d_out, d, k, s, p):
    N, d_in, H, W = x_nchw.shape
    # TODO(synk): accept/return NHWC across the decoder to drop these per-block
    # NCHW<->NHWC transposes.
    x = jnp.transpose(x_nchw, (0, 2, 3, 1)).astype(jnp.bfloat16)
    skip = jnp.transpose(skip_nchw, (0, 2, 3, 1)).astype(jnp.bfloat16)

    # --- up branch: ConvTranspose2d as sub-pixel conv + depth-to-space ------
    Ho, Wo = (H - 1) * s - 2 * p + k, (W - 1) * s - 2 * p + k
    assert Ho % s == 0 and Wo % s == 0, "sub-pixel path needs (k - 2p) % s == 0"
    Hq, Wq = Ho // s, Wo // s
    dmin, dmax = _subpixel_offsets(k, s, p)
    pad_lo = -dmin
    pad_hi_h, pad_hi_w = Hq - 1 + dmax - (H - 1), Wq - 1 + dmax - (W - 1)
    assert pad_lo >= 0 and pad_hi_h >= 0 and pad_hi_w >= 0
    xp = jnp.pad(x, ((0, 0), (pad_lo, pad_hi_h), (pad_lo, pad_hi_w), (0, 0)))
    ones = jnp.ones((1, d_in), jnp.float32)       # dummy (no input activation)
    zeros = jnp.zeros((1, d_in), jnp.float32)
    y_ps, sum_ps, ssq_ps = conv_taps(xp, prep['w_up'], ones, zeros,
                                     ho=Hq, wo=Wq, apply_act=False)
    up_nhwc = (y_ps.reshape(N, Hq, Wq, s, s, d_out)
                   .transpose(0, 1, 3, 2, 4, 5)
                   .reshape(N, Ho, Wo, d_out))
    M = N * Ho * Wo
    sc_u, sh_u = _bn_scale_shift(sum_ps.reshape(s * s, d_out).sum(0),
                                 ssq_ps.reshape(s * s, d_out).sum(0),
                                 M, prep['up_bn_g'], prep['up_bn_b'])

    # --- skip branch: 1x1 conv fused with the channel concat (raw values) ---
    cat_raw, sum_sk, ssq_sk = skip_cat(up_nhwc.reshape(M, d_out),
                                       skip.reshape(M, d), prep['w_skip'])
    sc_s, sh_s = _bn_scale_shift(sum_sk, ssq_sk, M,
                                 prep['skip_bn_g'], prep['skip_bn_b'])

    # --- conv1: BN+ReLU of both branches folded into the conv kernel --------
    # padding_mode='reflect' (the module default).  TODO(synk): 'zeros' mode.
    sc_in = jnp.concatenate([sc_u, sc_s]).reshape(1, d_out + d)
    sh_in = jnp.concatenate([sh_u, sh_s]).reshape(1, d_out + d)
    cat_pad = jnp.pad(cat_raw.reshape(N, Ho, Wo, d_out + d),
                      ((0, 0), (1, 1), (1, 1), (0, 0)), mode='reflect')
    y1, sum1, ssq1 = conv_taps(cat_pad, prep['w_c1'], sc_in, sh_in,
                               ho=Ho, wo=Wo, apply_act=True)
    sc1, sh1 = _bn_scale_shift(sum1, ssq1, M, prep['c1_bn_g'], prep['c1_bn_b'])

    # --- conv2: BN1+ReLU folded in; out1 is never materialized --------------
    y1_pad = jnp.pad(y1.reshape(N, Ho, Wo, d_out),
                     ((0, 0), (1, 1), (1, 1), (0, 0)), mode='reflect')
    y2, sum2, ssq2 = conv_taps(y1_pad, prep['w_c2'],
                               sc1.reshape(1, d_out), sh1.reshape(1, d_out),
                               ho=Ho, wo=Wo, apply_act=True,
                               out_dtype=jnp.float32)
    sc2, sh2 = _bn_scale_shift(sum2, ssq2, M, prep['c2_bn_g'], prep['c2_bn_b'])

    # --- out = ReLU(BN1(y1)) + ReLU(BN2(y2)) in one elementwise pass ---------
    out = residual_bn_relu(y1, y2,
                           sc1.reshape(1, d_out), sh1.reshape(1, d_out),
                           sc2.reshape(1, d_out), sh2.reshape(1, d_out))
    return jnp.transpose(out.reshape(N, Ho, Wo, d_out), (0, 3, 1, 2))


# --------------------------- reference & params ------------------------------

def upconvblock_reference(params, x_nchw, skip_nchw, *, k, s, p, eps=1e-5):
    """Pure-JAX f32 reference of the torch UpConvBlock forward (training-mode
    BatchNorm; conv biases included — they cancel against the batch mean)."""
    x = jnp.transpose(x_nchw, (0, 2, 3, 1)).astype(jnp.float32)
    skip = jnp.transpose(skip_nchw, (0, 2, 3, 1)).astype(jnp.float32)
    N, H, W, _ = x.shape

    def bn_relu(y, g, b):
        mean = y.mean(axis=(0, 1, 2))
        var = y.var(axis=(0, 1, 2))
        return jax.nn.relu((y - mean) * lax.rsqrt(var + eps) * g + b)

    # ConvTranspose2d(k, s, p) via explicit scatter-add.
    wt = params['up_w'].astype(jnp.float32)               # (ci, co, k, k)
    co = wt.shape[1]
    Ho, Wo = (H - 1) * s - 2 * p + k, (W - 1) * s - 2 * p + k
    taps = jnp.einsum('nhwi,iokl->nhwklo', x, wt)
    full = jnp.zeros((N, (H - 1) * s + k, (W - 1) * s + k, co), jnp.float32)
    for ki in range(k):
        for kj in range(k):
            full = full.at[:, ki:ki + (H - 1) * s + 1:s,
                               kj:kj + (W - 1) * s + 1:s, :].add(
                taps[:, :, :, ki, kj, :])
    up = full[:, p:p + Ho, p:p + Wo, :] + params['up_b']
    up = bn_relu(up, params['up_bn_g'], params['up_bn_b'])

    sk = jnp.einsum('nhwc,dc->nhwd', skip,
                    params['skip_w'][:, :, 0, 0].astype(jnp.float32))
    sk = bn_relu(sk + params['skip_b'],
                 params['skip_bn_g'], params['skip_bn_b'])

    def conv3x3(z, w, b):
        zp = jnp.pad(z, ((0, 0), (1, 1), (1, 1), (0, 0)), mode='reflect')
        w_hwio = jnp.transpose(w, (2, 3, 1, 0)).astype(jnp.float32)
        y = lax.conv_general_dilated(zp, w_hwio, (1, 1), 'VALID',
                                     dimension_numbers=('NHWC', 'HWIO', 'NHWC'))
        return y + b

    cat = jnp.concatenate([up, sk], axis=-1)
    o1 = bn_relu(conv3x3(cat, params['c1_w'], params['c1_b']),
                 params['c1_bn_g'], params['c1_bn_b'])
    o2 = bn_relu(conv3x3(o1, params['c2_w'], params['c2_b']),
                 params['c2_bn_g'], params['c2_bn_b'])
    return jnp.transpose(o1 + o2, (0, 3, 1, 2))


def init_params(key, d_in, d_out, d_skip, k):
    """Mirrors the torch module's parameters.  Conv biases are generated for
    interface parity but unused by the kernel path (they cancel under
    training-mode BatchNorm)."""
    d = d_out if d_skip is None else d_skip
    ks = jax.random.split(key, 16)
    n = lambda kk, shape, sc=0.1: sc * jax.random.normal(kk, shape, jnp.float32)
    return {
        # skip_conv: Conv2d(d, d, 1) + BN(d)
        'skip_w': n(ks[0], (d, d, 1, 1)), 'skip_b': n(ks[1], (d,)),
        'skip_bn_g': 1.0 + n(ks[2], (d,)), 'skip_bn_b': n(ks[3], (d,)),
        # up: ConvTranspose2d(d_in, d_out, k) + BN(d_out)
        'up_w': n(ks[4], (d_in, d_out, k, k)), 'up_b': n(ks[5], (d_out,)),
        'up_bn_g': 1.0 + n(ks[6], (d_out,)), 'up_bn_b': n(ks[7], (d_out,)),
        # conv1: Conv2d(d_out + d, d_out, 3) + BN(d_out)
        'c1_w': n(ks[8], (d_out, d_out + d, 3, 3)), 'c1_b': n(ks[9], (d_out,)),
        'c1_bn_g': 1.0 + n(ks[10], (d_out,)), 'c1_bn_b': n(ks[11], (d_out,)),
        # conv2: Conv2d(d_out, d_out, 3) + BN(d_out)
        'c2_w': n(ks[12], (d_out, d_out, 3, 3)), 'c2_b': n(ks[13], (d_out,)),
        'c2_bn_g': 1.0 + n(ks[14], (d_out,)), 'c2_bn_b': n(ks[15], (d_out,)),
    }


if __name__ == "__main__":
    key = jax.random.PRNGKey(0)
    kp, kx, ksk = jax.random.split(key, 3)

    # UpConvBlock(d_in=8, d_out=4, k=4, s=2, p=1), d_skip=None -> d = d_out = 4
    d_in, d_out, k, s, p = 8, 4, 4, 2, 1
    d = d_out
    B, H, W = 2, 8, 8                       # input  [2, 8, 8, 8]   (NCHW)
    Hs, Ws = H * s, W * s                   # skip   [2, 4, 16, 16] (NCHW)

    params = init_params(kp, d_in, d_out, None, k)
    prep = prepare_params(params, d_in, d_out, d, k, s, p)  # one-time prep

    x = jax.random.normal(kx, (B, d_in, H, W), jnp.float32)
    skip = jax.random.normal(ksk, (B, d, Hs, Ws), jnp.float32)

    out = upconvblock_forward(prep, x, skip, d_out=d_out, d=d, k=k, s=s, p=p)
    out = jax.block_until_ready(out)
    assert out.shape == (B, d_out, Hs, Ws), out.shape
    assert bool(jnp.all(jnp.isfinite(out)))

    # pure-JAX f32 reference check (bf16 kernel path => loose tolerance)
    ref = upconvblock_reference(params, x, skip, k=k, s=s, p=p)
    err = float(jnp.max(jnp.abs(out - ref)))
    scl = float(jnp.max(jnp.abs(ref)))
    assert err <= 0.05 * scl + 0.25, ("mismatch vs reference", err, scl)

    print("KERNEL_OK")
</pallas_src>

<mosaic_0001>
module attributes {stable_mosaic.version = 11 : i64} {
  func.func @_conv_taps_kernel(%arg0: i32, %arg1: memref<1x10x10x8xbf16, #tpu.memory_space<vmem>>, %arg2: memref<9x8x16xbf16, #tpu.memory_space<vmem>>, %arg3: memref<1x8xf32, #tpu.memory_space<vmem>>, %arg4: memref<1x8xf32, #tpu.memory_space<vmem>>, %arg5: memref<64x16xbf16, #tpu.memory_space<vmem>>, %arg6: memref<8x16xf32, #tpu.memory_space<vmem>>, %arg7: memref<8x16xf32, #tpu.memory_space<vmem>>) attributes {dimension_semantics = [#tpu.dimension_semantics<parallel>], iteration_bounds = array<i64: 2>, scalar_prefetch = 0 : i64, scratch_operands = 0 : i64, tpu.core_type = #tpu.core_type<tc>, window_params = [{transform_indices = @transform_0, window_bounds = array<i64: 1, 10, 10, 8>}, {pipeline_mode = #tpu.pipeline_mode<synchronous>, transform_indices = @transform_1, window_bounds = array<i64: 9, 8, 16>}, {pipeline_mode = #tpu.pipeline_mode<synchronous>, transform_indices = @transform_2, window_bounds = array<i64: 1, 8>}, {pipeline_mode = #tpu.pipeline_mode<synchronous>, transform_indices = @transform_3, window_bounds = array<i64: 1, 8>}, {transform_indices = @transform_4, window_bounds = array<i64: 64, 16>}, {transform_indices = @transform_5, window_bounds = array<i64: 8, 16>}, {transform_indices = @transform_6, window_bounds = array<i64: 8, 16>}]} {
    %c0 = arith.constant 0 : index
    %c0_0 = arith.constant 0 : index
    %c0_1 = arith.constant 0 : index
    %c0_2 = arith.constant 0 : index
    %0 = vector.load %arg1[%c0, %c0_0, %c0_1, %c0_2] : memref<1x10x10x8xbf16, #tpu.memory_space<vmem>>, vector<1x10x10x8xbf16>
    %1 = vector.shape_cast %0 : vector<1x10x10x8xbf16> to vector<10x10x8xbf16>
    %cst = arith.constant 0.000000e+00 : f32
    %2 = vector.broadcast %cst : f32 to vector<64x16xf32>
    %3 = vector.extract_strided_slice %1 {offsets = [0, 0, 0], sizes = [8, 8, 8], strides = [1, 1, 1]} : vector<10x10x8xbf16> to vector<8x8x8xbf16>
    %4 = vector.shape_cast %3 : vector<8x8x8xbf16> to vector<64x8xbf16>
    %c0_3 = arith.constant 0 : index
    %c0_4 = arith.constant 0 : index
    %c0_5 = arith.constant 0 : index
    %5 = vector.load %arg2[%c0_3, %c0_4, %c0_5] : memref<9x8x16xbf16, #tpu.memory_space<vmem>>, vector<1x8x16xbf16>
    %6 = vector.shape_cast %5 : vector<1x8x16xbf16> to vector<8x16xbf16>
    %cst_6 = arith.constant dense<0.000000e+00> : vector<64x16xf32>
    %7 = tpu.matmul %4, %6, %cst_6 {dimension_numbers = #tpu.dot_dimension_numbers<[1], [0], [0], [1], [0, 0, 1, 1], [], []>} : vector<64x8xbf16>, vector<8x16xbf16>, vector<64x16xf32> -> vector<64x16xf32>
    %8 = arith.addf %2, %7 : vector<64x16xf32>
    %9 = vector.extract_strided_slice %1 {offsets = [0, 1, 0], sizes = [8, 8, 8], strides = [1, 1, 1]} : vector<10x10x8xbf16> to vector<8x8x8xbf16>
    %10 = vector.shape_cast %9 : vector<8x8x8xbf16> to vector<64x8xbf16>
    %c1 = arith.constant 1 : index
    %c0_7 = arith.constant 0 : index
    %c0_8 = arith.constant 0 : index
    %11 = vector.load %arg2[%c1, %c0_7, %c0_8] : memref<9x8x16xbf16, #tpu.memory_space<vmem>>, vector<1x8x16xbf16>
    %12 = vector.shape_cast %11 : vector<1x8x16xbf16> to vector<8x16xbf16>
    %cst_9 = arith.constant dense<0.000000e+00> : vector<64x16xf32>
    %13 = tpu.matmul %10, %12, %cst_9 {dimension_numbers = #tpu.dot_dimension_numbers<[1], [0], [0], [1], [0, 0, 1, 1], [], []>} : vector<64x8xbf16>, vector<8x16xbf16>, vector<64x16xf32> -> vector<64x16xf32>
    %14 = arith.addf %8, %13 : vector<64x16xf32>
    %15 = vector.extract_strided_slice %1 {offsets = [0, 2, 0], sizes = [8, 8, 8], strides = [1, 1, 1]} : vector<10x10x8xbf16> to vector<8x8x8xbf16>
    %16 = vector.shape_cast %15 : vector<8x8x8xbf16> to vector<64x8xbf16>
    %c2 = arith.constant 2 : index
    %c0_10 = arith.constant 0 : index
    %c0_11 = arith.constant 0 : index
    %17 = vector.load %arg2[%c2, %c0_10, %c0_11] : memref<9x8x16xbf16, #tpu.memory_space<vmem>>, vector<1x8x16xbf16>
    %18 = vector.shape_cast %17 : vector<1x8x16xbf16> to vector<8x16xbf16>
    %cst_12 = arith.constant dense<0.000000e+00> : vector<64x16xf32>
    %19 = tpu.matmul %16, %18, %cst_12 {dimension_numbers = #tpu.dot_dimension_numbers<[1], [0], [0], [1], [0, 0, 1, 1], [], []>} : vector<64x8xbf16>, vector<8x16xbf16>, vector<64x16xf32> -> vector<64x16xf32>
    %20 = arith.addf %14, %19 : vector<64x16xf32>
    %21 = vector.extract_strided_slice %1 {offsets = [1, 0, 0], sizes = [8, 8, 8], strides = [1, 1, 1]} : vector<10x10x8xbf16> to vector<8x8x8xbf16>
    %22 = vector.shape_cast %21 : vector<8x8x8xbf16> to vector<64x8xbf16>
    %c3 = arith.constant 3 : index
    %c0_13 = arith.constant 0 : index
    %c0_14 = arith.constant 0 : index
    %23 = vector.load %arg2[%c3, %c0_13, %c0_14] : memref<9x8x16xbf16, #tpu.memory_space<vmem>>, vector<1x8x16xbf16>
    %24 = vector.shape_cast %23 : vector<1x8x16xbf16> to vector<8x16xbf16>
    %cst_15 = arith.constant dense<0.000000e+00> : vector<64x16xf32>
    %25 = tpu.matmul %22, %24, %cst_15 {dimension_numbers = #tpu.dot_dimension_numbers<[1], [0], [0], [1], [0, 0, 1, 1], [], []>} : vector<64x8xbf16>, vector<8x16xbf16>, vector<64x16xf32> -> vector<64x16xf32>
    %26 = arith.addf %20, %25 : vector<64x16xf32>
    %27 = vector.extract_strided_slice %1 {offsets = [1, 1, 0], sizes = [8, 8, 8], strides = [1, 1, 1]} : vector<10x10x8xbf16> to vector<8x8x8xbf16>
    %28 = vector.shape_cast %27 : vector<8x8x8xbf16> to vector<64x8xbf16>
    %c4 = arith.constant 4 : index
    %c0_16 = arith.constant 0 : index
    %c0_17 = arith.constant 0 : index
    %29 = vector.load %arg2[%c4, %c0_16, %c0_17] : memref<9x8x16xbf16, #tpu.memory_space<vmem>>, vector<1x8x16xbf16>
    %30 = vector.shape_cast %29 : vector<1x8x16xbf16> to vector<8x16xbf16>
    %cst_18 = arith.constant dense<0.000000e+00> : vector<64x16xf32>
    %31 = tpu.matmul %28, %30, %cst_18 {dimension_numbers = #tpu.dot_dimension_numbers<[1], [0], [0], [1], [0, 0, 1, 1], [], []>} : vector<64x8xbf16>, vector<8x16xbf16>, vector<64x16xf32> -> vector<64x16xf32>
    %32 = arith.addf %26, %31 : vector<64x16xf32>
    %33 = vector.extract_strided_slice %1 {offsets = [1, 2, 0], sizes = [8, 8, 8], strides = [1, 1, 1]} : vector<10x10x8xbf16> to vector<8x8x8xbf16>
    %34 = vector.shape_cast %33 : vector<8x8x8xbf16> to vector<64x8xbf16>
    %c5 = arith.constant 5 : index
    %c0_19 = arith.constant 0 : index
    %c0_20 = arith.constant 0 : index
    %35 = vector.load %arg2[%c5, %c0_19, %c0_20] : memref<9x8x16xbf16, #tpu.memory_space<vmem>>, vector<1x8x16xbf16>
    %36 = vector.shape_cast %35 : vector<1x8x16xbf16> to vector<8x16xbf16>
    %cst_21 = arith.constant dense<0.000000e+00> : vector<64x16xf32>
    %37 = tpu.matmul %34, %36, %cst_21 {dimension_numbers = #tpu.dot_dimension_numbers<[1], [0], [0], [1], [0, 0, 1, 1], [], []>} : vector<64x8xbf16>, vector<8x16xbf16>, vector<64x16xf32> -> vector<64x16xf32>
    %38 = arith.addf %32, %37 : vector<64x16xf32>
    %39 = vector.extract_strided_slice %1 {offsets = [2, 0, 0], sizes = [8, 8, 8], strides = [1, 1, 1]} : vector<10x10x8xbf16> to vector<8x8x8xbf16>
    %40 = vector.shape_cast %39 : vector<8x8x8xbf16> to vector<64x8xbf16>
    %c6 = arith.constant 6 : index
    %c0_22 = arith.constant 0 : index
    %c0_23 = arith.constant 0 : index
    %41 = vector.load %arg2[%c6, %c0_22, %c0_23] : memref<9x8x16xbf16, #tpu.memory_space<vmem>>, vector<1x8x16xbf16>
    %42 = vector.shape_cast %41 : vector<1x8x16xbf16> to vector<8x16xbf16>
    %cst_24 = arith.constant dense<0.000000e+00> : vector<64x16xf32>
    %43 = tpu.matmul %40, %42, %cst_24 {dimension_numbers = #tpu.dot_dimension_numbers<[1], [0], [0], [1], [0, 0, 1, 1], [], []>} : vector<64x8xbf16>, vector<8x16xbf16>, vector<64x16xf32> -> vector<64x16xf32>
    %44 = arith.addf %38, %43 : vector<64x16xf32>
    %45 = vector.extract_strided_slice %1 {offsets = [2, 1, 0], sizes = [8, 8, 8], strides = [1, 1, 1]} : vector<10x10x8xbf16> to vector<8x8x8xbf16>
    %46 = vector.shape_cast %45 : vector<8x8x8xbf16> to vector<64x8xbf16>
    %c7 = arith.constant 7 : index
    %c0_25 = arith.constant 0 : index
    %c0_26 = arith.constant 0 : index
    %47 = vector.load %arg2[%c7, %c0_25, %c0_26] : memref<9x8x16xbf16, #tpu.memory_space<vmem>>, vector<1x8x16xbf16>
    %48 = vector.shape_cast %47 : vector<1x8x16xbf16> to vector<8x16xbf16>
    %cst_27 = arith.constant dense<0.000000e+00> : vector<64x16xf32>
    %49 = tpu.matmul %46, %48, %cst_27 {dimension_numbers = #tpu.dot_dimension_numbers<[1], [0], [0], [1], [0, 0, 1, 1], [], []>} : vector<64x8xbf16>, vector<8x16xbf16>, vector<64x16xf32> -> vector<64x16xf32>
    %50 = arith.addf %44, %49 : vector<64x16xf32>
    %51 = vector.extract_strided_slice %1 {offsets = [2, 2, 0], sizes = [8, 8, 8], strides = [1, 1, 1]} : vector<10x10x8xbf16> to vector<8x8x8xbf16>
    %52 = vector.shape_cast %51 : vector<8x8x8xbf16> to vector<64x8xbf16>
    %c8 = arith.constant 8 : index
    %c0_28 = arith.constant 0 : index
    %c0_29 = arith.constant 0 : index
    %53 = vector.load %arg2[%c8, %c0_28, %c0_29] : memref<9x8x16xbf16, #tpu.memory_space<vmem>>, vector<1x8x16xbf16>
    %54 = vector.shape_cast %53 : vector<1x8x16xbf16> to vector<8x16xbf16>
    %cst_30 = arith.constant dense<0.000000e+00> : vector<64x16xf32>
    %55 = tpu.matmul %52, %54, %cst_30 {dimension_numbers = #tpu.dot_dimension_numbers<[1], [0], [0], [1], [0, 0, 1, 1], [], []>} : vector<64x8xbf16>, vector<8x16xbf16>, vector<64x16xf32> -> vector<64x16xf32>
    %56 = arith.addf %50, %55 : vector<64x16xf32>
    %57 = arith.truncf %56 : vector<64x16xf32> to vector<64x16xbf16>
    %c0_31 = arith.constant 0 : index
    %c0_32 = arith.constant 0 : index
    %58 = vector.load %arg5[%c0_31, %c0_32] : memref<64x16xbf16, #tpu.memory_space<vmem>>, vector<64x16xbf16>
    tpu.vector_store %arg5[%c0_31, %c0_32], %57 {strides = array<i32>} : memref<64x16xbf16, #tpu.memory_space<vmem>>, vector<64x16xbf16>,
    %59 = vector.shape_cast %56 : vector<64x16xf32> to vector<8x8x16xf32>
    %cst_33 = arith.constant dense<0.000000e+00> : vector<8x16xf32>
    %60 = vector.multi_reduction <add>, %59, %cst_33 [0] : vector<8x8x16xf32> to vector<8x16xf32>
    %c0_34 = arith.constant 0 : index
    %c0_35 = arith.constant 0 : index
    %61 = vector.load %arg6[%c0_34, %c0_35] : memref<8x16xf32, #tpu.memory_space<vmem>>, vector<8x16xf32>
    tpu.vector_store %arg6[%c0_34, %c0_35], %60 {strides = array<i32>} : memref<8x16xf32, #tpu.memory_space<vmem>>, vector<8x16xf32>,
    %62 = arith.mulf %56, %56 : vector<64x16xf32>
    %63 = vector.shape_cast %62 : vector<64x16xf32> to vector<8x8x16xf32>
    %cst_36 = arith.constant dense<0.000000e+00> : vector<8x16xf32>
    %64 = vector.multi_reduction <add>, %63, %cst_36 [0] : vector<8x8x16xf32> to vector<8x16xf32>
    %c0_37 = arith.constant 0 : index
    %c0_38 = arith.constant 0 : index
    %65 = vector.load %arg7[%c0_37, %c0_38] : memref<8x16xf32, #tpu.memory_space<vmem>>, vector<8x16xf32>
    tpu.vector_store %arg7[%c0_37, %c0_38], %64 {strides = array<i32>} : memref<8x16xf32, #tpu.memory_space<vmem>>, vector<8x16xf32>,
    return
  }
  func.func @transform_0(%arg0: i32) -> (i32, i32, i32, i32) {
    %c0_i32 = arith.constant 0 : i32
    %c0_i32_0 = arith.constant 0 : i32
    %c0_i32_1 = arith.constant 0 : i32
    %c0_i32_2 = arith.constant 0 : i32
    return %arg0, %c0_i32, %c0_i32_0, %c0_i32_1 : i32, i32, i32, i32
  }
  func.func @transform_1(%arg0: i32) -> (i32, i32, i32) {
    %c0_i32 = arith.constant 0 : i32
    %c0_i32_0 = arith.constant 0 : i32
    %c0_i32_1 = arith.constant 0 : i32
    %c0_i32_2 = arith.constant 0 : i32
    return %c0_i32, %c0_i32_0, %c0_i32_1 : i32, i32, i32
  }
  func.func @transform_2(%arg0: i32) -> (i32, i32) {
    %c0_i32 = arith.constant 0 : i32
    %c0_i32_0 = arith.constant 0 : i32
    %c0_i32_1 = arith.constant 0 : i32
    return %c0_i32, %c0_i32_0 : i32, i32
  }
  func.func @transform_3(%arg0: i32) -> (i32, i32) {
    %c0_i32 = arith.constant 0 : i32
    %c0_i32_0 = arith.constant 0 : i32
    %c0_i32_1 = arith.constant 0 : i32
    return %c0_i32, %c0_i32_0 : i32, i32
  }
  func.func @transform_4(%arg0: i32) -> (i32, i32) {
    %c0_i32 = arith.constant 0 : i32
    %c0_i32_0 = arith.constant 0 : i32
    return %arg0, %c0_i32 : i32, i32
  }
  func.func @transform_5(%arg0: i32) -> (i32, i32) {
    %c0_i32 = arith.constant 0 : i32
    %c0_i32_0 = arith.constant 0 : i32
    return %arg0, %c0_i32 : i32, i32
  }
  func.func @transform_6(%arg0: i32) -> (i32, i32) {
    %c0_i32 = arith.constant 0 : i32
    %c0_i32_0 = arith.constant 0 : i32
    return %arg0, %c0_i32 : i32, i32
  }
}

module attributes {stable_mosaic.version = 11 : i64} {
  func.func @_skip_cat_kernel(%arg0: i32, %arg1: memref<256x4xbf16, #tpu.memory_space<vmem>>, %arg2: memref<256x4xbf16, #tpu.memory_space<vmem>>, %arg3: memref<4x4xbf16, #tpu.memory_space<vmem>>, %arg4: memref<256x8xbf16, #tpu.memory_space<vmem>>, %arg5: memref<8x4xf32, #tpu.memory_space<vmem>>, %arg6: memref<8x4xf32, #tpu.memory_space<vmem>>) attributes {dimension_semantics = [#tpu.dimension_semantics<parallel>], iteration_bounds = array<i64: 2>, scalar_prefetch = 0 : i64, scratch_operands = 0 : i64, tpu.core_type = #tpu.core_type<tc>, window_params = [{transform_indices = @transform_0, window_bounds = array<i64: 256, 4>}, {transform_indices = @transform_1, window_bounds = array<i64: 256, 4>}, {pipeline_mode = #tpu.pipeline_mode<synchronous>, transform_indices = @transform_2, window_bounds = array<i64: 4, 4>}, {transform_indices = @transform_3, window_bounds = array<i64: 256, 8>}, {transform_indices = @transform_4, window_bounds = array<i64: 8, 4>}, {transform_indices = @transform_5, window_bounds = array<i64: 8, 4>}]} {
    %c0 = arith.constant 0 : index
    %c0_0 = arith.constant 0 : index
    %0 = vector.load %arg2[%c0, %c0_0] : memref<256x4xbf16, #tpu.memory_space<vmem>>, vector<256x4xbf16>
    %c0_1 = arith.constant 0 : index
    %c0_2 = arith.constant 0 : index
    %1 = vector.load %arg3[%c0_1, %c0_2] : memref<4x4xbf16, #tpu.memory_space<vmem>>, vector<4x4xbf16>
    %cst = arith.constant dense<0.000000e+00> : vector<256x4xf32>
    %2 = tpu.matmul %0, %1, %cst {dimension_numbers = #tpu.dot_dimension_numbers<[1], [0], [0], [1], [0, 0, 1, 1], [], []>} : vector<256x4xbf16>, vector<4x4xbf16>, vector<256x4xf32> -> vector<256x4xf32>
    %c0_3 = arith.constant 0 : index
    %c0_4 = arith.constant 0 : index
    %3 = vector.load %arg1[%c0_3, %c0_4] : memref<256x4xbf16, #tpu.memory_space<vmem>>, vector<256x4xbf16>
    %4 = arith.truncf %2 : vector<256x4xf32> to vector<256x4xbf16>
    %5 = tpu.concatenate %3, %4 in 1 : vector<256x4xbf16>, vector<256x4xbf16> -> vector<256x8xbf16>
    %c0_5 = arith.constant 0 : index
    %c0_6 = arith.constant 0 : index
    %6 = vector.load %arg4[%c0_5, %c0_6] : memref<256x8xbf16, #tpu.memory_space<vmem>>, vector<256x8xbf16>
    tpu.vector_store %arg4[%c0_5, %c0_6], %5 {strides = array<i32>} : memref<256x8xbf16, #tpu.memory_space<vmem>>, vector<256x8xbf16>,
    %7 = vector.shape_cast %2 : vector<256x4xf32> to vector<32x8x4xf32>
    %cst_7 = arith.constant dense<0.000000e+00> : vector<8x4xf32>
    %8 = vector.multi_reduction <add>, %7, %cst_7 [0] : vector<32x8x4xf32> to vector<8x4xf32>
    %c0_8 = arith.constant 0 : index
    %c0_9 = arith.constant 0 : index
    %9 = vector.load %arg5[%c0_8, %c0_9] : memref<8x4xf32, #tpu.memory_space<vmem>>, vector<8x4xf32>
    tpu.vector_store %arg5[%c0_8, %c0_9], %8 {strides = array<i32>} : memref<8x4xf32, #tpu.memory_space<vmem>>, vector<8x4xf32>,
    %10 = arith.mulf %2, %2 : vector<256x4xf32>
    %11 = vector.shape_cast %10 : vector<256x4xf32> to vector<32x8x4xf32>
    %cst_10 = arith.constant dense<0.000000e+00> : vector<8x4xf32>
    %12 = vector.multi_reduction <add>, %11, %cst_10 [0] : vector<32x8x4xf32> to vector<8x4xf32>
    %c0_11 = arith.constant 0 : index
    %c0_12 = arith.constant 0 : index
    %13 = vector.load %arg6[%c0_11, %c0_12] : memref<8x4xf32, #tpu.memory_space<vmem>>, vector<8x4xf32>
    tpu.vector_store %arg6[%c0_11, %c0_12], %12 {strides = array<i32>} : memref<8x4xf32, #tpu.memory_space<vmem>>, vector<8x4xf32>,
    return
  }
  func.func @transform_0(%arg0: i32) -> (i32, i32) {
    %c0_i32 = arith.constant 0 : i32
    %c0_i32_0 = arith.constant 0 : i32
    return %arg0, %c0_i32 : i32, i32
  }
  func.func @transform_1(%arg0: i32) -> (i32, i32) {
    %c0_i32 = arith.constant 0 : i32
    %c0_i32_0 = arith.constant 0 : i32
    return %arg0, %c0_i32 : i32, i32
  }
  func.func @transform_2(%arg0: i32) -> (i32, i32) {
    %c0_i32 = arith.constant 0 : i32
    %c0_i32_0 = arith.constant 0 : i32
    %c0_i32_1 = arith.constant 0 : i32
    return %c0_i32, %c0_i32_0 : i32, i32
  }
  func.func @transform_3(%arg0: i32) -> (i32, i32) {
    %c0_i32 = arith.constant 0 : i32
    %c0_i32_0 = arith.constant 0 : i32
    return %arg0, %c0_i32 : i32, i32
  }
  func.func @transform_4(%arg0: i32) -> (i32, i32) {
    %c0_i32 = arith.constant 0 : i32
    %c0_i32_0 = arith.constant 0 : i32
    return %arg0, %c0_i32 : i32, i32
  }
  func.func @transform_5(%arg0: i32) -> (i32, i32) {
    %c0_i32 = arith.constant 0 : i32
    %c0_i32_0 = arith.constant 0 : i32
    return %arg0, %c0_i32 : i32, i32
  }
}

module attributes {stable_mosaic.version = 11 : i64} {
  func.func @_conv_taps_kernel(%arg0: i32, %arg1: memref<1x18x18x8xbf16, #tpu.memory_space<vmem>>, %arg2: memref<9x8x4xbf16, #tpu.memory_space<vmem>>, %arg3: memref<1x8xf32, #tpu.memory_space<vmem>>, %arg4: memref<1x8xf32, #tpu.memory_space<vmem>>, %arg5: memref<256x4xbf16, #tpu.memory_space<vmem>>, %arg6: memref<8x4xf32, #tpu.memory_space<vmem>>, %arg7: memref<8x4xf32, #tpu.memory_space<vmem>>) attributes {dimension_semantics = [#tpu.dimension_semantics<parallel>], iteration_bounds = array<i64: 2>, scalar_prefetch = 0 : i64, scratch_operands = 0 : i64, tpu.core_type = #tpu.core_type<tc>, window_params = [{transform_indices = @transform_0, window_bounds = array<i64: 1, 18, 18, 8>}, {pipeline_mode = #tpu.pipeline_mode<synchronous>, transform_indices = @transform_1, window_bounds = array<i64: 9, 8, 4>}, {pipeline_mode = #tpu.pipeline_mode<synchronous>, transform_indices = @transform_2, window_bounds = array<i64: 1, 8>}, {pipeline_mode = #tpu.pipeline_mode<synchronous>, transform_indices = @transform_3, window_bounds = array<i64: 1, 8>}, {transform_indices = @transform_4, window_bounds = array<i64: 256, 4>}, {transform_indices = @transform_5, window_bounds = array<i64: 8, 4>}, {transform_indices = @transform_6, window_bounds = array<i64: 8, 4>}]} {
    %c0 = arith.constant 0 : index
    %c0_0 = arith.constant 0 : index
    %c0_1 = arith.constant 0 : index
    %c0_2 = arith.constant 0 : index
    %0 = vector.load %arg1[%c0, %c0_0, %c0_1, %c0_2] : memref<1x18x18x8xbf16, #tpu.memory_space<vmem>>, vector<1x18x18x8xbf16>
    %1 = vector.shape_cast %0 : vector<1x18x18x8xbf16> to vector<18x18x8xbf16>
    %c0_3 = arith.constant 0 : index
    %c0_4 = arith.constant 0 : index
    %2 = vector.load %arg3[%c0_3, %c0_4] : memref<1x8xf32, #tpu.memory_space<vmem>>, vector<1x8xf32>
    %3 = vector.shape_cast %2 : vector<1x8xf32> to vector<1x1x8xf32>
    %c0_5 = arith.constant 0 : index
    %c0_6 = arith.constant 0 : index
    %4 = vector.load %arg4[%c0_5, %c0_6] : memref<1x8xf32, #tpu.memory_space<vmem>>, vector<1x8xf32>
    %5 = vector.shape_cast %4 : vector<1x8xf32> to vector<1x1x8xf32>
    %6 = arith.extf %1 : vector<18x18x8xbf16> to vector<18x18x8xf32>
    %7 = vector.broadcast %3 : vector<1x1x8xf32> to vector<18x18x8xf32>
    %8 = arith.mulf %6, %7 : vector<18x18x8xf32>
    %9 = vector.broadcast %5 : vector<1x1x8xf32> to vector<18x18x8xf32>
    %10 = arith.addf %8, %9 : vector<18x18x8xf32>
    %cst = arith.constant 0.000000e+00 : f32
    %11 = vector.broadcast %cst : f32 to vector<18x18x8xf32>
    %12 = arith.maximumf %10, %11 : vector<18x18x8xf32>
    %13 = arith.truncf %12 : vector<18x18x8xf32> to vector<18x18x8xbf16>
    %cst_7 = arith.constant 0.000000e+00 : f32
    %14 = vector.broadcast %cst_7 : f32 to vector<256x4xf32>
    %15 = vector.extract_strided_slice %13 {offsets = [0, 0, 0], sizes = [16, 16, 8], strides = [1, 1, 1]} : vector<18x18x8xbf16> to vector<16x16x8xbf16>
    %16 = vector.shape_cast %15 : vector<16x16x8xbf16> to vector<256x8xbf16>
    %c0_8 = arith.constant 0 : index
    %c0_9 = arith.constant 0 : index
    %c0_10 = arith.constant 0 : index
    %17 = vector.load %arg2[%c0_8, %c0_9, %c0_10] : memref<9x8x4xbf16, #tpu.memory_space<vmem>>, vector<1x8x4xbf16>
    %18 = vector.shape_cast %17 : vector<1x8x4xbf16> to vector<8x4xbf16>
    %cst_11 = arith.constant dense<0.000000e+00> : vector<256x4xf32>
    %19 = tpu.matmul %16, %18, %cst_11 {dimension_numbers = #tpu.dot_dimension_numbers<[1], [0], [0], [1], [0, 0, 1, 1], [], []>} : vector<256x8xbf16>, vector<8x4xbf16>, vector<256x4xf32> -> vector<256x4xf32>
    %20 = arith.addf %14, %19 : vector<256x4xf32>
    %21 = vector.extract_strided_slice %13 {offsets = [0, 1, 0], sizes = [16, 16, 8], strides = [1, 1, 1]} : vector<18x18x8xbf16> to vector<16x16x8xbf16>
    %22 = vector.shape_cast %21 : vector<16x16x8xbf16> to vector<256x8xbf16>
    %c1 = arith.constant 1 : index
    %c0_12 = arith.constant 0 : index
    %c0_13 = arith.constant 0 : index
    %23 = vector.load %arg2[%c1, %c0_12, %c0_13] : memref<9x8x4xbf16, #tpu.memory_space<vmem>>, vector<1x8x4xbf16>
    %24 = vector.shape_cast %23 : vector<1x8x4xbf16> to vector<8x4xbf16>
    %cst_14 = arith.constant dense<0.000000e+00> : vector<256x4xf32>
    %25 = tpu.matmul %22, %24, %cst_14 {dimension_numbers = #tpu.dot_dimension_numbers<[1], [0], [0], [1], [0, 0, 1, 1], [], []>} : vector<256x8xbf16>, vector<8x4xbf16>, vector<256x4xf32> -> vector<256x4xf32>
    %26 = arith.addf %20, %25 : vector<256x4xf32>
    %27 = vector.extract_strided_slice %13 {offsets = [0, 2, 0], sizes = [16, 16, 8], strides = [1, 1, 1]} : vector<18x18x8xbf16> to vector<16x16x8xbf16>
    %28 = vector.shape_cast %27 : vector<16x16x8xbf16> to vector<256x8xbf16>
    %c2 = arith.constant 2 : index
    %c0_15 = arith.constant 0 : index
    %c0_16 = arith.constant 0 : index
    %29 = vector.load %arg2[%c2, %c0_15, %c0_16] : memref<9x8x4xbf16, #tpu.memory_space<vmem>>, vector<1x8x4xbf16>
    %30 = vector.shape_cast %29 : vector<1x8x4xbf16> to vector<8x4xbf16>
    %cst_17 = arith.constant dense<0.000000e+00> : vector<256x4xf32>
    %31 = tpu.matmul %28, %30, %cst_17 {dimension_numbers = #tpu.dot_dimension_numbers<[1], [0], [0], [1], [0, 0, 1, 1], [], []>} : vector<256x8xbf16>, vector<8x4xbf16>, vector<256x4xf32> -> vector<256x4xf32>
    %32 = arith.addf %26, %31 : vector<256x4xf32>
    %33 = vector.extract_strided_slice %13 {offsets = [1, 0, 0], sizes = [16, 16, 8], strides = [1, 1, 1]} : vector<18x18x8xbf16> to vector<16x16x8xbf16>
    %34 = vector.shape_cast %33 : vector<16x16x8xbf16> to vector<256x8xbf16>
    %c3 = arith.constant 3 : index
    %c0_18 = arith.constant 0 : index
    %c0_19 = arith.constant 0 : index
    %35 = vector.load %arg2[%c3, %c0_18, %c0_19] : memref<9x8x4xbf16, #tpu.memory_space<vmem>>, vector<1x8x4xbf16>
    %36 = vector.shape_cast %35 : vector<1x8x4xbf16> to vector<8x4xbf16>
    %cst_20 = arith.constant dense<0.000000e+00> : vector<256x4xf32>
    %37 = tpu.matmul %34, %36, %cst_20 {dimension_numbers = #tpu.dot_dimension_numbers<[1], [0], [0], [1], [0, 0, 1, 1], [], []>} : vector<256x8xbf16>, vector<8x4xbf16>, vector<256x4xf32> -> vector<256x4xf32>
    %38 = arith.addf %32, %37 : vector<256x4xf32>
    %39 = vector.extract_strided_slice %13 {offsets = [1, 1, 0], sizes = [16, 16, 8], strides = [1, 1, 1]} : vector<18x18x8xbf16> to vector<16x16x8xbf16>
    %40 = vector.shape_cast %39 : vector<16x16x8xbf16> to vector<256x8xbf16>
    %c4 = arith.constant 4 : index
    %c0_21 = arith.constant 0 : index
    %c0_22 = arith.constant 0 : index
    %41 = vector.load %arg2[%c4, %c0_21, %c0_22] : memref<9x8x4xbf16, #tpu.memory_space<vmem>>, vector<1x8x4xbf16>
    %42 = vector.shape_cast %41 : vector<1x8x4xbf16> to vector<8x4xbf16>
    %cst_23 = arith.constant dense<0.000000e+00> : vector<256x4xf32>
    %43 = tpu.matmul %40, %42, %cst_23 {dimension_numbers = #tpu.dot_dimension_numbers<[1], [0], [0], [1], [0, 0, 1, 1], [], []>} : vector<256x8xbf16>, vector<8x4xbf16>, vector<256x4xf32> -> vector<256x4xf32>
    %44 = arith.addf %38, %43 : vector<256x4xf32>
    %45 = vector.extract_strided_slice %13 {offsets = [1, 2, 0], sizes = [16, 16, 8], strides = [1, 1, 1]} : vector<18x18x8xbf16> to vector<16x16x8xbf16>
    %46 = vector.shape_cast %45 : vector<16x16x8xbf16> to vector<256x8xbf16>
    %c5 = arith.constant 5 : index
    %c0_24 = arith.constant 0 : index
    %c0_25 = arith.constant 0 : index
    %47 = vector.load %arg2[%c5, %c0_24, %c0_25] : memref<9x8x4xbf16, #tpu.memory_space<vmem>>, vector<1x8x4xbf16>
    %48 = vector.shape_cast %47 : vector<1x8x4xbf16> to vector<8x4xbf16>
    %cst_26 = arith.constant dense<0.000000e+00> : vector<256x4xf32>
    %49 = tpu.matmul %46, %48, %cst_26 {dimension_numbers = #tpu.dot_dimension_numbers<[1], [0], [0], [1], [0, 0, 1, 1], [], []>} : vector<256x8xbf16>, vector<8x4xbf16>, vector<256x4xf32> -> vector<256x4xf32>
    %50 = arith.addf %44, %49 : vector<256x4xf32>
    %51 = vector.extract_strided_slice %13 {offsets = [2, 0, 0], sizes = [16, 16, 8], strides = [1, 1, 1]} : vector<18x18x8xbf16> to vector<16x16x8xbf16>
    %52 = vector.shape_cast %51 : vector<16x16x8xbf16> to vector<256x8xbf16>
    %c6 = arith.constant 6 : index
    %c0_27 = arith.constant 0 : index
    %c0_28 = arith.constant 0 : index
    %53 = vector.load %arg2[%c6, %c0_27, %c0_28] : memref<9x8x4xbf16, #tpu.memory_space<vmem>>, vector<1x8x4xbf16>
    %54 = vector.shape_cast %53 : vector<1x8x4xbf16> to vector<8x4xbf16>
    %cst_29 = arith.constant dense<0.000000e+00> : vector<256x4xf32>
    %55 = tpu.matmul %52, %54, %cst_29 {dimension_numbers = #tpu.dot_dimension_numbers<[1], [0], [0], [1], [0, 0, 1, 1], [], []>} : vector<256x8xbf16>, vector<8x4xbf16>, vector<256x4xf32> -> vector<256x4xf32>
    %56 = arith.addf %50, %55 : vector<256x4xf32>
    %57 = vector.extract_strided_slice %13 {offsets = [2, 1, 0], sizes = [16, 16, 8], strides = [1, 1, 1]} : vector<18x18x8xbf16> to vector<16x16x8xbf16>
    %58 = vector.shape_cast %57 : vector<16x16x8xbf16> to vector<256x8xbf16>
    %c7 = arith.constant 7 : index
    %c0_30 = arith.constant 0 : index
    %c0_31 = arith.constant 0 : index
    %59 = vector.load %arg2[%c7, %c0_30, %c0_31] : memref<9x8x4xbf16, #tpu.memory_space<vmem>>, vector<1x8x4xbf16>
    %60 = vector.shape_cast %59 : vector<1x8x4xbf16> to vector<8x4xbf16>
    %cst_32 = arith.constant dense<0.000000e+00> : vector<256x4xf32>
    %61 = tpu.matmul %58, %60, %cst_32 {dimension_numbers = #tpu.dot_dimension_numbers<[1], [0], [0], [1], [0, 0, 1, 1], [], []>} : vector<256x8xbf16>, vector<8x4xbf16>, vector<256x4xf32> -> vector<256x4xf32>
    %62 = arith.addf %56, %61 : vector<256x4xf32>
    %63 = vector.extract_strided_slice %13 {offsets = [2, 2, 0], sizes = [16, 16, 8], strides = [1, 1, 1]} : vector<18x18x8xbf16> to vector<16x16x8xbf16>
    %64 = vector.shape_cast %63 : vector<16x16x8xbf16> to vector<256x8xbf16>
    %c8 = arith.constant 8 : index
    %c0_33 = arith.constant 0 : index
    %c0_34 = arith.constant 0 : index
    %65 = vector.load %arg2[%c8, %c0_33, %c0_34] : memref<9x8x4xbf16, #tpu.memory_space<vmem>>, vector<1x8x4xbf16>
    %66 = vector.shape_cast %65 : vector<1x8x4xbf16> to vector<8x4xbf16>
    %cst_35 = arith.constant dense<0.000000e+00> : vector<256x4xf32>
    %67 = tpu.matmul %64, %66, %cst_35 {dimension_numbers = #tpu.dot_dimension_numbers<[1], [0], [0], [1], [0, 0, 1, 1], [], []>} : vector<256x8xbf16>, vector<8x4xbf16>, vector<256x4xf32> -> vector<256x4xf32>
    %68 = arith.addf %62, %67 : vector<256x4xf32>
    %69 = arith.truncf %68 : vector<256x4xf32> to vector<256x4xbf16>
    %c0_36 = arith.constant 0 : index
    %c0_37 = arith.constant 0 : index
    %70 = vector.load %arg5[%c0_36, %c0_37] : memref<256x4xbf16, #tpu.memory_space<vmem>>, vector<256x4xbf16>
    tpu.vector_store %arg5[%c0_36, %c0_37], %69 {strides = array<i32>} : memref<256x4xbf16, #tpu.memory_space<vmem>>, vector<256x4xbf16>,
    %71 = vector.shape_cast %68 : vector<256x4xf32> to vector<32x8x4xf32>
    %cst_38 = arith.constant dense<0.000000e+00> : vector<8x4xf32>
    %72 = vector.multi_reduction <add>, %71, %cst_38 [0] : vector<32x8x4xf32> to vector<8x4xf32>
    %c0_39 = arith.constant 0 : index
    %c0_40 = arith.constant 0 : index
    %73 = vector.load %arg6[%c0_39, %c0_40] : memref<8x4xf32, #tpu.memory_space<vmem>>, vector<8x4xf32>
    tpu.vector_store %arg6[%c0_39, %c0_40], %72 {strides = array<i32>} : memref<8x4xf32, #tpu.memory_space<vmem>>, vector<8x4xf32>,
    %74 = arith.mulf %68, %68 : vector<256x4xf32>
    %75 = vector.shape_cast %74 : vector<256x4xf32> to vector<32x8x4xf32>
    %cst_41 = arith.constant dense<0.000000e+00> : vector<8x4xf32>
    %76 = vector.multi_reduction <add>, %75, %cst_41 [0] : vector<32x8x4xf32> to vector<8x4xf32>
    %c0_42 = arith.constant 0 : index
    %c0_43 = arith.constant 0 : index
    %77 = vector.load %arg7[%c0_42, %c0_43] : memref<8x4xf32, #tpu.memory_space<vmem>>, vector<8x4xf32>
    tpu.vector_store %arg7[%c0_42, %c0_43], %76 {strides = array<i32>} : memref<8x4xf32, #tpu.memory_space<vmem>>, vector<8x4xf32>,
    return
  }
  func.func @transform_0(%arg0: i32) -> (i32, i32, i32, i32) {
    %c0_i32 = arith.constant 0 : i32
    %c0_i32_0 = arith.constant 0 : i32
    %c0_i32_1 = arith.constant 0 : i32
    %c0_i32_2 = arith.constant 0 : i32
    return %arg0, %c0_i32, %c0_i32_0, %c0_i32_1 : i32, i32, i32, i32
  }
  func.func @transform_1(%arg0: i32) -> (i32, i32, i32) {
    %c0_i32 = arith.constant 0 : i32
    %c0_i32_0 = arith.constant 0 : i32
    %c0_i32_1 = arith.constant 0 : i32
    %c0_i32_2 = arith.constant 0 : i32
    return %c0_i32, %c0_i32_0, %c0_i32_1 : i32, i32, i32
  }
  func.func @transform_2(%arg0: i32) -> (i32, i32) {
    %c0_i32 = arith.constant 0 : i32
    %c0_i32_0 = arith.constant 0 : i32
    %c0_i32_1 = arith.constant 0 : i32
    return %c0_i32, %c0_i32_0 : i32, i32
  }
  func.func @transform_3(%arg0: i32) -> (i32, i32) {
    %c0_i32 = arith.constant 0 : i32
    %c0_i32_0 = arith.constant 0 : i32
    %c0_i32_1 = arith.constant 0 : i32
    return %c0_i32, %c0_i32_0 : i32, i32
  }
  func.func @transform_4(%arg0: i32) -> (i32, i32) {
    %c0_i32 = arith.constant 0 : i32
    %c0_i32_0 = arith.constant 0 : i32
    return %arg0, %c0_i32 : i32, i32
  }
  func.func @transform_5(%arg0: i32) -> (i32, i32) {
    %c0_i32 = arith.constant 0 : i32
    %c0_i32_0 = arith.constant 0 : i32
    return %arg0, %c0_i32 : i32, i32
  }
  func.func @transform_6(%arg0: i32) -> (i32, i32) {
    %c0_i32 = arith.constant 0 : i32
    %c0_i32_0 = arith.constant 0 : i32
    return %arg0, %c0_i32 : i32, i32
  }
}

module attributes {stable_mosaic.version = 11 : i64} {
  func.func @_residual_bn_relu_kernel(%arg0: i32, %arg1: memref<256x4xbf16, #tpu.memory_space<vmem>>, %arg2: memref<256x4xf32, #tpu.memory_space<vmem>>, %arg3: memref<1x4xf32, #tpu.memory_space<vmem>>, %arg4: memref<1x4xf32, #tpu.memory_space<vmem>>, %arg5: memref<1x4xf32, #tpu.memory_space<vmem>>, %arg6: memref<1x4xf32, #tpu.memory_space<vmem>>, %arg7: memref<256x4xf32, #tpu.memory_space<vmem>>) attributes {dimension_semantics = [#tpu.dimension_semantics<parallel>], iteration_bounds = array<i64: 2>, scalar_prefetch = 0 : i64, scratch_operands = 0 : i64, tpu.core_type = #tpu.core_type<tc>, window_params = [{transform_indices = @transform_0, window_bounds = array<i64: 256, 4>}, {transform_indices = @transform_1, window_bounds = array<i64: 256, 4>}, {pipeline_mode = #tpu.pipeline_mode<synchronous>, transform_indices = @transform_2, window_bounds = array<i64: 1, 4>}, {pipeline_mode = #tpu.pipeline_mode<synchronous>, transform_indices = @transform_3, window_bounds = array<i64: 1, 4>}, {pipeline_mode = #tpu.pipeline_mode<synchronous>, transform_indices = @transform_4, window_bounds = array<i64: 1, 4>}, {pipeline_mode = #tpu.pipeline_mode<synchronous>, transform_indices = @transform_5, window_bounds = array<i64: 1, 4>}, {transform_indices = @transform_6, window_bounds = array<i64: 256, 4>}]} {
    %c0 = arith.constant 0 : index
    %c0_0 = arith.constant 0 : index
    %0 = vector.load %arg1[%c0, %c0_0] : memref<256x4xbf16, #tpu.memory_space<vmem>>, vector<256x4xbf16>
    %1 = arith.extf %0 : vector<256x4xbf16> to vector<256x4xf32>
    %c0_1 = arith.constant 0 : index
    %c0_2 = arith.constant 0 : index
    %2 = vector.load %arg2[%c0_1, %c0_2] : memref<256x4xf32, #tpu.memory_space<vmem>>, vector<256x4xf32>
    %c0_3 = arith.constant 0 : index
    %c0_4 = arith.constant 0 : index
    %3 = vector.load %arg3[%c0_3, %c0_4] : memref<1x4xf32, #tpu.memory_space<vmem>>, vector<1x4xf32>
    %4 = vector.broadcast %3 : vector<1x4xf32> to vector<256x4xf32>
    %5 = arith.mulf %1, %4 : vector<256x4xf32>
    %c0_5 = arith.constant 0 : index
    %c0_6 = arith.constant 0 : index
    %6 = vector.load %arg4[%c0_5, %c0_6] : memref<1x4xf32, #tpu.memory_space<vmem>>, vector<1x4xf32>
    %7 = vector.broadcast %6 : vector<1x4xf32> to vector<256x4xf32>
    %8 = arith.addf %5, %7 : vector<256x4xf32>
    %cst = arith.constant 0.000000e+00 : f32
    %9 = vector.broadcast %cst : f32 to vector<256x4xf32>
    %10 = arith.maximumf %8, %9 : vector<256x4xf32>
    %c0_7 = arith.constant 0 : index
    %c0_8 = arith.constant 0 : index
    %11 = vector.load %arg5[%c0_7, %c0_8] : memref<1x4xf32, #tpu.memory_space<vmem>>, vector<1x4xf32>
    %12 = vector.broadcast %11 : vector<1x4xf32> to vector<256x4xf32>
    %13 = arith.mulf %2, %12 : vector<256x4xf32>
    %c0_9 = arith.constant 0 : index
    %c0_10 = arith.constant 0 : index
    %14 = vector.load %arg6[%c0_9, %c0_10] : memref<1x4xf32, #tpu.memory_space<vmem>>, vector<1x4xf32>
    %15 = vector.broadcast %14 : vector<1x4xf32> to vector<256x4xf32>
    %16 = arith.addf %13, %15 : vector<256x4xf32>
    %cst_11 = arith.constant 0.000000e+00 : f32
    %17 = vector.broadcast %cst_11 : f32 to vector<256x4xf32>
    %18 = arith.maximumf %16, %17 : vector<256x4xf32>
    %19 = arith.addf %10, %18 : vector<256x4xf32>
    %c0_12 = arith.constant 0 : index
    %c0_13 = arith.constant 0 : index
    %20 = vector.load %arg7[%c0_12, %c0_13] : memref<256x4xf32, #tpu.memory_space<vmem>>, vector<256x4xf32>
    tpu.vector_store %arg7[%c0_12, %c0_13], %19 {strides = array<i32>} : memref<256x4xf32, #tpu.memory_space<vmem>>, vector<256x4xf32>,
    return
  }
  func.func @transform_0(%arg0: i32) -> (i32, i32) {
    %c0_i32 = arith.constant 0 : i32
    %c0_i32_0 = arith.constant 0 : i32
    return %arg0, %c0_i32 : i32, i32
  }
  func.func @transform_1(%arg0: i32) -> (i32, i32) {
    %c0_i32 = arith.constant 0 : i32
    %c0_i32_0 = arith.constant 0 : i32
    return %arg0, %c0_i32 : i32, i32
  }
  func.func @transform_2(%arg0: i32) -> (i32, i32) {
    %c0_i32 = arith.constant 0 : i32
    %c0_i32_0 = arith.constant 0 : i32
    %c0_i32_1 = arith.constant 0 : i32
    return %c0_i32, %c0_i32_0 : i32, i32
  }
  func.func @transform_3(%arg0: i32) -> (i32, i32) {
    %c0_i32 = arith.constant 0 : i32
    %c0_i32_0 = arith.constant 0 : i32
    %c0_i32_1 = arith.constant 0 : i32
    return %c0_i32, %c0_i32_0 : i32, i32
  }
  func.func @transform_4(%arg0: i32) -> (i32, i32) {
    %c0_i32 = arith.constant 0 : i32
    %c0_i32_0 = arith.constant 0 : i32
    %c0_i32_1 = arith.constant 0 : i32
    return %c0_i32, %c0_i32_0 : i32, i32
  }
  func.func @transform_5(%arg0: i32) -> (i32, i32) {
    %c0_i32 = arith.constant 0 : i32
    %c0_i32_0 = arith.constant 0 : i32
    %c0_i32_1 = arith.constant 0 : i32
    return %c0_i32, %c0_i32_0 : i32, i32
  }
  func.func @transform_6(%arg0: i32) -> (i32, i32) {
    %c0_i32 = arith.constant 0 : i32
    %c0_i32_0 = arith.constant 0 : i32
    return %arg0, %c0_i32 : i32, i32
  }
}

module attributes {stable_mosaic.version = 11 : i64} {
  func.func @_conv_taps_kernel(%arg0: i32, %arg1: memref<1x18x18x4xbf16, #tpu.memory_space<vmem>>, %arg2: memref<9x4x4xbf16, #tpu.memory_space<vmem>>, %arg3: memref<1x4xf32, #tpu.memory_space<vmem>>, %arg4: memref<1x4xf32, #tpu.memory_space<vmem>>, %arg5: memref<256x4xf32, #tpu.memory_space<vmem>>, %arg6: memref<8x4xf32, #tpu.memory_space<vmem>>, %arg7: memref<8x4xf32, #tpu.memory_space<vmem>>) attributes {dimension_semantics = [#tpu.dimension_semantics<parallel>], iteration_bounds = array<i64: 2>, scalar_prefetch = 0 : i64, scratch_operands = 0 : i64, tpu.core_type = #tpu.core_type<tc>, window_params = [{transform_indices = @transform_0, window_bounds = array<i64: 1, 18, 18, 4>}, {pipeline_mode = #tpu.pipeline_mode<synchronous>, transform_indices = @transform_1, window_bounds = array<i64: 9, 4, 4>}, {pipeline_mode = #tpu.pipeline_mode<synchronous>, transform_indices = @transform_2, window_bounds = array<i64: 1, 4>}, {pipeline_mode = #tpu.pipeline_mode<synchronous>, transform_indices = @transform_3, window_bounds = array<i64: 1, 4>}, {transform_indices = @transform_4, window_bounds = array<i64: 256, 4>}, {transform_indices = @transform_5, window_bounds = array<i64: 8, 4>}, {transform_indices = @transform_6, window_bounds = array<i64: 8, 4>}]} {
    %c0 = arith.constant 0 : index
    %c0_0 = arith.constant 0 : index
    %c0_1 = arith.constant 0 : index
    %c0_2 = arith.constant 0 : index
    %0 = vector.load %arg1[%c0, %c0_0, %c0_1, %c0_2] : memref<1x18x18x4xbf16, #tpu.memory_space<vmem>>, vector<1x18x18x4xbf16>
    %1 = vector.shape_cast %0 : vector<1x18x18x4xbf16> to vector<18x18x4xbf16>
    %c0_3 = arith.constant 0 : index
    %c0_4 = arith.constant 0 : index
    %2 = vector.load %arg3[%c0_3, %c0_4] : memref<1x4xf32, #tpu.memory_space<vmem>>, vector<1x4xf32>
    %3 = vector.shape_cast %2 : vector<1x4xf32> to vector<1x1x4xf32>
    %c0_5 = arith.constant 0 : index
    %c0_6 = arith.constant 0 : index
    %4 = vector.load %arg4[%c0_5, %c0_6] : memref<1x4xf32, #tpu.memory_space<vmem>>, vector<1x4xf32>
    %5 = vector.shape_cast %4 : vector<1x4xf32> to vector<1x1x4xf32>
    %6 = arith.extf %1 : vector<18x18x4xbf16> to vector<18x18x4xf32>
    %7 = vector.broadcast %3 : vector<1x1x4xf32> to vector<18x18x4xf32>
    %8 = arith.mulf %6, %7 : vector<18x18x4xf32>
    %9 = vector.broadcast %5 : vector<1x1x4xf32> to vector<18x18x4xf32>
    %10 = arith.addf %8, %9 : vector<18x18x4xf32>
    %cst = arith.constant 0.000000e+00 : f32
    %11 = vector.broadcast %cst : f32 to vector<18x18x4xf32>
    %12 = arith.maximumf %10, %11 : vector<18x18x4xf32>
    %13 = arith.truncf %12 : vector<18x18x4xf32> to vector<18x18x4xbf16>
    %cst_7 = arith.constant 0.000000e+00 : f32
    %14 = vector.broadcast %cst_7 : f32 to vector<256x4xf32>
    %15 = vector.extract_strided_slice %13 {offsets = [0, 0, 0], sizes = [16, 16, 4], strides = [1, 1, 1]} : vector<18x18x4xbf16> to vector<16x16x4xbf16>
    %16 = vector.shape_cast %15 : vector<16x16x4xbf16> to vector<256x4xbf16>
    %c0_8 = arith.constant 0 : index
    %c0_9 = arith.constant 0 : index
    %c0_10 = arith.constant 0 : index
    %17 = vector.load %arg2[%c0_8, %c0_9, %c0_10] : memref<9x4x4xbf16, #tpu.memory_space<vmem>>, vector<1x4x4xbf16>
    %18 = vector.shape_cast %17 : vector<1x4x4xbf16> to vector<4x4xbf16>
    %cst_11 = arith.constant dense<0.000000e+00> : vector<256x4xf32>
    %19 = tpu.matmul %16, %18, %cst_11 {dimension_numbers = #tpu.dot_dimension_numbers<[1], [0], [0], [1], [0, 0, 1, 1], [], []>} : vector<256x4xbf16>, vector<4x4xbf16>, vector<256x4xf32> -> vector<256x4xf32>
    %20 = arith.addf %14, %19 : vector<256x4xf32>
    %21 = vector.extract_strided_slice %13 {offsets = [0, 1, 0], sizes = [16, 16, 4], strides = [1, 1, 1]} : vector<18x18x4xbf16> to vector<16x16x4xbf16>
    %22 = vector.shape_cast %21 : vector<16x16x4xbf16> to vector<256x4xbf16>
    %c1 = arith.constant 1 : index
    %c0_12 = arith.constant 0 : index
    %c0_13 = arith.constant 0 : index
    %23 = vector.load %arg2[%c1, %c0_12, %c0_13] : memref<9x4x4xbf16, #tpu.memory_space<vmem>>, vector<1x4x4xbf16>
    %24 = vector.shape_cast %23 : vector<1x4x4xbf16> to vector<4x4xbf16>
    %cst_14 = arith.constant dense<0.000000e+00> : vector<256x4xf32>
    %25 = tpu.matmul %22, %24, %cst_14 {dimension_numbers = #tpu.dot_dimension_numbers<[1], [0], [0], [1], [0, 0, 1, 1], [], []>} : vector<256x4xbf16>, vector<4x4xbf16>, vector<256x4xf32> -> vector<256x4xf32>
    %26 = arith.addf %20, %25 : vector<256x4xf32>
    %27 = vector.extract_strided_slice %13 {offsets = [0, 2, 0], sizes = [16, 16, 4], strides = [1, 1, 1]} : vector<18x18x4xbf16> to vector<16x16x4xbf16>
    %28 = vector.shape_cast %27 : vector<16x16x4xbf16> to vector<256x4xbf16>
    %c2 = arith.constant 2 : index
    %c0_15 = arith.constant 0 : index
    %c0_16 = arith.constant 0 : index
    %29 = vector.load %arg2[%c2, %c0_15, %c0_16] : memref<9x4x4xbf16, #tpu.memory_space<vmem>>, vector<1x4x4xbf16>
    %30 = vector.shape_cast %29 : vector<1x4x4xbf16> to vector<4x4xbf16>
    %cst_17 = arith.constant dense<0.000000e+00> : vector<256x4xf32>
    %31 = tpu.matmul %28, %30, %cst_17 {dimension_numbers = #tpu.dot_dimension_numbers<[1], [0], [0], [1], [0, 0, 1, 1], [], []>} : vector<256x4xbf16>, vector<4x4xbf16>, vector<256x4xf32> -> vector<256x4xf32>
    %32 = arith.addf %26, %31 : vector<256x4xf32>
    %33 = vector.extract_strided_slice %13 {offsets = [1, 0, 0], sizes = [16, 16, 4], strides = [1, 1, 1]} : vector<18x18x4xbf16> to vector<16x16x4xbf16>
    %34 = vector.shape_cast %33 : vector<16x16x4xbf16> to vector<256x4xbf16>
    %c3 = arith.constant 3 : index
    %c0_18 = arith.constant 0 : index
    %c0_19 = arith.constant 0 : index
    %35 = vector.load %arg2[%c3, %c0_18, %c0_19] : memref<9x4x4xbf16, #tpu.memory_space<vmem>>, vector<1x4x4xbf16>
    %36 = vector.shape_cast %35 : vector<1x4x4xbf16> to vector<4x4xbf16>
    %cst_20 = arith.constant dense<0.000000e+00> : vector<256x4xf32>
    %37 = tpu.matmul %34, %36, %cst_20 {dimension_numbers = #tpu.dot_dimension_numbers<[1], [0], [0], [1], [0, 0, 1, 1], [], []>} : vector<256x4xbf16>, vector<4x4xbf16>, vector<256x4xf32> -> vector<256x4xf32>
    %38 = arith.addf %32, %37 : vector<256x4xf32>
    %39 = vector.extract_strided_slice %13 {offsets = [1, 1, 0], sizes = [16, 16, 4], strides = [1, 1, 1]} : vector<18x18x4xbf16> to vector<16x16x4xbf16>
    %40 = vector.shape_cast %39 : vector<16x16x4xbf16> to vector<256x4xbf16>
    %c4 = arith.constant 4 : index
    %c0_21 = arith.constant 0 : index
    %c0_22 = arith.constant 0 : index
    %41 = vector.load %arg2[%c4, %c0_21, %c0_22] : memref<9x4x4xbf16, #tpu.memory_space<vmem>>, vector<1x4x4xbf16>
    %42 = vector.shape_cast %41 : vector<1x4x4xbf16> to vector<4x4xbf16>
    %cst_23 = arith.constant dense<0.000000e+00> : vector<256x4xf32>
    %43 = tpu.matmul %40, %42, %cst_23 {dimension_numbers = #tpu.dot_dimension_numbers<[1], [0], [0], [1], [0, 0, 1, 1], [], []>} : vector<256x4xbf16>, vector<4x4xbf16>, vector<256x4xf32> -> vector<256x4xf32>
    %44 = arith.addf %38, %43 : vector<256x4xf32>
    %45 = vector.extract_strided_slice %13 {offsets = [1, 2, 0], sizes = [16, 16, 4], strides = [1, 1, 1]} : vector<18x18x4xbf16> to vector<16x16x4xbf16>
    %46 = vector.shape_cast %45 : vector<16x16x4xbf16> to vector<256x4xbf16>
    %c5 = arith.constant 5 : index
    %c0_24 = arith.constant 0 : index
    %c0_25 = arith.constant 0 : index
    %47 = vector.load %arg2[%c5, %c0_24, %c0_25] : memref<9x4x4xbf16, #tpu.memory_space<vmem>>, vector<1x4x4xbf16>
    %48 = vector.shape_cast %47 : vector<1x4x4xbf16> to vector<4x4xbf16>
    %cst_26 = arith.constant dense<0.000000e+00> : vector<256x4xf32>
    %49 = tpu.matmul %46, %48, %cst_26 {dimension_numbers = #tpu.dot_dimension_numbers<[1], [0], [0], [1], [0, 0, 1, 1], [], []>} : vector<256x4xbf16>, vector<4x4xbf16>, vector<256x4xf32> -> vector<256x4xf32>
    %50 = arith.addf %44, %49 : vector<256x4xf32>
    %51 = vector.extract_strided_slice %13 {offsets = [2, 0, 0], sizes = [16, 16, 4], strides = [1, 1, 1]} : vector<18x18x4xbf16> to vector<16x16x4xbf16>
    %52 = vector.shape_cast %51 : vector<16x16x4xbf16> to vector<256x4xbf16>
    %c6 = arith.constant 6 : index
    %c0_27 = arith.constant 0 : index
    %c0_28 = arith.constant 0 : index
    %53 = vector.load %arg2[%c6, %c0_27, %c0_28] : memref<9x4x4xbf16, #tpu.memory_space<vmem>>, vector<1x4x4xbf16>
    %54 = vector.shape_cast %53 : vector<1x4x4xbf16> to vector<4x4xbf16>
    %cst_29 = arith.constant dense<0.000000e+00> : vector<256x4xf32>
    %55 = tpu.matmul %52, %54, %cst_29 {dimension_numbers = #tpu.dot_dimension_numbers<[1], [0], [0], [1], [0, 0, 1, 1], [], []>} : vector<256x4xbf16>, vector<4x4xbf16>, vector<256x4xf32> -> vector<256x4xf32>
    %56 = arith.addf %50, %55 : vector<256x4xf32>
    %57 = vector.extract_strided_slice %13 {offsets = [2, 1, 0], sizes = [16, 16, 4], strides = [1, 1, 1]} : vector<18x18x4xbf16> to vector<16x16x4xbf16>
    %58 = vector.shape_cast %57 : vector<16x16x4xbf16> to vector<256x4xbf16>
    %c7 = arith.constant 7 : index
    %c0_30 = arith.constant 0 : index
    %c0_31 = arith.constant 0 : index
    %59 = vector.load %arg2[%c7, %c0_30, %c0_31] : memref<9x4x4xbf16, #tpu.memory_space<vmem>>, vector<1x4x4xbf16>
    %60 = vector.shape_cast %59 : vector<1x4x4xbf16> to vector<4x4xbf16>
    %cst_32 = arith.constant dense<0.000000e+00> : vector<256x4xf32>
    %61 = tpu.matmul %58, %60, %cst_32 {dimension_numbers = #tpu.dot_dimension_numbers<[1], [0], [0], [1], [0, 0, 1, 1], [], []>} : vector<256x4xbf16>, vector<4x4xbf16>, vector<256x4xf32> -> vector<256x4xf32>
    %62 = arith.addf %56, %61 : vector<256x4xf32>
    %63 = vector.extract_strided_slice %13 {offsets = [2, 2, 0], sizes = [16, 16, 4], strides = [1, 1, 1]} : vector<18x18x4xbf16> to vector<16x16x4xbf16>
    %64 = vector.shape_cast %63 : vector<16x16x4xbf16> to vector<256x4xbf16>
    %c8 = arith.constant 8 : index
    %c0_33 = arith.constant 0 : index
    %c0_34 = arith.constant 0 : index
    %65 = vector.load %arg2[%c8, %c0_33, %c0_34] : memref<9x4x4xbf16, #tpu.memory_space<vmem>>, vector<1x4x4xbf16>
    %66 = vector.shape_cast %65 : vector<1x4x4xbf16> to vector<4x4xbf16>
    %cst_35 = arith.constant dense<0.000000e+00> : vector<256x4xf32>
    %67 = tpu.matmul %64, %66, %cst_35 {dimension_numbers = #tpu.dot_dimension_numbers<[1], [0], [0], [1], [0, 0, 1, 1], [], []>} : vector<256x4xbf16>, vector<4x4xbf16>, vector<256x4xf32> -> vector<256x4xf32>
    %68 = arith.addf %62, %67 : vector<256x4xf32>
    %c0_36 = arith.constant 0 : index
    %c0_37 = arith.constant 0 : index
    %69 = vector.load %arg5[%c0_36, %c0_37] : memref<256x4xf32, #tpu.memory_space<vmem>>, vector<256x4xf32>
    tpu.vector_store %arg5[%c0_36, %c0_37], %68 {strides = array<i32>} : memref<256x4xf32, #tpu.memory_space<vmem>>, vector<256x4xf32>,
    %70 = vector.shape_cast %68 : vector<256x4xf32> to vector<32x8x4xf32>
    %cst_38 = arith.constant dense<0.000000e+00> : vector<8x4xf32>
    %71 = vector.multi_reduction <add>, %70, %cst_38 [0] : vector<32x8x4xf32> to vector<8x4xf32>
    %c0_39 = arith.constant 0 : index
    %c0_40 = arith.constant 0 : index
    %72 = vector.load %arg6[%c0_39, %c0_40] : memref<8x4xf32, #tpu.memory_space<vmem>>, vector<8x4xf32>
    tpu.vector_store %arg6[%c0_39, %c0_40], %71 {strides = array<i32>} : memref<8x4xf32, #tpu.memory_space<vmem>>, vector<8x4xf32>,
    %73 = arith.mulf %68, %68 : vector<256x4xf32>
    %74 = vector.shape_cast %73 : vector<256x4xf32> to vector<32x8x4xf32>
    %cst_41 = arith.constant dense<0.000000e+00> : vector<8x4xf32>
    %75 = vector.multi_reduction <add>, %74, %cst_41 [0] : vector<32x8x4xf32> to vector<8x4xf32>
    %c0_42 = arith.constant 0 : index
    %c0_43 = arith.constant 0 : index
    %76 = vector.load %arg7[%c0_42, %c0_43] : memref<8x4xf32, #tpu.memory_space<vmem>>, vector<8x4xf32>
    tpu.vector_store %arg7[%c0_42, %c0_43], %75 {strides = array<i32>} : memref<8x4xf32, #tpu.memory_space<vmem>>, vector<8x4xf32>,
    return
  }
  func.func @transform_0(%arg0: i32) -> (i32, i32, i32, i32) {
    %c0_i32 = arith.constant 0 : i32
    %c0_i32_0 = arith.constant 0 : i32
    %c0_i32_1 = arith.constant 0 : i32
    %c0_i32_2 = arith.constant 0 : i32
    return %arg0, %c0_i32, %c0_i32_0, %c0_i32_1 : i32, i32, i32, i32
  }
  func.func @transform_1(%arg0: i32) -> (i32, i32, i32) {
    %c0_i32 = arith.constant 0 : i32
    %c0_i32_0 = arith.constant 0 : i32
    %c0_i32_1 = arith.constant 0 : i32
    %c0_i32_2 = arith.constant 0 : i32
    return %c0_i32, %c0_i32_0, %c0_i32_1 : i32, i32, i32
  }
  func.func @transform_2(%arg0: i32) -> (i32, i32) {
    %c0_i32 = arith.constant 0 : i32
    %c0_i32_0 = arith.constant 0 : i32
    %c0_i32_1 = arith.constant 0 : i32
    return %c0_i32, %c0_i32_0 : i32, i32
  }
  func.func @transform_3(%arg0: i32) -> (i32, i32) {
    %c0_i32 = arith.constant 0 : i32
    %c0_i32_0 = arith.constant 0 : i32
    %c0_i32_1 = arith.constant 0 : i32
    return %c0_i32, %c0_i32_0 : i32, i32
  }
  func.func @transform_4(%arg0: i32) -> (i32, i32) {
    %c0_i32 = arith.constant 0 : i32
    %c0_i32_0 = arith.constant 0 : i32
    return %arg0, %c0_i32 : i32, i32
  }
  func.func @transform_5(%arg0: i32) -> (i32, i32) {
    %c0_i32 = arith.constant 0 : i32
    %c0_i32_0 = arith.constant 0 : i32
    return %arg0, %c0_i32 : i32, i32
  }
  func.func @transform_6(%arg0: i32) -> (i32, i32) {
    %c0_i32 = arith.constant 0 : i32
    %c0_i32_0 = arith.constant 0 : i32
    return %arg0, %c0_i32 : i32, i32
  }
}

</mosaic_0001>

<llo_original>
// kernel: upconvblock_forward.6
$region0: #{upconvblock_forward.6}
  #allocation0 [shape = 'u32[]', space=smem, size = 0x4, offset = 0x4, fixed_abs, tag = 'smem constant byte address 0x4 - core index']
  #allocation1 [shape = 'u32[144,128]{1,0:T(1,128)}', space=vmem, size = 0x12000, scoped, tag = 'internal scratch']
  %s0 = inlined_call_operand.vmem [shape: bf16[512,4], index: 0, kind: input, shape index: {}]
  %s1 = inlined_call_operand.vmem [shape: bf16[512,4], index: 1, kind: input, shape index: {}]
  %s2 = inlined_call_operand.vmem [shape: bf16[4,4], index: 2, kind: input, shape index: {}]
  %s3 = inlined_call_operand.vmem [shape: bf16[512,8], index: 3, kind: output, shape index: {0}]
  %s4 = inlined_call_operand.vmem [shape: f32[16,4], index: 4, kind: output, shape index: {1}]
  %s5 = inlined_call_operand.vmem [shape: f32[16,4], index: 5, kind: output, shape index: {2}]
  %6 = xla_tuple %s3, %s4, %s5
  %s7 = sld [smem:[#allocation0]]
  $region61: #{upconvblock_forward.6} parent=0
    _
  %s9 = ssub.s32 1, %s7
  %s10 = scalar_select 0, %s9, %s7
  loop: start=0, step=1, limit=4
  $region2: #{upconvblock_forward.6} parent=0 // loop_pre_header
    _
  $region3: #{upconvblock_forward.6} parent=0 // loop_header
    %s12 = sphi 0, %s16
    %p13 = scmp.ge.s32.totalorder %s12, 4
    %s22 = sphi 0, %s24
    %s25 = sphi 0, %s22
    %s26 = sphi 0, %s25
    %s42 = sphi 0, %s26
    %s48 = sphi 0, %s50
    %s51 = sphi 0, %s48
    %s52 = sphi 0, %s51
    %s68 = sphi 0, %s52
    %s72 = sphi 0, %s72
    %s74 = sphi 0, %s72
    %s75 = sphi 0, %s74
    %s89 = sphi 0, %s75
    %s95 = sphi 0, %s97
    %s98 = sphi 0, %s95
    %s99 = sphi 0, %s98
    %s115 = sphi 0, %s99
    %s121 = sphi 0, %s123
    %s124 = sphi 0, %s121
    %s125 = sphi 0, %s124
    %s141 = sphi 0, %s125
    %s147 = sphi 0, %s149
    %s150 = sphi 0, %s147
    %s151 = sphi 0, %s150
    %s167 = sphi 0, %s151
  $region4: #{upconvblock_forward.6} parent=0 // loop_header_branch
    %15 = sbr.rel (%p13) target = $region8
  $region5: #{upconvblock_forward.6} parent=0 // loop_body
    %s17 = ssub.s32 %s12, 1
    %s18 = ssub.s32 %s12, 2
    %s19 = sadd.s32 %s12, 1
    %s20 = ssub.s32 %s12, %s19
    %p21 = scmp.eq.s32.totalorder %s20, 0
    %s23 = sadd.s32 %s22, 1
    %s24 = scalar_select %p21, %s22, %s23
    %p27 = pneg %p21
    %p28 = scmp.eq.s32.totalorder %s12, 1
    %p29 = por %p27, %p28
    %p30 = scmp.ne.s32.totalorder %s22, %s25
    %p31 = scmp.eq.s32.totalorder %s12, 0
    %p32 = por %p30, %p31
    %p33 = scmp.ne.s32.totalorder %s22, %s25
    %p34 = scmp.eq.s32.totalorder %s17, 1
    %p35 = por %p33, %p34
    %p36 = scmp.ne.s32.totalorder %s25, %s26
    %p37 = scmp.eq.s32.totalorder %s17, 0
    %p38 = por %p36, %p37
    %p39 = scmp.ne.s32.totalorder %s25, %s26
    %p40 = scmp.eq.s32.totalorder %s18, 1
    %p41 = por %p39, %p40
    %p43 = scmp.ne.s32.totalorder %s26, %s42
    %p44 = scmp.eq.s32.totalorder %s18, 0
    %p45 = por %p43, %p44
    %s46 = ssub.s32 %s12, %s19
    %p47 = scmp.eq.s32.totalorder %s46, 0
    %s49 = sadd.s32 %s48, 1
    %s50 = scalar_select %p47, %s48, %s49
    %p53 = pneg %p47
    %p54 = scmp.eq.s32.totalorder %s12, 1
    %p55 = por %p53, %p54
    %p56 = scmp.ne.s32.totalorder %s48, %s51
    %p57 = scmp.eq.s32.totalorder %s12, 0
    %p58 = por %p56, %p57
    %p59 = scmp.ne.s32.totalorder %s48, %s51
    %p60 = scmp.eq.s32.totalorder %s17, 1
    %p61 = por %p59, %p60
    %p62 = scmp.ne.s32.totalorder %s51, %s52
    %p63 = scmp.eq.s32.totalorder %s17, 0
    %p64 = por %p62, %p63
    %p65 = scmp.ne.s32.totalorder %s51, %s52
    %p66 = scmp.eq.s32.totalorder %s18, 1
    %p67 = por %p65, %p66
    %p69 = scmp.ne.s32.totalorder %s52, %s68
    %p70 = scmp.eq.s32.totalorder %s18, 0
    %p71 = por %p69, %p70
    %s73 = sadd.s32 %s72, 1
    %p76 = scmp.eq.s32.totalorder %s12, 1
    %p77 = scmp.ne.s32.totalorder %s72, %s74
    %p78 = scmp.eq.s32.totalorder %s12, 0
    %p79 = por %p77, %p78
    %p80 = scmp.ne.s32.totalorder %s72, %s74
    %p81 = scmp.eq.s32.totalorder %s17, 1
    %p82 = por %p80, %p81
    %p83 = scmp.ne.s32.totalorder %s74, %s75
    %p84 = scmp.eq.s32.totalorder %s17, 0
    %p85 = por %p83, %p84
    %p86 = scmp.ne.s32.totalorder %s74, %s75
    %p87 = scmp.eq.s32.totalorder %s18, 1
    %p88 = por %p86, %p87
    %p90 = scmp.ne.s32.totalorder %s75, %s89
    %p91 = scmp.eq.s32.totalorder %s18, 0
    %p92 = por %p90, %p91
    %s93 = ssub.s32 %s12, %s19
    %p94 = scmp.eq.s32.totalorder %s93, 0
    %s96 = sadd.s32 %s95, 1
    %s97 = scalar_select %p94, %s95, %s96
    %p100 = pneg %p94
    %p101 = scmp.eq.s32.totalorder %s12, 1
    %p102 = por %p100, %p101
    %p103 = scmp.ne.s32.totalorder %s95, %s98
    %p104 = scmp.eq.s32.totalorder %s12, 0
    %p105 = por %p103, %p104
    %p106 = scmp.ne.s32.totalorder %s95, %s98
    %p107 = scmp.eq.s32.totalorder %s17, 1
    %p108 = por %p106, %p107
    %p109 = scmp.ne.s32.totalorder %s98, %s99
    %p110 = scmp.eq.s32.totalorder %s17, 0
    %p111 = por %p109, %p110
    %p112 = scmp.ne.s32.totalorder %s98, %s99
    %p113 = scmp.eq.s32.totalorder %s18, 1
    %p114 = por %p112, %p113
    %p116 = scmp.ne.s32.totalorder %s99, %s115
    %p117 = scmp.eq.s32.totalorder %s18, 0
    %p118 = por %p116, %p117
    %s119 = ssub.s32 %s12, %s19
    %p120 = scmp.eq.s32.totalorder %s119, 0
    %s122 = sadd.s32 %s121, 1
    %s123 = scalar_select %p120, %s121, %s122
    %p126 = pneg %p120
    %p127 = scmp.eq.s32.totalorder %s12, 1
    %p128 = por %p126, %p127
    %p129 = scmp.ne.s32.totalorder %s121, %s124
    %p130 = scmp.eq.s32.totalorder %s12, 0
    %p131 = por %p129, %p130
    %p132 = scmp.ne.s32.totalorder %s121, %s124
    %p133 = scmp.eq.s32.totalorder %s17, 1
    %p134 = por %p132, %p133
    %p135 = scmp.ne.s32.totalorder %s124, %s125
    %p136 = scmp.eq.s32.totalorder %s17, 0
    %p137 = por %p135, %p136
    %p138 = scmp.ne.s32.totalorder %s124, %s125
    %p139 = scmp.eq.s32.totalorder %s18, 1
    %p140 = por %p138, %p139
    %p142 = scmp.ne.s32.totalorder %s125, %s141
    %p143 = scmp.eq.s32.totalorder %s18, 0
    %p144 = por %p142, %p143
    %s145 = ssub.s32 %s12, %s19
    %p146 = scmp.eq.s32.totalorder %s145, 0
    %s148 = sadd.s32 %s147, 1
    %s149 = scalar_select %p146, %s147, %s148
    %p152 = pneg %p146
    %p153 = scmp.eq.s32.totalorder %s12, 1
    %p154 = por %p152, %p153
    %p155 = scmp.ne.s32.totalorder %s147, %s150
    %p156 = scmp.eq.s32.totalorder %s12, 0
    %p157 = por %p155, %p156
    %p158 = scmp.ne.s32.totalorder %s147, %s150
    %p159 = scmp.eq.s32.totalorder %s17, 1
    %p160 = por %p158, %p159
    %p161 = scmp.ne.s32.totalorder %s150, %s151
    %p162 = scmp.eq.s32.totalorder %s17, 0
    %p163 = por %p161, %p162
    %p164 = scmp.ne.s32.totalorder %s150, %s151
    %p165 = scmp.eq.s32.totalorder %s18, 1
    %p166 = por %p164, %p165
    %p168 = scmp.ne.s32.totalorder %s151, %s167
    %p169 = scmp.eq.s32.totalorder %s18, 0
    %p170 = por %p168, %p169
    %p171 = scmp.le.s32.totalorder 1, %s12
    %p172 = scmp.lt.s32.totalorder %s12, 3
    %p173 = pnand %p171, %p172
    %p174 = pneg %p173
    // Predicated region
    $region9: #{upconvblock_forward.6} parent=5 // pred_check
      _
    $region10: #{upconvblock_forward.6} parent=5 // pred_check_branch
      %176 = sbr.rel (%p173) target = $region12
    $region11: #{upconvblock_forward.6} parent=5 // pred_region
      %s177 = ssub.s32 %s12, 1
      // Predicated region
      $region13: #{upconvblock_forward.6} parent=11 // pred_check
        %p178 = pneg %p85
      $region14: #{upconvblock_forward.6} parent=11 // pred_check_branch
        %180 = sbr.rel (%p178) target = $region16
      $region15: #{upconvblock_forward.6} parent=11 // pred_region
        _
      $region16: #{upconvblock_forward.6} parent=11 // pred_fallthru
        _
    $region12: #{upconvblock_forward.6} parent=5 // pred_fallthru
      _
    %p181 = scmp.lt.s32.totalorder %s12, 2
    // Predicated region
    $region17: #{upconvblock_forward.6} parent=5 // pred_check
      %p182 = pneg %p181
    $region18: #{upconvblock_forward.6} parent=5 // pred_check_branch
      %184 = sbr.rel (%p182) target = $region20
    $region19: #{upconvblock_forward.6} parent=5 // pred_region
      // Predicated region
      $region21: #{upconvblock_forward.6} parent=19 // pred_check
        %p185 = pneg %p32
      $region22: #{upconvblock_forward.6} parent=19 // pred_check_branch
        %187 = sbr.rel (%p185) target = $region24
      $region23: #{upconvblock_forward.6} parent=19 // pred_region
        %s188 = smul.u32 32, %s12
        %p189 = scmp.lt.s32.totalorder %s188, 63
        %s190 = scalar_select %p189, %s188, 63
        %s191 = smul.addr %s190, 4
        %s192 = scalar_lea.vmem %s0, %s191
        %s193 = smul.u32 32, %s12
      $region24: #{upconvblock_forward.6} parent=19 // pred_fallthru
        _
      // Predicated region
      $region25: #{upconvblock_forward.6} parent=19 // pred_check
        %p194 = pneg %p58
      $region26: #{upconvblock_forward.6} parent=19 // pred_check_branch
        %196 = sbr.rel (%p194) target = $region28
      $region27: #{upconvblock_forward.6} parent=19 // pred_region
        %s197 = smul.u32 32, %s12
        %p198 = scmp.lt.s32.totalorder %s197, 63
        %s199 = scalar_select %p198, %s197, 63
        %s200 = smul.addr %s199, 4
        %s201 = scalar_lea.vmem %s1, %s200
        %s202 = smul.u32 32, %s12
      $region28: #{upconvblock_forward.6} parent=19 // pred_fallthru
        _
    $region20: #{upconvblock_forward.6} parent=5 // pred_fallthru
      _
    %p203 = scmp.le.s32.totalorder 1, %s12
    %p204 = scmp.lt.s32.totalorder %s12, 3
    %p205 = pnand %p203, %p204
    %p206 = pneg %p205
    // Predicated region
    $region29: #{upconvblock_forward.6} parent=5 // pred_check
      _
    $region30: #{upconvblock_forward.6} parent=5 // pred_check_branch
      %208 = sbr.rel (%p205) target = $region32
    $region31: #{upconvblock_forward.6} parent=5 // pred_region
      %s209 = ssub.s32 %s12, 1
      %s210 = smul.u32 32, %s17
      %p211 = scmp.lt.s32.totalorder %s210, 63
      %s212 = scalar_select %p211, %s210, 63
      %s213 = smul.addr %s212, 4
      %s214 = scalar_lea.vmem %s0, %s213
      %p215 = pneg %p38
      %p216 = pneg %p35
      %s217 = smul.u32 32, %s17
      %p218 = scmp.lt.s32.totalorder %s217, 63
      %s219 = scalar_select %p218, %s217, 63
      %s220 = smul.addr %s219, 4
      %s221 = scalar_lea.vmem %s1, %s220
      %p222 = pneg %p64
      %p223 = pneg %p61
      %p224 = pneg %p85
      %p225 = pneg %p82
      %p226 = pneg %p111
      %p227 = pneg %p108
      %s228 = smul.u32 32, %s17
      %p229 = scmp.lt.s32.totalorder %s228, 63
      %s230 = scalar_select %p229, %s228, 63
      %s231 = smul.addr %s230, 4
      %s232 = scalar_lea.vmem %s3, %s231
      %p233 = pneg %p137
      %p234 = pneg %p134
      %p235 = scmp.lt.s32.totalorder %s17, 1
      %s236 = scalar_select %p235, %s17, 1
      %s237 = smul.addr %s236, 8
      %s238 = scalar_lea.vmem %s4, %s237
      %p239 = pneg %p163
      %p240 = pneg %p160
      %p241 = scmp.lt.s32.totalorder %s17, 1
      %s242 = scalar_select %p241, %s17, 1
      %s243 = smul.addr %s242, 8
      %s244 = scalar_lea.vmem %s5, %s243
      %s245 = smul.u32 32, %s17
      %p246 = scmp.lt.s32.totalorder %s245, 63
      %s247 = scalar_select %p246, %s245, 63
      %s248 = smul.addr %s247, 4
      %s249 = scalar_lea.vmem %s0, %s248
      %s250 = smul.u32 32, %s17
      %s251 = smul.u32 32, %s17
      %p252 = scmp.lt.s32.totalorder %s251, 63
      %s253 = scalar_select %p252, %s251, 63
      %s254 = smul.addr %s253, 4
      %s255 = scalar_lea.vmem %s1, %s254
      %s256 = smul.u32 32, %s17
      %s257 = smul.u32 32, %s17
      %p258 = scmp.lt.s32.totalorder %s257, 63
      %s259 = scalar_select %p258, %s257, 63
      %s260 = smul.addr %s259, 4
      %s261 = scalar_lea.vmem %s3, %s260
      %s262 = smul.u32 32, %s17
      %p263 = scmp.lt.s32.totalorder %s17, 1
      %s264 = scalar_select %p263, %s17, 1
      %s265 = smul.addr %s264, 8
      %s266 = scalar_lea.vmem %s4, %s265
      %p267 = scmp.lt.s32.totalorder %s17, 1
      %s268 = scalar_select %p267, %s17, 1
      %s269 = smul.addr %s268, 8
      %s270 = scalar_lea.vmem %s5, %s269
      %v272 = vld [vmem:[%s255] sm:$0xf]
      %v273 = vld [vmem:[%s255 + $0x4] sm:$0xf]
      %v274 = vld [vmem:[%s255 + $0x8] sm:$0xf]
      %v275 = vld [vmem:[%s255 + $0xc] sm:$0xf]
      %v276 = vld [vmem:[%s255 + $0x10] sm:$0xf]
      %v277 = vld [vmem:[%s255 + $0x14] sm:$0xf]
      %v278 = vld [vmem:[%s255 + $0x18] sm:$0xf]
      %v279 = vld [vmem:[%s255 + $0x1c] sm:$0xf]
      %v280 = vld [vmem:[%s255 + $0x20] sm:$0xf]
      %v281 = vld [vmem:[%s255 + $0x24] sm:$0xf]
      %v282 = vld [vmem:[%s255 + $0x28] sm:$0xf]
      %v283 = vld [vmem:[%s255 + $0x2c] sm:$0xf]
      %v284 = vld [vmem:[%s255 + $0x30] sm:$0xf]
      %v285 = vld [vmem:[%s255 + $0x34] sm:$0xf]
      %v286 = vld [vmem:[%s255 + $0x38] sm:$0xf]
      %v287 = vld [vmem:[%s255 + $0x3c] sm:$0xf]
      %v288 = vld [vmem:[%s255 + $0x40] sm:$0xf]
      %v289 = vld [vmem:[%s255 + $0x44] sm:$0xf]
      %v290 = vld [vmem:[%s255 + $0x48] sm:$0xf]
      %v291 = vld [vmem:[%s255 + $0x4c] sm:$0xf]
      %v292 = vld [vmem:[%s255 + $0x50] sm:$0xf]
      %v293 = vld [vmem:[%s255 + $0x54] sm:$0xf]
      %v294 = vld [vmem:[%s255 + $0x58] sm:$0xf]
      %v295 = vld [vmem:[%s255 + $0x5c] sm:$0xf]
      %v296 = vld [vmem:[%s255 + $0x60] sm:$0xf]
      %v297 = vld [vmem:[%s255 + $0x64] sm:$0xf]
      %v298 = vld [vmem:[%s255 + $0x68] sm:$0xf]
      %v299 = vld [vmem:[%s255 + $0x6c] sm:$0xf]
      %v300 = vld [vmem:[%s255 + $0x70] sm:$0xf]
      %v301 = vld [vmem:[%s255 + $0x74] sm:$0xf]
      %v302 = vld [vmem:[%s255 + $0x78] sm:$0xf]
      %v303 = vld [vmem:[%s255 + $0x7c] sm:$0xf]
      %v304 = vld [vmem:[%s2] sm:$0x3]
      %v337 = vunpack.c.l.b16 %v272
      %v338 = vunpack.c.l.b16 %v273
      %v339 = vunpack.c.l.b16 %v274
      %v340 = vunpack.c.l.b16 %v275
      %v341 = vunpack.c.l.b16 %v276
      %v342 = vunpack.c.l.b16 %v277
      %v343 = vunpack.c.l.b16 %v278
      %v344 = vunpack.c.l.b16 %v279
      %v345 = vunpack.c.l.b16 %v280
      %v346 = vunpack.c.l.b16 %v281
      %v347 = vunpack.c.l.b16 %v282
      %v348 = vunpack.c.l.b16 %v283
      %v349 = vunpack.c.l.b16 %v284
      %v350 = vunpack.c.l.b16 %v285
      %v351 = vunpack.c.l.b16 %v286
      %v352 = vunpack.c.l.b16 %v287
      %v353 = vunpack.c.l.b16 %v288
      %v354 = vunpack.c.l.b16 %v289
      %v355 = vunpack.c.l.b16 %v290
      %v356 = vunpack.c.l.b16 %v291
      %v357 = vunpack.c.l.b16 %v292
      %v358 = vunpack.c.l.b16 %v293
      %v359 = vunpack.c.l.b16 %v294
      %v360 = vunpack.c.l.b16 %v295
      %v361 = vunpack.c.l.b16 %v296
      %v362 = vunpack.c.l.b16 %v297
      %v363 = vunpack.c.l.b16 %v298
      %v364 = vunpack.c.l.b16 %v299
      %v365 = vunpack.c.l.b16 %v300
      %v366 = vunpack.c.l.b16 %v301
      %v367 = vunpack.c.l.b16 %v302
      %v368 = vunpack.c.l.b16 %v303
      %v369 = vpack.c.b16 %v338, %v337
      %v370 = vpack.c.b16 %v340, %v339
      %v371 = vpack.c.b16 %v342, %v341
      %v372 = vpack.c.b16 %v344, %v343
      %v373 = vpack.c.b16 %v346, %v345
      %v374 = vpack.c.b16 %v348, %v347
      %v375 = vpack.c.b16 %v350, %v349
      %v376 = vpack.c.b16 %v352, %v351
      %v377 = vpack.c.b16 %v354, %v353
      %v378 = vpack.c.b16 %v356, %v355
      %v379 = vpack.c.b16 %v358, %v357
      %v380 = vpack.c.b16 %v360, %v359
      %v381 = vpack.c.b16 %v362, %v361
      %v382 = vpack.c.b16 %v364, %v363
      %v383 = vpack.c.b16 %v366, %v365
      %v384 = vpack.c.b16 %v368, %v367
      %vm385 = vcmask 31744
      %v387 = vsel %vm385, %v369, 0
      %v390 = vsel %vm385, %v370, 0
      %v393 = vsel %vm385, %v371, 0
      %v396 = vsel %vm385, %v372, 0
      %v399 = vsel %vm385, %v373, 0
      %v402 = vsel %vm385, %v374, 0
      %v405 = vsel %vm385, %v375, 0
      %v408 = vsel %vm385, %v376, 0
      %v411 = vsel %vm385, %v377, 0
      %v414 = vsel %vm385, %v378, 0
      %v417 = vsel %vm385, %v379, 0
      %v420 = vsel %vm385, %v380, 0
      %v423 = vsel %vm385, %v381, 0
      %v426 = vsel %vm385, %v382, 0
      %v429 = vsel %vm385, %v383, 0
      %v432 = vsel %vm385, %v384, 0
      %vm434 = vcmask 1041408
      %v436 = vsel %vm434, %v304, 0
      %438 = vmatprep.subr.bf16.mxu0 0
      %439 = vmatpush1.bf16.msra.mxu0 %v436
      %440 = vmatprep.subr.bf16.mxu0 0
      %441 = vmatpush1.bf16.msra.mxu0 0
      %442 = vmatprep.subr.bf16.mxu0 0
      %443 = vmatpush1.bf16.msra.mxu0 0
      %444 = vmatprep.subr.bf16.mxu0 0
      %445 = vmatpush1.bf16.msra.mxu0 0
      %446 = vmatprep.subr.bf16.mxu0 0
      %447 = vmatpush1.bf16.msra.mxu0 0
      %448 = vmatprep.subr.bf16.mxu0 0
      %449 = vmatpush1.bf16.msra.mxu0 0
      %450 = vmatprep.subr.bf16.mxu0 0
      %451 = vmatpush1.bf16.msra.mxu0 0
      %452 = vmatprep.subr.bf16.mxu0 0
      %453 = vmatpush1.bf16.msra.mxu0 0
      %454 = vmatprep.subr.bf16.mxu0 0
      %455 = vmatpush1.bf16.msra.mxu0 0
      %456 = vmatprep.subr.bf16.mxu0 0
      %457 = vmatpush1.bf16.msra.mxu0 0
      %458 = vmatprep.subr.bf16.mxu0 0
      %459 = vmatpush1.bf16.msra.mxu0 0
      %460 = vmatprep.subr.bf16.mxu0 0
      %461 = vmatpush1.bf16.msra.mxu0 0
      %462 = vmatprep.subr.bf16.mxu0 0
      %463 = vmatpush1.bf16.msra.mxu0 0
      %464 = vmatprep.subr.bf16.mxu0 0
      %465 = vmatpush1.bf16.msra.mxu0 0
      %466 = vmatprep.subr.bf16.mxu0 0
      %467 = vmatpush1.bf16.msra.mxu0 0
      %468 = vmatprep.subr.bf16.mxu0 0
      %469 = vmatpush1.bf16.msra.mxu0 0
      %470 = vmatprep.mubr.bf16.mxu0 0
      %471 = vmatmul.mubr.bf16.gmra.mrb[0].mxu0 %v387
      %v472 = vpop.f32.mrb[0].mxu0
      %v473 = vadd.f32 0.0, %v472
      %v474 = vpop.f32.mrb[0].mxu0
      %v475 = vpop.f32.mrb[0].mxu0
      %v476 = vadd.f32 0.0, %v475
      %v477 = vpop.f32.mrb[0].mxu0
      %478 = vmatprep.mubr.bf16.mxu0 0
      %479 = vmatmul.mubr.bf16.gmra.mrb[0].mxu0 %v390
      %v480 = vpop.f32.mrb[0].mxu0
      %v481 = vadd.f32 0.0, %v480
      %v482 = vpop.f32.mrb[0].mxu0
      %v483 = vpop.f32.mrb[0].mxu0
      %v484 = vadd.f32 0.0, %v483
      %v485 = vpop.f32.mrb[0].mxu0
      %486 = vmatprep.mubr.bf16.mxu0 0
      %487 = vmatmul.mubr.bf16.gmra.mrb[0].mxu0 %v393
      %v488 = vpop.f32.mrb[0].mxu0
      %v489 = vadd.f32 0.0, %v488
      %v490 = vpop.f32.mrb[0].mxu0
      %v491 = vpop.f32.mrb[0].mxu0
      %v492 = vadd.f32 0.0, %v491
      %v493 = vpop.f32.mrb[0].mxu0
      %494 = vmatprep.mubr.bf16.mxu0 0
      %495 = vmatmul.mubr.bf16.gmra.mrb[0].mxu0 %v396
      %v496 = vpop.f32.mrb[0].mxu0
      %v497 = vadd.f32 0.0, %v496
      %v498 = vpop.f32.mrb[0].mxu0
      %v499 = vpop.f32.mrb[0].mxu0
      %v500 = vadd.f32 0.0, %v499
      %v501 = vpop.f32.mrb[0].mxu0
      %502 = vmatprep.mubr.bf16.mxu0 0
      %503 = vmatmul.mubr.bf16.gmra.mrb[0].mxu0 %v399
      %v504 = vpop.f32.mrb[0].mxu0
      %v505 = vadd.f32 0.0, %v504
      %v506 = vpop.f32.mrb[0].mxu0
      %v507 = vpop.f32.mrb[0].mxu0
      %v508 = vadd.f32 0.0, %v507
      %v509 = vpop.f32.mrb[0].mxu0
      %510 = vmatprep.mubr.bf16.mxu0 0
      %511 = vmatmul.mubr.bf16.gmra.mrb[0].mxu0 %v402
      %v512 = vpop.f32.mrb[0].mxu0
      %v513 = vadd.f32 0.0, %v512
      %v514 = vpop.f32.mrb[0].mxu0
      %v515 = vpop.f32.mrb[0].mxu0
      %v516 = vadd.f32 0.0, %v515
      %v517 = vpop.f32.mrb[0].mxu0
      %518 = vmatprep.mubr.bf16.mxu0 0
      %519 = vmatmul.mubr.bf16.gmra.mrb[0].mxu0 %v405
      %v520 = vpop.f32.mrb[0].mxu0
      %v521 = vadd.f32 0.0, %v520
      %v522 = vpop.f32.mrb[0].mxu0
      %v523 = vpop.f32.mrb[0].mxu0
      %v524 = vadd.f32 0.0, %v523
      %v525 = vpop.f32.mrb[0].mxu0
      %526 = vmatprep.mubr.bf16.mxu0 0
      %527 = vmatmul.mubr.bf16.gmra.mrb[0].mxu0 %v408
      %v528 = vpop.f32.mrb[0].mxu0
      %v529 = vadd.f32 0.0, %v528
      %v530 = vpop.f32.mrb[0].mxu0
      %v531 = vpop.f32.mrb[0].mxu0
      %v532 = vadd.f32 0.0, %v531
      %v533 = vpop.f32.mrb[0].mxu0
      %534 = vmatprep.mubr.bf16.mxu0 0
      %535 = vmatmul.mubr.bf16.gmra.mrb[0].mxu0 %v411
      %v536 = vpop.f32.mrb[0].mxu0
      %v537 = vadd.f32 0.0, %v536
      %v538 = vpop.f32.mrb[0].mxu0
      %v539 = vpop.f32.mrb[0].mxu0
      %v540 = vadd.f32 0.0, %v539
      %v541 = vpop.f32.mrb[0].mxu0
      %542 = vmatprep.mubr.bf16.mxu0 0
      %543 = vmatmul.mubr.bf16.gmra.mrb[0].mxu0 %v414
      %v544 = vpop.f32.mrb[0].mxu0
      %v545 = vadd.f32 0.0, %v544
      %v546 = vpop.f32.mrb[0].mxu0
      %v547 = vpop.f32.mrb[0].mxu0
      %v548 = vadd.f32 0.0, %v547
      %v549 = vpop.f32.mrb[0].mxu0
      %550 = vmatprep.mubr.bf16.mxu0 0
      %551 = vmatmul.mubr.bf16.gmra.mrb[0].mxu0 %v417
      %v552 = vpop.f32.mrb[0].mxu0
      %v553 = vadd.f32 0.0, %v552
      %v554 = vpop.f32.mrb[0].mxu0
      %v555 = vpop.f32.mrb[0].mxu0
      %v556 = vadd.f32 0.0, %v555
      %v557 = vpop.f32.mrb[0].mxu0
      %558 = vmatprep.mubr.bf16.mxu0 0
      %559 = vmatmul.mubr.bf16.gmra.mrb[0].mxu0 %v420
      %v560 = vpop.f32.mrb[0].mxu0
      %v561 = vadd.f32 0.0, %v560
      %v562 = vpop.f32.mrb[0].mxu0
      %v563 = vpop.f32.mrb[0].mxu0
      %v564 = vadd.f32 0.0, %v563
      %v565 = vpop.f32.mrb[0].mxu0
      %566 = vmatprep.mubr.bf16.mxu0 0
      %567 = vmatmul.mubr.bf16.gmra.mrb[0].mxu0 %v423
      %v568 = vpop.f32.mrb[0].mxu0
      %v569 = vadd.f32 0.0, %v568
      %v570 = vpop.f32.mrb[0].mxu0
      %v571 = vpop.f32.mrb[0].mxu0
      %v572 = vadd.f32 0.0, %v571
      %v573 = vpop.f32.mrb[0].mxu0
      %574 = vmatprep.mubr.bf16.mxu0 0
      %575 = vmatmul.mubr.bf16.gmra.mrb[0].mxu0 %v426
      %v576 = vpop.f32.mrb[0].mxu0
      %v577 = vadd.f32 0.0, %v576
      %v578 = vpop.f32.mrb[0].mxu0
      %v579 = vpop.f32.mrb[0].mxu0
      %v580 = vadd.f32 0.0, %v579
      %v581 = vpop.f32.mrb[0].mxu0
      %582 = vmatprep.mubr.bf16.mxu0 0
      %583 = vmatmul.mubr.bf16.gmra.mrb[0].mxu0 %v429
      %v584 = vpop.f32.mrb[0].mxu0
      %v585 = vadd.f32 0.0, %v584
      %v586 = vpop.f32.mrb[0].mxu0
      %v587 = vpop.f32.mrb[0].mxu0
      %v588 = vadd.f32 0.0, %v587
      %v589 = vpop.f32.mrb[0].mxu0
      %590 = vmatprep.mubr.bf16.mxu0 0
      %591 = vmatmul.mubr.bf16.gmra.mrb[0].mxu0 %v432
      %v592 = vpop.f32.mrb[0].mxu0
      %v593 = vadd.f32 0.0, %v592
      %v594 = vpop.f32.mrb[0].mxu0
      %v595 = vpop.f32.mrb[0].mxu0
      %v596 = vadd.f32 0.0, %v595
      %v597 = vpop.f32.mrb[0].mxu0
      %598 = vdwg.mxu0
      %v599 = vld [vmem:[%s249] sm:$0xf]
      %v600 = vld [vmem:[%s249 + $0x4] sm:$0xf]
      %v601 = vld [vmem:[%s249 + $0x8] sm:$0xf]
      %v602 = vld [vmem:[%s249 + $0xc] sm:$0xf]
      %v603 = vld [vmem:[%s249 + $0x10] sm:$0xf]
      %v604 = vld [vmem:[%s249 + $0x14] sm:$0xf]
      %v605 = vld [vmem:[%s249 + $0x18] sm:$0xf]
      %v606 = vld [vmem:[%s249 + $0x1c] sm:$0xf]
      %v607 = vld [vmem:[%s249 + $0x20] sm:$0xf]
      %v608 = vld [vmem:[%s249 + $0x24] sm:$0xf]
      %v609 = vld [vmem:[%s249 + $0x28] sm:$0xf]
      %v610 = vld [vmem:[%s249 + $0x2c] sm:$0xf]
      %v611 = vld [vmem:[%s249 + $0x30] sm:$0xf]
      %v612 = vld [vmem:[%s249 + $0x34] sm:$0xf]
      %v613 = vld [vmem:[%s249 + $0x38] sm:$0xf]
      %v614 = vld [vmem:[%s249 + $0x3c] sm:$0xf]
      %v615 = vld [vmem:[%s249 + $0x40] sm:$0xf]
      %v616 = vld [vmem:[%s249 + $0x44] sm:$0xf]
      %v617 = vld [vmem:[%s249 + $0x48] sm:$0xf]
      %v618 = vld [vmem:[%s249 + $0x4c] sm:$0xf]
      %v619 = vld [vmem:[%s249 + $0x50] sm:$0xf]
      %v620 = vld [vmem:[%s249 + $0x54] sm:$0xf]
      %v621 = vld [vmem:[%s249 + $0x58] sm:$0xf]
      %v622 = vld [vmem:[%s249 + $0x5c] sm:$0xf]
      %v623 = vld [vmem:[%s249 + $0x60] sm:$0xf]
      %v624 = vld [vmem:[%s249 + $0x64] sm:$0xf]
      %v625 = vld [vmem:[%s249 + $0x68] sm:$0xf]
      %v626 = vld [vmem:[%s249 + $0x6c] sm:$0xf]
      %v627 = vld [vmem:[%s249 + $0x70] sm:$0xf]
      %v628 = vld [vmem:[%s249 + $0x74] sm:$0xf]
      %v629 = vld [vmem:[%s249 + $0x78] sm:$0xf]
      %v630 = vld [vmem:[%s249 + $0x7c] sm:$0xf]
      %v631 = vpack.c.bf16 %v476, %v473
      %v632 = vpack.c.bf16 %v484, %v481
      %v633 = vpack.c.bf16 %v492, %v489
      %v634 = vpack.c.bf16 %v500, %v497
      %v635 = vpack.c.bf16 %v508, %v505
      %v636 = vpack.c.bf16 %v516, %v513
      %v637 = vpack.c.bf16 %v524, %v521
      %v638 = vpack.c.bf16 %v532, %v529
      %v639 = vpack.c.bf16 %v540, %v537
      %v640 = vpack.c.bf16 %v548, %v545
      %v641 = vpack.c.bf16 %v556, %v553
      %v642 = vpack.c.bf16 %v564, %v561
      %v643 = vpack.c.bf16 %v572, %v569
      %v644 = vpack.c.bf16 %v580, %v577
      %v645 = vpack.c.bf16 %v588, %v585
      %v646 = vpack.c.bf16 %v596, %v593
      %v679 = vunpack.c.l.b16 %v599
      %v680 = vunpack.c.l.b16 %v600
      %v681 = vunpack.c.l.b16 %v601
      %v682 = vunpack.c.l.b16 %v602
      %v683 = vunpack.c.l.b16 %v603
      %v684 = vunpack.c.l.b16 %v604
      %v685 = vunpack.c.l.b16 %v605
      %v686 = vunpack.c.l.b16 %v606
      %v687 = vunpack.c.l.b16 %v607
      %v688 = vunpack.c.l.b16 %v608
      %v689 = vunpack.c.l.b16 %v609
      %v690 = vunpack.c.l.b16 %v610
      %v691 = vunpack.c.l.b16 %v611
      %v692 = vunpack.c.l.b16 %v612
      %v693 = vunpack.c.l.b16 %v613
      %v694 = vunpack.c.l.b16 %v614
      %v695 = vunpack.c.l.b16 %v615
      %v696 = vunpack.c.l.b16 %v616
      %v697 = vunpack.c.l.b16 %v617
      %v698 = vunpack.c.l.b16 %v618
      %v699 = vunpack.c.l.b16 %v619
      %v700 = vunpack.c.l.b16 %v620
      %v701 = vunpack.c.l.b16 %v621
      %v702 = vunpack.c.l.b16 %v622
      %v703 = vunpack.c.l.b16 %v623
      %v704 = vunpack.c.l.b16 %v624
      %v705 = vunpack.c.l.b16 %v625
      %v706 = vunpack.c.l.b16 %v626
      %v707 = vunpack.c.l.b16 %v627
      %v708 = vunpack.c.l.b16 %v628
      %v709 = vunpack.c.l.b16 %v629
      %v710 = vunpack.c.l.b16 %v630
      %v711 = vpack.c.b16 %v680, %v679
      %v712 = vpack.c.b16 %v682, %v681
      %v713 = vpack.c.b16 %v684, %v683
      %v714 = vpack.c.b16 %v686, %v685
      %v715 = vpack.c.b16 %v688, %v687
      %v716 = vpack.c.b16 %v690, %v689
      %v717 = vpack.c.b16 %v692, %v691
      %v718 = vpack.c.b16 %v694, %v693
      %v719 = vpack.c.b16 %v696, %v695
      %v720 = vpack.c.b16 %v698, %v697
      %v721 = vpack.c.b16 %v700, %v699
      %v722 = vpack.c.b16 %v702, %v701
      %v723 = vpack.c.b16 %v704, %v703
      %v724 = vpack.c.b16 %v706, %v705
      %v725 = vpack.c.b16 %v708, %v707
      %v726 = vpack.c.b16 %v710, %v709
      %743 = vrot.lane.b32.xlu0 %v631, 4
      %v744 = vpop.permute.xlu0 %743
      %745 = vrot.lane.b32.xlu0 %v632, 4
      %v746 = vpop.permute.xlu0 %745
      %747 = vrot.lane.b32.xlu0 %v633, 4
      %v748 = vpop.permute.xlu0 %747
      %749 = vrot.lane.b32.xlu0 %v634, 4
      %v750 = vpop.permute.xlu0 %749
      %751 = vrot.lane.b32.xlu0 %v635, 4
      %v752 = vpop.permute.xlu0 %751
      %753 = vrot.lane.b32.xlu0 %v636, 4
      %v754 = vpop.permute.xlu0 %753
      %755 = vrot.lane.b32.xlu0 %v637, 4
      %v756 = vpop.permute.xlu0 %755
      %757 = vrot.lane.b32.xlu0 %v638, 4
      %v758 = vpop.permute.xlu0 %757
      %759 = vrot.lane.b32.xlu0 %v639, 4
      %v760 = vpop.permute.xlu0 %759
      %761 = vrot.lane.b32.xlu0 %v640, 4
      %v762 = vpop.permute.xlu0 %761
      %763 = vrot.lane.b32.xlu0 %v641, 4
      %v764 = vpop.permute.xlu0 %763
      %765 = vrot.lane.b32.xlu0 %v642, 4
      %v766 = vpop.permute.xlu0 %765
      %767 = vrot.lane.b32.xlu0 %v643, 4
      %v768 = vpop.permute.xlu0 %767
      %769 = vrot.lane.b32.xlu0 %v644, 4
      %v770 = vpop.permute.xlu0 %769
      %771 = vrot.lane.b32.xlu0 %v645, 4
      %v772 = vpop.permute.xlu0 %771
      %773 = vrot.lane.b32.xlu0 %v646, 4
      %v774 = vpop.permute.xlu0 %773
      %v777 = vsel %vm385, %v711, %v744
      %v780 = vsel %vm385, %v712, %v746
      %v783 = vsel %vm385, %v713, %v748
      %v786 = vsel %vm385, %v714, %v750
      %v789 = vsel %vm385, %v715, %v752
      %v792 = vsel %vm385, %v716, %v754
      %v795 = vsel %vm385, %v717, %v756
      %v798 = vsel %vm385, %v718, %v758
      %v801 = vsel %vm385, %v719, %v760
      %v804 = vsel %vm385, %v720, %v762
      %v807 = vsel %vm385, %v721, %v764
      %v810 = vsel %vm385, %v722, %v766
      %v813 = vsel %vm385, %v723, %v768
      %v816 = vsel %vm385, %v724, %v770
      %v819 = vsel %vm385, %v725, %v772
      %v822 = vsel %vm385, %v726, %v774
      %v839 = vunpack.c.l.b16 %v777
      %v840 = vunpack.c.h.b16 %v777
      %v841 = vunpack.c.l.b16 %v780
      %v842 = vunpack.c.h.b16 %v780
      %v843 = vunpack.c.l.b16 %v783
      %v844 = vunpack.c.h.b16 %v783
      %v845 = vunpack.c.l.b16 %v786
      %v846 = vunpack.c.h.b16 %v786
      %v847 = vunpack.c.l.b16 %v789
      %v848 = vunpack.c.h.b16 %v789
      %v849 = vunpack.c.l.b16 %v792
      %v850 = vunpack.c.h.b16 %v792
      %v851 = vunpack.c.l.b16 %v795
      %v852 = vunpack.c.h.b16 %v795
      %v853 = vunpack.c.l.b16 %v798
      %v854 = vunpack.c.h.b16 %v798
      %v855 = vunpack.c.l.b16 %v801
      %v856 = vunpack.c.h.b16 %v801
      %v857 = vunpack.c.l.b16 %v804
      %v858 = vunpack.c.h.b16 %v804
      %v859 = vunpack.c.l.b16 %v807
      %v860 = vunpack.c.h.b16 %v807
      %v861 = vunpack.c.l.b16 %v810
      %v862 = vunpack.c.h.b16 %v810
      %v863 = vunpack.c.l.b16 %v813
      %v864 = vunpack.c.h.b16 %v813
      %v865 = vunpack.c.l.b16 %v816
      %v866 = vunpack.c.h.b16 %v816
      %v867 = vunpack.c.l.b16 %v819
      %v868 = vunpack.c.h.b16 %v819
      %v869 = vunpack.c.l.b16 %v822
      %v870 = vunpack.c.h.b16 %v822
      %v871 = vpack.c.b16 %v839, %v839
      %v872 = vpack.c.b16 %v840, %v840
      %v873 = vpack.c.b16 %v841, %v841
      %v874 = vpack.c.b16 %v842, %v842
      %v875 = vpack.c.b16 %v843, %v843
      %v876 = vpack.c.b16 %v844, %v844
      %v877 = vpack.c.b16 %v845, %v845
      %v878 = vpack.c.b16 %v846, %v846
      %v879 = vpack.c.b16 %v847, %v847
      %v880 = vpack.c.b16 %v848, %v848
      %v881 = vpack.c.b16 %v849, %v849
      %v882 = vpack.c.b16 %v850, %v850
      %v883 = vpack.c.b16 %v851, %v851
      %v884 = vpack.c.b16 %v852, %v852
      %v885 = vpack.c.b16 %v853, %v853
      %v886 = vpack.c.b16 %v854, %v854
      %v887 = vpack.c.b16 %v855, %v855
      %v888 = vpack.c.b16 %v856, %v856
      %v889 = vpack.c.b16 %v857, %v857
      %v890 = vpack.c.b16 %v858, %v858
      %v891 = vpack.c.b16 %v859, %v859
      %v892 = vpack.c.b16 %v860, %v860
      %v893 = vpack.c.b16 %v861, %v861
      %v894 = vpack.c.b16 %v862, %v862
      %v895 = vpack.c.b16 %v863, %v863
      %v896 = vpack.c.b16 %v864, %v864
      %v897 = vpack.c.b16 %v865, %v865
      %v898 = vpack.c.b16 %v866, %v866
      %v899 = vpack.c.b16 %v867, %v867
      %v900 = vpack.c.b16 %v868, %v868
      %v901 = vpack.c.b16 %v869, %v869
      %v902 = vpack.c.b16 %v870, %v870
      %vm935 = vcmask 60416
      %936 = vst.msk [vmem:[%s261] sm:$0xf] %vm935, %v871
      %937 = vst.msk [vmem:[%s261 + $0x4] sm:$0xf] %vm935, %v872
      %938 = vst.msk [vmem:[%s261 + $0x8] sm:$0xf] %vm935, %v873
      %939 = vst.msk [vmem:[%s261 + $0xc] sm:$0xf] %vm935, %v874
      %940 = vst.msk [vmem:[%s261 + $0x10] sm:$0xf] %vm935, %v875
      %941 = vst.msk [vmem:[%s261 + $0x14] sm:$0xf] %vm935, %v876
      %942 = vst.msk [vmem:[%s261 + $0x18] sm:$0xf] %vm935, %v877
      %943 = vst.msk [vmem:[%s261 + $0x1c] sm:$0xf] %vm935, %v878
      %944 = vst.msk [vmem:[%s261 + $0x20] sm:$0xf] %vm935, %v879
      %945 = vst.msk [vmem:[%s261 + $0x24] sm:$0xf] %vm935, %v880
      %946 = vst.msk [vmem:[%s261 + $0x28] sm:$0xf] %vm935, %v881
      %947 = vst.msk [vmem:[%s261 + $0x2c] sm:$0xf] %vm935, %v882
      %948 = vst.msk [vmem:[%s261 + $0x30] sm:$0xf] %vm935, %v883
      %949 = vst.msk [vmem:[%s261 + $0x34] sm:$0xf] %vm935, %v884
      %950 = vst.msk [vmem:[%s261 + $0x38] sm:$0xf] %vm935, %v885
      %951 = vst.msk [vmem:[%s261 + $0x3c] sm:$0xf] %vm935, %v886
      %952 = vst.msk [vmem:[%s261 + $0x40] sm:$0xf] %vm935, %v887
      %953 = vst.msk [vmem:[%s261 + $0x44] sm:$0xf] %vm935, %v888
      %954 = vst.msk [vmem:[%s261 + $0x48] sm:$0xf] %vm935, %v889
      %955 = vst.msk [vmem:[%s261 + $0x4c] sm:$0xf] %vm935, %v890
      %956 = vst.msk [vmem:[%s261 + $0x50] sm:$0xf] %vm935, %v891
      %957 = vst.msk [vmem:[%s261 + $0x54] sm:$0xf] %vm935, %v892
      %958 = vst.msk [vmem:[%s261 + $0x58] sm:$0xf] %vm935, %v893
      %959 = vst.msk [vmem:[%s261 + $0x5c] sm:$0xf] %vm935, %v894
      %960 = vst.msk [vmem:[%s261 + $0x60] sm:$0xf] %vm935, %v895
      %961 = vst.msk [vmem:[%s261 + $0x64] sm:$0xf] %vm935, %v896
      %962 = vst.msk [vmem:[%s261 + $0x68] sm:$0xf] %vm935, %v897
      %963 = vst.msk [vmem:[%s261 + $0x6c] sm:$0xf] %vm935, %v898
      %964 = vst.msk [vmem:[%s261 + $0x70] sm:$0xf] %vm935, %v899
      %965 = vst.msk [vmem:[%s261 + $0x74] sm:$0xf] %vm935, %v900
      %966 = vst.msk [vmem:[%s261 + $0x78] sm:$0xf] %vm935, %v901
      %967 = vst.msk [vmem:[%s261 + $0x7c] sm:$0xf] %vm935, %v902
      %v968 = vsel %vm385, %v473, 0.0
      %v969 = vsel %vm385, %v476, 0.0
      %v970 = vadd.f32 %v968, %v969
      %v971 = vsel %vm385, %v481, 0.0
      %v972 = vadd.f32 %v970, %v971
      %v973 = vsel %vm385, %v484, 0.0
      %v974 = vadd.f32 %v972, %v973
      %v975 = vsel %vm385, %v489, 0.0
      %v976 = vadd.f32 %v974, %v975
      %v977 = vsel %vm385, %v492, 0.0
      %v978 = vadd.f32 %v976, %v977
      %v979 = vsel %vm385, %v497, 0.0
      %v980 = vadd.f32 %v978, %v979
      %v981 = vsel %vm385, %v500, 0.0
      %v982 = vadd.f32 %v980, %v981
      %v983 = vsel %vm385, %v505, 0.0
      %v984 = vadd.f32 %v982, %v983
      %v985 = vsel %vm385, %v508, 0.0
      %v986 = vadd.f32 %v984, %v985
      %v987 = vsel %vm385, %v513, 0.0
      %v988 = vadd.f32 %v986, %v987
      %v989 = vsel %vm385, %v516, 0.0
      %v990 = vadd.f32 %v988, %v989
      %v991 = vsel %vm385, %v521, 0.0
      %v992 = vadd.f32 %v990, %v991
      %v993 = vsel %vm385, %v524, 0.0
      %v994 = vadd.f32 %v992, %v993
      %v995 = vsel %vm385, %v529, 0.0
      %v996 = vadd.f32 %v994, %v995
      %v997 = vsel %vm385, %v532, 0.0
      %v998 = vadd.f32 %v996, %v997
      %v999 = vsel %vm385, %v537, 0.0
      %v1000 = vadd.f32 %v998, %v999
      %v1001 = vsel %vm385, %v540, 0.0
      %v1002 = vadd.f32 %v1000, %v1001
      %v1003 = vsel %vm385, %v545, 0.0
      %v1004 = vadd.f32 %v1002, %v1003
      %v1005 = vsel %vm385, %v548, 0.0
      %v1006 = vadd.f32 %v1004, %v1005
      %v1007 = vsel %vm385, %v553, 0.0
      %v1008 = vadd.f32 %v1006, %v1007
      %v1009 = vsel %vm385, %v556, 0.0
      %v1010 = vadd.f32 %v1008, %v1009
      %v1011 = vsel %vm385, %v561, 0.0
      %v1012 = vadd.f32 %v1010, %v1011
      %v1013 = vsel %vm385, %v564, 0.0
      %v1014 = vadd.f32 %v1012, %v1013
      %v1015 = vsel %vm385, %v569, 0.0
      %v1016 = vadd.f32 %v1014, %v1015
      %v1017 = vsel %vm385, %v572, 0.0
      %v1018 = vadd.f32 %v1016, %v1017
      %v1019 = vsel %vm385, %v577, 0.0
      %v1020 = vadd.f32 %v1018, %v1019
      %v1021 = vsel %vm385, %v580, 0.0
      %v1022 = vadd.f32 %v1020, %v1021
      %v1023 = vsel %vm385, %v585, 0.0
      %v1024 = vadd.f32 %v1022, %v1023
      %v1025 = vsel %vm385, %v588, 0.0
      %v1026 = vadd.f32 %v1024, %v1025
      %v1027 = vsel %vm385, %v593, 0.0
      %v1028 = vadd.f32 %v1026, %v1027
      %v1029 = vsel %vm385, %v596, 0.0
      %v1030 = vadd.f32 %v1028, %v1029
      %1031 = vst.msk [vmem:[%s266] sm:$0xff] %vm385, %v1030
      %v1032 = vmul.f32 %v473, %v473
      %v1033 = vmul.f32 %v476, %v476
      %v1034 = vmul.f32 %v481, %v481
      %v1035 = vmul.f32 %v484, %v484
      %v1036 = vmul.f32 %v489, %v489
      %v1037 = vmul.f32 %v492, %v492
      %v1038 = vmul.f32 %v497, %v497
      %v1039 = vmul.f32 %v500, %v500
      %v1040 = vmul.f32 %v505, %v505
      %v1041 = vmul.f32 %v508, %v508
      %v1042 = vmul.f32 %v513, %v513
      %v1043 = vmul.f32 %v516, %v516
      %v1044 = vmul.f32 %v521, %v521
      %v1045 = vmul.f32 %v524, %v524
      %v1046 = vmul.f32 %v529, %v529
      %v1047 = vmul.f32 %v532, %v532
      %v1048 = vmul.f32 %v537, %v537
      %v1049 = vmul.f32 %v540, %v540
      %v1050 = vmul.f32 %v545, %v545
      %v1051 = vmul.f32 %v548, %v548
      %v1052 = vmul.f32 %v553, %v553
      %v1053 = vmul.f32 %v556, %v556
      %v1054 = vmul.f32 %v561, %v561
      %v1055 = vmul.f32 %v564, %v564
      %v1056 = vmul.f32 %v569, %v569
      %v1057 = vmul.f32 %v572, %v572
      %v1058 = vmul.f32 %v577, %v577
      %v1059 = vmul.f32 %v580, %v580
      %v1060 = vmul.f32 %v585, %v585
      %v1061 = vmul.f32 %v588, %v588
      %v1062 = vmul.f32 %v593, %v593
      %v1063 = vmul.f32 %v596, %v596
      %v1064 = vsel %vm385, %v1032, 0.0
      %v1065 = vsel %vm385, %v1033, 0.0
      %v1066 = vadd.f32 %v1064, %v1065
      %v1067 = vsel %vm385, %v1034, 0.0
      %v1068 = vadd.f32 %v1066, %v1067
      %v1069 = vsel %vm385, %v1035, 0.0
      %v1070 = vadd.f32 %v1068, %v1069
      %v1071 = vsel %vm385, %v1036, 0.0
      %v1072 = vadd.f32 %v1070, %v1071
      %v1073 = vsel %vm385, %v1037, 0.0
      %v1074 = vadd.f32 %v1072, %v1073
      %v1075 = vsel %vm385, %v1038, 0.0
      %v1076 = vadd.f32 %v1074, %v1075
      %v1077 = vsel %vm385, %v1039, 0.0
      %v1078 = vadd.f32 %v1076, %v1077
      %v1079 = vsel %vm385, %v1040, 0.0
      %v1080 = vadd.f32 %v1078, %v1079
      %v1081 = vsel %vm385, %v1041, 0.0
      %v1082 = vadd.f32 %v1080, %v1081
      %v1083 = vsel %vm385, %v1042, 0.0
      %v1084 = vadd.f32 %v1082, %v1083
      %v1085 = vsel %vm385, %v1043, 0.0
      %v1086 = vadd.f32 %v1084, %v1085
      %v1087 = vsel %vm385, %v1044, 0.0
      %v1088 = vadd.f32 %v1086, %v1087
      %v1089 = vsel %vm385, %v1045, 0.0
      %v1090 = vadd.f32 %v1088, %v1089
      %v1091 = vsel %vm385, %v1046, 0.0
      %v1092 = vadd.f32 %v1090, %v1091
      %v1093 = vsel %vm385, %v1047, 0.0
      %v1094 = vadd.f32 %v1092, %v1093
      %v1095 = vsel %vm385, %v1048, 0.0
      %v1096 = vadd.f32 %v1094, %v1095
      %v1097 = vsel %vm385, %v1049, 0.0
      %v1098 = vadd.f32 %v1096, %v1097
      %v1099 = vsel %vm385, %v1050, 0.0
      %v1100 = vadd.f32 %v1098, %v1099
      %v1101 = vsel %vm385, %v1051, 0.0
      %v1102 = vadd.f32 %v1100, %v1101
      %v1103 = vsel %vm385, %v1052, 0.0
      %v1104 = vadd.f32 %v1102, %v1103
      %v1105 = vsel %vm385, %v1053, 0.0
      %v1106 = vadd.f32 %v1104, %v1105
      %v1107 = vsel %vm385, %v1054, 0.0
      %v1108 = vadd.f32 %v1106, %v1107
      %v1109 = vsel %vm385, %v1055, 0.0
      %v1110 = vadd.f32 %v1108, %v1109
      %v1111 = vsel %vm385, %v1056, 0.0
      %v1112 = vadd.f32 %v1110, %v1111
      %v1113 = vsel %vm385, %v1057, 0.0
      %v1114 = vadd.f32 %v1112, %v1113
      %v1115 = vsel %vm385, %v1058, 0.0
      %v1116 = vadd.f32 %v1114, %v1115
      %v1117 = vsel %vm385, %v1059, 0.0
      %v1118 = vadd.f32 %v1116, %v1117
      %v1119 = vsel %vm385, %v1060, 0.0
      %v1120 = vadd.f32 %v1118, %v1119
      %v1121 = vsel %vm385, %v1061, 0.0
      %v1122 = vadd.f32 %v1120, %v1121
      %v1123 = vsel %vm385, %v1062, 0.0
      %v1124 = vadd.f32 %v1122, %v1123
      %v1125 = vsel %vm385, %v1063, 0.0
      %v1126 = vadd.f32 %v1124, %v1125
      %1127 = vst.msk [vmem:[%s270] sm:$0xff] %vm385, %v1126
      %s1128 = smul.u32 32, %s17
      %p1129 = scmp.lt.s32.totalorder %s1128, 63
      %s1130 = scalar_select %p1129, %s1128, 63
      %s1131 = smul.addr %s1130, 4
      %s1132 = scalar_lea.vmem %s3, %s1131
      %p1133 = scmp.lt.s32.totalorder %s17, 1
      %s1134 = scalar_select %p1133, %s17, 1
      %s1135 = smul.addr %s1134, 8
      %s1136 = scalar_lea.vmem %s4, %s1135
      %p1137 = scmp.lt.s32.totalorder %s17, 1
      %s1138 = scalar_select %p1137, %s17, 1
      %s1139 = smul.addr %s1138, 8
      %s1140 = scalar_lea.vmem %s5, %s1139
      // Predicated region
      $region33: #{upconvblock_forward.6} parent=31 // pred_check
        %p1141 = pneg %p108
      $region34: #{upconvblock_forward.6} parent=31 // pred_check_branch
        %1143 = sbr.rel (%p1141) target = $region36
      $region35: #{upconvblock_forward.6} parent=31 // pred_region
        %s1144 = smul.u32 32, %s17
      $region36: #{upconvblock_forward.6} parent=31 // pred_fallthru
        _
      // Predicated region
      $region37: #{upconvblock_forward.6} parent=31 // pred_check
        %p1145 = pneg %p134
      $region38: #{upconvblock_forward.6} parent=31 // pred_check_branch
        %1147 = sbr.rel (%p1145) target = $region40
      $region39: #{upconvblock_forward.6} parent=31 // pred_region
        _
      $region40: #{upconvblock_forward.6} parent=31 // pred_fallthru
        _
      // Predicated region
      $region41: #{upconvblock_forward.6} parent=31 // pred_check
        %p1148 = pneg %p160
      $region42: #{upconvblock_forward.6} parent=31 // pred_check_branch
        %1150 = sbr.rel (%p1148) target = $region44
      $region43: #{upconvblock_forward.6} parent=31 // pred_region
        _
      $region44: #{upconvblock_forward.6} parent=31 // pred_fallthru
        _
    $region32: #{upconvblock_forward.6} parent=5 // pred_fallthru
      _
    %p1151 = scmp.le.s32.totalorder 2, %s12
    // Predicated region
    $region45: #{upconvblock_forward.6} parent=5 // pred_check
      %p1152 = pneg %p1151
    $region46: #{upconvblock_forward.6} parent=5 // pred_check_branch
      %1154 = sbr.rel (%p1152) target = $region48
    $region47: #{upconvblock_forward.6} parent=5 // pred_region
      %s1155 = ssub.s32 %s12, 2
      // Predicated region
      $region49: #{upconvblock_forward.6} parent=47 // pred_check
        %p1156 = pneg %p114
      $region50: #{upconvblock_forward.6} parent=47 // pred_check_branch
        %1158 = sbr.rel (%p1156) target = $region52
      $region51: #{upconvblock_forward.6} parent=47 // pred_region
        %s1159 = smul.u32 32, %s18
        %p1160 = scmp.lt.s32.totalorder %s1159, 63
        %s1161 = scalar_select %p1160, %s1159, 63
        %s1162 = smul.addr %s1161, 4
        %s1163 = scalar_lea.vmem %s3, %s1162
      $region52: #{upconvblock_forward.6} parent=47 // pred_fallthru
        _
      // Predicated region
      $region53: #{upconvblock_forward.6} parent=47 // pred_check
        %p1164 = pneg %p140
      $region54: #{upconvblock_forward.6} parent=47 // pred_check_branch
        %1166 = sbr.rel (%p1164) target = $region56
      $region55: #{upconvblock_forward.6} parent=47 // pred_region
        %p1167 = scmp.lt.s32.totalorder %s18, 1
        %s1168 = scalar_select %p1167, %s18, 1
        %s1169 = smul.addr %s1168, 8
        %s1170 = scalar_lea.vmem %s4, %s1169
      $region56: #{upconvblock_forward.6} parent=47 // pred_fallthru
        _
      // Predicated region
      $region57: #{upconvblock_forward.6} parent=47 // pred_check
        %p1171 = pneg %p166
      $region58: #{upconvblock_forward.6} parent=47 // pred_check_branch
        %1173 = sbr.rel (%p1171) target = $region60
      $region59: #{upconvblock_forward.6} parent=47 // pred_region
        %p1174 = scmp.lt.s32.totalorder %s18, 1
        %s1175 = scalar_select %p1174, %s18, 1
        %s1176 = smul.addr %s1175, 8
        %s1177 = scalar_lea.vmem %s5, %s1176
      $region60: #{upconvblock_forward.6} parent=47 // pred_fallthru
        _
    $region48: #{upconvblock_forward.6} parent=5 // pred_fallthru
      _
  $region6: #{upconvblock_forward.6} parent=0 // loop_footer
    %s16 = sadd.s32 1, %s12
  $region7: #{upconvblock_forward.6} parent=0 // loop_footer_branch
    %11 = sbr.rel target = $region3
  $region8: #{upconvblock_forward.6} parent=0 // loop_exit
    _

// kernel: upconvblock_forward.5
$region0: #{upconvblock_forward.5}
  #allocation0 [shape = 'u32[]', space=smem, size = 0x4, offset = 0x4, fixed_abs, tag = 'smem constant byte address 0x4 - core index']
  #allocation1 [shape = 'u32[144,128]{1,0:T(1,128)}', space=vmem, size = 0x12000, scoped, tag = 'internal scratch']
  %s0 = inlined_call_operand.vmem [shape: bf16[2,10,10,8], index: 0, kind: input, shape index: {}]
  %s1 = inlined_call_operand.vmem [shape: bf16[9,8,16], index: 1, kind: input, shape index: {}]
  %s2 = inlined_call_operand.vmem [shape: f32[1,8], index: 2, kind: input, shape index: {}]
  %s3 = inlined_call_operand.vmem [shape: f32[1,8], index: 3, kind: input, shape index: {}]
  %s4 = inlined_call_operand.vmem [shape: bf16[128,16], index: 4, kind: output, shape index: {0}]
  %s5 = inlined_call_operand.vmem [shape: f32[16,16], index: 5, kind: output, shape index: {1}]
  %s6 = inlined_call_operand.vmem [shape: f32[16,16], index: 6, kind: output, shape index: {2}]
  %7 = xla_tuple %s4, %s5, %s6
  %s8 = sld [smem:[#allocation0]]
  $region65: #{upconvblock_forward.5} parent=0
    _
  %s10 = ssub.s32 1, %s8
  %s11 = scalar_select 0, %s10, %s8
  loop: start=0, step=1, limit=4
  $region2: #{upconvblock_forward.5} parent=0 // loop_pre_header
    _
  $region3: #{upconvblock_forward.5} parent=0 // loop_header
    %s13 = sphi 0, %s17
    %p14 = scmp.ge.s32.totalorder %s13, 4
    %s23 = sphi 0, %s25
    %s26 = sphi 0, %s23
    %s27 = sphi 0, %s26
    %s43 = sphi 0, %s27
    %s47 = sphi 0, %s47
    %s49 = sphi 0, %s47
    %s50 = sphi 0, %s49
    %s64 = sphi 0, %s50
    %s68 = sphi 0, %s68
    %s70 = sphi 0, %s68
    %s71 = sphi 0, %s70
    %s85 = sphi 0, %s71
    %s89 = sphi 0, %s89
    %s91 = sphi 0, %s89
    %s92 = sphi 0, %s91
    %s106 = sphi 0, %s92
    %s112 = sphi 0, %s114
    %s115 = sphi 0, %s112
    %s116 = sphi 0, %s115
    %s132 = sphi 0, %s116
    %s138 = sphi 0, %s140
    %s141 = sphi 0, %s138
    %s142 = sphi 0, %s141
    %s158 = sphi 0, %s142
    %s164 = sphi 0, %s166
    %s167 = sphi 0, %s164
    %s168 = sphi 0, %s167
    %s184 = sphi 0, %s168
  $region4: #{upconvblock_forward.5} parent=0 // loop_header_branch
    %16 = sbr.rel (%p14) target = $region8
  $region5: #{upconvblock_forward.5} parent=0 // loop_body
    %s18 = ssub.s32 %s13, 1
    %s19 = ssub.s32 %s13, 2
    %s20 = sadd.s32 %s13, 1
    %s21 = ssub.s32 %s13, %s20
    %p22 = scmp.eq.s32.totalorder %s21, 0
    %s24 = sadd.s32 %s23, 1
    %s25 = scalar_select %p22, %s23, %s24
    %p28 = pneg %p22
    %p29 = scmp.eq.s32.totalorder %s13, 1
    %p30 = por %p28, %p29
    %p31 = scmp.ne.s32.totalorder %s23, %s26
    %p32 = scmp.eq.s32.totalorder %s13, 0
    %p33 = por %p31, %p32
    %p34 = scmp.ne.s32.totalorder %s23, %s26
    %p35 = scmp.eq.s32.totalorder %s18, 1
    %p36 = por %p34, %p35
    %p37 = scmp.ne.s32.totalorder %s26, %s27
    %p38 = scmp.eq.s32.totalorder %s18, 0
    %p39 = por %p37, %p38
    %p40 = scmp.ne.s32.totalorder %s26, %s27
    %p41 = scmp.eq.s32.totalorder %s19, 1
    %p42 = por %p40, %p41
    %p44 = scmp.ne.s32.totalorder %s27, %s43
    %p45 = scmp.eq.s32.totalorder %s19, 0
    %p46 = por %p44, %p45
    %s48 = sadd.s32 %s47, 1
    %p51 = scmp.eq.s32.totalorder %s13, 1
    %p52 = scmp.ne.s32.totalorder %s47, %s49
    %p53 = scmp.eq.s32.totalorder %s13, 0
    %p54 = por %p52, %p53
    %p55 = scmp.ne.s32.totalorder %s47, %s49
    %p56 = scmp.eq.s32.totalorder %s18, 1
    %p57 = por %p55, %p56
    %p58 = scmp.ne.s32.totalorder %s49, %s50
    %p59 = scmp.eq.s32.totalorder %s18, 0
    %p60 = por %p58, %p59
    %p61 = scmp.ne.s32.totalorder %s49, %s50
    %p62 = scmp.eq.s32.totalorder %s19, 1
    %p63 = por %p61, %p62
    %p65 = scmp.ne.s32.totalorder %s50, %s64
    %p66 = scmp.eq.s32.totalorder %s19, 0
    %p67 = por %p65, %p66
    %s69 = sadd.s32 %s68, 1
    %p72 = scmp.eq.s32.totalorder %s13, 1
    %p73 = scmp.ne.s32.totalorder %s68, %s70
    %p74 = scmp.eq.s32.totalorder %s13, 0
    %p75 = por %p73, %p74
    %p76 = scmp.ne.s32.totalorder %s68, %s70
    %p77 = scmp.eq.s32.totalorder %s18, 1
    %p78 = por %p76, %p77
    %p79 = scmp.ne.s32.totalorder %s70, %s71
    %p80 = scmp.eq.s32.totalorder %s18, 0
    %p81 = por %p79, %p80
    %p82 = scmp.ne.s32.totalorder %s70, %s71
    %p83 = scmp.eq.s32.totalorder %s19, 1
    %p84 = por %p82, %p83
    %p86 = scmp.ne.s32.totalorder %s71, %s85
    %p87 = scmp.eq.s32.totalorder %s19, 0
    %p88 = por %p86, %p87
    %s90 = sadd.s32 %s89, 1
    %p93 = scmp.eq.s32.totalorder %s13, 1
    %p94 = scmp.ne.s32.totalorder %s89, %s91
    %p95 = scmp.eq.s32.totalorder %s13, 0
    %p96 = por %p94, %p95
    %p97 = scmp.ne.s32.totalorder %s89, %s91
    %p98 = scmp.eq.s32.totalorder %s18, 1
    %p99 = por %p97, %p98
    %p100 = scmp.ne.s32.totalorder %s91, %s92
    %p101 = scmp.eq.s32.totalorder %s18, 0
    %p102 = por %p100, %p101
    %p103 = scmp.ne.s32.totalorder %s91, %s92
    %p104 = scmp.eq.s32.totalorder %s19, 1
    %p105 = por %p103, %p104
    %p107 = scmp.ne.s32.totalorder %s92, %s106
    %p108 = scmp.eq.s32.totalorder %s19, 0
    %p109 = por %p107, %p108
    %s110 = ssub.s32 %s13, %s20
    %p111 = scmp.eq.s32.totalorder %s110, 0
    %s113 = sadd.s32 %s112, 1
    %s114 = scalar_select %p111, %s112, %s113
    %p117 = pneg %p111
    %p118 = scmp.eq.s32.totalorder %s13, 1
    %p119 = por %p117, %p118
    %p120 = scmp.ne.s32.totalorder %s112, %s115
    %p121 = scmp.eq.s32.totalorder %s13, 0
    %p122 = por %p120, %p121
    %p123 = scmp.ne.s32.totalorder %s112, %s115
    %p124 = scmp.eq.s32.totalorder %s18, 1
    %p125 = por %p123, %p124
    %p126 = scmp.ne.s32.totalorder %s115, %s116
    %p127 = scmp.eq.s32.totalorder %s18, 0
    %p128 = por %p126, %p127
    %p129 = scmp.ne.s32.totalorder %s115, %s116
    %p130 = scmp.eq.s32.totalorder %s19, 1
    %p131 = por %p129, %p130
    %p133 = scmp.ne.s32.totalorder %s116, %s132
    %p134 = scmp.eq.s32.totalorder %s19, 0
    %p135 = por %p133, %p134
    %s136 = ssub.s32 %s13, %s20
    %p137 = scmp.eq.s32.totalorder %s136, 0
    %s139 = sadd.s32 %s138, 1
    %s140 = scalar_select %p137, %s138, %s139
    %p143 = pneg %p137
    %p144 = scmp.eq.s32.totalorder %s13, 1
    %p145 = por %p143, %p144
    %p146 = scmp.ne.s32.totalorder %s138, %s141
    %p147 = scmp.eq.s32.totalorder %s13, 0
    %p148 = por %p146, %p147
    %p149 = scmp.ne.s32.totalorder %s138, %s141
    %p150 = scmp.eq.s32.totalorder %s18, 1
    %p151 = por %p149, %p150
    %p152 = scmp.ne.s32.totalorder %s141, %s142
    %p153 = scmp.eq.s32.totalorder %s18, 0
    %p154 = por %p152, %p153
    %p155 = scmp.ne.s32.totalorder %s141, %s142
    %p156 = scmp.eq.s32.totalorder %s19, 1
    %p157 = por %p155, %p156
    %p159 = scmp.ne.s32.totalorder %s142, %s158
    %p160 = scmp.eq.s32.totalorder %s19, 0
    %p161 = por %p159, %p160
    %s162 = ssub.s32 %s13, %s20
    %p163 = scmp.eq.s32.totalorder %s162, 0
    %s165 = sadd.s32 %s164, 1
    %s166 = scalar_select %p163, %s164, %s165
    %p169 = pneg %p163
    %p170 = scmp.eq.s32.totalorder %s13, 1
    %p171 = por %p169, %p170
    %p172 = scmp.ne.s32.totalorder %s164, %s167
    %p173 = scmp.eq.s32.totalorder %s13, 0
    %p174 = por %p172, %p173
    %p175 = scmp.ne.s32.totalorder %s164, %s167
    %p176 = scmp.eq.s32.totalorder %s18, 1
    %p177 = por %p175, %p176
    %p178 = scmp.ne.s32.totalorder %s167, %s168
    %p179 = scmp.eq.s32.totalorder %s18, 0
    %p180 = por %p178, %p179
    %p181 = scmp.ne.s32.totalorder %s167, %s168
    %p182 = scmp.eq.s32.totalorder %s19, 1
    %p183 = por %p181, %p182
    %p185 = scmp.ne.s32.totalorder %s168, %s184
    %p186 = scmp.eq.s32.totalorder %s19, 0
    %p187 = por %p185, %p186
    %p188 = scmp.le.s32.totalorder 1, %s13
    %p189 = scmp.lt.s32.totalorder %s13, 3
    %p190 = pnand %p188, %p189
    %p191 = pneg %p190
    // Predicated region
    $region9: #{upconvblock_forward.5} parent=5 // pred_check
      _
    $region10: #{upconvblock_forward.5} parent=5 // pred_check_branch
      %193 = sbr.rel (%p190) target = $region12
    $region11: #{upconvblock_forward.5} parent=5 // pred_region
      %s194 = ssub.s32 %s13, 1
      // Predicated region
      $region13: #{upconvblock_forward.5} parent=11 // pred_check
        %p195 = pneg %p60
      $region14: #{upconvblock_forward.5} parent=11 // pred_check_branch
        %197 = sbr.rel (%p195) target = $region16
      $region15: #{upconvblock_forward.5} parent=11 // pred_region
        _
      $region16: #{upconvblock_forward.5} parent=11 // pred_fallthru
        _
      // Predicated region
      $region17: #{upconvblock_forward.5} parent=11 // pred_check
        %p198 = pneg %p81
      $region18: #{upconvblock_forward.5} parent=11 // pred_check_branch
        %200 = sbr.rel (%p198) target = $region20
      $region19: #{upconvblock_forward.5} parent=11 // pred_region
        _
      $region20: #{upconvblock_forward.5} parent=11 // pred_fallthru
        _
      // Predicated region
      $region21: #{upconvblock_forward.5} parent=11 // pred_check
        %p201 = pneg %p102
      $region22: #{upconvblock_forward.5} parent=11 // pred_check_branch
        %203 = sbr.rel (%p201) target = $region24
      $region23: #{upconvblock_forward.5} parent=11 // pred_region
        _
      $region24: #{upconvblock_forward.5} parent=11 // pred_fallthru
        _
    $region12: #{upconvblock_forward.5} parent=5 // pred_fallthru
      _
    %p204 = scmp.lt.s32.totalorder %s13, 2
    // Predicated region
    $region25: #{upconvblock_forward.5} parent=5 // pred_check
      %p205 = pneg %p204
    $region26: #{upconvblock_forward.5} parent=5 // pred_check_branch
      %207 = sbr.rel (%p205) target = $region28
    $region27: #{upconvblock_forward.5} parent=5 // pred_region
      // Predicated region
      $region29: #{upconvblock_forward.5} parent=27 // pred_check
        %p208 = pneg %p33
      $region30: #{upconvblock_forward.5} parent=27 // pred_check_branch
        %210 = sbr.rel (%p208) target = $region32
      $region31: #{upconvblock_forward.5} parent=27 // pred_region
        %p211 = scmp.lt.s32.totalorder %s13, 1
        %s212 = scalar_select %p211, %s13, 1
        %s213 = smul.addr %s212, 20
        %s214 = smul.addr %s213, 4
        %s215 = scalar_lea.vmem %s0, %s214
      $region32: #{upconvblock_forward.5} parent=27 // pred_fallthru
        _
    $region28: #{upconvblock_forward.5} parent=5 // pred_fallthru
      _
    %p216 = scmp.le.s32.totalorder 1, %s13
    %p217 = scmp.lt.s32.totalorder %s13, 3
    %p218 = pnand %p216, %p217
    %p219 = pneg %p218
    // Predicated region
    $region33: #{upconvblock_forward.5} parent=5 // pred_check
      _
    $region34: #{upconvblock_forward.5} parent=5 // pred_check_branch
      %221 = sbr.rel (%p218) target = $region36
    $region35: #{upconvblock_forward.5} parent=5 // pred_region
      %s222 = ssub.s32 %s13, 1
      %p223 = scmp.lt.s32.totalorder %s18, 1
      %s224 = scalar_select %p223, %s18, 1
      %s225 = smul.addr %s224, 20
      %s226 = smul.addr %s225, 4
      %s227 = scalar_lea.vmem %s0, %s226
      %p228 = pneg %p39
      %p229 = pneg %p36
      %p230 = pneg %p60
      %p231 = pneg %p57
      %p232 = pneg %p81
      %p233 = pneg %p78
      %p234 = pneg %p102
      %p235 = pneg %p99
      %p236 = pneg %p128
      %p237 = pneg %p125
      %s238 = smul.u32 8, %s18
      %p239 = scmp.lt.s32.totalorder %s238, 15
      %s240 = scalar_select %p239, %s238, 15
      %s241 = smul.addr %s240, 4
      %s242 = scalar_lea.vmem %s4, %s241
      %p243 = pneg %p154
      %p244 = pneg %p151
      %p245 = scmp.lt.s32.totalorder %s18, 1
      %s246 = scalar_select %p245, %s18, 1
      %s247 = smul.addr %s246, 8
      %s248 = scalar_lea.vmem %s5, %s247
      %p249 = pneg %p180
      %p250 = pneg %p177
      %p251 = scmp.lt.s32.totalorder %s18, 1
      %s252 = scalar_select %p251, %s18, 1
      %s253 = smul.addr %s252, 8
      %s254 = scalar_lea.vmem %s6, %s253
      %p255 = scmp.lt.s32.totalorder %s18, 1
      %s256 = scalar_select %p255, %s18, 1
      %s257 = smul.addr %s256, 20
      %s258 = smul.addr %s257, 4
      %s259 = scalar_lea.vmem %s0, %s258
      %s260 = smul.u32 8, %s18
      %p261 = scmp.lt.s32.totalorder %s260, 15
      %s262 = scalar_select %p261, %s260, 15
      %s263 = smul.addr %s262, 4
      %s264 = scalar_lea.vmem %s4, %s263
      %s265 = smul.u32 8, %s18
      %p266 = scmp.lt.s32.totalorder %s18, 1
      %s267 = scalar_select %p266, %s18, 1
      %s268 = smul.addr %s267, 8
      %s269 = scalar_lea.vmem %s5, %s268
      %p270 = scmp.lt.s32.totalorder %s18, 1
      %s271 = scalar_select %p270, %s18, 1
      %s272 = smul.addr %s271, 8
      %s273 = scalar_lea.vmem %s6, %s272
      %v275 = vld [vmem:[%s259] sm:$0xf]
      %v276 = vld [vmem:[%s259 + $0x4] sm:$0x1]
      %v277 = vld [vmem:[%s259 + $0x8] sm:$0xf]
      %v278 = vld [vmem:[%s259 + $0xc] sm:$0x1]
      %v279 = vld [vmem:[%s259 + $0x10] sm:$0xf]
      %v280 = vld [vmem:[%s259 + $0x14] sm:$0x1]
      %v281 = vld [vmem:[%s259 + $0x18] sm:$0xf]
      %v282 = vld [vmem:[%s259 + $0x1c] sm:$0x1]
      %v283 = vld [vmem:[%s259 + $0x20] sm:$0xf]
      %v284 = vld [vmem:[%s259 + $0x24] sm:$0x1]
      %v285 = vld [vmem:[%s259 + $0x28] sm:$0xf]
      %v286 = vld [vmem:[%s259 + $0x2c] sm:$0x1]
      %v287 = vld [vmem:[%s259 + $0x30] sm:$0xf]
      %v288 = vld [vmem:[%s259 + $0x34] sm:$0x1]
      %v289 = vld [vmem:[%s259 + $0x38] sm:$0xf]
      %v290 = vld [vmem:[%s259 + $0x3c] sm:$0x1]
      %v291 = vld [vmem:[%s259 + $0x40] sm:$0xf]
      %v292 = vld [vmem:[%s259 + $0x44] sm:$0x1]
      %v293 = vld [vmem:[%s259 + $0x48] sm:$0xf]
      %v294 = vld [vmem:[%s259 + $0x4c] sm:$0x1]
      %v295 = vld [vmem:[%s1] sm:$0xf]
      %vm296 = vsmask.f32 3328
      %vm297 = vsmask.f32 7440
      %vm298 = vmor %vm296, %vm297
      %v300 = vshrl.u32 %v275, 16
      %v302 = vrot.slane %v300, 4
      %v303 = vshll.u32 %v275, 16
      %v305 = vrot.slane %v303, 5
      %v306 = vor.u32 %v302, %v305
      %v307 = vrot.slane %v306, 4
      %v309 = vshll.u32 %v276, 16
      %v311 = vrot.slane %v309, 5
      %v312 = vsel %vm298, %v307, %v311
      %v314 = vshrl.u32 %v277, 16
      %v316 = vrot.slane %v314, 4
      %v317 = vshll.u32 %v277, 16
      %v319 = vrot.slane %v317, 5
      %v320 = vor.u32 %v316, %v319
      %v321 = vrot.slane %v320, 4
      %v323 = vshll.u32 %v278, 16
      %v325 = vrot.slane %v323, 5
      %v326 = vsel %vm298, %v321, %v325
      %v328 = vshrl.u32 %v279, 16
      %v330 = vrot.slane %v328, 4
      %v331 = vshll.u32 %v279, 16
      %v333 = vrot.slane %v331, 5
      %v334 = vor.u32 %v330, %v333
      %v335 = vrot.slane %v334, 4
      %v337 = vshll.u32 %v280, 16
      %v339 = vrot.slane %v337, 5
      %v340 = vsel %vm298, %v335, %v339
      %v342 = vshrl.u32 %v281, 16
      %v344 = vrot.slane %v342, 4
      %v345 = vshll.u32 %v281, 16
      %v347 = vrot.slane %v345, 5
      %v348 = vor.u32 %v344, %v347
      %v349 = vrot.slane %v348, 4
      %v351 = vshll.u32 %v282, 16
      %v353 = vrot.slane %v351, 5
      %v354 = vsel %vm298, %v349, %v353
      %v356 = vshrl.u32 %v283, 16
      %v358 = vrot.slane %v356, 4
      %v359 = vshll.u32 %v283, 16
      %v361 = vrot.slane %v359, 5
      %v362 = vor.u32 %v358, %v361
      %v363 = vrot.slane %v362, 4
      %v365 = vshll.u32 %v284, 16
      %v367 = vrot.slane %v365, 5
      %v368 = vsel %vm298, %v363, %v367
      %v370 = vshrl.u32 %v285, 16
      %v372 = vrot.slane %v370, 4
      %v373 = vshll.u32 %v285, 16
      %v375 = vrot.slane %v373, 5
      %v376 = vor.u32 %v372, %v375
      %v377 = vrot.slane %v376, 4
      %v379 = vshll.u32 %v286, 16
      %v381 = vrot.slane %v379, 5
      %v382 = vsel %vm298, %v377, %v381
      %v384 = vshrl.u32 %v287, 16
      %v386 = vrot.slane %v384, 4
      %v387 = vshll.u32 %v287, 16
      %v389 = vrot.slane %v387, 5
      %v390 = vor.u32 %v386, %v389
      %v391 = vrot.slane %v390, 4
      %v393 = vshll.u32 %v288, 16
      %v395 = vrot.slane %v393, 5
      %v396 = vsel %vm298, %v391, %v395
      %v398 = vshrl.u32 %v289, 16
      %v400 = vrot.slane %v398, 4
      %v401 = vshll.u32 %v289, 16
      %v403 = vrot.slane %v401, 5
      %v404 = vor.u32 %v400, %v403
      %v405 = vrot.slane %v404, 4
      %v407 = vshll.u32 %v290, 16
      %v409 = vrot.slane %v407, 5
      %v410 = vsel %vm298, %v405, %v409
      %s411 = scalar_lea.vmem %s1, 4
      %v412 = vld [vmem:[%s411] sm:$0xf]
      %v413 = vunpack.c.l.b16 %v312
      %v414 = vunpack.c.l.b16 %v326
      %v415 = vunpack.c.l.b16 %v340
      %v416 = vunpack.c.l.b16 %v354
      %v417 = vunpack.c.l.b16 %v368
      %v418 = vunpack.c.l.b16 %v382
      %v419 = vunpack.c.l.b16 %v396
      %v420 = vunpack.c.l.b16 %v410
      %v421 = vpack.c.b16 %v414, %v413
      %v422 = vpack.c.b16 %v416, %v415
      %v423 = vpack.c.b16 %v418, %v417
      %v424 = vpack.c.b16 %v420, %v419
      %vm425 = vcmask 64512
      %v427 = vsel %vm425, %v421, 0
      %v430 = vsel %vm425, %v422, 0
      %v433 = vsel %vm425, %v423, 0
      %v436 = vsel %vm425, %v424, 0
      %vm438 = vcmask 1043456
      %v440 = vsel %vm438, %v412, 0
      %442 = vmatprep.subr.bf16.mxu0 0
      %443 = vmatpush1.bf16.msra.mxu0 %v440
      %444 = vmatprep.subr.bf16.mxu0 0
      %445 = vmatpush1.bf16.msra.mxu0 0
      %446 = vmatprep.subr.bf16.mxu0 0
      %447 = vmatpush1.bf16.msra.mxu0 0
      %448 = vmatprep.subr.bf16.mxu0 0
      %449 = vmatpush1.bf16.msra.mxu0 0
      %450 = vmatprep.subr.bf16.mxu0 0
      %451 = vmatpush1.bf16.msra.mxu0 0
      %452 = vmatprep.subr.bf16.mxu0 0
      %453 = vmatpush1.bf16.msra.mxu0 0
      %454 = vmatprep.subr.bf16.mxu0 0
      %455 = vmatpush1.bf16.msra.mxu0 0
      %456 = vmatprep.subr.bf16.mxu0 0
      %457 = vmatpush1.bf16.msra.mxu0 0
      %458 = vmatprep.subr.bf16.mxu0 0
      %459 = vmatpush1.bf16.msra.mxu0 0
      %460 = vmatprep.subr.bf16.mxu0 0
      %461 = vmatpush1.bf16.msra.mxu0 0
      %462 = vmatprep.subr.bf16.mxu0 0
      %463 = vmatpush1.bf16.msra.mxu0 0
      %464 = vmatprep.subr.bf16.mxu0 0
      %465 = vmatpush1.bf16.msra.mxu0 0
      %466 = vmatprep.subr.bf16.mxu0 0
      %467 = vmatpush1.bf16.msra.mxu0 0
      %468 = vmatprep.subr.bf16.mxu0 0
      %469 = vmatpush1.bf16.msra.mxu0 0
      %470 = vmatprep.subr.bf16.mxu0 0
      %471 = vmatpush1.bf16.msra.mxu0 0
      %472 = vmatprep.subr.bf16.mxu0 0
      %473 = vmatpush1.bf16.msra.mxu0 0
      %474 = vmatprep.mubr.bf16.mxu0 0
      %475 = vmatmul.mubr.bf16.gmra.mrb[0].mxu0 %v427
      %v476 = vpop.f32.mrb[0].mxu0
      %v477 = vadd.f32 0.0, %v476
      %v478 = vpop.f32.mrb[0].mxu0
      %v479 = vpop.f32.mrb[0].mxu0
      %v480 = vadd.f32 0.0, %v479
      %v481 = vpop.f32.mrb[0].mxu0
      %482 = vmatprep.mubr.bf16.mxu0 0
      %483 = vmatmul.mubr.bf16.gmra.mrb[0].mxu0 %v430
      %v484 = vpop.f32.mrb[0].mxu0
      %v485 = vadd.f32 0.0, %v484
      %v486 = vpop.f32.mrb[0].mxu0
      %v487 = vpop.f32.mrb[0].mxu0
      %v488 = vadd.f32 0.0, %v487
      %v489 = vpop.f32.mrb[0].mxu0
      %490 = vmatprep.mubr.bf16.mxu0 0
      %491 = vmatmul.mubr.bf16.gmra.mrb[0].mxu0 %v433
      %v492 = vpop.f32.mrb[0].mxu0
      %v493 = vadd.f32 0.0, %v492
      %v494 = vpop.f32.mrb[0].mxu0
      %v495 = vpop.f32.mrb[0].mxu0
      %v496 = vadd.f32 0.0, %v495
      %v497 = vpop.f32.mrb[0].mxu0
      %498 = vmatprep.mubr.bf16.mxu0 0
      %499 = vmatmul.mubr.bf16.gmra.mrb[0].mxu0 %v436
      %v500 = vpop.f32.mrb[0].mxu0
      %v501 = vadd.f32 0.0, %v500
      %v502 = vpop.f32.mrb[0].mxu0
      %v503 = vpop.f32.mrb[0].mxu0
      %v504 = vadd.f32 0.0, %v503
      %v505 = vpop.f32.mrb[0].mxu0
      %506 = vdwg.mxu0
      %v515 = vunpack.c.l.b16 %v275
      %v516 = vunpack.c.l.b16 %v277
      %v517 = vunpack.c.l.b16 %v279
      %v518 = vunpack.c.l.b16 %v281
      %v519 = vunpack.c.l.b16 %v283
      %v520 = vunpack.c.l.b16 %v285
      %v521 = vunpack.c.l.b16 %v287
      %v522 = vunpack.c.l.b16 %v289
      %v523 = vpack.c.b16 %v516, %v515
      %v524 = vpack.c.b16 %v518, %v517
      %v525 = vpack.c.b16 %v520, %v519
      %v526 = vpack.c.b16 %v522, %v521
      %v528 = vsel %vm425, %v523, 0
      %v531 = vsel %vm425, %v524, 0
      %v534 = vsel %vm425, %v525, 0
      %v537 = vsel %vm425, %v526, 0
      %v540 = vsel %vm438, %v295, 0
      %542 = vmatprep.subr.bf16.mxu0 0
      %543 = vmatpush1.bf16.msra.mxu0 %v540
      %544 = vmatprep.subr.bf16.mxu0 0
      %545 = vmatpush1.bf16.msra.mxu0 0
      %546 = vmatprep.subr.bf16.mxu0 0
      %547 = vmatpush1.bf16.msra.mxu0 0
      %548 = vmatprep.subr.bf16.mxu0 0
      %549 = vmatpush1.bf16.msra.mxu0 0
      %550 = vmatprep.subr.bf16.mxu0 0
      %551 = vmatpush1.bf16.msra.mxu0 0
      %552 = vmatprep.subr.bf16.mxu0 0
      %553 = vmatpush1.bf16.msra.mxu0 0
      %554 = vmatprep.subr.bf16.mxu0 0
      %555 = vmatpush1.bf16.msra.mxu0 0
      %556 = vmatprep.subr.bf16.mxu0 0
      %557 = vmatpush1.bf16.msra.mxu0 0
      %558 = vmatprep.subr.bf16.mxu0 0
      %559 = vmatpush1.bf16.msra.mxu0 0
      %560 = vmatprep.subr.bf16.mxu0 0
      %561 = vmatpush1.bf16.msra.mxu0 0
      %562 = vmatprep.subr.bf16.mxu0 0
      %563 = vmatpush1.bf16.msra.mxu0 0
      %564 = vmatprep.subr.bf16.mxu0 0
      %565 = vmatpush1.bf16.msra.mxu0 0
      %566 = vmatprep.subr.bf16.mxu0 0
      %567 = vmatpush1.bf16.msra.mxu0 0
      %568 = vmatprep.subr.bf16.mxu0 0
      %569 = vmatpush1.bf16.msra.mxu0 0
      %570 = vmatprep.subr.bf16.mxu0 0
      %571 = vmatpush1.bf16.msra.mxu0 0
      %572 = vmatprep.subr.bf16.mxu0 0
      %573 = vmatpush1.bf16.msra.mxu0 0
      %574 = vmatprep.mubr.bf16.mxu0 0
      %575 = vmatmul.mubr.bf16.gmra.mrb[0].mxu0 %v528
      %v576 = vpop.f32.mrb[0].mxu0
      %v577 = vadd.f32 %v477, %v576
      %v578 = vpop.f32.mrb[0].mxu0
      %v579 = vpop.f32.mrb[0].mxu0
      %v580 = vadd.f32 %v480, %v579
      %v581 = vpop.f32.mrb[0].mxu0
      %582 = vmatprep.mubr.bf16.mxu0 0
      %583 = vmatmul.mubr.bf16.gmra.mrb[0].mxu0 %v531
      %v584 = vpop.f32.mrb[0].mxu0
      %v585 = vadd.f32 %v485, %v584
      %v586 = vpop.f32.mrb[0].mxu0
      %v587 = vpop.f32.mrb[0].mxu0
      %v588 = vadd.f32 %v488, %v587
      %v589 = vpop.f32.mrb[0].mxu0
      %590 = vmatprep.mubr.bf16.mxu0 0
      %591 = vmatmul.mubr.bf16.gmra.mrb[0].mxu0 %v534
      %v592 = vpop.f32.mrb[0].mxu0
      %v593 = vadd.f32 %v493, %v592
      %v594 = vpop.f32.mrb[0].mxu0
      %v595 = vpop.f32.mrb[0].mxu0
      %v596 = vadd.f32 %v496, %v595
      %v597 = vpop.f32.mrb[0].mxu0
      %598 = vmatprep.mubr.bf16.mxu0 0
      %599 = vmatmul.mubr.bf16.gmra.mrb[0].mxu0 %v537
      %v600 = vpop.f32.mrb[0].mxu0
      %v601 = vadd.f32 %v501, %v600
      %v602 = vpop.f32.mrb[0].mxu0
      %v603 = vpop.f32.mrb[0].mxu0
      %v604 = vadd.f32 %v504, %v603
      %v605 = vpop.f32.mrb[0].mxu0
      %606 = vdwg.mxu0
      %vm615 = vcmask 1042432
      %vm616 = vcmask 1046532
      %vm617 = vmor %vm615, %vm616
      %v618 = vrot.slane %v275, 5
      %v619 = vrot.slane %v618, 4
      %v620 = vrot.slane %v276, 5
      %v621 = vsel %vm617, %v619, %v620
      %v622 = vrot.slane %v277, 5
      %v623 = vrot.slane %v622, 4
      %v624 = vrot.slane %v278, 5
      %v625 = vsel %vm617, %v623, %v624
      %v626 = vrot.slane %v279, 5
      %v627 = vrot.slane %v626, 4
      %v628 = vrot.slane %v280, 5
      %v629 = vsel %vm617, %v627, %v628
      %v630 = vrot.slane %v281, 5
      %v631 = vrot.slane %v630, 4
      %v632 = vrot.slane %v282, 5
      %v633 = vsel %vm617, %v631, %v632
      %v634 = vrot.slane %v283, 5
      %v635 = vrot.slane %v634, 4
      %v636 = vrot.slane %v284, 5
      %v637 = vsel %vm617, %v635, %v636
      %v638 = vrot.slane %v285, 5
      %v639 = vrot.slane %v638, 4
      %v640 = vrot.slane %v286, 5
      %v641 = vsel %vm617, %v639, %v640
      %v642 = vrot.slane %v287, 5
      %v643 = vrot.slane %v642, 4
      %v644 = vrot.slane %v288, 5
      %v645 = vsel %vm617, %v643, %v644
      %v646 = vrot.slane %v289, 5
      %v647 = vrot.slane %v646, 4
      %v648 = vrot.slane %v290, 5
      %v649 = vsel %vm617, %v647, %v648
      %s650 = scalar_lea.vmem %s1, 8
      %v651 = vld [vmem:[%s650] sm:$0xf]
      %v652 = vunpack.c.l.b16 %v621
      %v653 = vunpack.c.l.b16 %v625
      %v654 = vunpack.c.l.b16 %v629
      %v655 = vunpack.c.l.b16 %v633
      %v656 = vunpack.c.l.b16 %v637
      %v657 = vunpack.c.l.b16 %v641
      %v658 = vunpack.c.l.b16 %v645
      %v659 = vunpack.c.l.b16 %v649
      %v660 = vpack.c.b16 %v653, %v652
      %v661 = vpack.c.b16 %v655, %v654
      %v662 = vpack.c.b16 %v657, %v656
      %v663 = vpack.c.b16 %v659, %v658
      %v665 = vsel %vm425, %v660, 0
      %v668 = vsel %vm425, %v661, 0
      %v671 = vsel %vm425, %v662, 0
      %v674 = vsel %vm425, %v663, 0
      %v677 = vsel %vm438, %v651, 0
      %679 = vmatprep.subr.bf16.mxu0 0
      %680 = vmatpush1.bf16.msra.mxu0 %v677
      %681 = vmatprep.subr.bf16.mxu0 0
      %682 = vmatpush1.bf16.msra.mxu0 0
      %683 = vmatprep.subr.bf16.mxu0 0
      %684 = vmatpush1.bf16.msra.mxu0 0
      %685 = vmatprep.subr.bf16.mxu0 0
      %686 = vmatpush1.bf16.msra.mxu0 0
      %687 = vmatprep.subr.bf16.mxu0 0
      %688 = vmatpush1.bf16.msra.mxu0 0
      %689 = vmatprep.subr.bf16.mxu0 0
      %690 = vmatpush1.bf16.msra.mxu0 0
      %691 = vmatprep.subr.bf16.mxu0 0
      %692 = vmatpush1.bf16.msra.mxu0 0
      %693 = vmatprep.subr.bf16.mxu0 0
      %694 = vmatpush1.bf16.msra.mxu0 0
      %695 = vmatprep.subr.bf16.mxu0 0
      %696 = vmatpush1.bf16.msra.mxu0 0
      %697 = vmatprep.subr.bf16.mxu0 0
      %698 = vmatpush1.bf16.msra.mxu0 0
      %699 = vmatprep.subr.bf16.mxu0 0
      %700 = vmatpush1.bf16.msra.mxu0 0
      %701 = vmatprep.subr.bf16.mxu0 0
      %702 = vmatpush1.bf16.msra.mxu0 0
      %703 = vmatprep.subr.bf16.mxu0 0
      %704 = vmatpush1.bf16.msra.mxu0 0
      %705 = vmatprep.subr.bf16.mxu0 0
      %706 = vmatpush1.bf16.msra.mxu0 0
      %707 = vmatprep.subr.bf16.mxu0 0
      %708 = vmatpush1.bf16.msra.mxu0 0
      %709 = vmatprep.subr.bf16.mxu0 0
      %710 = vmatpush1.bf16.msra.mxu0 0
      %711 = vmatprep.mubr.bf16.mxu0 0
      %712 = vmatmul.mubr.bf16.gmra.mrb[0].mxu0 %v665
      %v713 = vpop.f32.mrb[0].mxu0
      %v714 = vadd.f32 0.0, %v713
      %v715 = vpop.f32.mrb[0].mxu0
      %v716 = vpop.f32.mrb[0].mxu0
      %v717 = vadd.f32 0.0, %v716
      %v718 = vpop.f32.mrb[0].mxu0
      %719 = vmatprep.mubr.bf16.mxu0 0
      %720 = vmatmul.mubr.bf16.gmra.mrb[0].mxu0 %v668
      %v721 = vpop.f32.mrb[0].mxu0
      %v722 = vadd.f32 0.0, %v721
      %v723 = vpop.f32.mrb[0].mxu0
      %v724 = vpop.f32.mrb[0].mxu0
      %v725 = vadd.f32 0.0, %v724
      %v726 = vpop.f32.mrb[0].mxu0
      %727 = vmatprep.mubr.bf16.mxu0 0
      %728 = vmatmul.mubr.bf16.gmra.mrb[0].mxu0 %v671
      %v729 = vpop.f32.mrb[0].mxu0
      %v730 = vadd.f32 0.0, %v729
      %v731 = vpop.f32.mrb[0].mxu0
      %v732 = vpop.f32.mrb[0].mxu0
      %v733 = vadd.f32 0.0, %v732
      %v734 = vpop.f32.mrb[0].mxu0
      %735 = vmatprep.mubr.bf16.mxu0 0
      %736 = vmatmul.mubr.bf16.gmra.mrb[0].mxu0 %v674
      %v737 = vpop.f32.mrb[0].mxu0
      %v738 = vadd.f32 0.0, %v737
      %v739 = vpop.f32.mrb[0].mxu0
      %v740 = vpop.f32.mrb[0].mxu0
      %v741 = vadd.f32 0.0, %v740
      %v742 = vpop.f32.mrb[0].mxu0
      %743 = vdwg.mxu0
      %v744 = vadd.f32 %v577, %v714
      %v745 = vadd.f32 %v580, %v717
      %v746 = vadd.f32 %v585, %v722
      %v747 = vadd.f32 %v588, %v725
      %v748 = vadd.f32 %v593, %v730
      %v749 = vadd.f32 %v596, %v733
      %v750 = vadd.f32 %v601, %v738
      %v751 = vadd.f32 %v604, %v741
      %s752 = scalar_lea.vmem %s1, 12
      %v753 = vld [vmem:[%s752] sm:$0xf]
      %v755 = vunpack.c.l.b16 %v291
      %v756 = vpack.c.b16 %v517, %v516
      %v757 = vpack.c.b16 %v519, %v518
      %v758 = vpack.c.b16 %v521, %v520
      %v759 = vpack.c.b16 %v755, %v522
      %v761 = vsel %vm425, %v756, 0
      %v764 = vsel %vm425, %v757, 0
      %v767 = vsel %vm425, %v758, 0
      %v770 = vsel %vm425, %v759, 0
      %v773 = vsel %vm438, %v753, 0
      %775 = vmatprep.subr.bf16.mxu0 0
      %776 = vmatpush1.bf16.msra.mxu0 %v773
      %777 = vmatprep.subr.bf16.mxu0 0
      %778 = vmatpush1.bf16.msra.mxu0 0
      %779 = vmatprep.subr.bf16.mxu0 0
      %780 = vmatpush1.bf16.msra.mxu0 0
      %781 = vmatprep.subr.bf16.mxu0 0
      %782 = vmatpush1.bf16.msra.mxu0 0
      %783 = vmatprep.subr.bf16.mxu0 0
      %784 = vmatpush1.bf16.msra.mxu0 0
      %785 = vmatprep.subr.bf16.mxu0 0
      %786 = vmatpush1.bf16.msra.mxu0 0
      %787 = vmatprep.subr.bf16.mxu0 0
      %788 = vmatpush1.bf16.msra.mxu0 0
      %789 = vmatprep.subr.bf16.mxu0 0
      %790 = vmatpush1.bf16.msra.mxu0 0
      %791 = vmatprep.subr.bf16.mxu0 0
      %792 = vmatpush1.bf16.msra.mxu0 0
      %793 = vmatprep.subr.bf16.mxu0 0
      %794 = vmatpush1.bf16.msra.mxu0 0
      %795 = vmatprep.subr.bf16.mxu0 0
      %796 = vmatpush1.bf16.msra.mxu0 0
      %797 = vmatprep.subr.bf16.mxu0 0
      %798 = vmatpush1.bf16.msra.mxu0 0
      %799 = vmatprep.subr.bf16.mxu0 0
      %800 = vmatpush1.bf16.msra.mxu0 0
      %801 = vmatprep.subr.bf16.mxu0 0
      %802 = vmatpush1.bf16.msra.mxu0 0
      %803 = vmatprep.subr.bf16.mxu0 0
      %804 = vmatpush1.bf16.msra.mxu0 0
      %805 = vmatprep.subr.bf16.mxu0 0
      %806 = vmatpush1.bf16.msra.mxu0 0
      %807 = vmatprep.mubr.bf16.mxu0 0
      %808 = vmatmul.mubr.bf16.gmra.mrb[0].mxu0 %v761
      %v809 = vpop.f32.mrb[0].mxu0
      %v810 = vadd.f32 0.0, %v809
      %v811 = vpop.f32.mrb[0].mxu0
      %v812 = vpop.f32.mrb[0].mxu0
      %v813 = vadd.f32 0.0, %v812
      %v814 = vpop.f32.mrb[0].mxu0
      %815 = vmatprep.mubr.bf16.mxu0 0
      %816 = vmatmul.mubr.bf16.gmra.mrb[0].mxu0 %v764
      %v817 = vpop.f32.mrb[0].mxu0
      %v818 = vadd.f32 0.0, %v817
      %v819 = vpop.f32.mrb[0].mxu0
      %v820 = vpop.f32.mrb[0].mxu0
      %v821 = vadd.f32 0.0, %v820
      %v822 = vpop.f32.mrb[0].mxu0
      %823 = vmatprep.mubr.bf16.mxu0 0
      %824 = vmatmul.mubr.bf16.gmra.mrb[0].mxu0 %v767
      %v825 = vpop.f32.mrb[0].mxu0
      %v826 = vadd.f32 0.0, %v825
      %v827 = vpop.f32.mrb[0].mxu0
      %v828 = vpop.f32.mrb[0].mxu0
      %v829 = vadd.f32 0.0, %v828
      %v830 = vpop.f32.mrb[0].mxu0
      %831 = vmatprep.mubr.bf16.mxu0 0
      %832 = vmatmul.mubr.bf16.gmra.mrb[0].mxu0 %v770
      %v833 = vpop.f32.mrb[0].mxu0
      %v834 = vadd.f32 0.0, %v833
      %v835 = vpop.f32.mrb[0].mxu0
      %v836 = vpop.f32.mrb[0].mxu0
      %v837 = vadd.f32 0.0, %v836
      %v838 = vpop.f32.mrb[0].mxu0
      %839 = vdwg.mxu0
      %v840 = vadd.f32 %v744, %v810
      %v841 = vadd.f32 %v745, %v813
      %v842 = vadd.f32 %v746, %v818
      %v843 = vadd.f32 %v747, %v821
      %v844 = vadd.f32 %v748, %v826
      %v845 = vadd.f32 %v749, %v829
      %v846 = vadd.f32 %v750, %v834
      %v847 = vadd.f32 %v751, %v837
      %v849 = vshrl.u32 %v291, 16
      %v851 = vrot.slane %v849, 4
      %v852 = vshll.u32 %v291, 16
      %v854 = vrot.slane %v852, 5
      %v855 = vor.u32 %v851, %v854
      %v856 = vrot.slane %v855, 4
      %v858 = vshll.u32 %v292, 16
      %v860 = vrot.slane %v858, 5
      %v861 = vsel %vm298, %v856, %v860
      %s862 = scalar_lea.vmem %s1, 16
      %v863 = vld [vmem:[%s862] sm:$0xf]
      %v864 = vunpack.c.l.b16 %v861
      %v865 = vpack.c.b16 %v415, %v414
      %v866 = vpack.c.b16 %v417, %v416
      %v867 = vpack.c.b16 %v419, %v418
      %v868 = vpack.c.b16 %v864, %v420
      %v870 = vsel %vm425, %v865, 0
      %v873 = vsel %vm425, %v866, 0
      %v876 = vsel %vm425, %v867, 0
      %v879 = vsel %vm425, %v868, 0
      %v882 = vsel %vm438, %v863, 0
      %884 = vmatprep.subr.bf16.mxu0 0
      %885 = vmatpush1.bf16.msra.mxu0 %v882
      %886 = vmatprep.subr.bf16.mxu0 0
      %887 = vmatpush1.bf16.msra.mxu0 0
      %888 = vmatprep.subr.bf16.mxu0 0
      %889 = vmatpush1.bf16.msra.mxu0 0
      %890 = vmatprep.subr.bf16.mxu0 0
      %891 = vmatpush1.bf16.msra.mxu0 0
      %892 = vmatprep.subr.bf16.mxu0 0
      %893 = vmatpush1.bf16.msra.mxu0 0
      %894 = vmatprep.subr.bf16.mxu0 0
      %895 = vmatpush1.bf16.msra.mxu0 0
      %896 = vmatprep.subr.bf16.mxu0 0
      %897 = vmatpush1.bf16.msra.mxu0 0
      %898 = vmatprep.subr.bf16.mxu0 0
      %899 = vmatpush1.bf16.msra.mxu0 0
      %900 = vmatprep.subr.bf16.mxu0 0
      %901 = vmatpush1.bf16.msra.mxu0 0
      %902 = vmatprep.subr.bf16.mxu0 0
      %903 = vmatpush1.bf16.msra.mxu0 0
      %904 = vmatprep.subr.bf16.mxu0 0
      %905 = vmatpush1.bf16.msra.mxu0 0
      %906 = vmatprep.subr.bf16.mxu0 0
      %907 = vmatpush1.bf16.msra.mxu0 0
      %908 = vmatprep.subr.bf16.mxu0 0
      %909 = vmatpush1.bf16.msra.mxu0 0
      %910 = vmatprep.subr.bf16.mxu0 0
      %911 = vmatpush1.bf16.msra.mxu0 0
      %912 = vmatprep.subr.bf16.mxu0 0
      %913 = vmatpush1.bf16.msra.mxu0 0
      %914 = vmatprep.subr.bf16.mxu0 0
      %915 = vmatpush1.bf16.msra.mxu0 0
      %916 = vmatprep.mubr.bf16.mxu0 0
      %917 = vmatmul.mubr.bf16.gmra.mrb[0].mxu0 %v870
      %v918 = vpop.f32.mrb[0].mxu0
      %v919 = vadd.f32 0.0, %v918
      %v920 = vpop.f32.mrb[0].mxu0
      %v921 = vpop.f32.mrb[0].mxu0
      %v922 = vadd.f32 0.0, %v921
      %v923 = vpop.f32.mrb[0].mxu0
      %924 = vmatprep.mubr.bf16.mxu0 0
      %925 = vmatmul.mubr.bf16.gmra.mrb[0].mxu0 %v873
      %v926 = vpop.f32.mrb[0].mxu0
      %v927 = vadd.f32 0.0, %v926
      %v928 = vpop.f32.mrb[0].mxu0
      %v929 = vpop.f32.mrb[0].mxu0
      %v930 = vadd.f32 0.0, %v929
      %v931 = vpop.f32.mrb[0].mxu0
      %932 = vmatprep.mubr.bf16.mxu0 0
      %933 = vmatmul.mubr.bf16.gmra.mrb[0].mxu0 %v876
      %v934 = vpop.f32.mrb[0].mxu0
      %v935 = vadd.f32 0.0, %v934
      %v936 = vpop.f32.mrb[0].mxu0
      %v937 = vpop.f32.mrb[0].mxu0
      %v938 = vadd.f32 0.0, %v937
      %v939 = vpop.f32.mrb[0].mxu0
      %940 = vmatprep.mubr.bf16.mxu0 0
      %941 = vmatmul.mubr.bf16.gmra.mrb[0].mxu0 %v879
      %v942 = vpop.f32.mrb[0].mxu0
      %v943 = vadd.f32 0.0, %v942
      %v944 = vpop.f32.mrb[0].mxu0
      %v945 = vpop.f32.mrb[0].mxu0
      %v946 = vadd.f32 0.0, %v945
      %v947 = vpop.f32.mrb[0].mxu0
      %948 = vdwg.mxu0
      %v949 = vadd.f32 %v840, %v919
      %v950 = vadd.f32 %v841, %v922
      %v951 = vadd.f32 %v842, %v927
      %v952 = vadd.f32 %v843, %v930
      %v953 = vadd.f32 %v844, %v935
      %v954 = vadd.f32 %v845, %v938
      %v955 = vadd.f32 %v846, %v943
      %v956 = vadd.f32 %v847, %v946
      %v958 = vrot.slane %v291, 5
      %v959 = vrot.slane %v958, 4
      %v960 = vrot.slane %v292, 5
      %v961 = vsel %vm617, %v959, %v960
      %s962 = scalar_lea.vmem %s1, 20
      %v963 = vld [vmem:[%s962] sm:$0xf]
      %v964 = vunpack.c.l.b16 %v961
      %v965 = vpack.c.b16 %v654, %v653
      %v966 = vpack.c.b16 %v656, %v655
      %v967 = vpack.c.b16 %v658, %v657
      %v968 = vpack.c.b16 %v964, %v659
      %v970 = vsel %vm425, %v965, 0
      %v973 = vsel %vm425, %v966, 0
      %v976 = vsel %vm425, %v967, 0
      %v979 = vsel %vm425, %v968, 0
      %v982 = vsel %vm438, %v963, 0
      %984 = vmatprep.subr.bf16.mxu0 0
      %985 = vmatpush1.bf16.msra.mxu0 %v982
      %986 = vmatprep.subr.bf16.mxu0 0
      %987 = vmatpush1.bf16.msra.mxu0 0
      %988 = vmatprep.subr.bf16.mxu0 0
      %989 = vmatpush1.bf16.msra.mxu0 0
      %990 = vmatprep.subr.bf16.mxu0 0
      %991 = vmatpush1.bf16.msra.mxu0 0
      %992 = vmatprep.subr.bf16.mxu0 0
      %993 = vmatpush1.bf16.msra.mxu0 0
      %994 = vmatprep.subr.bf16.mxu0 0
      %995 = vmatpush1.bf16.msra.mxu0 0
      %996 = vmatprep.subr.bf16.mxu0 0
      %997 = vmatpush1.bf16.msra.mxu0 0
      %998 = vmatprep.subr.bf16.mxu0 0
      %999 = vmatpush1.bf16.msra.mxu0 0
      %1000 = vmatprep.subr.bf16.mxu0 0
      %1001 = vmatpush1.bf16.msra.mxu0 0
      %1002 = vmatprep.subr.bf16.mxu0 0
      %1003 = vmatpush1.bf16.msra.mxu0 0
      %1004 = vmatprep.subr.bf16.mxu0 0
      %1005 = vmatpush1.bf16.msra.mxu0 0
      %1006 = vmatprep.subr.bf16.mxu0 0
      %1007 = vmatpush1.bf16.msra.mxu0 0
      %1008 = vmatprep.subr.bf16.mxu0 0
      %1009 = vmatpush1.bf16.msra.mxu0 0
      %1010 = vmatprep.subr.bf16.mxu0 0
      %1011 = vmatpush1.bf16.msra.mxu0 0
      %1012 = vmatprep.subr.bf16.mxu0 0
      %1013 = vmatpush1.bf16.msra.mxu0 0
      %1014 = vmatprep.subr.bf16.mxu0 0
      %1015 = vmatpush1.bf16.msra.mxu0 0
      %1016 = vmatprep.mubr.bf16.mxu0 0
      %1017 = vmatmul.mubr.bf16.gmra.mrb[0].mxu0 %v970
      %v1018 = vpop.f32.mrb[0].mxu0
      %v1019 = vadd.f32 0.0, %v1018
      %v1020 = vpop.f32.mrb[0].mxu0
      %v1021 = vpop.f32.mrb[0].mxu0
      %v1022 = vadd.f32 0.0, %v1021
      %v1023 = vpop.f32.mrb[0].mxu0
      %1024 = vmatprep.mubr.bf16.mxu0 0
      %1025 = vmatmul.mubr.bf16.gmra.mrb[0].mxu0 %v973
      %v1026 = vpop.f32.mrb[0].mxu0
      %v1027 = vadd.f32 0.0, %v1026
      %v1028 = vpop.f32.mrb[0].mxu0
      %v1029 = vpop.f32.mrb[0].mxu0
      %v1030 = vadd.f32 0.0, %v1029
      %v1031 = vpop.f32.mrb[0].mxu0
      %1032 = vmatprep.mubr.bf16.mxu0 0
      %1033 = vmatmul.mubr.bf16.gmra.mrb[0].mxu0 %v976
      %v1034 = vpop.f32.mrb[0].mxu0
      %v1035 = vadd.f32 0.0, %v1034
      %v1036 = vpop.f32.mrb[0].mxu0
      %v1037 = vpop.f32.mrb[0].mxu0
      %v1038 = vadd.f32 0.0, %v1037
      %v1039 = vpop.f32.mrb[0].mxu0
      %1040 = vmatprep.mubr.bf16.mxu0 0
      %1041 = vmatmul.mubr.bf16.gmra.mrb[0].mxu0 %v979
      %v1042 = vpop.f32.mrb[0].mxu0
      %v1043 = vadd.f32 0.0, %v1042
      %v1044 = vpop.f32.mrb[0].mxu0
      %v1045 = vpop.f32.mrb[0].mxu0
      %v1046 = vadd.f32 0.0, %v1045
      %v1047 = vpop.f32.mrb[0].mxu0
      %1048 = vdwg.mxu0
      %v1049 = vadd.f32 %v949, %v1019
      %v1050 = vadd.f32 %v950, %v1022
      %v1051 = vadd.f32 %v951, %v1027
      %v1052 = vadd.f32 %v952, %v1030
      %v1053 = vadd.f32 %v953, %v1035
      %v1054 = vadd.f32 %v954, %v1038
      %v1055 = vadd.f32 %v955, %v1043
      %v1056 = vadd.f32 %v956, %v1046
      %s1057 = scalar_lea.vmem %s1, 24
      %v1058 = vld [vmem:[%s1057] sm:$0xf]
      %v1060 = vunpack.c.l.b16 %v293
      %v1061 = vpack.c.b16 %v1060, %v755
      %v1063 = vsel %vm425, %v1061, 0
      %v1066 = vsel %vm438, %v1058, 0
      %1068 = vmatprep.subr.bf16.mxu0 0
      %1069 = vmatpush1.bf16.msra.mxu0 %v1066
      %1070 = vmatprep.subr.bf16.mxu0 0
      %1071 = vmatpush1.bf16.msra.mxu0 0
      %1072 = vmatprep.subr.bf16.mxu0 0
      %1073 = vmatpush1.bf16.msra.mxu0 0
      %1074 = vmatprep.subr.bf16.mxu0 0
      %1075 = vmatpush1.bf16.msra.mxu0 0
      %1076 = vmatprep.subr.bf16.mxu0 0
      %1077 = vmatpush1.bf16.msra.mxu0 0
      %1078 = vmatprep.subr.bf16.mxu0 0
      %1079 = vmatpush1.bf16.msra.mxu0 0
      %1080 = vmatprep.subr.bf16.mxu0 0
      %1081 = vmatpush1.bf16.msra.mxu0 0
      %1082 = vmatprep.subr.bf16.mxu0 0
      %1083 = vmatpush1.bf16.msra.mxu0 0
      %1084 = vmatprep.subr.bf16.mxu0 0
      %1085 = vmatpush1.bf16.msra.mxu0 0
      %1086 = vmatprep.subr.bf16.mxu0 0
      %1087 = vmatpush1.bf16.msra.mxu0 0
      %1088 = vmatprep.subr.bf16.mxu0 0
      %1089 = vmatpush1.bf16.msra.mxu0 0
      %1090 = vmatprep.subr.bf16.mxu0 0
      %1091 = vmatpush1.bf16.msra.mxu0 0
      %1092 = vmatprep.subr.bf16.mxu0 0
      %1093 = vmatpush1.bf16.msra.mxu0 0
      %1094 = vmatprep.subr.bf16.mxu0 0
      %1095 = vmatpush1.bf16.msra.mxu0 0
      %1096 = vmatprep.subr.bf16.mxu0 0
      %1097 = vmatpush1.bf16.msra.mxu0 0
      %1098 = vmatprep.subr.bf16.mxu0 0
      %1099 = vmatpush1.bf16.msra.mxu0 0
      %1100 = vmatprep.mubr.bf16.mxu0 0
      %1101 = vmatmul.mubr.bf16.gmra.mrb[0].mxu0 %v531
      %v1102 = vpop.f32.mrb[0].mxu0
      %v1103 = vadd.f32 0.0, %v1102
      %v1104 = vpop.f32.mrb[0].mxu0
      %v1105 = vpop.f32.mrb[0].mxu0
      %v1106 = vadd.f32 0.0, %v1105
      %v1107 = vpop.f32.mrb[0].mxu0
      %1108 = vmatprep.mubr.bf16.mxu0 0
      %1109 = vmatmul.mubr.bf16.gmra.mrb[0].mxu0 %v534
      %v1110 = vpop.f32.mrb[0].mxu0
      %v1111 = vadd.f32 0.0, %v1110
      %v1112 = vpop.f32.mrb[0].mxu0
      %v1113 = vpop.f32.mrb[0].mxu0
      %v1114 = vadd.f32 0.0, %v1113
      %v1115 = vpop.f32.mrb[0].mxu0
      %1116 = vmatprep.mubr.bf16.mxu0 0
      %1117 = vmatmul.mubr.bf16.gmra.mrb[0].mxu0 %v537
      %v1118 = vpop.f32.mrb[0].mxu0
      %v1119 = vadd.f32 0.0, %v1118
      %v1120 = vpop.f32.mrb[0].mxu0
      %v1121 = vpop.f32.mrb[0].mxu0
      %v1122 = vadd.f32 0.0, %v1121
      %v1123 = vpop.f32.mrb[0].mxu0
      %1124 = vmatprep.mubr.bf16.mxu0 0
      %1125 = vmatmul.mubr.bf16.gmra.mrb[0].mxu0 %v1063
      %v1126 = vpop.f32.mrb[0].mxu0
      %v1127 = vadd.f32 0.0, %v1126
      %v1128 = vpop.f32.mrb[0].mxu0
      %v1129 = vpop.f32.mrb[0].mxu0
      %v1130 = vadd.f32 0.0, %v1129
      %v1131 = vpop.f32.mrb[0].mxu0
      %1132 = vdwg.mxu0
      %v1133 = vadd.f32 %v1049, %v1103
      %v1134 = vadd.f32 %v1050, %v1106
      %v1135 = vadd.f32 %v1051, %v1111
      %v1136 = vadd.f32 %v1052, %v1114
      %v1137 = vadd.f32 %v1053, %v1119
      %v1138 = vadd.f32 %v1054, %v1122
      %v1139 = vadd.f32 %v1055, %v1127
      %v1140 = vadd.f32 %v1056, %v1130
      %v1142 = vshrl.u32 %v293, 16
      %v1144 = vrot.slane %v1142, 4
      %v1145 = vshll.u32 %v293, 16
      %v1147 = vrot.slane %v1145, 5
      %v1148 = vor.u32 %v1144, %v1147
      %v1149 = vrot.slane %v1148, 4
      %v1151 = vshll.u32 %v294, 16
      %v1153 = vrot.slane %v1151, 5
      %v1154 = vsel %vm298, %v1149, %v1153
      %s1155 = scalar_lea.vmem %s1, 28
      %v1156 = vld [vmem:[%s1155] sm:$0xf]
      %v1157 = vunpack.c.l.b16 %v1154
      %v1158 = vpack.c.b16 %v1157, %v864
      %v1160 = vsel %vm425, %v1158, 0
      %v1163 = vsel %vm438, %v1156, 0
      %1165 = vmatprep.subr.bf16.mxu0 0
      %1166 = vmatpush1.bf16.msra.mxu0 %v1163
      %1167 = vmatprep.subr.bf16.mxu0 0
      %1168 = vmatpush1.bf16.msra.mxu0 0
      %1169 = vmatprep.subr.bf16.mxu0 0
      %1170 = vmatpush1.bf16.msra.mxu0 0
      %1171 = vmatprep.subr.bf16.mxu0 0
      %1172 = vmatpush1.bf16.msra.mxu0 0
      %1173 = vmatprep.subr.bf16.mxu0 0
      %1174 = vmatpush1.bf16.msra.mxu0 0
      %1175 = vmatprep.subr.bf16.mxu0 0
      %1176 = vmatpush1.bf16.msra.mxu0 0
      %1177 = vmatprep.subr.bf16.mxu0 0
      %1178 = vmatpush1.bf16.msra.mxu0 0
      %1179 = vmatprep.subr.bf16.mxu0 0
      %1180 = vmatpush1.bf16.msra.mxu0 0
      %1181 = vmatprep.subr.bf16.mxu0 0
      %1182 = vmatpush1.bf16.msra.mxu0 0
      %1183 = vmatprep.subr.bf16.mxu0 0
      %1184 = vmatpush1.bf16.msra.mxu0 0
      %1185 = vmatprep.subr.bf16.mxu0 0
      %1186 = vmatpush1.bf16.msra.mxu0 0
      %1187 = vmatprep.subr.bf16.mxu0 0
      %1188 = vmatpush1.bf16.msra.mxu0 0
      %1189 = vmatprep.subr.bf16.mxu0 0
      %1190 = vmatpush1.bf16.msra.mxu0 0
      %1191 = vmatprep.subr.bf16.mxu0 0
      %1192 = vmatpush1.bf16.msra.mxu0 0
      %1193 = vmatprep.subr.bf16.mxu0 0
      %1194 = vmatpush1.bf16.msra.mxu0 0
      %1195 = vmatprep.subr.bf16.mxu0 0
      %1196 = vmatpush1.bf16.msra.mxu0 0
      %1197 = vmatprep.mubr.bf16.mxu0 0
      %1198 = vmatmul.mubr.bf16.gmra.mrb[0].mxu0 %v430
      %v1199 = vpop.f32.mrb[0].mxu0
      %v1200 = vadd.f32 0.0, %v1199
      %v1201 = vpop.f32.mrb[0].mxu0
      %v1202 = vpop.f32.mrb[0].mxu0
      %v1203 = vadd.f32 0.0, %v1202
      %v1204 = vpop.f32.mrb[0].mxu0
      %1205 = vmatprep.mubr.bf16.mxu0 0
      %1206 = vmatmul.mubr.bf16.gmra.mrb[0].mxu0 %v433
      %v1207 = vpop.f32.mrb[0].mxu0
      %v1208 = vadd.f32 0.0, %v1207
      %v1209 = vpop.f32.mrb[0].mxu0
      %v1210 = vpop.f32.mrb[0].mxu0
      %v1211 = vadd.f32 0.0, %v1210
      %v1212 = vpop.f32.mrb[0].mxu0
      %1213 = vmatprep.mubr.bf16.mxu0 0
      %1214 = vmatmul.mubr.bf16.gmra.mrb[0].mxu0 %v436
      %v1215 = vpop.f32.mrb[0].mxu0
      %v1216 = vadd.f32 0.0, %v1215
      %v1217 = vpop.f32.mrb[0].mxu0
      %v1218 = vpop.f32.mrb[0].mxu0
      %v1219 = vadd.f32 0.0, %v1218
      %v1220 = vpop.f32.mrb[0].mxu0
      %1221 = vmatprep.mubr.bf16.mxu0 0
      %1222 = vmatmul.mubr.bf16.gmra.mrb[0].mxu0 %v1160
      %v1223 = vpop.f32.mrb[0].mxu0
      %v1224 = vadd.f32 0.0, %v1223
      %v1225 = vpop.f32.mrb[0].mxu0
      %v1226 = vpop.f32.mrb[0].mxu0
      %v1227 = vadd.f32 0.0, %v1226
      %v1228 = vpop.f32.mrb[0].mxu0
      %1229 = vdwg.mxu0
      %v1230 = vadd.f32 %v1133, %v1200
      %v1231 = vadd.f32 %v1134, %v1203
      %v1232 = vadd.f32 %v1135, %v1208
      %v1233 = vadd.f32 %v1136, %v1211
      %v1234 = vadd.f32 %v1137, %v1216
      %v1235 = vadd.f32 %v1138, %v1219
      %v1236 = vadd.f32 %v1139, %v1224
      %v1237 = vadd.f32 %v1140, %v1227
      %v1239 = vrot.slane %v293, 5
      %v1240 = vrot.slane %v1239, 4
      %v1241 = vrot.slane %v294, 5
      %v1242 = vsel %vm617, %v1240, %v1241
      %s1243 = scalar_lea.vmem %s1, 32
      %v1244 = vld [vmem:[%s1243] sm:$0xf]
      %v1245 = vunpack.c.l.b16 %v1242
      %v1246 = vpack.c.b16 %v1245, %v964
      %v1248 = vsel %vm425, %v1246, 0
      %v1251 = vsel %vm438, %v1244, 0
      %1253 = vmatprep.subr.bf16.mxu0 0
      %1254 = vmatpush1.bf16.msra.mxu0 %v1251
      %1255 = vmatprep.subr.bf16.mxu0 0
      %1256 = vmatpush1.bf16.msra.mxu0 0
      %1257 = vmatprep.subr.bf16.mxu0 0
      %1258 = vmatpush1.bf16.msra.mxu0 0
      %1259 = vmatprep.subr.bf16.mxu0 0
      %1260 = vmatpush1.bf16.msra.mxu0 0
      %1261 = vmatprep.subr.bf16.mxu0 0
      %1262 = vmatpush1.bf16.msra.mxu0 0
      %1263 = vmatprep.subr.bf16.mxu0 0
      %1264 = vmatpush1.bf16.msra.mxu0 0
      %1265 = vmatprep.subr.bf16.mxu0 0
      %1266 = vmatpush1.bf16.msra.mxu0 0
      %1267 = vmatprep.subr.bf16.mxu0 0
      %1268 = vmatpush1.bf16.msra.mxu0 0
      %1269 = vmatprep.subr.bf16.mxu0 0
      %1270 = vmatpush1.bf16.msra.mxu0 0
      %1271 = vmatprep.subr.bf16.mxu0 0
      %1272 = vmatpush1.bf16.msra.mxu0 0
      %1273 = vmatprep.subr.bf16.mxu0 0
      %1274 = vmatpush1.bf16.msra.mxu0 0
      %1275 = vmatprep.subr.bf16.mxu0 0
      %1276 = vmatpush1.bf16.msra.mxu0 0
      %1277 = vmatprep.subr.bf16.mxu0 0
      %1278 = vmatpush1.bf16.msra.mxu0 0
      %1279 = vmatprep.subr.bf16.mxu0 0
      %1280 = vmatpush1.bf16.msra.mxu0 0
      %1281 = vmatprep.subr.bf16.mxu0 0
      %1282 = vmatpush1.bf16.msra.mxu0 0
      %1283 = vmatprep.subr.bf16.mxu0 0
      %1284 = vmatpush1.bf16.msra.mxu0 0
      %1285 = vmatprep.mubr.bf16.mxu0 0
      %1286 = vmatmul.mubr.bf16.gmra.mrb[0].mxu0 %v668
      %v1287 = vpop.f32.mrb[0].mxu0
      %v1288 = vadd.f32 0.0, %v1287
      %v1289 = vpop.f32.mrb[0].mxu0
      %v1290 = vpop.f32.mrb[0].mxu0
      %v1291 = vadd.f32 0.0, %v1290
      %v1292 = vpop.f32.mrb[0].mxu0
      %1293 = vmatprep.mubr.bf16.mxu0 0
      %1294 = vmatmul.mubr.bf16.gmra.mrb[0].mxu0 %v671
      %v1295 = vpop.f32.mrb[0].mxu0
      %v1296 = vadd.f32 0.0, %v1295
      %v1297 = vpop.f32.mrb[0].mxu0
      %v1298 = vpop.f32.mrb[0].mxu0
      %v1299 = vadd.f32 0.0, %v1298
      %v1300 = vpop.f32.mrb[0].mxu0
      %1301 = vmatprep.mubr.bf16.mxu0 0
      %1302 = vmatmul.mubr.bf16.gmra.mrb[0].mxu0 %v674
      %v1303 = vpop.f32.mrb[0].mxu0
      %v1304 = vadd.f32 0.0, %v1303
      %v1305 = vpop.f32.mrb[0].mxu0
      %v1306 = vpop.f32.mrb[0].mxu0
      %v1307 = vadd.f32 0.0, %v1306
      %v1308 = vpop.f32.mrb[0].mxu0
      %1309 = vmatprep.mubr.bf16.mxu0 0
      %1310 = vmatmul.mubr.bf16.gmra.mrb[0].mxu0 %v1248
      %v1311 = vpop.f32.mrb[0].mxu0
      %v1312 = vadd.f32 0.0, %v1311
      %v1313 = vpop.f32.mrb[0].mxu0
      %v1314 = vpop.f32.mrb[0].mxu0
      %v1315 = vadd.f32 0.0, %v1314
      %v1316 = vpop.f32.mrb[0].mxu0
      %1317 = vdwg.mxu0
      %v1318 = vadd.f32 %v1230, %v1288
      %v1319 = vadd.f32 %v1231, %v1291
      %v1320 = vadd.f32 %v1232, %v1296
      %v1321 = vadd.f32 %v1233, %v1299
      %v1322 = vadd.f32 %v1234, %v1304
      %v1323 = vadd.f32 %v1235, %v1307
      %v1324 = vadd.f32 %v1236, %v1312
      %v1325 = vadd.f32 %v1237, %v1315
      %v1326 = vpack.c.bf16 %v1319, %v1318
      %v1327 = vpack.c.bf16 %v1321, %v1320
      %v1328 = vpack.c.bf16 %v1323, %v1322
      %v1329 = vpack.c.bf16 %v1325, %v1324
      %v1334 = vunpack.c.l.b16 %v1326
      %v1335 = vunpack.c.h.b16 %v1326
      %v1336 = vunpack.c.l.b16 %v1327
      %v1337 = vunpack.c.h.b16 %v1327
      %v1338 = vunpack.c.l.b16 %v1328
      %v1339 = vunpack.c.h.b16 %v1328
      %v1340 = vunpack.c.l.b16 %v1329
      %v1341 = vunpack.c.h.b16 %v1329
      %v1342 = vpack.c.b16 %v1334, %v1334
      %v1343 = vpack.c.b16 %v1335, %v1335
      %v1344 = vpack.c.b16 %v1336, %v1336
      %v1345 = vpack.c.b16 %v1337, %v1337
      %v1346 = vpack.c.b16 %v1338, %v1338
      %v1347 = vpack.c.b16 %v1339, %v1339
      %v1348 = vpack.c.b16 %v1340, %v1340
      %v1349 = vpack.c.b16 %v1341, %v1341
      %vm1358 = vcmask 125952
      %1359 = vst.msk [vmem:[%s264] sm:$0xf] %vm1358, %v1342
      %1360 = vst.msk [vmem:[%s264 + $0x4] sm:$0xf] %vm1358, %v1343
      %1361 = vst.msk [vmem:[%s264 + $0x8] sm:$0xf] %vm1358, %v1344
      %1362 = vst.msk [vmem:[%s264 + $0xc] sm:$0xf] %vm1358, %v1345
      %1363 = vst.msk [vmem:[%s264 + $0x10] sm:$0xf] %vm1358, %v1346
      %1364 = vst.msk [vmem:[%s264 + $0x14] sm:$0xf] %vm1358, %v1347
      %1365 = vst.msk [vmem:[%s264 + $0x18] sm:$0xf] %vm1358, %v1348
      %1366 = vst.msk [vmem:[%s264 + $0x1c] sm:$0xf] %vm1358, %v1349
      %vm1367 = vcmask 130048
      %v1368 = vsel %vm1367, %v1318, 0.0
      %v1369 = vsel %vm1367, %v1319, 0.0
      %v1370 = vadd.f32 %v1368, %v1369
      %v1371 = vsel %vm1367, %v1320, 0.0
      %v1372 = vadd.f32 %v1370, %v1371
      %v1373 = vsel %vm1367, %v1321, 0.0
      %v1374 = vadd.f32 %v1372, %v1373
      %v1375 = vsel %vm1367, %v1322, 0.0
      %v1376 = vadd.f32 %v1374, %v1375
      %v1377 = vsel %vm1367, %v1323, 0.0
      %v1378 = vadd.f32 %v1376, %v1377
      %v1379 = vsel %vm1367, %v1324, 0.0
      %v1380 = vadd.f32 %v1378, %v1379
      %v1381 = vsel %vm1367, %v1325, 0.0
      %v1382 = vadd.f32 %v1380, %v1381
      %1383 = vst.msk [vmem:[%s269] sm:$0xff] %vm1367, %v1382
      %v1384 = vmul.f32 %v1318, %v1318
      %v1385 = vmul.f32 %v1319, %v1319
      %v1386 = vmul.f32 %v1320, %v1320
      %v1387 = vmul.f32 %v1321, %v1321
      %v1388 = vmul.f32 %v1322, %v1322
      %v1389 = vmul.f32 %v1323, %v1323
      %v1390 = vmul.f32 %v1324, %v1324
      %v1391 = vmul.f32 %v1325, %v1325
      %v1392 = vsel %vm1367, %v1384, 0.0
      %v1393 = vsel %vm1367, %v1385, 0.0
      %v1394 = vadd.f32 %v1392, %v1393
      %v1395 = vsel %vm1367, %v1386, 0.0
      %v1396 = vadd.f32 %v1394, %v1395
      %v1397 = vsel %vm1367, %v1387, 0.0
      %v1398 = vadd.f32 %v1396, %v1397
      %v1399 = vsel %vm1367, %v1388, 0.0
      %v1400 = vadd.f32 %v1398, %v1399
      %v1401 = vsel %vm1367, %v1389, 0.0
      %v1402 = vadd.f32 %v1400, %v1401
      %v1403 = vsel %vm1367, %v1390, 0.0
      %v1404 = vadd.f32 %v1402, %v1403
      %v1405 = vsel %vm1367, %v1391, 0.0
      %v1406 = vadd.f32 %v1404, %v1405
      %1407 = vst.msk [vmem:[%s273] sm:$0xff] %vm1367, %v1406
      %s1408 = smul.u32 8, %s18
      %p1409 = scmp.lt.s32.totalorder %s1408, 15
      %s1410 = scalar_select %p1409, %s1408, 15
      %s1411 = smul.addr %s1410, 4
      %s1412 = scalar_lea.vmem %s4, %s1411
      %p1413 = scmp.lt.s32.totalorder %s18, 1
      %s1414 = scalar_select %p1413, %s18, 1
      %s1415 = smul.addr %s1414, 8
      %s1416 = scalar_lea.vmem %s5, %s1415
      %p1417 = scmp.lt.s32.totalorder %s18, 1
      %s1418 = scalar_select %p1417, %s18, 1
      %s1419 = smul.addr %s1418, 8
      %s1420 = scalar_lea.vmem %s6, %s1419
      // Predicated region
      $region37: #{upconvblock_forward.5} parent=35 // pred_check
        %p1421 = pneg %p125
      $region38: #{upconvblock_forward.5} parent=35 // pred_check_branch
        %1423 = sbr.rel (%p1421) target = $region40
      $region39: #{upconvblock_forward.5} parent=35 // pred_region
        %s1424 = smul.u32 8, %s18
      $region40: #{upconvblock_forward.5} parent=35 // pred_fallthru
        _
      // Predicated region
      $region41: #{upconvblock_forward.5} parent=35 // pred_check
        %p1425 = pneg %p151
      $region42: #{upconvblock_forward.5} parent=35 // pred_check_branch
        %1427 = sbr.rel (%p1425) target = $region44
      $region43: #{upconvblock_forward.5} parent=35 // pred_region
        _
      $region44: #{upconvblock_forward.5} parent=35 // pred_fallthru
        _
      // Predicated region
      $region45: #{upconvblock_forward.5} parent=35 // pred_check
        %p1428 = pneg %p177
      $region46: #{upconvblock_forward.5} parent=35 // pred_check_branch
        %1430 = sbr.rel (%p1428) target = $region48
      $region47: #{upconvblock_forward.5} parent=35 // pred_region
        _
      $region48: #{upconvblock_forward.5} parent=35 // pred_fallthru
        _
    $region36: #{upconvblock_forward.5} parent=5 // pred_fallthru
      _
    %p1431 = scmp.le.s32.totalorder 2, %s13
    // Predicated region
    $region49: #{upconvblock_forward.5} parent=5 // pred_check
      %p1432 = pneg %p1431
    $region50: #{upconvblock_forward.5} parent=5 // pred_check_branch
      %1434 = sbr.rel (%p1432) target = $region52
    $region51: #{upconvblock_forward.5} parent=5 // pred_region
      %s1435 = ssub.s32 %s13, 2
      // Predicated region
      $region53: #{upconvblock_forward.5} parent=51 // pred_check
        %p1436 = pneg %p131
      $region54: #{upconvblock_forward.5} parent=51 // pred_check_branch
        %1438 = sbr.rel (%p1436) target = $region56
      $region55: #{upconvblock_forward.5} parent=51 // pred_region
        %s1439 = smul.u32 8, %s19
        %p1440 = scmp.lt.s32.totalorder %s1439, 15
        %s1441 = scalar_select %p1440, %s1439, 15
        %s1442 = smul.addr %s1441, 4
        %s1443 = scalar_lea.vmem %s4, %s1442
      $region56: #{upconvblock_forward.5} parent=51 // pred_fallthru
        _
      // Predicated region
      $region57: #{upconvblock_forward.5} parent=51 // pred_check
        %p1444 = pneg %p157
      $region58: #{upconvblock_forward.5} parent=51 // pred_check_branch
        %1446 = sbr.rel (%p1444) target = $region60
      $region59: #{upconvblock_forward.5} parent=51 // pred_region
        %p1447 = scmp.lt.s32.totalorder %s19, 1
        %s1448 = scalar_select %p1447, %s19, 1
        %s1449 = smul.addr %s1448, 8
        %s1450 = scalar_lea.vmem %s5, %s1449
      $region60: #{upconvblock_forward.5} parent=51 // pred_fallthru
        _
      // Predicated region
      $region61: #{upconvblock_forward.5} parent=51 // pred_check
        %p1451 = pneg %p183
      $region62: #{upconvblock_forward.5} parent=51 // pred_check_branch
        %1453 = sbr.rel (%p1451) target = $region64
      $region63: #{upconvblock_forward.5} parent=51 // pred_region
        %p1454 = scmp.lt.s32.totalorder %s19, 1
        %s1455 = scalar_select %p1454, %s19, 1
        %s1456 = smul.addr %s1455, 8
        %s1457 = scalar_lea.vmem %s6, %s1456
      $region64: #{upconvblock_forward.5} parent=51 // pred_fallthru
        _
    $region52: #{upconvblock_forward.5} parent=5 // pred_fallthru
      _
  $region6: #{upconvblock_forward.5} parent=0 // loop_footer
    %s17 = sadd.s32 1, %s13
  $region7: #{upconvblock_forward.5} parent=0 // loop_footer_branch
    %12 = sbr.rel target = $region3
  $region8: #{upconvblock_forward.5} parent=0 // loop_exit
    _

// kernel: upconvblock_forward.9
$region0: #{upconvblock_forward.9}
  #allocation0 [shape = 'u32[]', space=smem, size = 0x4, offset = 0x4, fixed_abs, tag = 'smem constant byte address 0x4 - core index']
  #allocation1 [shape = 'u32[144,128]{1,0:T(1,128)}', space=vmem, size = 0x12000, scoped, tag = 'internal scratch']
  %s0 = inlined_call_operand.vmem [shape: bf16[512,4], index: 0, kind: input, shape index: {}]
  %s1 = inlined_call_operand.vmem [shape: f32[512,4], index: 1, kind: input, shape index: {}]
  %s2 = inlined_call_operand.vmem [shape: f32[1,4], index: 2, kind: input, shape index: {}]
  %s3 = inlined_call_operand.vmem [shape: f32[1,4], index: 3, kind: input, shape index: {}]
  %s4 = inlined_call_operand.vmem [shape: f32[1,4], index: 4, kind: input, shape index: {}]
  %s5 = inlined_call_operand.vmem [shape: f32[1,4], index: 5, kind: input, shape index: {}]
  %s6 = inlined_call_operand.vmem [shape: f32[512,4], index: 6, kind: output, shape index: {}]
  %s7 = sld [smem:[#allocation0]]
  $region57: #{upconvblock_forward.9} parent=0
    _
  %s9 = ssub.s32 1, %s7
  %s10 = scalar_select 0, %s9, %s7
  loop: start=0, step=1, limit=4
  $region2: #{upconvblock_forward.9} parent=0 // loop_pre_header
    _
  $region3: #{upconvblock_forward.9} parent=0 // loop_header
    %s12 = sphi 0, %s16
    %p13 = scmp.ge.s32.totalorder %s12, 4
    %s22 = sphi 0, %s24
    %s25 = sphi 0, %s22
    %s26 = sphi 0, %s25
    %s42 = sphi 0, %s26
    %s48 = sphi 0, %s50
    %s51 = sphi 0, %s48
    %s52 = sphi 0, %s51
    %s68 = sphi 0, %s52
    %s72 = sphi 0, %s72
    %s74 = sphi 0, %s72
    %s75 = sphi 0, %s74
    %s89 = sphi 0, %s75
    %s93 = sphi 0, %s93
    %s95 = sphi 0, %s93
    %s96 = sphi 0, %s95
    %s110 = sphi 0, %s96
    %s114 = sphi 0, %s114
    %s116 = sphi 0, %s114
    %s117 = sphi 0, %s116
    %s131 = sphi 0, %s117
    %s135 = sphi 0, %s135
    %s137 = sphi 0, %s135
    %s138 = sphi 0, %s137
    %s152 = sphi 0, %s138
    %s158 = sphi 0, %s160
    %s161 = sphi 0, %s158
    %s162 = sphi 0, %s161
    %s178 = sphi 0, %s162
  $region4: #{upconvblock_forward.9} parent=0 // loop_header_branch
    %15 = sbr.rel (%p13) target = $region8
  $region5: #{upconvblock_forward.9} parent=0 // loop_body
    %s17 = ssub.s32 %s12, 1
    %s18 = ssub.s32 %s12, 2
    %s19 = sadd.s32 %s12, 1
    %s20 = ssub.s32 %s12, %s19
    %p21 = scmp.eq.s32.totalorder %s20, 0
    %s23 = sadd.s32 %s22, 1
    %s24 = scalar_select %p21, %s22, %s23
    %p27 = pneg %p21
    %p28 = scmp.eq.s32.totalorder %s12, 1
    %p29 = por %p27, %p28
    %p30 = scmp.ne.s32.totalorder %s22, %s25
    %p31 = scmp.eq.s32.totalorder %s12, 0
    %p32 = por %p30, %p31
    %p33 = scmp.ne.s32.totalorder %s22, %s25
    %p34 = scmp.eq.s32.totalorder %s17, 1
    %p35 = por %p33, %p34
    %p36 = scmp.ne.s32.totalorder %s25, %s26
    %p37 = scmp.eq.s32.totalorder %s17, 0
    %p38 = por %p36, %p37
    %p39 = scmp.ne.s32.totalorder %s25, %s26
    %p40 = scmp.eq.s32.totalorder %s18, 1
    %p41 = por %p39, %p40
    %p43 = scmp.ne.s32.totalorder %s26, %s42
    %p44 = scmp.eq.s32.totalorder %s18, 0
    %p45 = por %p43, %p44
    %s46 = ssub.s32 %s12, %s19
    %p47 = scmp.eq.s32.totalorder %s46, 0
    %s49 = sadd.s32 %s48, 1
    %s50 = scalar_select %p47, %s48, %s49
    %p53 = pneg %p47
    %p54 = scmp.eq.s32.totalorder %s12, 1
    %p55 = por %p53, %p54
    %p56 = scmp.ne.s32.totalorder %s48, %s51
    %p57 = scmp.eq.s32.totalorder %s12, 0
    %p58 = por %p56, %p57
    %p59 = scmp.ne.s32.totalorder %s48, %s51
    %p60 = scmp.eq.s32.totalorder %s17, 1
    %p61 = por %p59, %p60
    %p62 = scmp.ne.s32.totalorder %s51, %s52
    %p63 = scmp.eq.s32.totalorder %s17, 0
    %p64 = por %p62, %p63
    %p65 = scmp.ne.s32.totalorder %s51, %s52
    %p66 = scmp.eq.s32.totalorder %s18, 1
    %p67 = por %p65, %p66
    %p69 = scmp.ne.s32.totalorder %s52, %s68
    %p70 = scmp.eq.s32.totalorder %s18, 0
    %p71 = por %p69, %p70
    %s73 = sadd.s32 %s72, 1
    %p76 = scmp.eq.s32.totalorder %s12, 1
    %p77 = scmp.ne.s32.totalorder %s72, %s74
    %p78 = scmp.eq.s32.totalorder %s12, 0
    %p79 = por %p77, %p78
    %p80 = scmp.ne.s32.totalorder %s72, %s74
    %p81 = scmp.eq.s32.totalorder %s17, 1
    %p82 = por %p80, %p81
    %p83 = scmp.ne.s32.totalorder %s74, %s75
    %p84 = scmp.eq.s32.totalorder %s17, 0
    %p85 = por %p83, %p84
    %p86 = scmp.ne.s32.totalorder %s74, %s75
    %p87 = scmp.eq.s32.totalorder %s18, 1
    %p88 = por %p86, %p87
    %p90 = scmp.ne.s32.totalorder %s75, %s89
    %p91 = scmp.eq.s32.totalorder %s18, 0
    %p92 = por %p90, %p91
    %s94 = sadd.s32 %s93, 1
    %p97 = scmp.eq.s32.totalorder %s12, 1
    %p98 = scmp.ne.s32.totalorder %s93, %s95
    %p99 = scmp.eq.s32.totalorder %s12, 0
    %p100 = por %p98, %p99
    %p101 = scmp.ne.s32.totalorder %s93, %s95
    %p102 = scmp.eq.s32.totalorder %s17, 1
    %p103 = por %p101, %p102
    %p104 = scmp.ne.s32.totalorder %s95, %s96
    %p105 = scmp.eq.s32.totalorder %s17, 0
    %p106 = por %p104, %p105
    %p107 = scmp.ne.s32.totalorder %s95, %s96
    %p108 = scmp.eq.s32.totalorder %s18, 1
    %p109 = por %p107, %p108
    %p111 = scmp.ne.s32.totalorder %s96, %s110
    %p112 = scmp.eq.s32.totalorder %s18, 0
    %p113 = por %p111, %p112
    %s115 = sadd.s32 %s114, 1
    %p118 = scmp.eq.s32.totalorder %s12, 1
    %p119 = scmp.ne.s32.totalorder %s114, %s116
    %p120 = scmp.eq.s32.totalorder %s12, 0
    %p121 = por %p119, %p120
    %p122 = scmp.ne.s32.totalorder %s114, %s116
    %p123 = scmp.eq.s32.totalorder %s17, 1
    %p124 = por %p122, %p123
    %p125 = scmp.ne.s32.totalorder %s116, %s117
    %p126 = scmp.eq.s32.totalorder %s17, 0
    %p127 = por %p125, %p126
    %p128 = scmp.ne.s32.totalorder %s116, %s117
    %p129 = scmp.eq.s32.totalorder %s18, 1
    %p130 = por %p128, %p129
    %p132 = scmp.ne.s32.totalorder %s117, %s131
    %p133 = scmp.eq.s32.totalorder %s18, 0
    %p134 = por %p132, %p133
    %s136 = sadd.s32 %s135, 1
    %p139 = scmp.eq.s32.totalorder %s12, 1
    %p140 = scmp.ne.s32.totalorder %s135, %s137
    %p141 = scmp.eq.s32.totalorder %s12, 0
    %p142 = por %p140, %p141
    %p143 = scmp.ne.s32.totalorder %s135, %s137
    %p144 = scmp.eq.s32.totalorder %s17, 1
    %p145 = por %p143, %p144
    %p146 = scmp.ne.s32.totalorder %s137, %s138
    %p147 = scmp.eq.s32.totalorder %s17, 0
    %p148 = por %p146, %p147
    %p149 = scmp.ne.s32.totalorder %s137, %s138
    %p150 = scmp.eq.s32.totalorder %s18, 1
    %p151 = por %p149, %p150
    %p153 = scmp.ne.s32.totalorder %s138, %s152
    %p154 = scmp.eq.s32.totalorder %s18, 0
    %p155 = por %p153, %p154
    %s156 = ssub.s32 %s12, %s19
    %p157 = scmp.eq.s32.totalorder %s156, 0
    %s159 = sadd.s32 %s158, 1
    %s160 = scalar_select %p157, %s158, %s159
    %p163 = pneg %p157
    %p164 = scmp.eq.s32.totalorder %s12, 1
    %p165 = por %p163, %p164
    %p166 = scmp.ne.s32.totalorder %s158, %s161
    %p167 = scmp.eq.s32.totalorder %s12, 0
    %p168 = por %p166, %p167
    %p169 = scmp.ne.s32.totalorder %s158, %s161
    %p170 = scmp.eq.s32.totalorder %s17, 1
    %p171 = por %p169, %p170
    %p172 = scmp.ne.s32.totalorder %s161, %s162
    %p173 = scmp.eq.s32.totalorder %s17, 0
    %p174 = por %p172, %p173
    %p175 = scmp.ne.s32.totalorder %s161, %s162
    %p176 = scmp.eq.s32.totalorder %s18, 1
    %p177 = por %p175, %p176
    %p179 = scmp.ne.s32.totalorder %s162, %s178
    %p180 = scmp.eq.s32.totalorder %s18, 0
    %p181 = por %p179, %p180
    %p182 = scmp.le.s32.totalorder 1, %s12
    %p183 = scmp.lt.s32.totalorder %s12, 3
    %p184 = pnand %p182, %p183
    %p185 = pneg %p184
    // Predicated region
    $region9: #{upconvblock_forward.9} parent=5 // pred_check
      _
    $region10: #{upconvblock_forward.9} parent=5 // pred_check_branch
      %187 = sbr.rel (%p184) target = $region12
    $region11: #{upconvblock_forward.9} parent=5 // pred_region
      %s188 = ssub.s32 %s12, 1
      // Predicated region
      $region13: #{upconvblock_forward.9} parent=11 // pred_check
        %p189 = pneg %p85
      $region14: #{upconvblock_forward.9} parent=11 // pred_check_branch
        %191 = sbr.rel (%p189) target = $region16
      $region15: #{upconvblock_forward.9} parent=11 // pred_region
        _
      $region16: #{upconvblock_forward.9} parent=11 // pred_fallthru
        _
      // Predicated region
      $region17: #{upconvblock_forward.9} parent=11 // pred_check
        %p192 = pneg %p106
      $region18: #{upconvblock_forward.9} parent=11 // pred_check_branch
        %194 = sbr.rel (%p192) target = $region20
      $region19: #{upconvblock_forward.9} parent=11 // pred_region
        _
      $region20: #{upconvblock_forward.9} parent=11 // pred_fallthru
        _
      // Predicated region
      $region21: #{upconvblock_forward.9} parent=11 // pred_check
        %p195 = pneg %p127
      $region22: #{upconvblock_forward.9} parent=11 // pred_check_branch
        %197 = sbr.rel (%p195) target = $region24
      $region23: #{upconvblock_forward.9} parent=11 // pred_region
        _
      $region24: #{upconvblock_forward.9} parent=11 // pred_fallthru
        _
      // Predicated region
      $region25: #{upconvblock_forward.9} parent=11 // pred_check
        %p198 = pneg %p148
      $region26: #{upconvblock_forward.9} parent=11 // pred_check_branch
        %200 = sbr.rel (%p198) target = $region28
      $region27: #{upconvblock_forward.9} parent=11 // pred_region
        _
      $region28: #{upconvblock_forward.9} parent=11 // pred_fallthru
        _
    $region12: #{upconvblock_forward.9} parent=5 // pred_fallthru
      _
    %p201 = scmp.lt.s32.totalorder %s12, 2
    // Predicated region
    $region29: #{upconvblock_forward.9} parent=5 // pred_check
      %p202 = pneg %p201
    $region30: #{upconvblock_forward.9} parent=5 // pred_check_branch
      %204 = sbr.rel (%p202) target = $region32
    $region31: #{upconvblock_forward.9} parent=5 // pred_region
      // Predicated region
      $region33: #{upconvblock_forward.9} parent=31 // pred_check
        %p205 = pneg %p32
      $region34: #{upconvblock_forward.9} parent=31 // pred_check_branch
        %207 = sbr.rel (%p205) target = $region36
      $region35: #{upconvblock_forward.9} parent=31 // pred_region
        %s208 = smul.u32 32, %s12
        %p209 = scmp.lt.s32.totalorder %s208, 63
        %s210 = scalar_select %p209, %s208, 63
        %s211 = smul.addr %s210, 4
        %s212 = scalar_lea.vmem %s0, %s211
        %s213 = smul.u32 32, %s12
      $region36: #{upconvblock_forward.9} parent=31 // pred_fallthru
        _
      // Predicated region
      $region37: #{upconvblock_forward.9} parent=31 // pred_check
        %p214 = pneg %p58
      $region38: #{upconvblock_forward.9} parent=31 // pred_check_branch
        %216 = sbr.rel (%p214) target = $region40
      $region39: #{upconvblock_forward.9} parent=31 // pred_region
        %s217 = smul.u32 32, %s12
        %p218 = scmp.lt.s32.totalorder %s217, 63
        %s219 = scalar_select %p218, %s217, 63
        %s220 = smul.addr %s219, 8
        %s221 = scalar_lea.vmem %s1, %s220
        %s222 = smul.u32 32, %s12
      $region40: #{upconvblock_forward.9} parent=31 // pred_fallthru
        _
    $region32: #{upconvblock_forward.9} parent=5 // pred_fallthru
      _
    %p223 = scmp.le.s32.totalorder 1, %s12
    %p224 = scmp.lt.s32.totalorder %s12, 3
    %p225 = pnand %p223, %p224
    %p226 = pneg %p225
    // Predicated region
    $region41: #{upconvblock_forward.9} parent=5 // pred_check
      _
    $region42: #{upconvblock_forward.9} parent=5 // pred_check_branch
      %228 = sbr.rel (%p225) target = $region44
    $region43: #{upconvblock_forward.9} parent=5 // pred_region
      %s229 = ssub.s32 %s12, 1
      %s230 = smul.u32 32, %s17
      %p231 = scmp.lt.s32.totalorder %s230, 63
      %s232 = scalar_select %p231, %s230, 63
      %s233 = smul.addr %s232, 4
      %s234 = scalar_lea.vmem %s0, %s233
      %p235 = pneg %p38
      %p236 = pneg %p35
      %s237 = smul.u32 32, %s17
      %p238 = scmp.lt.s32.totalorder %s237, 63
      %s239 = scalar_select %p238, %s237, 63
      %s240 = smul.addr %s239, 8
      %s241 = scalar_lea.vmem %s1, %s240
      %p242 = pneg %p64
      %p243 = pneg %p61
      %p244 = pneg %p85
      %p245 = pneg %p82
      %p246 = pneg %p106
      %p247 = pneg %p103
      %p248 = pneg %p127
      %p249 = pneg %p124
      %p250 = pneg %p148
      %p251 = pneg %p145
      %p252 = pneg %p174
      %p253 = pneg %p171
      %s254 = smul.u32 32, %s17
      %p255 = scmp.lt.s32.totalorder %s254, 63
      %s256 = scalar_select %p255, %s254, 63
      %s257 = smul.addr %s256, 8
      %s258 = scalar_lea.vmem %s6, %s257
      %s259 = smul.u32 32, %s17
      %p260 = scmp.lt.s32.totalorder %s259, 63
      %s261 = scalar_select %p260, %s259, 63
      %s262 = smul.addr %s261, 4
      %s263 = scalar_lea.vmem %s0, %s262
      %s264 = smul.u32 32, %s17
      %s265 = smul.u32 32, %s17
      %p266 = scmp.lt.s32.totalorder %s265, 63
      %s267 = scalar_select %p266, %s265, 63
      %s268 = smul.addr %s267, 8
      %s269 = scalar_lea.vmem %s1, %s268
      %s270 = smul.u32 32, %s17
      %s271 = smul.u32 32, %s17
      %p272 = scmp.lt.s32.totalorder %s271, 63
      %s273 = scalar_select %p272, %s271, 63
      %s274 = smul.addr %s273, 8
      %s275 = scalar_lea.vmem %s6, %s274
      %s276 = smul.u32 32, %s17
      %v277 = vld [vmem:[%s263] sm:$0xf]
      %v278 = vld [vmem:[%s263 + $0x4] sm:$0xf]
      %v279 = vld [vmem:[%s263 + $0x8] sm:$0xf]
      %v280 = vld [vmem:[%s263 + $0xc] sm:$0xf]
      %v281 = vld [vmem:[%s263 + $0x10] sm:$0xf]
      %v282 = vld [vmem:[%s263 + $0x14] sm:$0xf]
      %v283 = vld [vmem:[%s263 + $0x18] sm:$0xf]
      %v284 = vld [vmem:[%s263 + $0x1c] sm:$0xf]
      %v285 = vld [vmem:[%s263 + $0x20] sm:$0xf]
      %v286 = vld [vmem:[%s263 + $0x24] sm:$0xf]
      %v287 = vld [vmem:[%s263 + $0x28] sm:$0xf]
      %v288 = vld [vmem:[%s263 + $0x2c] sm:$0xf]
      %v289 = vld [vmem:[%s263 + $0x30] sm:$0xf]
      %v290 = vld [vmem:[%s263 + $0x34] sm:$0xf]
      %v291 = vld [vmem:[%s263 + $0x38] sm:$0xf]
      %v292 = vld [vmem:[%s263 + $0x3c] sm:$0xf]
      %v293 = vld [vmem:[%s263 + $0x40] sm:$0xf]
      %v294 = vld [vmem:[%s263 + $0x44] sm:$0xf]
      %v295 = vld [vmem:[%s263 + $0x48] sm:$0xf]
      %v296 = vld [vmem:[%s263 + $0x4c] sm:$0xf]
      %v297 = vld [vmem:[%s263 + $0x50] sm:$0xf]
      %v298 = vld [vmem:[%s263 + $0x54] sm:$0xf]
      %v299 = vld [vmem:[%s263 + $0x58] sm:$0xf]
      %v300 = vld [vmem:[%s263 + $0x5c] sm:$0xf]
      %v301 = vld [vmem:[%s263 + $0x60] sm:$0xf]
      %v302 = vld [vmem:[%s263 + $0x64] sm:$0xf]
      %v303 = vld [vmem:[%s263 + $0x68] sm:$0xf]
      %v304 = vld [vmem:[%s263 + $0x6c] sm:$0xf]
      %v305 = vld [vmem:[%s263 + $0x70] sm:$0xf]
      %v306 = vld [vmem:[%s263 + $0x74] sm:$0xf]
      %v307 = vld [vmem:[%s263 + $0x78] sm:$0xf]
      %v308 = vld [vmem:[%s263 + $0x7c] sm:$0xf]
      %v309 = vunpack.c.l.bf16 %v277
      %v310 = vunpack.c.l.bf16 %v278
      %v311 = vunpack.c.l.bf16 %v279
      %v312 = vunpack.c.l.bf16 %v280
      %v313 = vunpack.c.l.bf16 %v281
      %v314 = vunpack.c.l.bf16 %v282
      %v315 = vunpack.c.l.bf16 %v283
      %v316 = vunpack.c.l.bf16 %v284
      %v317 = vunpack.c.l.bf16 %v285
      %v318 = vunpack.c.l.bf16 %v286
      %v319 = vunpack.c.l.bf16 %v287
      %v320 = vunpack.c.l.bf16 %v288
      %v321 = vunpack.c.l.bf16 %v289
      %v322 = vunpack.c.l.bf16 %v290
      %v323 = vunpack.c.l.bf16 %v291
      %v324 = vunpack.c.l.bf16 %v292
      %v325 = vunpack.c.l.bf16 %v293
      %v326 = vunpack.c.l.bf16 %v294
      %v327 = vunpack.c.l.bf16 %v295
      %v328 = vunpack.c.l.bf16 %v296
      %v329 = vunpack.c.l.bf16 %v297
      %v330 = vunpack.c.l.bf16 %v298
      %v331 = vunpack.c.l.bf16 %v299
      %v332 = vunpack.c.l.bf16 %v300
      %v333 = vunpack.c.l.bf16 %v301
      %v334 = vunpack.c.l.bf16 %v302
      %v335 = vunpack.c.l.bf16 %v303
      %v336 = vunpack.c.l.bf16 %v304
      %v337 = vunpack.c.l.bf16 %v305
      %v338 = vunpack.c.l.bf16 %v306
      %v339 = vunpack.c.l.bf16 %v307
      %v340 = vunpack.c.l.bf16 %v308
      %v341 = vld [vmem:[%s269] sm:$0xff]
      %v342 = vld [vmem:[%s269 + $0x8] sm:$0xff]
      %v343 = vld [vmem:[%s269 + $0x10] sm:$0xff]
      %v344 = vld [vmem:[%s269 + $0x18] sm:$0xff]
      %v345 = vld [vmem:[%s269 + $0x20] sm:$0xff]
      %v346 = vld [vmem:[%s269 + $0x28] sm:$0xff]
      %v347 = vld [vmem:[%s269 + $0x30] sm:$0xff]
      %v348 = vld [vmem:[%s269 + $0x38] sm:$0xff]
      %v349 = vld [vmem:[%s269 + $0x40] sm:$0xff]
      %v350 = vld [vmem:[%s269 + $0x48] sm:$0xff]
      %v351 = vld [vmem:[%s269 + $0x50] sm:$0xff]
      %v352 = vld [vmem:[%s269 + $0x58] sm:$0xff]
      %v353 = vld [vmem:[%s269 + $0x60] sm:$0xff]
      %v354 = vld [vmem:[%s269 + $0x68] sm:$0xff]
      %v355 = vld [vmem:[%s269 + $0x70] sm:$0xff]
      %v356 = vld [vmem:[%s269 + $0x78] sm:$0xff]
      %v357 = vld [vmem:[%s269 + $0x80] sm:$0xff]
      %v358 = vld [vmem:[%s269 + $0x88] sm:$0xff]
      %v359 = vld [vmem:[%s269 + $0x90] sm:$0xff]
      %v360 = vld [vmem:[%s269 + $0x98] sm:$0xff]
      %v361 = vld [vmem:[%s269 + $0xa0] sm:$0xff]
      %v362 = vld [vmem:[%s269 + $0xa8] sm:$0xff]
      %v363 = vld [vmem:[%s269 + $0xb0] sm:$0xff]
      %v364 = vld [vmem:[%s269 + $0xb8] sm:$0xff]
      %v365 = vld [vmem:[%s269 + $0xc0] sm:$0xff]
      %v366 = vld [vmem:[%s269 + $0xc8] sm:$0xff]
      %v367 = vld [vmem:[%s269 + $0xd0] sm:$0xff]
      %v368 = vld [vmem:[%s269 + $0xd8] sm:$0xff]
      %v369 = vld [vmem:[%s269 + $0xe0] sm:$0xff]
      %v370 = vld [vmem:[%s269 + $0xe8] sm:$0xff]
      %v371 = vld [vmem:[%s269 + $0xf0] sm:$0xff]
      %v372 = vld [vmem:[%s269 + $0xf8] sm:$0xff]
      %v373 = vld [vmem:[%s2] sm:$0x1]
      %v375 = vlaneseq
      %v376 = vshrl.u32 %v375, 7
      %v377 = vsub.s32 0, %v376
      %v378 = vrot.slane %v373, %v377
      %v380 = vmul.f32 %v309, %v378
      %v381 = vmul.f32 %v310, %v378
      %v382 = vmul.f32 %v311, %v378
      %v383 = vmul.f32 %v312, %v378
      %v384 = vmul.f32 %v313, %v378
      %v385 = vmul.f32 %v314, %v378
      %v386 = vmul.f32 %v315, %v378
      %v387 = vmul.f32 %v316, %v378
      %v388 = vmul.f32 %v317, %v378
      %v389 = vmul.f32 %v318, %v378
      %v390 = vmul.f32 %v319, %v378
      %v391 = vmul.f32 %v320, %v378
      %v392 = vmul.f32 %v321, %v378
      %v393 = vmul.f32 %v322, %v378
      %v394 = vmul.f32 %v323, %v378
      %v395 = vmul.f32 %v324, %v378
      %v396 = vmul.f32 %v325, %v378
      %v397 = vmul.f32 %v326, %v378
      %v398 = vmul.f32 %v327, %v378
      %v399 = vmul.f32 %v328, %v378
      %v400 = vmul.f32 %v329, %v378
      %v401 = vmul.f32 %v330, %v378
      %v402 = vmul.f32 %v331, %v378
      %v403 = vmul.f32 %v332, %v378
      %v404 = vmul.f32 %v333, %v378
      %v405 = vmul.f32 %v334, %v378
      %v406 = vmul.f32 %v335, %v378
      %v407 = vmul.f32 %v336, %v378
      %v408 = vmul.f32 %v337, %v378
      %v409 = vmul.f32 %v338, %v378
      %v410 = vmul.f32 %v339, %v378
      %v411 = vmul.f32 %v340, %v378
      %v412 = vld [vmem:[%s3] sm:$0x1]
      %v414 = vlaneseq
      %v415 = vshrl.u32 %v414, 7
      %v416 = vsub.s32 0, %v415
      %v417 = vrot.slane %v412, %v416
      %v419 = vadd.f32 %v380, %v417
      %v420 = vadd.f32 %v381, %v417
      %v421 = vadd.f32 %v382, %v417
      %v422 = vadd.f32 %v383, %v417
      %v423 = vadd.f32 %v384, %v417
      %v424 = vadd.f32 %v385, %v417
      %v425 = vadd.f32 %v386, %v417
      %v426 = vadd.f32 %v387, %v417
      %v427 = vadd.f32 %v388, %v417
      %v428 = vadd.f32 %v389, %v417
      %v429 = vadd.f32 %v390, %v417
      %v430 = vadd.f32 %v391, %v417
      %v431 = vadd.f32 %v392, %v417
      %v432 = vadd.f32 %v393, %v417
      %v433 = vadd.f32 %v394, %v417
      %v434 = vadd.f32 %v395, %v417
      %v435 = vadd.f32 %v396, %v417
      %v436 = vadd.f32 %v397, %v417
      %v437 = vadd.f32 %v398, %v417
      %v438 = vadd.f32 %v399, %v417
      %v439 = vadd.f32 %v400, %v417
      %v440 = vadd.f32 %v401, %v417
      %v441 = vadd.f32 %v402, %v417
      %v442 = vadd.f32 %v403, %v417
      %v443 = vadd.f32 %v404, %v417
      %v444 = vadd.f32 %v405, %v417
      %v445 = vadd.f32 %v406, %v417
      %v446 = vadd.f32 %v407, %v417
      %v447 = vadd.f32 %v408, %v417
      %v448 = vadd.f32 %v409, %v417
      %v449 = vadd.f32 %v410, %v417
      %v450 = vadd.f32 %v411, %v417
      %v451 = vmax.f32 %v419, 0.0
      %v452 = vmax.f32 %v420, 0.0
      %v453 = vmax.f32 %v421, 0.0
      %v454 = vmax.f32 %v422, 0.0
      %v455 = vmax.f32 %v423, 0.0
      %v456 = vmax.f32 %v424, 0.0
      %v457 = vmax.f32 %v425, 0.0
      %v458 = vmax.f32 %v426, 0.0
      %v459 = vmax.f32 %v427, 0.0
      %v460 = vmax.f32 %v428, 0.0
      %v461 = vmax.f32 %v429, 0.0
      %v462 = vmax.f32 %v430, 0.0
      %v463 = vmax.f32 %v431, 0.0
      %v464 = vmax.f32 %v432, 0.0
      %v465 = vmax.f32 %v433, 0.0
      %v466 = vmax.f32 %v434, 0.0
      %v467 = vmax.f32 %v435, 0.0
      %v468 = vmax.f32 %v436, 0.0
      %v469 = vmax.f32 %v437, 0.0
      %v470 = vmax.f32 %v438, 0.0
      %v471 = vmax.f32 %v439, 0.0
      %v472 = vmax.f32 %v440, 0.0
      %v473 = vmax.f32 %v441, 0.0
      %v474 = vmax.f32 %v442, 0.0
      %v475 = vmax.f32 %v443, 0.0
      %v476 = vmax.f32 %v444, 0.0
      %v477 = vmax.f32 %v445, 0.0
      %v478 = vmax.f32 %v446, 0.0
      %v479 = vmax.f32 %v447, 0.0
      %v480 = vmax.f32 %v448, 0.0
      %v481 = vmax.f32 %v449, 0.0
      %v482 = vmax.f32 %v450, 0.0
      %v483 = vld [vmem:[%s4] sm:$0x1]
      %v485 = vlaneseq
      %v486 = vshrl.u32 %v485, 7
      %v487 = vsub.s32 0, %v486
      %v488 = vrot.slane %v483, %v487
      %v490 = vmul.f32 %v341, %v488
      %v491 = vmul.f32 %v342, %v488
      %v492 = vmul.f32 %v343, %v488
      %v493 = vmul.f32 %v344, %v488
      %v494 = vmul.f32 %v345, %v488
      %v495 = vmul.f32 %v346, %v488
      %v496 = vmul.f32 %v347, %v488
      %v497 = vmul.f32 %v348, %v488
      %v498 = vmul.f32 %v349, %v488
      %v499 = vmul.f32 %v350, %v488
      %v500 = vmul.f32 %v351, %v488
      %v501 = vmul.f32 %v352, %v488
      %v502 = vmul.f32 %v353, %v488
      %v503 = vmul.f32 %v354, %v488
      %v504 = vmul.f32 %v355, %v488
      %v505 = vmul.f32 %v356, %v488
      %v506 = vmul.f32 %v357, %v488
      %v507 = vmul.f32 %v358, %v488
      %v508 = vmul.f32 %v359, %v488
      %v509 = vmul.f32 %v360, %v488
      %v510 = vmul.f32 %v361, %v488
      %v511 = vmul.f32 %v362, %v488
      %v512 = vmul.f32 %v363, %v488
      %v513 = vmul.f32 %v364, %v488
      %v514 = vmul.f32 %v365, %v488
      %v515 = vmul.f32 %v366, %v488
      %v516 = vmul.f32 %v367, %v488
      %v517 = vmul.f32 %v368, %v488
      %v518 = vmul.f32 %v369, %v488
      %v519 = vmul.f32 %v370, %v488
      %v520 = vmul.f32 %v371, %v488
      %v521 = vmul.f32 %v372, %v488
      %v522 = vld [vmem:[%s5] sm:$0x1]
      %v524 = vlaneseq
      %v525 = vshrl.u32 %v524, 7
      %v526 = vsub.s32 0, %v525
      %v527 = vrot.slane %v522, %v526
      %v529 = vadd.f32 %v490, %v527
      %v530 = vadd.f32 %v491, %v527
      %v531 = vadd.f32 %v492, %v527
      %v532 = vadd.f32 %v493, %v527
      %v533 = vadd.f32 %v494, %v527
      %v534 = vadd.f32 %v495, %v527
      %v535 = vadd.f32 %v496, %v527
      %v536 = vadd.f32 %v497, %v527
      %v537 = vadd.f32 %v498, %v527
      %v538 = vadd.f32 %v499, %v527
      %v539 = vadd.f32 %v500, %v527
      %v540 = vadd.f32 %v501, %v527
      %v541 = vadd.f32 %v502, %v527
      %v542 = vadd.f32 %v503, %v527
      %v543 = vadd.f32 %v504, %v527
      %v544 = vadd.f32 %v505, %v527
      %v545 = vadd.f32 %v506, %v527
      %v546 = vadd.f32 %v507, %v527
      %v547 = vadd.f32 %v508, %v527
      %v548 = vadd.f32 %v509, %v527
      %v549 = vadd.f32 %v510, %v527
      %v550 = vadd.f32 %v511, %v527
      %v551 = vadd.f32 %v512, %v527
      %v552 = vadd.f32 %v513, %v527
      %v553 = vadd.f32 %v514, %v527
      %v554 = vadd.f32 %v515, %v527
      %v555 = vadd.f32 %v516, %v527
      %v556 = vadd.f32 %v517, %v527
      %v557 = vadd.f32 %v518, %v527
      %v558 = vadd.f32 %v519, %v527
      %v559 = vadd.f32 %v520, %v527
      %v560 = vadd.f32 %v521, %v527
      %v561 = vmax.f32 %v529, 0.0
      %v562 = vmax.f32 %v530, 0.0
      %v563 = vmax.f32 %v531, 0.0
      %v564 = vmax.f32 %v532, 0.0
      %v565 = vmax.f32 %v533, 0.0
      %v566 = vmax.f32 %v534, 0.0
      %v567 = vmax.f32 %v535, 0.0
      %v568 = vmax.f32 %v536, 0.0
      %v569 = vmax.f32 %v537, 0.0
      %v570 = vmax.f32 %v538, 0.0
      %v571 = vmax.f32 %v539, 0.0
      %v572 = vmax.f32 %v540, 0.0
      %v573 = vmax.f32 %v541, 0.0
      %v574 = vmax.f32 %v542, 0.0
      %v575 = vmax.f32 %v543, 0.0
      %v576 = vmax.f32 %v544, 0.0
      %v577 = vmax.f32 %v545, 0.0
      %v578 = vmax.f32 %v546, 0.0
      %v579 = vmax.f32 %v547, 0.0
      %v580 = vmax.f32 %v548, 0.0
      %v581 = vmax.f32 %v549, 0.0
      %v582 = vmax.f32 %v550, 0.0
      %v583 = vmax.f32 %v551, 0.0
      %v584 = vmax.f32 %v552, 0.0
      %v585 = vmax.f32 %v553, 0.0
      %v586 = vmax.f32 %v554, 0.0
      %v587 = vmax.f32 %v555, 0.0
      %v588 = vmax.f32 %v556, 0.0
      %v589 = vmax.f32 %v557, 0.0
      %v590 = vmax.f32 %v558, 0.0
      %v591 = vmax.f32 %v559, 0.0
      %v592 = vmax.f32 %v560, 0.0
      %v593 = vadd.f32 %v451, %v561
      %v594 = vadd.f32 %v452, %v562
      %v595 = vadd.f32 %v453, %v563
      %v596 = vadd.f32 %v454, %v564
      %v597 = vadd.f32 %v455, %v565
      %v598 = vadd.f32 %v456, %v566
      %v599 = vadd.f32 %v457, %v567
      %v600 = vadd.f32 %v458, %v568
      %v601 = vadd.f32 %v459, %v569
      %v602 = vadd.f32 %v460, %v570
      %v603 = vadd.f32 %v461, %v571
      %v604 = vadd.f32 %v462, %v572
      %v605 = vadd.f32 %v463, %v573
      %v606 = vadd.f32 %v464, %v574
      %v607 = vadd.f32 %v465, %v575
      %v608 = vadd.f32 %v466, %v576
      %v609 = vadd.f32 %v467, %v577
      %v610 = vadd.f32 %v468, %v578
      %v611 = vadd.f32 %v469, %v579
      %v612 = vadd.f32 %v470, %v580
      %v613 = vadd.f32 %v471, %v581
      %v614 = vadd.f32 %v472, %v582
      %v615 = vadd.f32 %v473, %v583
      %v616 = vadd.f32 %v474, %v584
      %v617 = vadd.f32 %v475, %v585
      %v618 = vadd.f32 %v476, %v586
      %v619 = vadd.f32 %v477, %v587
      %v620 = vadd.f32 %v478, %v588
      %v621 = vadd.f32 %v479, %v589
      %v622 = vadd.f32 %v480, %v590
      %v623 = vadd.f32 %v481, %v591
      %v624 = vadd.f32 %v482, %v592
      %vm625 = vcmask 31744
      %626 = vst.msk [vmem:[%s275] sm:$0xff] %vm625, %v593
      %627 = vst.msk [vmem:[%s275 + $0x8] sm:$0xff] %vm625, %v594
      %628 = vst.msk [vmem:[%s275 + $0x10] sm:$0xff] %vm625, %v595
      %629 = vst.msk [vmem:[%s275 + $0x18] sm:$0xff] %vm625, %v596
      %630 = vst.msk [vmem:[%s275 + $0x20] sm:$0xff] %vm625, %v597
      %631 = vst.msk [vmem:[%s275 + $0x28] sm:$0xff] %vm625, %v598
      %632 = vst.msk [vmem:[%s275 + $0x30] sm:$0xff] %vm625, %v599
      %633 = vst.msk [vmem:[%s275 + $0x38] sm:$0xff] %vm625, %v600
      %634 = vst.msk [vmem:[%s275 + $0x40] sm:$0xff] %vm625, %v601
      %635 = vst.msk [vmem:[%s275 + $0x48] sm:$0xff] %vm625, %v602
      %636 = vst.msk [vmem:[%s275 + $0x50] sm:$0xff] %vm625, %v603
      %637 = vst.msk [vmem:[%s275 + $0x58] sm:$0xff] %vm625, %v604
      %638 = vst.msk [vmem:[%s275 + $0x60] sm:$0xff] %vm625, %v605
      %639 = vst.msk [vmem:[%s275 + $0x68] sm:$0xff] %vm625, %v606
      %640 = vst.msk [vmem:[%s275 + $0x70] sm:$0xff] %vm625, %v607
      %641 = vst.msk [vmem:[%s275 + $0x78] sm:$0xff] %vm625, %v608
      %642 = vst.msk [vmem:[%s275 + $0x80] sm:$0xff] %vm625, %v609
      %643 = vst.msk [vmem:[%s275 + $0x88] sm:$0xff] %vm625, %v610
      %644 = vst.msk [vmem:[%s275 + $0x90] sm:$0xff] %vm625, %v611
      %645 = vst.msk [vmem:[%s275 + $0x98] sm:$0xff] %vm625, %v612
      %646 = vst.msk [vmem:[%s275 + $0xa0] sm:$0xff] %vm625, %v613
      %647 = vst.msk [vmem:[%s275 + $0xa8] sm:$0xff] %vm625, %v614
      %648 = vst.msk [vmem:[%s275 + $0xb0] sm:$0xff] %vm625, %v615
      %649 = vst.msk [vmem:[%s275 + $0xb8] sm:$0xff] %vm625, %v616
      %650 = vst.msk [vmem:[%s275 + $0xc0] sm:$0xff] %vm625, %v617
      %651 = vst.msk [vmem:[%s275 + $0xc8] sm:$0xff] %vm625, %v618
      %652 = vst.msk [vmem:[%s275 + $0xd0] sm:$0xff] %vm625, %v619
      %653 = vst.msk [vmem:[%s275 + $0xd8] sm:$0xff] %vm625, %v620
      %654 = vst.msk [vmem:[%s275 + $0xe0] sm:$0xff] %vm625, %v621
      %655 = vst.msk [vmem:[%s275 + $0xe8] sm:$0xff] %vm625, %v622
      %656 = vst.msk [vmem:[%s275 + $0xf0] sm:$0xff] %vm625, %v623
      %657 = vst.msk [vmem:[%s275 + $0xf8] sm:$0xff] %vm625, %v624
      %s658 = smul.u32 32, %s17
      %p659 = scmp.lt.s32.totalorder %s658, 63
      %s660 = scalar_select %p659, %s658, 63
      %s661 = smul.addr %s660, 8
      %s662 = scalar_lea.vmem %s6, %s661
      // Predicated region
      $region45: #{upconvblock_forward.9} parent=43 // pred_check
        %p663 = pneg %p171
      $region46: #{upconvblock_forward.9} parent=43 // pred_check_branch
        %665 = sbr.rel (%p663) target = $region48
      $region47: #{upconvblock_forward.9} parent=43 // pred_region
        %s666 = smul.u32 32, %s17
      $region48: #{upconvblock_forward.9} parent=43 // pred_fallthru
        _
    $region44: #{upconvblock_forward.9} parent=5 // pred_fallthru
      _
    %p667 = scmp.le.s32.totalorder 2, %s12
    // Predicated region
    $region49: #{upconvblock_forward.9} parent=5 // pred_check
      %p668 = pneg %p667
    $region50: #{upconvblock_forward.9} parent=5 // pred_check_branch
      %670 = sbr.rel (%p668) target = $region52
    $region51: #{upconvblock_forward.9} parent=5 // pred_region
      %s671 = ssub.s32 %s12, 2
      // Predicated region
      $region53: #{upconvblock_forward.9} parent=51 // pred_check
        %p672 = pneg %p177
      $region54: #{upconvblock_forward.9} parent=51 // pred_check_branch
        %674 = sbr.rel (%p672) target = $region56
      $region55: #{upconvblock_forward.9} parent=51 // pred_region
        %s675 = smul.u32 32, %s18
        %p676 = scmp.lt.s32.totalorder %s675, 63
        %s677 = scalar_select %p676, %s675, 63
        %s678 = smul.addr %s677, 8
        %s679 = scalar_lea.vmem %s6, %s678
      $region56: #{upconvblock_forward.9} parent=51 // pred_fallthru
        _
    $region52: #{upconvblock_forward.9} parent=5 // pred_fallthru
      _
  $region6: #{upconvblock_forward.9} parent=0 // loop_footer
    %s16 = sadd.s32 1, %s12
  $region7: #{upconvblock_forward.9} parent=0 // loop_footer_branch
    %11 = sbr.rel target = $region3
  $region8: #{upconvblock_forward.9} parent=0 // loop_exit
    _

// kernel: upconvblock_forward.7
$region0: #{upconvblock_forward.7}
  #allocation0 [shape = 'u32[]', space=smem, size = 0x4, offset = 0x4, fixed_abs, tag = 'smem constant byte address 0x4 - core index']
  #allocation1 [shape = 'u32[144,128]{1,0:T(1,128)}', space=vmem, size = 0x12000, scoped, tag = 'internal scratch']
  %s0 = inlined_call_operand.vmem [shape: bf16[2,18,18,8], index: 0, kind: input, shape index: {}]
  %s1 = inlined_call_operand.vmem [shape: bf16[9,8,4], index: 1, kind: input, shape index: {}]
  %s2 = inlined_call_operand.vmem [shape: f32[1,8], index: 2, kind: input, shape index: {}]
  %s3 = inlined_call_operand.vmem [shape: f32[1,8], index: 3, kind: input, shape index: {}]
  %s4 = inlined_call_operand.vmem [shape: bf16[512,4], index: 4, kind: output, shape index: {0}]
  %s5 = inlined_call_operand.vmem [shape: f32[16,4], index: 5, kind: output, shape index: {1}]
  %s6 = inlined_call_operand.vmem [shape: f32[16,4], index: 6, kind: output, shape index: {2}]
  %7 = xla_tuple %s4, %s5, %s6
  %s8 = sld [smem:[#allocation0]]
  $region65: #{upconvblock_forward.7} parent=0
    _
  %s10 = ssub.s32 1, %s8
  %s11 = scalar_select 0, %s10, %s8
  loop: start=0, step=1, limit=4
  $region2: #{upconvblock_forward.7} parent=0 // loop_pre_header
    _
  $region3: #{upconvblock_forward.7} parent=0 // loop_header
    %s13 = sphi 0, %s17
    %p14 = scmp.ge.s32.totalorder %s13, 4
    %s23 = sphi 0, %s25
    %s26 = sphi 0, %s23
    %s27 = sphi 0, %s26
    %s43 = sphi 0, %s27
    %s47 = sphi 0, %s47
    %s49 = sphi 0, %s47
    %s50 = sphi 0, %s49
    %s64 = sphi 0, %s50
    %s68 = sphi 0, %s68
    %s70 = sphi 0, %s68
    %s71 = sphi 0, %s70
    %s85 = sphi 0, %s71
    %s89 = sphi 0, %s89
    %s91 = sphi 0, %s89
    %s92 = sphi 0, %s91
    %s106 = sphi 0, %s92
    %s112 = sphi 0, %s114
    %s115 = sphi 0, %s112
    %s116 = sphi 0, %s115
    %s132 = sphi 0, %s116
    %s138 = sphi 0, %s140
    %s141 = sphi 0, %s138
    %s142 = sphi 0, %s141
    %s158 = sphi 0, %s142
    %s164 = sphi 0, %s166
    %s167 = sphi 0, %s164
    %s168 = sphi 0, %s167
    %s184 = sphi 0, %s168
  $region4: #{upconvblock_forward.7} parent=0 // loop_header_branch
    %16 = sbr.rel (%p14) target = $region8
  $region5: #{upconvblock_forward.7} parent=0 // loop_body
    %s18 = ssub.s32 %s13, 1
    %s19 = ssub.s32 %s13, 2
    %s20 = sadd.s32 %s13, 1
    %s21 = ssub.s32 %s13, %s20
    %p22 = scmp.eq.s32.totalorder %s21, 0
    %s24 = sadd.s32 %s23, 1
    %s25 = scalar_select %p22, %s23, %s24
    %p28 = pneg %p22
    %p29 = scmp.eq.s32.totalorder %s13, 1
    %p30 = por %p28, %p29
    %p31 = scmp.ne.s32.totalorder %s23, %s26
    %p32 = scmp.eq.s32.totalorder %s13, 0
    %p33 = por %p31, %p32
    %p34 = scmp.ne.s32.totalorder %s23, %s26
    %p35 = scmp.eq.s32.totalorder %s18, 1
    %p36 = por %p34, %p35
    %p37 = scmp.ne.s32.totalorder %s26, %s27
    %p38 = scmp.eq.s32.totalorder %s18, 0
    %p39 = por %p37, %p38
    %p40 = scmp.ne.s32.totalorder %s26, %s27
    %p41 = scmp.eq.s32.totalorder %s19, 1
    %p42 = por %p40, %p41
    %p44 = scmp.ne.s32.totalorder %s27, %s43
    %p45 = scmp.eq.s32.totalorder %s19, 0
    %p46 = por %p44, %p45
    %s48 = sadd.s32 %s47, 1
    %p51 = scmp.eq.s32.totalorder %s13, 1
    %p52 = scmp.ne.s32.totalorder %s47, %s49
    %p53 = scmp.eq.s32.totalorder %s13, 0
    %p54 = por %p52, %p53
    %p55 = scmp.ne.s32.totalorder %s47, %s49
    %p56 = scmp.eq.s32.totalorder %s18, 1
    %p57 = por %p55, %p56
    %p58 = scmp.ne.s32.totalorder %s49, %s50
    %p59 = scmp.eq.s32.totalorder %s18, 0
    %p60 = por %p58, %p59
    %p61 = scmp.ne.s32.totalorder %s49, %s50
    %p62 = scmp.eq.s32.totalorder %s19, 1
    %p63 = por %p61, %p62
    %p65 = scmp.ne.s32.totalorder %s50, %s64
    %p66 = scmp.eq.s32.totalorder %s19, 0
    %p67 = por %p65, %p66
    %s69 = sadd.s32 %s68, 1
    %p72 = scmp.eq.s32.totalorder %s13, 1
    %p73 = scmp.ne.s32.totalorder %s68, %s70
    %p74 = scmp.eq.s32.totalorder %s13, 0
    %p75 = por %p73, %p74
    %p76 = scmp.ne.s32.totalorder %s68, %s70
    %p77 = scmp.eq.s32.totalorder %s18, 1
    %p78 = por %p76, %p77
    %p79 = scmp.ne.s32.totalorder %s70, %s71
    %p80 = scmp.eq.s32.totalorder %s18, 0
    %p81 = por %p79, %p80
    %p82 = scmp.ne.s32.totalorder %s70, %s71
    %p83 = scmp.eq.s32.totalorder %s19, 1
    %p84 = por %p82, %p83
    %p86 = scmp.ne.s32.totalorder %s71, %s85
    %p87 = scmp.eq.s32.totalorder %s19, 0
    %p88 = por %p86, %p87
    %s90 = sadd.s32 %s89, 1
    %p93 = scmp.eq.s32.totalorder %s13, 1
    %p94 = scmp.ne.s32.totalorder %s89, %s91
    %p95 = scmp.eq.s32.totalorder %s13, 0
    %p96 = por %p94, %p95
    %p97 = scmp.ne.s32.totalorder %s89, %s91
    %p98 = scmp.eq.s32.totalorder %s18, 1
    %p99 = por %p97, %p98
    %p100 = scmp.ne.s32.totalorder %s91, %s92
    %p101 = scmp.eq.s32.totalorder %s18, 0
    %p102 = por %p100, %p101
    %p103 = scmp.ne.s32.totalorder %s91, %s92
    %p104 = scmp.eq.s32.totalorder %s19, 1
    %p105 = por %p103, %p104
    %p107 = scmp.ne.s32.totalorder %s92, %s106
    %p108 = scmp.eq.s32.totalorder %s19, 0
    %p109 = por %p107, %p108
    %s110 = ssub.s32 %s13, %s20
    %p111 = scmp.eq.s32.totalorder %s110, 0
    %s113 = sadd.s32 %s112, 1
    %s114 = scalar_select %p111, %s112, %s113
    %p117 = pneg %p111
    %p118 = scmp.eq.s32.totalorder %s13, 1
    %p119 = por %p117, %p118
    %p120 = scmp.ne.s32.totalorder %s112, %s115
    %p121 = scmp.eq.s32.totalorder %s13, 0
    %p122 = por %p120, %p121
    %p123 = scmp.ne.s32.totalorder %s112, %s115
    %p124 = scmp.eq.s32.totalorder %s18, 1
    %p125 = por %p123, %p124
    %p126 = scmp.ne.s32.totalorder %s115, %s116
    %p127 = scmp.eq.s32.totalorder %s18, 0
    %p128 = por %p126, %p127
    %p129 = scmp.ne.s32.totalorder %s115, %s116
    %p130 = scmp.eq.s32.totalorder %s19, 1
    %p131 = por %p129, %p130
    %p133 = scmp.ne.s32.totalorder %s116, %s132
    %p134 = scmp.eq.s32.totalorder %s19, 0
    %p135 = por %p133, %p134
    %s136 = ssub.s32 %s13, %s20
    %p137 = scmp.eq.s32.totalorder %s136, 0
    %s139 = sadd.s32 %s138, 1
    %s140 = scalar_select %p137, %s138, %s139
    %p143 = pneg %p137
    %p144 = scmp.eq.s32.totalorder %s13, 1
    %p145 = por %p143, %p144
    %p146 = scmp.ne.s32.totalorder %s138, %s141
    %p147 = scmp.eq.s32.totalorder %s13, 0
    %p148 = por %p146, %p147
    %p149 = scmp.ne.s32.totalorder %s138, %s141
    %p150 = scmp.eq.s32.totalorder %s18, 1
    %p151 = por %p149, %p150
    %p152 = scmp.ne.s32.totalorder %s141, %s142
    %p153 = scmp.eq.s32.totalorder %s18, 0
    %p154 = por %p152, %p153
    %p155 = scmp.ne.s32.totalorder %s141, %s142
    %p156 = scmp.eq.s32.totalorder %s19, 1
    %p157 = por %p155, %p156
    %p159 = scmp.ne.s32.totalorder %s142, %s158
    %p160 = scmp.eq.s32.totalorder %s19, 0
    %p161 = por %p159, %p160
    %s162 = ssub.s32 %s13, %s20
    %p163 = scmp.eq.s32.totalorder %s162, 0
    %s165 = sadd.s32 %s164, 1
    %s166 = scalar_select %p163, %s164, %s165
    %p169 = pneg %p163
    %p170 = scmp.eq.s32.totalorder %s13, 1
    %p171 = por %p169, %p170
    %p172 = scmp.ne.s32.totalorder %s164, %s167
    %p173 = scmp.eq.s32.totalorder %s13, 0
    %p174 = por %p172, %p173
    %p175 = scmp.ne.s32.totalorder %s164, %s167
    %p176 = scmp.eq.s32.totalorder %s18, 1
    %p177 = por %p175, %p176
    %p178 = scmp.ne.s32.totalorder %s167, %s168
    %p179 = scmp.eq.s32.totalorder %s18, 0
    %p180 = por %p178, %p179
    %p181 = scmp.ne.s32.totalorder %s167, %s168
    %p182 = scmp.eq.s32.totalorder %s19, 1
    %p183 = por %p181, %p182
    %p185 = scmp.ne.s32.totalorder %s168, %s184
    %p186 = scmp.eq.s32.totalorder %s19, 0
    %p187 = por %p185, %p186
    %p188 = scmp.le.s32.totalorder 1, %s13
    %p189 = scmp.lt.s32.totalorder %s13, 3
    %p190 = pnand %p188, %p189
    %p191 = pneg %p190
    // Predicated region
    $region9: #{upconvblock_forward.7} parent=5 // pred_check
      _
    $region10: #{upconvblock_forward.7} parent=5 // pred_check_branch
      %193 = sbr.rel (%p190) target = $region12
    $region11: #{upconvblock_forward.7} parent=5 // pred_region
      %s194 = ssub.s32 %s13, 1
      // Predicated region
      $region13: #{upconvblock_forward.7} parent=11 // pred_check
        %p195 = pneg %p60
      $region14: #{upconvblock_forward.7} parent=11 // pred_check_branch
        %197 = sbr.rel (%p195) target = $region16
      $region15: #{upconvblock_forward.7} parent=11 // pred_region
        _
      $region16: #{upconvblock_forward.7} parent=11 // pred_fallthru
        _
      // Predicated region
      $region17: #{upconvblock_forward.7} parent=11 // pred_check
        %p198 = pneg %p81
      $region18: #{upconvblock_forward.7} parent=11 // pred_check_branch
        %200 = sbr.rel (%p198) target = $region20
      $region19: #{upconvblock_forward.7} parent=11 // pred_region
        _
      $region20: #{upconvblock_forward.7} parent=11 // pred_fallthru
        _
      // Predicated region
      $region21: #{upconvblock_forward.7} parent=11 // pred_check
        %p201 = pneg %p102
      $region22: #{upconvblock_forward.7} parent=11 // pred_check_branch
        %203 = sbr.rel (%p201) target = $region24
      $region23: #{upconvblock_forward.7} parent=11 // pred_region
        _
      $region24: #{upconvblock_forward.7} parent=11 // pred_fallthru
        _
    $region12: #{upconvblock_forward.7} parent=5 // pred_fallthru
      _
    %p204 = scmp.lt.s32.totalorder %s13, 2
    // Predicated region
    $region25: #{upconvblock_forward.7} parent=5 // pred_check
      %p205 = pneg %p204
    $region26: #{upconvblock_forward.7} parent=5 // pred_check_branch
      %207 = sbr.rel (%p205) target = $region28
    $region27: #{upconvblock_forward.7} parent=5 // pred_region
      // Predicated region
      $region29: #{upconvblock_forward.7} parent=27 // pred_check
        %p208 = pneg %p33
      $region30: #{upconvblock_forward.7} parent=27 // pred_check_branch
        %210 = sbr.rel (%p208) target = $region32
      $region31: #{upconvblock_forward.7} parent=27 // pred_region
        %p211 = scmp.lt.s32.totalorder %s13, 1
        %s212 = scalar_select %p211, %s13, 1
        %s213 = smul.addr %s212, 54
        %s214 = smul.addr %s213, 4
        %s215 = scalar_lea.vmem %s0, %s214
      $region32: #{upconvblock_forward.7} parent=27 // pred_fallthru
        _
    $region28: #{upconvblock_forward.7} parent=5 // pred_fallthru
      _
    %p216 = scmp.le.s32.totalorder 1, %s13
    %p217 = scmp.lt.s32.totalorder %s13, 3
    %p218 = pnand %p216, %p217
    %p219 = pneg %p218
    // Predicated region
    $region33: #{upconvblock_forward.7} parent=5 // pred_check
      _
    $region34: #{upconvblock_forward.7} parent=5 // pred_check_branch
      %221 = sbr.rel (%p218) target = $region36
    $region35: #{upconvblock_forward.7} parent=5 // pred_region
      %s222 = ssub.s32 %s13, 1
      %p223 = scmp.lt.s32.totalorder %s18, 1
      %s224 = scalar_select %p223, %s18, 1
      %s225 = smul.addr %s224, 54
      %s226 = smul.addr %s225, 4
      %s227 = scalar_lea.vmem %s0, %s226
      %p228 = pneg %p39
      %p229 = pneg %p36
      %p230 = pneg %p60
      %p231 = pneg %p57
      %p232 = pneg %p81
      %p233 = pneg %p78
      %p234 = pneg %p102
      %p235 = pneg %p99
      %p236 = pneg %p128
      %p237 = pneg %p125
      %s238 = smul.u32 32, %s18
      %p239 = scmp.lt.s32.totalorder %s238, 63
      %s240 = scalar_select %p239, %s238, 63
      %s241 = smul.addr %s240, 4
      %s242 = scalar_lea.vmem %s4, %s241
      %p243 = pneg %p154
      %p244 = pneg %p151
      %p245 = scmp.lt.s32.totalorder %s18, 1
      %s246 = scalar_select %p245, %s18, 1
      %s247 = smul.addr %s246, 8
      %s248 = scalar_lea.vmem %s5, %s247
      %p249 = pneg %p180
      %p250 = pneg %p177
      %p251 = scmp.lt.s32.totalorder %s18, 1
      %s252 = scalar_select %p251, %s18, 1
      %s253 = smul.addr %s252, 8
      %s254 = scalar_lea.vmem %s6, %s253
      %p255 = scmp.lt.s32.totalorder %s18, 1
      %s256 = scalar_select %p255, %s18, 1
      %s257 = smul.addr %s256, 54
      %s258 = smul.addr %s257, 4
      %s259 = scalar_lea.vmem %s0, %s258
      %s260 = smul.u32 32, %s18
      %p261 = scmp.lt.s32.totalorder %s260, 63
      %s262 = scalar_select %p261, %s260, 63
      %s263 = smul.addr %s262, 4
      %s264 = scalar_lea.vmem %s4, %s263
      %s265 = smul.u32 32, %s18
      %p266 = scmp.lt.s32.totalorder %s18, 1
      %s267 = scalar_select %p266, %s18, 1
      %s268 = smul.addr %s267, 8
      %s269 = scalar_lea.vmem %s5, %s268
      %p270 = scmp.lt.s32.totalorder %s18, 1
      %s271 = scalar_select %p270, %s18, 1
      %s272 = smul.addr %s271, 8
      %s273 = scalar_lea.vmem %s6, %s272
      %v275 = vld [vmem:[%s259] sm:$0xf]
      %v276 = vld [vmem:[%s259 + $0x4] sm:$0xf]
      %v277 = vld [vmem:[%s259 + $0x8] sm:$0x1]
      %v278 = vld [vmem:[%s259 + $0xc] sm:$0xf]
      %v279 = vld [vmem:[%s259 + $0x10] sm:$0xf]
      %v280 = vld [vmem:[%s259 + $0x14] sm:$0x1]
      %v281 = vld [vmem:[%s259 + $0x18] sm:$0xf]
      %v282 = vld [vmem:[%s259 + $0x1c] sm:$0xf]
      %v283 = vld [vmem:[%s259 + $0x20] sm:$0x1]
      %v284 = vld [vmem:[%s259 + $0x24] sm:$0xf]
      %v285 = vld [vmem:[%s259 + $0x28] sm:$0xf]
      %v286 = vld [vmem:[%s259 + $0x2c] sm:$0x1]
      %v287 = vld [vmem:[%s259 + $0x30] sm:$0xf]
      %v288 = vld [vmem:[%s259 + $0x34] sm:$0xf]
      %v289 = vld [vmem:[%s259 + $0x38] sm:$0x1]
      %v290 = vld [vmem:[%s259 + $0x3c] sm:$0xf]
      %v291 = vld [vmem:[%s259 + $0x40] sm:$0xf]
      %v292 = vld [vmem:[%s259 + $0x44] sm:$0x1]
      %v293 = vld [vmem:[%s259 + $0x48] sm:$0xf]
      %v294 = vld [vmem:[%s259 + $0x4c] sm:$0xf]
      %v295 = vld [vmem:[%s259 + $0x50] sm:$0x1]
      %v296 = vld [vmem:[%s259 + $0x54] sm:$0xf]
      %v297 = vld [vmem:[%s259 + $0x58] sm:$0xf]
      %v298 = vld [vmem:[%s259 + $0x5c] sm:$0x1]
      %v299 = vld [vmem:[%s259 + $0x60] sm:$0xf]
      %v300 = vld [vmem:[%s259 + $0x64] sm:$0xf]
      %v301 = vld [vmem:[%s259 + $0x68] sm:$0x1]
      %v302 = vld [vmem:[%s259 + $0x6c] sm:$0xf]
      %v303 = vld [vmem:[%s259 + $0x70] sm:$0xf]
      %v304 = vld [vmem:[%s259 + $0x74] sm:$0x1]
      %v305 = vld [vmem:[%s259 + $0x78] sm:$0xf]
      %v306 = vld [vmem:[%s259 + $0x7c] sm:$0xf]
      %v307 = vld [vmem:[%s259 + $0x80] sm:$0x1]
      %v308 = vld [vmem:[%s259 + $0x84] sm:$0xf]
      %v309 = vld [vmem:[%s259 + $0x88] sm:$0xf]
      %v310 = vld [vmem:[%s259 + $0x8c] sm:$0x1]
      %v311 = vld [vmem:[%s259 + $0x90] sm:$0xf]
      %v312 = vld [vmem:[%s259 + $0x94] sm:$0xf]
      %v313 = vld [vmem:[%s259 + $0x98] sm:$0x1]
      %v314 = vld [vmem:[%s259 + $0x9c] sm:$0xf]
      %v315 = vld [vmem:[%s259 + $0xa0] sm:$0xf]
      %v316 = vld [vmem:[%s259 + $0xa4] sm:$0x1]
      %v317 = vld [vmem:[%s259 + $0xa8] sm:$0xf]
      %v318 = vld [vmem:[%s259 + $0xac] sm:$0xf]
      %v319 = vld [vmem:[%s259 + $0xb0] sm:$0x1]
      %v320 = vld [vmem:[%s259 + $0xb4] sm:$0xf]
      %v321 = vld [vmem:[%s259 + $0xb8] sm:$0xf]
      %v322 = vld [vmem:[%s259 + $0xbc] sm:$0x1]
      %v323 = vld [vmem:[%s259 + $0xc0] sm:$0xf]
      %v324 = vld [vmem:[%s259 + $0xc4] sm:$0xf]
      %v325 = vld [vmem:[%s259 + $0xc8] sm:$0x1]
      %v326 = vld [vmem:[%s259 + $0xcc] sm:$0xf]
      %v327 = vld [vmem:[%s259 + $0xd0] sm:$0xf]
      %v328 = vld [vmem:[%s259 + $0xd4] sm:$0x1]
      %v329 = vld [vmem:[%s2] sm:$0x1]
      %v330 = vld [vmem:[%s3] sm:$0x1]
      %v331 = vunpack.c.l.bf16 %v275
      %v332 = vunpack.c.l.bf16 %v276
      %v333 = vunpack.c.l.bf16 %v277
      %v334 = vunpack.c.l.bf16 %v278
      %v335 = vunpack.c.l.bf16 %v279
      %v336 = vunpack.c.l.bf16 %v280
      %v337 = vunpack.c.l.bf16 %v281
      %v338 = vunpack.c.l.bf16 %v282
      %v339 = vunpack.c.l.bf16 %v283
      %v340 = vunpack.c.l.bf16 %v284
      %v341 = vunpack.c.l.bf16 %v285
      %v342 = vunpack.c.l.bf16 %v286
      %v343 = vunpack.c.l.bf16 %v287
      %v344 = vunpack.c.l.bf16 %v288
      %v345 = vunpack.c.l.bf16 %v289
      %v346 = vunpack.c.l.bf16 %v290
      %v347 = vunpack.c.l.bf16 %v291
      %v348 = vunpack.c.l.bf16 %v292
      %v349 = vunpack.c.l.bf16 %v293
      %v350 = vunpack.c.l.bf16 %v294
      %v351 = vunpack.c.l.bf16 %v295
      %v352 = vunpack.c.l.bf16 %v296
      %v353 = vunpack.c.l.bf16 %v297
      %v354 = vunpack.c.l.bf16 %v298
      %v355 = vunpack.c.l.bf16 %v299
      %v356 = vunpack.c.l.bf16 %v300
      %v357 = vunpack.c.l.bf16 %v301
      %v358 = vunpack.c.l.bf16 %v302
      %v359 = vunpack.c.l.bf16 %v303
      %v360 = vunpack.c.l.bf16 %v304
      %v361 = vunpack.c.l.bf16 %v305
      %v362 = vunpack.c.l.bf16 %v306
      %v363 = vunpack.c.l.bf16 %v307
      %v364 = vunpack.c.l.bf16 %v308
      %v365 = vunpack.c.l.bf16 %v309
      %v366 = vunpack.c.l.bf16 %v310
      %v367 = vunpack.c.l.bf16 %v311
      %v368 = vunpack.c.l.bf16 %v312
      %v369 = vunpack.c.l.bf16 %v313
      %v370 = vunpack.c.l.bf16 %v314
      %v371 = vunpack.c.l.bf16 %v315
      %v372 = vunpack.c.l.bf16 %v316
      %v373 = vunpack.c.l.bf16 %v317
      %v374 = vunpack.c.l.bf16 %v318
      %v375 = vunpack.c.l.bf16 %v319
      %v376 = vunpack.c.l.bf16 %v320
      %v377 = vunpack.c.l.bf16 %v321
      %v378 = vunpack.c.l.bf16 %v322
      %v379 = vunpack.c.l.bf16 %v323
      %v380 = vunpack.c.l.bf16 %v324
      %v381 = vunpack.c.l.bf16 %v325
      %v382 = vunpack.c.l.bf16 %v326
      %v383 = vunpack.c.l.bf16 %v327
      %v384 = vunpack.c.l.bf16 %v328
      %v386 = vlaneseq
      %v387 = vshrl.u32 %v386, 7
      %v388 = vsub.s32 0, %v387
      %v389 = vrot.slane %v329, %v388
      %v391 = vmul.f32 %v331, %v389
      %v392 = vmul.f32 %v332, %v389
      %v393 = vmul.f32 %v333, %v389
      %v394 = vmul.f32 %v334, %v389
      %v395 = vmul.f32 %v335, %v389
      %v396 = vmul.f32 %v336, %v389
      %v397 = vmul.f32 %v337, %v389
      %v398 = vmul.f32 %v338, %v389
      %v399 = vmul.f32 %v339, %v389
      %v400 = vmul.f32 %v340, %v389
      %v401 = vmul.f32 %v341, %v389
      %v402 = vmul.f32 %v342, %v389
      %v403 = vmul.f32 %v343, %v389
      %v404 = vmul.f32 %v344, %v389
      %v405 = vmul.f32 %v345, %v389
      %v406 = vmul.f32 %v346, %v389
      %v407 = vmul.f32 %v347, %v389
      %v408 = vmul.f32 %v348, %v389
      %v409 = vmul.f32 %v349, %v389
      %v410 = vmul.f32 %v350, %v389
      %v411 = vmul.f32 %v351, %v389
      %v412 = vmul.f32 %v352, %v389
      %v413 = vmul.f32 %v353, %v389
      %v414 = vmul.f32 %v354, %v389
      %v415 = vmul.f32 %v355, %v389
      %v416 = vmul.f32 %v356, %v389
      %v417 = vmul.f32 %v357, %v389
      %v418 = vmul.f32 %v358, %v389
      %v419 = vmul.f32 %v359, %v389
      %v420 = vmul.f32 %v360, %v389
      %v421 = vmul.f32 %v361, %v389
      %v422 = vmul.f32 %v362, %v389
      %v423 = vmul.f32 %v363, %v389
      %v424 = vmul.f32 %v364, %v389
      %v425 = vmul.f32 %v365, %v389
      %v426 = vmul.f32 %v366, %v389
      %v427 = vmul.f32 %v367, %v389
      %v428 = vmul.f32 %v368, %v389
      %v429 = vmul.f32 %v369, %v389
      %v430 = vmul.f32 %v370, %v389
      %v431 = vmul.f32 %v371, %v389
      %v432 = vmul.f32 %v372, %v389
      %v433 = vmul.f32 %v373, %v389
      %v434 = vmul.f32 %v374, %v389
      %v435 = vmul.f32 %v375, %v389
      %v436 = vmul.f32 %v376, %v389
      %v437 = vmul.f32 %v377, %v389
      %v438 = vmul.f32 %v378, %v389
      %v439 = vmul.f32 %v379, %v389
      %v440 = vmul.f32 %v380, %v389
      %v441 = vmul.f32 %v381, %v389
      %v442 = vmul.f32 %v382, %v389
      %v443 = vmul.f32 %v383, %v389
      %v444 = vmul.f32 %v384, %v389
      %v446 = vlaneseq
      %v447 = vshrl.u32 %v446, 7
      %v448 = vsub.s32 0, %v447
      %v449 = vrot.slane %v330, %v448
      %v451 = vadd.f32 %v391, %v449
      %v452 = vadd.f32 %v392, %v449
      %v453 = vadd.f32 %v393, %v449
      %v454 = vadd.f32 %v394, %v449
      %v455 = vadd.f32 %v395, %v449
      %v456 = vadd.f32 %v396, %v449
      %v457 = vadd.f32 %v397, %v449
      %v458 = vadd.f32 %v398, %v449
      %v459 = vadd.f32 %v399, %v449
      %v460 = vadd.f32 %v400, %v449
      %v461 = vadd.f32 %v401, %v449
      %v462 = vadd.f32 %v402, %v449
      %v463 = vadd.f32 %v403, %v449
      %v464 = vadd.f32 %v404, %v449
      %v465 = vadd.f32 %v405, %v449
      %v466 = vadd.f32 %v406, %v449
      %v467 = vadd.f32 %v407, %v449
      %v468 = vadd.f32 %v408, %v449
      %v469 = vadd.f32 %v409, %v449
      %v470 = vadd.f32 %v410, %v449
      %v471 = vadd.f32 %v411, %v449
      %v472 = vadd.f32 %v412, %v449
      %v473 = vadd.f32 %v413, %v449
      %v474 = vadd.f32 %v414, %v449
      %v475 = vadd.f32 %v415, %v449
      %v476 = vadd.f32 %v416, %v449
      %v477 = vadd.f32 %v417, %v449
      %v478 = vadd.f32 %v418, %v449
      %v479 = vadd.f32 %v419, %v449
      %v480 = vadd.f32 %v420, %v449
      %v481 = vadd.f32 %v421, %v449
      %v482 = vadd.f32 %v422, %v449
      %v483 = vadd.f32 %v423, %v449
      %v484 = vadd.f32 %v424, %v449
      %v485 = vadd.f32 %v425, %v449
      %v486 = vadd.f32 %v426, %v449
      %v487 = vadd.f32 %v427, %v449
      %v488 = vadd.f32 %v428, %v449
      %v489 = vadd.f32 %v429, %v449
      %v490 = vadd.f32 %v430, %v449
      %v491 = vadd.f32 %v431, %v449
      %v492 = vadd.f32 %v432, %v449
      %v493 = vadd.f32 %v433, %v449
      %v494 = vadd.f32 %v434, %v449
      %v495 = vadd.f32 %v435, %v449
      %v496 = vadd.f32 %v436, %v449
      %v497 = vadd.f32 %v437, %v449
      %v498 = vadd.f32 %v438, %v449
      %v499 = vadd.f32 %v439, %v449
      %v500 = vadd.f32 %v440, %v449
      %v501 = vadd.f32 %v441, %v449
      %v502 = vadd.f32 %v442, %v449
      %v503 = vadd.f32 %v443, %v449
      %v504 = vadd.f32 %v444, %v449
      %v505 = vmax.f32 %v451, 0.0
      %v506 = vmax.f32 %v452, 0.0
      %v507 = vmax.f32 %v453, 0.0
      %v508 = vmax.f32 %v454, 0.0
      %v509 = vmax.f32 %v455, 0.0
      %v510 = vmax.f32 %v456, 0.0
      %v511 = vmax.f32 %v457, 0.0
      %v512 = vmax.f32 %v458, 0.0
      %v513 = vmax.f32 %v459, 0.0
      %v514 = vmax.f32 %v460, 0.0
      %v515 = vmax.f32 %v461, 0.0
      %v516 = vmax.f32 %v462, 0.0
      %v517 = vmax.f32 %v463, 0.0
      %v518 = vmax.f32 %v464, 0.0
      %v519 = vmax.f32 %v465, 0.0
      %v520 = vmax.f32 %v466, 0.0
      %v521 = vmax.f32 %v467, 0.0
      %v522 = vmax.f32 %v468, 0.0
      %v523 = vmax.f32 %v469, 0.0
      %v524 = vmax.f32 %v470, 0.0
      %v525 = vmax.f32 %v471, 0.0
      %v526 = vmax.f32 %v472, 0.0
      %v527 = vmax.f32 %v473, 0.0
      %v528 = vmax.f32 %v474, 0.0
      %v529 = vmax.f32 %v475, 0.0
      %v530 = vmax.f32 %v476, 0.0
      %v531 = vmax.f32 %v477, 0.0
      %v532 = vmax.f32 %v478, 0.0
      %v533 = vmax.f32 %v479, 0.0
      %v534 = vmax.f32 %v480, 0.0
      %v535 = vmax.f32 %v481, 0.0
      %v536 = vmax.f32 %v482, 0.0
      %v537 = vmax.f32 %v483, 0.0
      %v538 = vmax.f32 %v484, 0.0
      %v539 = vmax.f32 %v485, 0.0
      %v540 = vmax.f32 %v486, 0.0
      %v541 = vmax.f32 %v487, 0.0
      %v542 = vmax.f32 %v488, 0.0
      %v543 = vmax.f32 %v489, 0.0
      %v544 = vmax.f32 %v490, 0.0
      %v545 = vmax.f32 %v491, 0.0
      %v546 = vmax.f32 %v492, 0.0
      %v547 = vmax.f32 %v493, 0.0
      %v548 = vmax.f32 %v494, 0.0
      %v549 = vmax.f32 %v495, 0.0
      %v550 = vmax.f32 %v496, 0.0
      %v551 = vmax.f32 %v497, 0.0
      %v552 = vmax.f32 %v498, 0.0
      %v553 = vmax.f32 %v499, 0.0
      %v554 = vmax.f32 %v500, 0.0
      %v555 = vmax.f32 %v501, 0.0
      %v556 = vmax.f32 %v502, 0.0
      %v557 = vmax.f32 %v503, 0.0
      %v558 = vmax.f32 %v504, 0.0
      %v559 = vpack.c.bf16 %v506, %v505
      %v560 = vpack.c.bf16 %v507, %v507
      %v561 = vpack.c.bf16 %v509, %v508
      %v562 = vpack.c.bf16 %v510, %v510
      %v563 = vpack.c.bf16 %v512, %v511
      %v564 = vpack.c.bf16 %v513, %v513
      %v565 = vpack.c.bf16 %v515, %v514
      %v566 = vpack.c.bf16 %v516, %v516
      %v567 = vpack.c.bf16 %v518, %v517
      %v568 = vpack.c.bf16 %v519, %v519
      %v569 = vpack.c.bf16 %v521, %v520
      %v570 = vpack.c.bf16 %v522, %v522
      %v571 = vpack.c.bf16 %v524, %v523
      %v572 = vpack.c.bf16 %v525, %v525
      %v573 = vpack.c.bf16 %v527, %v526
      %v574 = vpack.c.bf16 %v528, %v528
      %v575 = vpack.c.bf16 %v530, %v529
      %v576 = vpack.c.bf16 %v531, %v531
      %v577 = vpack.c.bf16 %v533, %v532
      %v578 = vpack.c.bf16 %v534, %v534
      %v579 = vpack.c.bf16 %v536, %v535
      %v580 = vpack.c.bf16 %v537, %v537
      %v581 = vpack.c.bf16 %v539, %v538
      %v582 = vpack.c.bf16 %v540, %v540
      %v583 = vpack.c.bf16 %v542, %v541
      %v584 = vpack.c.bf16 %v543, %v543
      %v585 = vpack.c.bf16 %v545, %v544
      %v586 = vpack.c.bf16 %v546, %v546
      %v587 = vpack.c.bf16 %v548, %v547
      %v588 = vpack.c.bf16 %v549, %v549
      %v589 = vpack.c.bf16 %v551, %v550
      %v590 = vpack.c.bf16 %v552, %v552
      %v591 = vpack.c.bf16 %v554, %v553
      %v592 = vpack.c.bf16 %v555, %v555
      %v593 = vpack.c.bf16 %v557, %v556
      %v594 = vpack.c.bf16 %v558, %v558
      %v595 = vld [vmem:[%s1] sm:$0xf]
      %vm596 = vsmask.f32 7424
      %v598 = vshrl.u32 %v559, 16
      %v600 = vshll.u32 %v559, 16
      %v602 = vrot.slane %v600, 1
      %v603 = vor.u32 %v598, %v602
      %v605 = vshll.u32 %v560, 16
      %v607 = vrot.slane %v605, 1
      %v608 = vsel %vm596, %v603, %v607
      %v610 = vshrl.u32 %v561, 16
      %v612 = vshll.u32 %v561, 16
      %v614 = vrot.slane %v612, 1
      %v615 = vor.u32 %v610, %v614
      %v617 = vshll.u32 %v562, 16
      %v619 = vrot.slane %v617, 1
      %v620 = vsel %vm596, %v615, %v619
      %v622 = vshrl.u32 %v563, 16
      %v624 = vshll.u32 %v563, 16
      %v626 = vrot.slane %v624, 1
      %v627 = vor.u32 %v622, %v626
      %v629 = vshll.u32 %v564, 16
      %v631 = vrot.slane %v629, 1
      %v632 = vsel %vm596, %v627, %v631
      %v634 = vshrl.u32 %v565, 16
      %v636 = vshll.u32 %v565, 16
      %v638 = vrot.slane %v636, 1
      %v639 = vor.u32 %v634, %v638
      %v641 = vshll.u32 %v566, 16
      %v643 = vrot.slane %v641, 1
      %v644 = vsel %vm596, %v639, %v643
      %v646 = vshrl.u32 %v567, 16
      %v648 = vshll.u32 %v567, 16
      %v650 = vrot.slane %v648, 1
      %v651 = vor.u32 %v646, %v650
      %v653 = vshll.u32 %v568, 16
      %v655 = vrot.slane %v653, 1
      %v656 = vsel %vm596, %v651, %v655
      %v658 = vshrl.u32 %v569, 16
      %v660 = vshll.u32 %v569, 16
      %v662 = vrot.slane %v660, 1
      %v663 = vor.u32 %v658, %v662
      %v665 = vshll.u32 %v570, 16
      %v667 = vrot.slane %v665, 1
      %v668 = vsel %vm596, %v663, %v667
      %v670 = vshrl.u32 %v571, 16
      %v672 = vshll.u32 %v571, 16
      %v674 = vrot.slane %v672, 1
      %v675 = vor.u32 %v670, %v674
      %v677 = vshll.u32 %v572, 16
      %v679 = vrot.slane %v677, 1
      %v680 = vsel %vm596, %v675, %v679
      %v682 = vshrl.u32 %v573, 16
      %v684 = vshll.u32 %v573, 16
      %v686 = vrot.slane %v684, 1
      %v687 = vor.u32 %v682, %v686
      %v689 = vshll.u32 %v574, 16
      %v691 = vrot.slane %v689, 1
      %v692 = vsel %vm596, %v687, %v691
      %v694 = vshrl.u32 %v575, 16
      %v696 = vshll.u32 %v575, 16
      %v698 = vrot.slane %v696, 1
      %v699 = vor.u32 %v694, %v698
      %v701 = vshll.u32 %v576, 16
      %v703 = vrot.slane %v701, 1
      %v704 = vsel %vm596, %v699, %v703
      %v706 = vshrl.u32 %v577, 16
      %v708 = vshll.u32 %v577, 16
      %v710 = vrot.slane %v708, 1
      %v711 = vor.u32 %v706, %v710
      %v713 = vshll.u32 %v578, 16
      %v715 = vrot.slane %v713, 1
      %v716 = vsel %vm596, %v711, %v715
      %v718 = vshrl.u32 %v579, 16
      %v720 = vshll.u32 %v579, 16
      %v722 = vrot.slane %v720, 1
      %v723 = vor.u32 %v718, %v722
      %v725 = vshll.u32 %v580, 16
      %v727 = vrot.slane %v725, 1
      %v728 = vsel %vm596, %v723, %v727
      %v730 = vshrl.u32 %v581, 16
      %v732 = vshll.u32 %v581, 16
      %v734 = vrot.slane %v732, 1
      %v735 = vor.u32 %v730, %v734
      %v737 = vshll.u32 %v582, 16
      %v739 = vrot.slane %v737, 1
      %v740 = vsel %vm596, %v735, %v739
      %v742 = vshrl.u32 %v583, 16
      %v744 = vshll.u32 %v583, 16
      %v746 = vrot.slane %v744, 1
      %v747 = vor.u32 %v742, %v746
      %v749 = vshll.u32 %v584, 16
      %v751 = vrot.slane %v749, 1
      %v752 = vsel %vm596, %v747, %v751
      %v754 = vshrl.u32 %v585, 16
      %v756 = vshll.u32 %v585, 16
      %v758 = vrot.slane %v756, 1
      %v759 = vor.u32 %v754, %v758
      %v761 = vshll.u32 %v586, 16
      %v763 = vrot.slane %v761, 1
      %v764 = vsel %vm596, %v759, %v763
      %v766 = vshrl.u32 %v587, 16
      %v768 = vshll.u32 %v587, 16
      %v770 = vrot.slane %v768, 1
      %v771 = vor.u32 %v766, %v770
      %v773 = vshll.u32 %v588, 16
      %v775 = vrot.slane %v773, 1
      %v776 = vsel %vm596, %v771, %v775
      %v778 = vshrl.u32 %v589, 16
      %v780 = vshll.u32 %v589, 16
      %v782 = vrot.slane %v780, 1
      %v783 = vor.u32 %v778, %v782
      %v785 = vshll.u32 %v590, 16
      %v787 = vrot.slane %v785, 1
      %v788 = vsel %vm596, %v783, %v787
      %s789 = scalar_lea.vmem %s1, 4
      %v790 = vld [vmem:[%s789] sm:$0xf]
      %vm791 = vcmask 64512
      %v793 = vsel %vm791, %v608, 0
      %v796 = vsel %vm791, %v620, 0
      %v799 = vsel %vm791, %v632, 0
      %v802 = vsel %vm791, %v644, 0
      %v805 = vsel %vm791, %v656, 0
      %v808 = vsel %vm791, %v668, 0
      %v811 = vsel %vm791, %v680, 0
      %v814 = vsel %vm791, %v692, 0
      %v817 = vsel %vm791, %v704, 0
      %v820 = vsel %vm791, %v716, 0
      %v823 = vsel %vm791, %v728, 0
      %v826 = vsel %vm791, %v740, 0
      %v829 = vsel %vm791, %v752, 0
      %v832 = vsel %vm791, %v764, 0
      %v835 = vsel %vm791, %v776, 0
      %v838 = vsel %vm791, %v788, 0
      %vm840 = vcmask 1043456
      %v842 = vsel %vm840, %v790, 0
      %844 = vmatprep.subr.bf16.mxu0 0
      %845 = vmatpush1.bf16.msra.mxu0 %v842
      %846 = vmatprep.subr.bf16.mxu0 0
      %847 = vmatpush1.bf16.msra.mxu0 0
      %848 = vmatprep.subr.bf16.mxu0 0
      %849 = vmatpush1.bf16.msra.mxu0 0
      %850 = vmatprep.subr.bf16.mxu0 0
      %851 = vmatpush1.bf16.msra.mxu0 0
      %852 = vmatprep.subr.bf16.mxu0 0
      %853 = vmatpush1.bf16.msra.mxu0 0
      %854 = vmatprep.subr.bf16.mxu0 0
      %855 = vmatpush1.bf16.msra.mxu0 0
      %856 = vmatprep.subr.bf16.mxu0 0
      %857 = vmatpush1.bf16.msra.mxu0 0
      %858 = vmatprep.subr.bf16.mxu0 0
      %859 = vmatpush1.bf16.msra.mxu0 0
      %860 = vmatprep.subr.bf16.mxu0 0
      %861 = vmatpush1.bf16.msra.mxu0 0
      %862 = vmatprep.subr.bf16.mxu0 0
      %863 = vmatpush1.bf16.msra.mxu0 0
      %864 = vmatprep.subr.bf16.mxu0 0
      %865 = vmatpush1.bf16.msra.mxu0 0
      %866 = vmatprep.subr.bf16.mxu0 0
      %867 = vmatpush1.bf16.msra.mxu0 0
      %868 = vmatprep.subr.bf16.mxu0 0
      %869 = vmatpush1.bf16.msra.mxu0 0
      %870 = vmatprep.subr.bf16.mxu0 0
      %871 = vmatpush1.bf16.msra.mxu0 0
      %872 = vmatprep.subr.bf16.mxu0 0
      %873 = vmatpush1.bf16.msra.mxu0 0
      %874 = vmatprep.subr.bf16.mxu0 0
      %875 = vmatpush1.bf16.msra.mxu0 0
      %876 = vmatprep.mubr.bf16.mxu0 0
      %877 = vmatmul.mubr.bf16.gmra.mrb[0].mxu0 %v793
      %v878 = vpop.f32.mrb[0].mxu0
      %v879 = vadd.f32 0.0, %v878
      %v880 = vpop.f32.mrb[0].mxu0
      %v881 = vpop.f32.mrb[0].mxu0
      %v882 = vadd.f32 0.0, %v881
      %v883 = vpop.f32.mrb[0].mxu0
      %884 = vmatprep.mubr.bf16.mxu0 0
      %885 = vmatmul.mubr.bf16.gmra.mrb[0].mxu0 %v796
      %v886 = vpop.f32.mrb[0].mxu0
      %v887 = vadd.f32 0.0, %v886
      %v888 = vpop.f32.mrb[0].mxu0
      %v889 = vpop.f32.mrb[0].mxu0
      %v890 = vadd.f32 0.0, %v889
      %v891 = vpop.f32.mrb[0].mxu0
      %892 = vmatprep.mubr.bf16.mxu0 0
      %893 = vmatmul.mubr.bf16.gmra.mrb[0].mxu0 %v799
      %v894 = vpop.f32.mrb[0].mxu0
      %v895 = vadd.f32 0.0, %v894
      %v896 = vpop.f32.mrb[0].mxu0
      %v897 = vpop.f32.mrb[0].mxu0
      %v898 = vadd.f32 0.0, %v897
      %v899 = vpop.f32.mrb[0].mxu0
      %900 = vmatprep.mubr.bf16.mxu0 0
      %901 = vmatmul.mubr.bf16.gmra.mrb[0].mxu0 %v802
      %v902 = vpop.f32.mrb[0].mxu0
      %v903 = vadd.f32 0.0, %v902
      %v904 = vpop.f32.mrb[0].mxu0
      %v905 = vpop.f32.mrb[0].mxu0
      %v906 = vadd.f32 0.0, %v905
      %v907 = vpop.f32.mrb[0].mxu0
      %908 = vmatprep.mubr.bf16.mxu0 0
      %909 = vmatmul.mubr.bf16.gmra.mrb[0].mxu0 %v805
      %v910 = vpop.f32.mrb[0].mxu0
      %v911 = vadd.f32 0.0, %v910
      %v912 = vpop.f32.mrb[0].mxu0
      %v913 = vpop.f32.mrb[0].mxu0
      %v914 = vadd.f32 0.0, %v913
      %v915 = vpop.f32.mrb[0].mxu0
      %916 = vmatprep.mubr.bf16.mxu0 0
      %917 = vmatmul.mubr.bf16.gmra.mrb[0].mxu0 %v808
      %v918 = vpop.f32.mrb[0].mxu0
      %v919 = vadd.f32 0.0, %v918
      %v920 = vpop.f32.mrb[0].mxu0
      %v921 = vpop.f32.mrb[0].mxu0
      %v922 = vadd.f32 0.0, %v921
      %v923 = vpop.f32.mrb[0].mxu0
      %924 = vmatprep.mubr.bf16.mxu0 0
      %925 = vmatmul.mubr.bf16.gmra.mrb[0].mxu0 %v811
      %v926 = vpop.f32.mrb[0].mxu0
      %v927 = vadd.f32 0.0, %v926
      %v928 = vpop.f32.mrb[0].mxu0
      %v929 = vpop.f32.mrb[0].mxu0
      %v930 = vadd.f32 0.0, %v929
      %v931 = vpop.f32.mrb[0].mxu0
      %932 = vmatprep.mubr.bf16.mxu0 0
      %933 = vmatmul.mubr.bf16.gmra.mrb[0].mxu0 %v814
      %v934 = vpop.f32.mrb[0].mxu0
      %v935 = vadd.f32 0.0, %v934
      %v936 = vpop.f32.mrb[0].mxu0
      %v937 = vpop.f32.mrb[0].mxu0
      %v938 = vadd.f32 0.0, %v937
      %v939 = vpop.f32.mrb[0].mxu0
      %940 = vmatprep.mubr.bf16.mxu0 0
      %941 = vmatmul.mubr.bf16.gmra.mrb[0].mxu0 %v817
      %v942 = vpop.f32.mrb[0].mxu0
      %v943 = vadd.f32 0.0, %v942
      %v944 = vpop.f32.mrb[0].mxu0
      %v945 = vpop.f32.mrb[0].mxu0
      %v946 = vadd.f32 0.0, %v945
      %v947 = vpop.f32.mrb[0].mxu0
      %948 = vmatprep.mubr.bf16.mxu0 0
      %949 = vmatmul.mubr.bf16.gmra.mrb[0].mxu0 %v820
      %v950 = vpop.f32.mrb[0].mxu0
      %v951 = vadd.f32 0.0, %v950
      %v952 = vpop.f32.mrb[0].mxu0
      %v953 = vpop.f32.mrb[0].mxu0
      %v954 = vadd.f32 0.0, %v953
      %v955 = vpop.f32.mrb[0].mxu0
      %956 = vmatprep.mubr.bf16.mxu0 0
      %957 = vmatmul.mubr.bf16.gmra.mrb[0].mxu0 %v823
      %v958 = vpop.f32.mrb[0].mxu0
      %v959 = vadd.f32 0.0, %v958
      %v960 = vpop.f32.mrb[0].mxu0
      %v961 = vpop.f32.mrb[0].mxu0
      %v962 = vadd.f32 0.0, %v961
      %v963 = vpop.f32.mrb[0].mxu0
      %964 = vmatprep.mubr.bf16.mxu0 0
      %965 = vmatmul.mubr.bf16.gmra.mrb[0].mxu0 %v826
      %v966 = vpop.f32.mrb[0].mxu0
      %v967 = vadd.f32 0.0, %v966
      %v968 = vpop.f32.mrb[0].mxu0
      %v969 = vpop.f32.mrb[0].mxu0
      %v970 = vadd.f32 0.0, %v969
      %v971 = vpop.f32.mrb[0].mxu0
      %972 = vmatprep.mubr.bf16.mxu0 0
      %973 = vmatmul.mubr.bf16.gmra.mrb[0].mxu0 %v829
      %v974 = vpop.f32.mrb[0].mxu0
      %v975 = vadd.f32 0.0, %v974
      %v976 = vpop.f32.mrb[0].mxu0
      %v977 = vpop.f32.mrb[0].mxu0
      %v978 = vadd.f32 0.0, %v977
      %v979 = vpop.f32.mrb[0].mxu0
      %980 = vmatprep.mubr.bf16.mxu0 0
      %981 = vmatmul.mubr.bf16.gmra.mrb[0].mxu0 %v832
      %v982 = vpop.f32.mrb[0].mxu0
      %v983 = vadd.f32 0.0, %v982
      %v984 = vpop.f32.mrb[0].mxu0
      %v985 = vpop.f32.mrb[0].mxu0
      %v986 = vadd.f32 0.0, %v985
      %v987 = vpop.f32.mrb[0].mxu0
      %988 = vmatprep.mubr.bf16.mxu0 0
      %989 = vmatmul.mubr.bf16.gmra.mrb[0].mxu0 %v835
      %v990 = vpop.f32.mrb[0].mxu0
      %v991 = vadd.f32 0.0, %v990
      %v992 = vpop.f32.mrb[0].mxu0
      %v993 = vpop.f32.mrb[0].mxu0
      %v994 = vadd.f32 0.0, %v993
      %v995 = vpop.f32.mrb[0].mxu0
      %996 = vmatprep.mubr.bf16.mxu0 0
      %997 = vmatmul.mubr.bf16.gmra.mrb[0].mxu0 %v838
      %v998 = vpop.f32.mrb[0].mxu0
      %v999 = vadd.f32 0.0, %v998
      %v1000 = vpop.f32.mrb[0].mxu0
      %v1001 = vpop.f32.mrb[0].mxu0
      %v1002 = vadd.f32 0.0, %v1001
      %v1003 = vpop.f32.mrb[0].mxu0
      %1004 = vdwg.mxu0
      %v1005 = vsel %vm791, %v559, 0
      %v1007 = vsel %vm791, %v561, 0
      %v1009 = vsel %vm791, %v563, 0
      %v1011 = vsel %vm791, %v565, 0
      %v1013 = vsel %vm791, %v567, 0
      %v1015 = vsel %vm791, %v569, 0
      %v1017 = vsel %vm791, %v571, 0
      %v1019 = vsel %vm791, %v573, 0
      %v1021 = vsel %vm791, %v575, 0
      %v1023 = vsel %vm791, %v577, 0
      %v1025 = vsel %vm791, %v579, 0
      %v1027 = vsel %vm791, %v581, 0
      %v1029 = vsel %vm791, %v583, 0
      %v1031 = vsel %vm791, %v585, 0
      %v1033 = vsel %vm791, %v587, 0
      %v1035 = vsel %vm791, %v589, 0
      %v1038 = vsel %vm840, %v595, 0
      %1040 = vmatprep.subr.bf16.mxu0 0
      %1041 = vmatpush1.bf16.msra.mxu0 %v1038
      %1042 = vmatprep.subr.bf16.mxu0 0
      %1043 = vmatpush1.bf16.msra.mxu0 0
      %1044 = vmatprep.subr.bf16.mxu0 0
      %1045 = vmatpush1.bf16.msra.mxu0 0
      %1046 = vmatprep.subr.bf16.mxu0 0
      %1047 = vmatpush1.bf16.msra.mxu0 0
      %1048 = vmatprep.subr.bf16.mxu0 0
      %1049 = vmatpush1.bf16.msra.mxu0 0
      %1050 = vmatprep.subr.bf16.mxu0 0
      %1051 = vmatpush1.bf16.msra.mxu0 0
      %1052 = vmatprep.subr.bf16.mxu0 0
      %1053 = vmatpush1.bf16.msra.mxu0 0
      %1054 = vmatprep.subr.bf16.mxu0 0
      %1055 = vmatpush1.bf16.msra.mxu0 0
      %1056 = vmatprep.subr.bf16.mxu0 0
      %1057 = vmatpush1.bf16.msra.mxu0 0
      %1058 = vmatprep.subr.bf16.mxu0 0
      %1059 = vmatpush1.bf16.msra.mxu0 0
      %1060 = vmatprep.subr.bf16.mxu0 0
      %1061 = vmatpush1.bf16.msra.mxu0 0
      %1062 = vmatprep.subr.bf16.mxu0 0
      %1063 = vmatpush1.bf16.msra.mxu0 0
      %1064 = vmatprep.subr.bf16.mxu0 0
      %1065 = vmatpush1.bf16.msra.mxu0 0
      %1066 = vmatprep.subr.bf16.mxu0 0
      %1067 = vmatpush1.bf16.msra.mxu0 0
      %1068 = vmatprep.subr.bf16.mxu0 0
      %1069 = vmatpush1.bf16.msra.mxu0 0
      %1070 = vmatprep.subr.bf16.mxu0 0
      %1071 = vmatpush1.bf16.msra.mxu0 0
      %1072 = vmatprep.mubr.bf16.mxu0 0
      %1073 = vmatmul.mubr.bf16.gmra.mrb[0].mxu0 %v1005
      %v1074 = vpop.f32.mrb[0].mxu0
      %v1075 = vadd.f32 %v879, %v1074
      %v1076 = vpop.f32.mrb[0].mxu0
      %v1077 = vpop.f32.mrb[0].mxu0
      %v1078 = vadd.f32 %v882, %v1077
      %v1079 = vpop.f32.mrb[0].mxu0
      %1080 = vmatprep.mubr.bf16.mxu0 0
      %1081 = vmatmul.mubr.bf16.gmra.mrb[0].mxu0 %v1007
      %v1082 = vpop.f32.mrb[0].mxu0
      %v1083 = vadd.f32 %v887, %v1082
      %v1084 = vpop.f32.mrb[0].mxu0
      %v1085 = vpop.f32.mrb[0].mxu0
      %v1086 = vadd.f32 %v890, %v1085
      %v1087 = vpop.f32.mrb[0].mxu0
      %1088 = vmatprep.mubr.bf16.mxu0 0
      %1089 = vmatmul.mubr.bf16.gmra.mrb[0].mxu0 %v1009
      %v1090 = vpop.f32.mrb[0].mxu0
      %v1091 = vadd.f32 %v895, %v1090
      %v1092 = vpop.f32.mrb[0].mxu0
      %v1093 = vpop.f32.mrb[0].mxu0
      %v1094 = vadd.f32 %v898, %v1093
      %v1095 = vpop.f32.mrb[0].mxu0
      %1096 = vmatprep.mubr.bf16.mxu0 0
      %1097 = vmatmul.mubr.bf16.gmra.mrb[0].mxu0 %v1011
      %v1098 = vpop.f32.mrb[0].mxu0
      %v1099 = vadd.f32 %v903, %v1098
      %v1100 = vpop.f32.mrb[0].mxu0
      %v1101 = vpop.f32.mrb[0].mxu0
      %v1102 = vadd.f32 %v906, %v1101
      %v1103 = vpop.f32.mrb[0].mxu0
      %1104 = vmatprep.mubr.bf16.mxu0 0
      %1105 = vmatmul.mubr.bf16.gmra.mrb[0].mxu0 %v1013
      %v1106 = vpop.f32.mrb[0].mxu0
      %v1107 = vadd.f32 %v911, %v1106
      %v1108 = vpop.f32.mrb[0].mxu0
      %v1109 = vpop.f32.mrb[0].mxu0
      %v1110 = vadd.f32 %v914, %v1109
      %v1111 = vpop.f32.mrb[0].mxu0
      %1112 = vmatprep.mubr.bf16.mxu0 0
      %1113 = vmatmul.mubr.bf16.gmra.mrb[0].mxu0 %v1015
      %v1114 = vpop.f32.mrb[0].mxu0
      %v1115 = vadd.f32 %v919, %v1114
      %v1116 = vpop.f32.mrb[0].mxu0
      %v1117 = vpop.f32.mrb[0].mxu0
      %v1118 = vadd.f32 %v922, %v1117
      %v1119 = vpop.f32.mrb[0].mxu0
      %1120 = vmatprep.mubr.bf16.mxu0 0
      %1121 = vmatmul.mubr.bf16.gmra.mrb[0].mxu0 %v1017
      %v1122 = vpop.f32.mrb[0].mxu0
      %v1123 = vadd.f32 %v927, %v1122
      %v1124 = vpop.f32.mrb[0].mxu0
      %v1125 = vpop.f32.mrb[0].mxu0
      %v1126 = vadd.f32 %v930, %v1125
      %v1127 = vpop.f32.mrb[0].mxu0
      %1128 = vmatprep.mubr.bf16.mxu0 0
      %1129 = vmatmul.mubr.bf16.gmra.mrb[0].mxu0 %v1019
      %v1130 = vpop.f32.mrb[0].mxu0
      %v1131 = vadd.f32 %v935, %v1130
      %v1132 = vpop.f32.mrb[0].mxu0
      %v1133 = vpop.f32.mrb[0].mxu0
      %v1134 = vadd.f32 %v938, %v1133
      %v1135 = vpop.f32.mrb[0].mxu0
      %1136 = vmatprep.mubr.bf16.mxu0 0
      %1137 = vmatmul.mubr.bf16.gmra.mrb[0].mxu0 %v1021
      %v1138 = vpop.f32.mrb[0].mxu0
      %v1139 = vadd.f32 %v943, %v1138
      %v1140 = vpop.f32.mrb[0].mxu0
      %v1141 = vpop.f32.mrb[0].mxu0
      %v1142 = vadd.f32 %v946, %v1141
      %v1143 = vpop.f32.mrb[0].mxu0
      %1144 = vmatprep.mubr.bf16.mxu0 0
      %1145 = vmatmul.mubr.bf16.gmra.mrb[0].mxu0 %v1023
      %v1146 = vpop.f32.mrb[0].mxu0
      %v1147 = vadd.f32 %v951, %v1146
      %v1148 = vpop.f32.mrb[0].mxu0
      %v1149 = vpop.f32.mrb[0].mxu0
      %v1150 = vadd.f32 %v954, %v1149
      %v1151 = vpop.f32.mrb[0].mxu0
      %1152 = vmatprep.mubr.bf16.mxu0 0
      %1153 = vmatmul.mubr.bf16.gmra.mrb[0].mxu0 %v1025
      %v1154 = vpop.f32.mrb[0].mxu0
      %v1155 = vadd.f32 %v959, %v1154
      %v1156 = vpop.f32.mrb[0].mxu0
      %v1157 = vpop.f32.mrb[0].mxu0
      %v1158 = vadd.f32 %v962, %v1157
      %v1159 = vpop.f32.mrb[0].mxu0
      %1160 = vmatprep.mubr.bf16.mxu0 0
      %1161 = vmatmul.mubr.bf16.gmra.mrb[0].mxu0 %v1027
      %v1162 = vpop.f32.mrb[0].mxu0
      %v1163 = vadd.f32 %v967, %v1162
      %v1164 = vpop.f32.mrb[0].mxu0
      %v1165 = vpop.f32.mrb[0].mxu0
      %v1166 = vadd.f32 %v970, %v1165
      %v1167 = vpop.f32.mrb[0].mxu0
      %1168 = vmatprep.mubr.bf16.mxu0 0
      %1169 = vmatmul.mubr.bf16.gmra.mrb[0].mxu0 %v1029
      %v1170 = vpop.f32.mrb[0].mxu0
      %v1171 = vadd.f32 %v975, %v1170
      %v1172 = vpop.f32.mrb[0].mxu0
      %v1173 = vpop.f32.mrb[0].mxu0
      %v1174 = vadd.f32 %v978, %v1173
      %v1175 = vpop.f32.mrb[0].mxu0
      %1176 = vmatprep.mubr.bf16.mxu0 0
      %1177 = vmatmul.mubr.bf16.gmra.mrb[0].mxu0 %v1031
      %v1178 = vpop.f32.mrb[0].mxu0
      %v1179 = vadd.f32 %v983, %v1178
      %v1180 = vpop.f32.mrb[0].mxu0
      %v1181 = vpop.f32.mrb[0].mxu0
      %v1182 = vadd.f32 %v986, %v1181
      %v1183 = vpop.f32.mrb[0].mxu0
      %1184 = vmatprep.mubr.bf16.mxu0 0
      %1185 = vmatmul.mubr.bf16.gmra.mrb[0].mxu0 %v1033
      %v1186 = vpop.f32.mrb[0].mxu0
      %v1187 = vadd.f32 %v991, %v1186
      %v1188 = vpop.f32.mrb[0].mxu0
      %v1189 = vpop.f32.mrb[0].mxu0
      %v1190 = vadd.f32 %v994, %v1189
      %v1191 = vpop.f32.mrb[0].mxu0
      %1192 = vmatprep.mubr.bf16.mxu0 0
      %1193 = vmatmul.mubr.bf16.gmra.mrb[0].mxu0 %v1035
      %v1194 = vpop.f32.mrb[0].mxu0
      %v1195 = vadd.f32 %v999, %v1194
      %v1196 = vpop.f32.mrb[0].mxu0
      %v1197 = vpop.f32.mrb[0].mxu0
      %v1198 = vadd.f32 %v1002, %v1197
      %v1199 = vpop.f32.mrb[0].mxu0
      %1200 = vdwg.mxu0
      %vm1233 = vcmask 1046528
      %v1234 = vrot.slane %v559, 1
      %v1235 = vrot.slane %v560, 1
      %v1236 = vsel %vm1233, %v1234, %v1235
      %v1237 = vrot.slane %v561, 1
      %v1238 = vrot.slane %v562, 1
      %v1239 = vsel %vm1233, %v1237, %v1238
      %v1240 = vrot.slane %v563, 1
      %v1241 = vrot.slane %v564, 1
      %v1242 = vsel %vm1233, %v1240, %v1241
      %v1243 = vrot.slane %v565, 1
      %v1244 = vrot.slane %v566, 1
      %v1245 = vsel %vm1233, %v1243, %v1244
      %v1246 = vrot.slane %v567, 1
      %v1247 = vrot.slane %v568, 1
      %v1248 = vsel %vm1233, %v1246, %v1247
      %v1249 = vrot.slane %v569, 1
      %v1250 = vrot.slane %v570, 1
      %v1251 = vsel %vm1233, %v1249, %v1250
      %v1252 = vrot.slane %v571, 1
      %v1253 = vrot.slane %v572, 1
      %v1254 = vsel %vm1233, %v1252, %v1253
      %v1255 = vrot.slane %v573, 1
      %v1256 = vrot.slane %v574, 1
      %v1257 = vsel %vm1233, %v1255, %v1256
      %v1258 = vrot.slane %v575, 1
      %v1259 = vrot.slane %v576, 1
      %v1260 = vsel %vm1233, %v1258, %v1259
      %v1261 = vrot.slane %v577, 1
      %v1262 = vrot.slane %v578, 1
      %v1263 = vsel %vm1233, %v1261, %v1262
      %v1264 = vrot.slane %v579, 1
      %v1265 = vrot.slane %v580, 1
      %v1266 = vsel %vm1233, %v1264, %v1265
      %v1267 = vrot.slane %v581, 1
      %v1268 = vrot.slane %v582, 1
      %v1269 = vsel %vm1233, %v1267, %v1268
      %v1270 = vrot.slane %v583, 1
      %v1271 = vrot.slane %v584, 1
      %v1272 = vsel %vm1233, %v1270, %v1271
      %v1273 = vrot.slane %v585, 1
      %v1274 = vrot.slane %v586, 1
      %v1275 = vsel %vm1233, %v1273, %v1274
      %v1276 = vrot.slane %v587, 1
      %v1277 = vrot.slane %v588, 1
      %v1278 = vsel %vm1233, %v1276, %v1277
      %v1279 = vrot.slane %v589, 1
      %v1280 = vrot.slane %v590, 1
      %v1281 = vsel %vm1233, %v1279, %v1280
      %s1282 = scalar_lea.vmem %s1, 8
      %v1283 = vld [vmem:[%s1282] sm:$0xf]
      %v1285 = vsel %vm791, %v1236, 0
      %v1288 = vsel %vm791, %v1239, 0
      %v1291 = vsel %vm791, %v1242, 0
      %v1294 = vsel %vm791, %v1245, 0
      %v1297 = vsel %vm791, %v1248, 0
      %v1300 = vsel %vm791, %v1251, 0
      %v1303 = vsel %vm791, %v1254, 0
      %v1306 = vsel %vm791, %v1257, 0
      %v1309 = vsel %vm791, %v1260, 0
      %v1312 = vsel %vm791, %v1263, 0
      %v1315 = vsel %vm791, %v1266, 0
      %v1318 = vsel %vm791, %v1269, 0
      %v1321 = vsel %vm791, %v1272, 0
      %v1324 = vsel %vm791, %v1275, 0
      %v1327 = vsel %vm791, %v1278, 0
      %v1330 = vsel %vm791, %v1281, 0
      %v1333 = vsel %vm840, %v1283, 0
      %1335 = vmatprep.subr.bf16.mxu0 0
      %1336 = vmatpush1.bf16.msra.mxu0 %v1333
      %1337 = vmatprep.subr.bf16.mxu0 0
      %1338 = vmatpush1.bf16.msra.mxu0 0
      %1339 = vmatprep.subr.bf16.mxu0 0
      %1340 = vmatpush1.bf16.msra.mxu0 0
      %1341 = vmatprep.subr.bf16.mxu0 0
      %1342 = vmatpush1.bf16.msra.mxu0 0
      %1343 = vmatprep.subr.bf16.mxu0 0
      %1344 = vmatpush1.bf16.msra.mxu0 0
      %1345 = vmatprep.subr.bf16.mxu0 0
      %1346 = vmatpush1.bf16.msra.mxu0 0
      %1347 = vmatprep.subr.bf16.mxu0 0
      %1348 = vmatpush1.bf16.msra.mxu0 0
      %1349 = vmatprep.subr.bf16.mxu0 0
      %1350 = vmatpush1.bf16.msra.mxu0 0
      %1351 = vmatprep.subr.bf16.mxu0 0
      %1352 = vmatpush1.bf16.msra.mxu0 0
      %1353 = vmatprep.subr.bf16.mxu0 0
      %1354 = vmatpush1.bf16.msra.mxu0 0
      %1355 = vmatprep.subr.bf16.mxu0 0
      %1356 = vmatpush1.bf16.msra.mxu0 0
      %1357 = vmatprep.subr.bf16.mxu0 0
      %1358 = vmatpush1.bf16.msra.mxu0 0
      %1359 = vmatprep.subr.bf16.mxu0 0
      %1360 = vmatpush1.bf16.msra.mxu0 0
      %1361 = vmatprep.subr.bf16.mxu0 0
      %1362 = vmatpush1.bf16.msra.mxu0 0
      %1363 = vmatprep.subr.bf16.mxu0 0
      %1364 = vmatpush1.bf16.msra.mxu0 0
      %1365 = vmatprep.subr.bf16.mxu0 0
      %1366 = vmatpush1.bf16.msra.mxu0 0
      %1367 = vmatprep.mubr.bf16.mxu0 0
      %1368 = vmatmul.mubr.bf16.gmra.mrb[0].mxu0 %v1285
      %v1369 = vpop.f32.mrb[0].mxu0
      %v1370 = vadd.f32 0.0, %v1369
      %v1371 = vpop.f32.mrb[0].mxu0
      %v1372 = vpop.f32.mrb[0].mxu0
      %v1373 = vadd.f32 0.0, %v1372
      %v1374 = vpop.f32.mrb[0].mxu0
      %1375 = vmatprep.mubr.bf16.mxu0 0
      %1376 = vmatmul.mubr.bf16.gmra.mrb[0].mxu0 %v1288
      %v1377 = vpop.f32.mrb[0].mxu0
      %v1378 = vadd.f32 0.0, %v1377
      %v1379 = vpop.f32.mrb[0].mxu0
      %v1380 = vpop.f32.mrb[0].mxu0
      %v1381 = vadd.f32 0.0, %v1380
      %v1382 = vpop.f32.mrb[0].mxu0
      %1383 = vmatprep.mubr.bf16.mxu0 0
      %1384 = vmatmul.mubr.bf16.gmra.mrb[0].mxu0 %v1291
      %v1385 = vpop.f32.mrb[0].mxu0
      %v1386 = vadd.f32 0.0, %v1385
      %v1387 = vpop.f32.mrb[0].mxu0
      %v1388 = vpop.f32.mrb[0].mxu0
      %v1389 = vadd.f32 0.0, %v1388
      %v1390 = vpop.f32.mrb[0].mxu0
      %1391 = vmatprep.mubr.bf16.mxu0 0
      %1392 = vmatmul.mubr.bf16.gmra.mrb[0].mxu0 %v1294
      %v1393 = vpop.f32.mrb[0].mxu0
      %v1394 = vadd.f32 0.0, %v1393
      %v1395 = vpop.f32.mrb[0].mxu0
      %v1396 = vpop.f32.mrb[0].mxu0
      %v1397 = vadd.f32 0.0, %v1396
      %v1398 = vpop.f32.mrb[0].mxu0
      %1399 = vmatprep.mubr.bf16.mxu0 0
      %1400 = vmatmul.mubr.bf16.gmra.mrb[0].mxu0 %v1297
      %v1401 = vpop.f32.mrb[0].mxu0
      %v1402 = vadd.f32 0.0, %v1401
      %v1403 = vpop.f32.mrb[0].mxu0
      %v1404 = vpop.f32.mrb[0].mxu0
      %v1405 = vadd.f32 0.0, %v1404
      %v1406 = vpop.f32.mrb[0].mxu0
      %1407 = vmatprep.mubr.bf16.mxu0 0
      %1408 = vmatmul.mubr.bf16.gmra.mrb[0].mxu0 %v1300
      %v1409 = vpop.f32.mrb[0].mxu0
      %v1410 = vadd.f32 0.0, %v1409
      %v1411 = vpop.f32.mrb[0].mxu0
      %v1412 = vpop.f32.mrb[0].mxu0
      %v1413 = vadd.f32 0.0, %v1412
      %v1414 = vpop.f32.mrb[0].mxu0
      %1415 = vmatprep.mubr.bf16.mxu0 0
      %1416 = vmatmul.mubr.bf16.gmra.mrb[0].mxu0 %v1303
      %v1417 = vpop.f32.mrb[0].mxu0
      %v1418 = vadd.f32 0.0, %v1417
      %v1419 = vpop.f32.mrb[0].mxu0
      %v1420 = vpop.f32.mrb[0].mxu0
      %v1421 = vadd.f32 0.0, %v1420
      %v1422 = vpop.f32.mrb[0].mxu0
      %1423 = vmatprep.mubr.bf16.mxu0 0
      %1424 = vmatmul.mubr.bf16.gmra.mrb[0].mxu0 %v1306
      %v1425 = vpop.f32.mrb[0].mxu0
      %v1426 = vadd.f32 0.0, %v1425
      %v1427 = vpop.f32.mrb[0].mxu0
      %v1428 = vpop.f32.mrb[0].mxu0
      %v1429 = vadd.f32 0.0, %v1428
      %v1430 = vpop.f32.mrb[0].mxu0
      %1431 = vmatprep.mubr.bf16.mxu0 0
      %1432 = vmatmul.mubr.bf16.gmra.mrb[0].mxu0 %v1309
      %v1433 = vpop.f32.mrb[0].mxu0
      %v1434 = vadd.f32 0.0, %v1433
      %v1435 = vpop.f32.mrb[0].mxu0
      %v1436 = vpop.f32.mrb[0].mxu0
      %v1437 = vadd.f32 0.0, %v1436
      %v1438 = vpop.f32.mrb[0].mxu0
      %1439 = vmatprep.mubr.bf16.mxu0 0
      %1440 = vmatmul.mubr.bf16.gmra.mrb[0].mxu0 %v1312
      %v1441 = vpop.f32.mrb[0].mxu0
      %v1442 = vadd.f32 0.0, %v1441
      %v1443 = vpop.f32.mrb[0].mxu0
      %v1444 = vpop.f32.mrb[0].mxu0
      %v1445 = vadd.f32 0.0, %v1444
      %v1446 = vpop.f32.mrb[0].mxu0
      %1447 = vmatprep.mubr.bf16.mxu0 0
      %1448 = vmatmul.mubr.bf16.gmra.mrb[0].mxu0 %v1315
      %v1449 = vpop.f32.mrb[0].mxu0
      %v1450 = vadd.f32 0.0, %v1449
      %v1451 = vpop.f32.mrb[0].mxu0
      %v1452 = vpop.f32.mrb[0].mxu0
      %v1453 = vadd.f32 0.0, %v1452
      %v1454 = vpop.f32.mrb[0].mxu0
      %1455 = vmatprep.mubr.bf16.mxu0 0
      %1456 = vmatmul.mubr.bf16.gmra.mrb[0].mxu0 %v1318
      %v1457 = vpop.f32.mrb[0].mxu0
      %v1458 = vadd.f32 0.0, %v1457
      %v1459 = vpop.f32.mrb[0].mxu0
      %v1460 = vpop.f32.mrb[0].mxu0
      %v1461 = vadd.f32 0.0, %v1460
      %v1462 = vpop.f32.mrb[0].mxu0
      %1463 = vmatprep.mubr.bf16.mxu0 0
      %1464 = vmatmul.mubr.bf16.gmra.mrb[0].mxu0 %v1321
      %v1465 = vpop.f32.mrb[0].mxu0
      %v1466 = vadd.f32 0.0, %v1465
      %v1467 = vpop.f32.mrb[0].mxu0
      %v1468 = vpop.f32.mrb[0].mxu0
      %v1469 = vadd.f32 0.0, %v1468
      %v1470 = vpop.f32.mrb[0].mxu0
      %1471 = vmatprep.mubr.bf16.mxu0 0
      %1472 = vmatmul.mubr.bf16.gmra.mrb[0].mxu0 %v1324
      %v1473 = vpop.f32.mrb[0].mxu0
      %v1474 = vadd.f32 0.0, %v1473
      %v1475 = vpop.f32.mrb[0].mxu0
      %v1476 = vpop.f32.mrb[0].mxu0
      %v1477 = vadd.f32 0.0, %v1476
      %v1478 = vpop.f32.mrb[0].mxu0
      %1479 = vmatprep.mubr.bf16.mxu0 0
      %1480 = vmatmul.mubr.bf16.gmra.mrb[0].mxu0 %v1327
      %v1481 = vpop.f32.mrb[0].mxu0
      %v1482 = vadd.f32 0.0, %v1481
      %v1483 = vpop.f32.mrb[0].mxu0
      %v1484 = vpop.f32.mrb[0].mxu0
      %v1485 = vadd.f32 0.0, %v1484
      %v1486 = vpop.f32.mrb[0].mxu0
      %1487 = vmatprep.mubr.bf16.mxu0 0
      %1488 = vmatmul.mubr.bf16.gmra.mrb[0].mxu0 %v1330
      %v1489 = vpop.f32.mrb[0].mxu0
      %v1490 = vadd.f32 0.0, %v1489
      %v1491 = vpop.f32.mrb[0].mxu0
      %v1492 = vpop.f32.mrb[0].mxu0
      %v1493 = vadd.f32 0.0, %v1492
      %v1494 = vpop.f32.mrb[0].mxu0
      %1495 = vdwg.mxu0
      %v1496 = vadd.f32 %v1075, %v1370
      %v1497 = vadd.f32 %v1078, %v1373
      %v1498 = vadd.f32 %v1083, %v1378
      %v1499 = vadd.f32 %v1086, %v1381
      %v1500 = vadd.f32 %v1091, %v1386
      %v1501 = vadd.f32 %v1094, %v1389
      %v1502 = vadd.f32 %v1099, %v1394
      %v1503 = vadd.f32 %v1102, %v1397
      %v1504 = vadd.f32 %v1107, %v1402
      %v1505 = vadd.f32 %v1110, %v1405
      %v1506 = vadd.f32 %v1115, %v1410
      %v1507 = vadd.f32 %v1118, %v1413
      %v1508 = vadd.f32 %v1123, %v1418
      %v1509 = vadd.f32 %v1126, %v1421
      %v1510 = vadd.f32 %v1131, %v1426
      %v1511 = vadd.f32 %v1134, %v1429
      %v1512 = vadd.f32 %v1139, %v1434
      %v1513 = vadd.f32 %v1142, %v1437
      %v1514 = vadd.f32 %v1147, %v1442
      %v1515 = vadd.f32 %v1150, %v1445
      %v1516 = vadd.f32 %v1155, %v1450
      %v1517 = vadd.f32 %v1158, %v1453
      %v1518 = vadd.f32 %v1163, %v1458
      %v1519 = vadd.f32 %v1166, %v1461
      %v1520 = vadd.f32 %v1171, %v1466
      %v1521 = vadd.f32 %v1174, %v1469
      %v1522 = vadd.f32 %v1179, %v1474
      %v1523 = vadd.f32 %v1182, %v1477
      %v1524 = vadd.f32 %v1187, %v1482
      %v1525 = vadd.f32 %v1190, %v1485
      %v1526 = vadd.f32 %v1195, %v1490
      %v1527 = vadd.f32 %v1198, %v1493
      %s1528 = scalar_lea.vmem %s1, 12
      %v1529 = vld [vmem:[%s1528] sm:$0xf]
      %v1531 = vsel %vm791, %v591, 0
      %v1534 = vsel %vm840, %v1529, 0
      %1536 = vmatprep.subr.bf16.mxu0 0
      %1537 = vmatpush1.bf16.msra.mxu0 %v1534
      %1538 = vmatprep.subr.bf16.mxu0 0
      %1539 = vmatpush1.bf16.msra.mxu0 0
      %1540 = vmatprep.subr.bf16.mxu0 0
      %1541 = vmatpush1.bf16.msra.mxu0 0
      %1542 = vmatprep.subr.bf16.mxu0 0
      %1543 = vmatpush1.bf16.msra.mxu0 0
      %1544 = vmatprep.subr.bf16.mxu0 0
      %1545 = vmatpush1.bf16.msra.mxu0 0
      %1546 = vmatprep.subr.bf16.mxu0 0
      %1547 = vmatpush1.bf16.msra.mxu0 0
      %1548 = vmatprep.subr.bf16.mxu0 0
      %1549 = vmatpush1.bf16.msra.mxu0 0
      %1550 = vmatprep.subr.bf16.mxu0 0
      %1551 = vmatpush1.bf16.msra.mxu0 0
      %1552 = vmatprep.subr.bf16.mxu0 0
      %1553 = vmatpush1.bf16.msra.mxu0 0
      %1554 = vmatprep.subr.bf16.mxu0 0
      %1555 = vmatpush1.bf16.msra.mxu0 0
      %1556 = vmatprep.subr.bf16.mxu0 0
      %1557 = vmatpush1.bf16.msra.mxu0 0
      %1558 = vmatprep.subr.bf16.mxu0 0
      %1559 = vmatpush1.bf16.msra.mxu0 0
      %1560 = vmatprep.subr.bf16.mxu0 0
      %1561 = vmatpush1.bf16.msra.mxu0 0
      %1562 = vmatprep.subr.bf16.mxu0 0
      %1563 = vmatpush1.bf16.msra.mxu0 0
      %1564 = vmatprep.subr.bf16.mxu0 0
      %1565 = vmatpush1.bf16.msra.mxu0 0
      %1566 = vmatprep.subr.bf16.mxu0 0
      %1567 = vmatpush1.bf16.msra.mxu0 0
      %1568 = vmatprep.mubr.bf16.mxu0 0
      %1569 = vmatmul.mubr.bf16.gmra.mrb[0].mxu0 %v1007
      %v1570 = vpop.f32.mrb[0].mxu0
      %v1571 = vadd.f32 0.0, %v1570
      %v1572 = vpop.f32.mrb[0].mxu0
      %v1573 = vpop.f32.mrb[0].mxu0
      %v1574 = vadd.f32 0.0, %v1573
      %v1575 = vpop.f32.mrb[0].mxu0
      %1576 = vmatprep.mubr.bf16.mxu0 0
      %1577 = vmatmul.mubr.bf16.gmra.mrb[0].mxu0 %v1009
      %v1578 = vpop.f32.mrb[0].mxu0
      %v1579 = vadd.f32 0.0, %v1578
      %v1580 = vpop.f32.mrb[0].mxu0
      %v1581 = vpop.f32.mrb[0].mxu0
      %v1582 = vadd.f32 0.0, %v1581
      %v1583 = vpop.f32.mrb[0].mxu0
      %1584 = vmatprep.mubr.bf16.mxu0 0
      %1585 = vmatmul.mubr.bf16.gmra.mrb[0].mxu0 %v1011
      %v1586 = vpop.f32.mrb[0].mxu0
      %v1587 = vadd.f32 0.0, %v1586
      %v1588 = vpop.f32.mrb[0].mxu0
      %v1589 = vpop.f32.mrb[0].mxu0
      %v1590 = vadd.f32 0.0, %v1589
      %v1591 = vpop.f32.mrb[0].mxu0
      %1592 = vmatprep.mubr.bf16.mxu0 0
      %1593 = vmatmul.mubr.bf16.gmra.mrb[0].mxu0 %v1013
      %v1594 = vpop.f32.mrb[0].mxu0
      %v1595 = vadd.f32 0.0, %v1594
      %v1596 = vpop.f32.mrb[0].mxu0
      %v1597 = vpop.f32.mrb[0].mxu0
      %v1598 = vadd.f32 0.0, %v1597
      %v1599 = vpop.f32.mrb[0].mxu0
      %1600 = vmatprep.mubr.bf16.mxu0 0
      %1601 = vmatmul.mubr.bf16.gmra.mrb[0].mxu0 %v1015
      %v1602 = vpop.f32.mrb[0].mxu0
      %v1603 = vadd.f32 0.0, %v1602
      %v1604 = vpop.f32.mrb[0].mxu0
      %v1605 = vpop.f32.mrb[0].mxu0
      %v1606 = vadd.f32 0.0, %v1605
      %v1607 = vpop.f32.mrb[0].mxu0
      %1608 = vmatprep.mubr.bf16.mxu0 0
      %1609 = vmatmul.mubr.bf16.gmra.mrb[0].mxu0 %v1017
      %v1610 = vpop.f32.mrb[0].mxu0
      %v1611 = vadd.f32 0.0, %v1610
      %v1612 = vpop.f32.mrb[0].mxu0
      %v1613 = vpop.f32.mrb[0].mxu0
      %v1614 = vadd.f32 0.0, %v1613
      %v1615 = vpop.f32.mrb[0].mxu0
      %1616 = vmatprep.mubr.bf16.mxu0 0
      %1617 = vmatmul.mubr.bf16.gmra.mrb[0].mxu0 %v1019
      %v1618 = vpop.f32.mrb[0].mxu0
      %v1619 = vadd.f32 0.0, %v1618
      %v1620 = vpop.f32.mrb[0].mxu0
      %v1621 = vpop.f32.mrb[0].mxu0
      %v1622 = vadd.f32 0.0, %v1621
      %v1623 = vpop.f32.mrb[0].mxu0
      %1624 = vmatprep.mubr.bf16.mxu0 0
      %1625 = vmatmul.mubr.bf16.gmra.mrb[0].mxu0 %v1021
      %v1626 = vpop.f32.mrb[0].mxu0
      %v1627 = vadd.f32 0.0, %v1626
      %v1628 = vpop.f32.mrb[0].mxu0
      %v1629 = vpop.f32.mrb[0].mxu0
      %v1630 = vadd.f32 0.0, %v1629
      %v1631 = vpop.f32.mrb[0].mxu0
      %1632 = vmatprep.mubr.bf16.mxu0 0
      %1633 = vmatmul.mubr.bf16.gmra.mrb[0].mxu0 %v1023
      %v1634 = vpop.f32.mrb[0].mxu0
      %v1635 = vadd.f32 0.0, %v1634
      %v1636 = vpop.f32.mrb[0].mxu0
      %v1637 = vpop.f32.mrb[0].mxu0
      %v1638 = vadd.f32 0.0, %v1637
      %v1639 = vpop.f32.mrb[0].mxu0
      %1640 = vmatprep.mubr.bf16.mxu0 0
      %1641 = vmatmul.mubr.bf16.gmra.mrb[0].mxu0 %v1025
      %v1642 = vpop.f32.mrb[0].mxu0
      %v1643 = vadd.f32 0.0, %v1642
      %v1644 = vpop.f32.mrb[0].mxu0
      %v1645 = vpop.f32.mrb[0].mxu0
      %v1646 = vadd.f32 0.0, %v1645
      %v1647 = vpop.f32.mrb[0].mxu0
      %1648 = vmatprep.mubr.bf16.mxu0 0
      %1649 = vmatmul.mubr.bf16.gmra.mrb[0].mxu0 %v1027
      %v1650 = vpop.f32.mrb[0].mxu0
      %v1651 = vadd.f32 0.0, %v1650
      %v1652 = vpop.f32.mrb[0].mxu0
      %v1653 = vpop.f32.mrb[0].mxu0
      %v1654 = vadd.f32 0.0, %v1653
      %v1655 = vpop.f32.mrb[0].mxu0
      %1656 = vmatprep.mubr.bf16.mxu0 0
      %1657 = vmatmul.mubr.bf16.gmra.mrb[0].mxu0 %v1029
      %v1658 = vpop.f32.mrb[0].mxu0
      %v1659 = vadd.f32 0.0, %v1658
      %v1660 = vpop.f32.mrb[0].mxu0
      %v1661 = vpop.f32.mrb[0].mxu0
      %v1662 = vadd.f32 0.0, %v1661
      %v1663 = vpop.f32.mrb[0].mxu0
      %1664 = vmatprep.mubr.bf16.mxu0 0
      %1665 = vmatmul.mubr.bf16.gmra.mrb[0].mxu0 %v1031
      %v1666 = vpop.f32.mrb[0].mxu0
      %v1667 = vadd.f32 0.0, %v1666
      %v1668 = vpop.f32.mrb[0].mxu0
      %v1669 = vpop.f32.mrb[0].mxu0
      %v1670 = vadd.f32 0.0, %v1669
      %v1671 = vpop.f32.mrb[0].mxu0
      %1672 = vmatprep.mubr.bf16.mxu0 0
      %1673 = vmatmul.mubr.bf16.gmra.mrb[0].mxu0 %v1033
      %v1674 = vpop.f32.mrb[0].mxu0
      %v1675 = vadd.f32 0.0, %v1674
      %v1676 = vpop.f32.mrb[0].mxu0
      %v1677 = vpop.f32.mrb[0].mxu0
      %v1678 = vadd.f32 0.0, %v1677
      %v1679 = vpop.f32.mrb[0].mxu0
      %1680 = vmatprep.mubr.bf16.mxu0 0
      %1681 = vmatmul.mubr.bf16.gmra.mrb[0].mxu0 %v1035
      %v1682 = vpop.f32.mrb[0].mxu0
      %v1683 = vadd.f32 0.0, %v1682
      %v1684 = vpop.f32.mrb[0].mxu0
      %v1685 = vpop.f32.mrb[0].mxu0
      %v1686 = vadd.f32 0.0, %v1685
      %v1687 = vpop.f32.mrb[0].mxu0
      %1688 = vmatprep.mubr.bf16.mxu0 0
      %1689 = vmatmul.mubr.bf16.gmra.mrb[0].mxu0 %v1531
      %v1690 = vpop.f32.mrb[0].mxu0
      %v1691 = vadd.f32 0.0, %v1690
      %v1692 = vpop.f32.mrb[0].mxu0
      %v1693 = vpop.f32.mrb[0].mxu0
      %v1694 = vadd.f32 0.0, %v1693
      %v1695 = vpop.f32.mrb[0].mxu0
      %1696 = vdwg.mxu0
      %v1697 = vadd.f32 %v1496, %v1571
      %v1698 = vadd.f32 %v1497, %v1574
      %v1699 = vadd.f32 %v1498, %v1579
      %v1700 = vadd.f32 %v1499, %v1582
      %v1701 = vadd.f32 %v1500, %v1587
      %v1702 = vadd.f32 %v1501, %v1590
      %v1703 = vadd.f32 %v1502, %v1595
      %v1704 = vadd.f32 %v1503, %v1598
      %v1705 = vadd.f32 %v1504, %v1603
      %v1706 = vadd.f32 %v1505, %v1606
      %v1707 = vadd.f32 %v1506, %v1611
      %v1708 = vadd.f32 %v1507, %v1614
      %v1709 = vadd.f32 %v1508, %v1619
      %v1710 = vadd.f32 %v1509, %v1622
      %v1711 = vadd.f32 %v1510, %v1627
      %v1712 = vadd.f32 %v1511, %v1630
      %v1713 = vadd.f32 %v1512, %v1635
      %v1714 = vadd.f32 %v1513, %v1638
      %v1715 = vadd.f32 %v1514, %v1643
      %v1716 = vadd.f32 %v1515, %v1646
      %v1717 = vadd.f32 %v1516, %v1651
      %v1718 = vadd.f32 %v1517, %v1654
      %v1719 = vadd.f32 %v1518, %v1659
      %v1720 = vadd.f32 %v1519, %v1662
      %v1721 = vadd.f32 %v1520, %v1667
      %v1722 = vadd.f32 %v1521, %v1670
      %v1723 = vadd.f32 %v1522, %v1675
      %v1724 = vadd.f32 %v1523, %v1678
      %v1725 = vadd.f32 %v1524, %v1683
      %v1726 = vadd.f32 %v1525, %v1686
      %v1727 = vadd.f32 %v1526, %v1691
      %v1728 = vadd.f32 %v1527, %v1694
      %v1729 = vshrl.u32 %v591, 16
      %v1731 = vshll.u32 %v591, 16
      %v1733 = vrot.slane %v1731, 1
      %v1734 = vor.u32 %v1729, %v1733
      %v1736 = vshll.u32 %v592, 16
      %v1738 = vrot.slane %v1736, 1
      %v1739 = vsel %vm596, %v1734, %v1738
      %s1740 = scalar_lea.vmem %s1, 16
      %v1741 = vld [vmem:[%s1740] sm:$0xf]
      %v1743 = vsel %vm791, %v1739, 0
      %v1746 = vsel %vm840, %v1741, 0
      %1748 = vmatprep.subr.bf16.mxu0 0
      %1749 = vmatpush1.bf16.msra.mxu0 %v1746
      %1750 = vmatprep.subr.bf16.mxu0 0
      %1751 = vmatpush1.bf16.msra.mxu0 0
      %1752 = vmatprep.subr.bf16.mxu0 0
      %1753 = vmatpush1.bf16.msra.mxu0 0
      %1754 = vmatprep.subr.bf16.mxu0 0
      %1755 = vmatpush1.bf16.msra.mxu0 0
      %1756 = vmatprep.subr.bf16.mxu0 0
      %1757 = vmatpush1.bf16.msra.mxu0 0
      %1758 = vmatprep.subr.bf16.mxu0 0
      %1759 = vmatpush1.bf16.msra.mxu0 0
      %1760 = vmatprep.subr.bf16.mxu0 0
      %1761 = vmatpush1.bf16.msra.mxu0 0
      %1762 = vmatprep.subr.bf16.mxu0 0
      %1763 = vmatpush1.bf16.msra.mxu0 0
      %1764 = vmatprep.subr.bf16.mxu0 0
      %1765 = vmatpush1.bf16.msra.mxu0 0
      %1766 = vmatprep.subr.bf16.mxu0 0
      %1767 = vmatpush1.bf16.msra.mxu0 0
      %1768 = vmatprep.subr.bf16.mxu0 0
      %1769 = vmatpush1.bf16.msra.mxu0 0
      %1770 = vmatprep.subr.bf16.mxu0 0
      %1771 = vmatpush1.bf16.msra.mxu0 0
      %1772 = vmatprep.subr.bf16.mxu0 0
      %1773 = vmatpush1.bf16.msra.mxu0 0
      %1774 = vmatprep.subr.bf16.mxu0 0
      %1775 = vmatpush1.bf16.msra.mxu0 0
      %1776 = vmatprep.subr.bf16.mxu0 0
      %1777 = vmatpush1.bf16.msra.mxu0 0
      %1778 = vmatprep.subr.bf16.mxu0 0
      %1779 = vmatpush1.bf16.msra.mxu0 0
      %1780 = vmatprep.mubr.bf16.mxu0 0
      %1781 = vmatmul.mubr.bf16.gmra.mrb[0].mxu0 %v796
      %v1782 = vpop.f32.mrb[0].mxu0
      %v1783 = vadd.f32 0.0, %v1782
      %v1784 = vpop.f32.mrb[0].mxu0
      %v1785 = vpop.f32.mrb[0].mxu0
      %v1786 = vadd.f32 0.0, %v1785
      %v1787 = vpop.f32.mrb[0].mxu0
      %1788 = vmatprep.mubr.bf16.mxu0 0
      %1789 = vmatmul.mubr.bf16.gmra.mrb[0].mxu0 %v799
      %v1790 = vpop.f32.mrb[0].mxu0
      %v1791 = vadd.f32 0.0, %v1790
      %v1792 = vpop.f32.mrb[0].mxu0
      %v1793 = vpop.f32.mrb[0].mxu0
      %v1794 = vadd.f32 0.0, %v1793
      %v1795 = vpop.f32.mrb[0].mxu0
      %1796 = vmatprep.mubr.bf16.mxu0 0
      %1797 = vmatmul.mubr.bf16.gmra.mrb[0].mxu0 %v802
      %v1798 = vpop.f32.mrb[0].mxu0
      %v1799 = vadd.f32 0.0, %v1798
      %v1800 = vpop.f32.mrb[0].mxu0
      %v1801 = vpop.f32.mrb[0].mxu0
      %v1802 = vadd.f32 0.0, %v1801
      %v1803 = vpop.f32.mrb[0].mxu0
      %1804 = vmatprep.mubr.bf16.mxu0 0
      %1805 = vmatmul.mubr.bf16.gmra.mrb[0].mxu0 %v805
      %v1806 = vpop.f32.mrb[0].mxu0
      %v1807 = vadd.f32 0.0, %v1806
      %v1808 = vpop.f32.mrb[0].mxu0
      %v1809 = vpop.f32.mrb[0].mxu0
      %v1810 = vadd.f32 0.0, %v1809
      %v1811 = vpop.f32.mrb[0].mxu0
      %1812 = vmatprep.mubr.bf16.mxu0 0
      %1813 = vmatmul.mubr.bf16.gmra.mrb[0].mxu0 %v808
      %v1814 = vpop.f32.mrb[0].mxu0
      %v1815 = vadd.f32 0.0, %v1814
      %v1816 = vpop.f32.mrb[0].mxu0
      %v1817 = vpop.f32.mrb[0].mxu0
      %v1818 = vadd.f32 0.0, %v1817
      %v1819 = vpop.f32.mrb[0].mxu0
      %1820 = vmatprep.mubr.bf16.mxu0 0
      %1821 = vmatmul.mubr.bf16.gmra.mrb[0].mxu0 %v811
      %v1822 = vpop.f32.mrb[0].mxu0
      %v1823 = vadd.f32 0.0, %v1822
      %v1824 = vpop.f32.mrb[0].mxu0
      %v1825 = vpop.f32.mrb[0].mxu0
      %v1826 = vadd.f32 0.0, %v1825
      %v1827 = vpop.f32.mrb[0].mxu0
      %1828 = vmatprep.mubr.bf16.mxu0 0
      %1829 = vmatmul.mubr.bf16.gmra.mrb[0].mxu0 %v814
      %v1830 = vpop.f32.mrb[0].mxu0
      %v1831 = vadd.f32 0.0, %v1830
      %v1832 = vpop.f32.mrb[0].mxu0
      %v1833 = vpop.f32.mrb[0].mxu0
      %v1834 = vadd.f32 0.0, %v1833
      %v1835 = vpop.f32.mrb[0].mxu0
      %1836 = vmatprep.mubr.bf16.mxu0 0
      %1837 = vmatmul.mubr.bf16.gmra.mrb[0].mxu0 %v817
      %v1838 = vpop.f32.mrb[0].mxu0
      %v1839 = vadd.f32 0.0, %v1838
      %v1840 = vpop.f32.mrb[0].mxu0
      %v1841 = vpop.f32.mrb[0].mxu0
      %v1842 = vadd.f32 0.0, %v1841
      %v1843 = vpop.f32.mrb[0].mxu0
      %1844 = vmatprep.mubr.bf16.mxu0 0
      %1845 = vmatmul.mubr.bf16.gmra.mrb[0].mxu0 %v820
      %v1846 = vpop.f32.mrb[0].mxu0
      %v1847 = vadd.f32 0.0, %v1846
      %v1848 = vpop.f32.mrb[0].mxu0
      %v1849 = vpop.f32.mrb[0].mxu0
      %v1850 = vadd.f32 0.0, %v1849
      %v1851 = vpop.f32.mrb[0].mxu0
      %1852 = vmatprep.mubr.bf16.mxu0 0
      %1853 = vmatmul.mubr.bf16.gmra.mrb[0].mxu0 %v823
      %v1854 = vpop.f32.mrb[0].mxu0
      %v1855 = vadd.f32 0.0, %v1854
      %v1856 = vpop.f32.mrb[0].mxu0
      %v1857 = vpop.f32.mrb[0].mxu0
      %v1858 = vadd.f32 0.0, %v1857
      %v1859 = vpop.f32.mrb[0].mxu0
      %1860 = vmatprep.mubr.bf16.mxu0 0
      %1861 = vmatmul.mubr.bf16.gmra.mrb[0].mxu0 %v826
      %v1862 = vpop.f32.mrb[0].mxu0
      %v1863 = vadd.f32 0.0, %v1862
      %v1864 = vpop.f32.mrb[0].mxu0
      %v1865 = vpop.f32.mrb[0].mxu0
      %v1866 = vadd.f32 0.0, %v1865
      %v1867 = vpop.f32.mrb[0].mxu0
      %1868 = vmatprep.mubr.bf16.mxu0 0
      %1869 = vmatmul.mubr.bf16.gmra.mrb[0].mxu0 %v829
      %v1870 = vpop.f32.mrb[0].mxu0
      %v1871 = vadd.f32 0.0, %v1870
      %v1872 = vpop.f32.mrb[0].mxu0
      %v1873 = vpop.f32.mrb[0].mxu0
      %v1874 = vadd.f32 0.0, %v1873
      %v1875 = vpop.f32.mrb[0].mxu0
      %1876 = vmatprep.mubr.bf16.mxu0 0
      %1877 = vmatmul.mubr.bf16.gmra.mrb[0].mxu0 %v832
      %v1878 = vpop.f32.mrb[0].mxu0
      %v1879 = vadd.f32 0.0, %v1878
      %v1880 = vpop.f32.mrb[0].mxu0
      %v1881 = vpop.f32.mrb[0].mxu0
      %v1882 = vadd.f32 0.0, %v1881
      %v1883 = vpop.f32.mrb[0].mxu0
      %1884 = vmatprep.mubr.bf16.mxu0 0
      %1885 = vmatmul.mubr.bf16.gmra.mrb[0].mxu0 %v835
      %v1886 = vpop.f32.mrb[0].mxu0
      %v1887 = vadd.f32 0.0, %v1886
      %v1888 = vpop.f32.mrb[0].mxu0
      %v1889 = vpop.f32.mrb[0].mxu0
      %v1890 = vadd.f32 0.0, %v1889
      %v1891 = vpop.f32.mrb[0].mxu0
      %1892 = vmatprep.mubr.bf16.mxu0 0
      %1893 = vmatmul.mubr.bf16.gmra.mrb[0].mxu0 %v838
      %v1894 = vpop.f32.mrb[0].mxu0
      %v1895 = vadd.f32 0.0, %v1894
      %v1896 = vpop.f32.mrb[0].mxu0
      %v1897 = vpop.f32.mrb[0].mxu0
      %v1898 = vadd.f32 0.0, %v1897
      %v1899 = vpop.f32.mrb[0].mxu0
      %1900 = vmatprep.mubr.bf16.mxu0 0
      %1901 = vmatmul.mubr.bf16.gmra.mrb[0].mxu0 %v1743
      %v1902 = vpop.f32.mrb[0].mxu0
      %v1903 = vadd.f32 0.0, %v1902
      %v1904 = vpop.f32.mrb[0].mxu0
      %v1905 = vpop.f32.mrb[0].mxu0
      %v1906 = vadd.f32 0.0, %v1905
      %v1907 = vpop.f32.mrb[0].mxu0
      %1908 = vdwg.mxu0
      %v1909 = vadd.f32 %v1697, %v1783
      %v1910 = vadd.f32 %v1698, %v1786
      %v1911 = vadd.f32 %v1699, %v1791
      %v1912 = vadd.f32 %v1700, %v1794
      %v1913 = vadd.f32 %v1701, %v1799
      %v1914 = vadd.f32 %v1702, %v1802
      %v1915 = vadd.f32 %v1703, %v1807
      %v1916 = vadd.f32 %v1704, %v1810
      %v1917 = vadd.f32 %v1705, %v1815
      %v1918 = vadd.f32 %v1706, %v1818
      %v1919 = vadd.f32 %v1707, %v1823
      %v1920 = vadd.f32 %v1708, %v1826
      %v1921 = vadd.f32 %v1709, %v1831
      %v1922 = vadd.f32 %v1710, %v1834
      %v1923 = vadd.f32 %v1711, %v1839
      %v1924 = vadd.f32 %v1712, %v1842
      %v1925 = vadd.f32 %v1713, %v1847
      %v1926 = vadd.f32 %v1714, %v1850
      %v1927 = vadd.f32 %v1715, %v1855
      %v1928 = vadd.f32 %v1716, %v1858
      %v1929 = vadd.f32 %v1717, %v1863
      %v1930 = vadd.f32 %v1718, %v1866
      %v1931 = vadd.f32 %v1719, %v1871
      %v1932 = vadd.f32 %v1720, %v1874
      %v1933 = vadd.f32 %v1721, %v1879
      %v1934 = vadd.f32 %v1722, %v1882
      %v1935 = vadd.f32 %v1723, %v1887
      %v1936 = vadd.f32 %v1724, %v1890
      %v1937 = vadd.f32 %v1725, %v1895
      %v1938 = vadd.f32 %v1726, %v1898
      %v1939 = vadd.f32 %v1727, %v1903
      %v1940 = vadd.f32 %v1728, %v1906
      %v1943 = vrot.slane %v591, 1
      %v1944 = vrot.slane %v592, 1
      %v1945 = vsel %vm1233, %v1943, %v1944
      %s1946 = scalar_lea.vmem %s1, 20
      %v1947 = vld [vmem:[%s1946] sm:$0xf]
      %v1949 = vsel %vm791, %v1945, 0
      %v1952 = vsel %vm840, %v1947, 0
      %1954 = vmatprep.subr.bf16.mxu0 0
      %1955 = vmatpush1.bf16.msra.mxu0 %v1952
      %1956 = vmatprep.subr.bf16.mxu0 0
      %1957 = vmatpush1.bf16.msra.mxu0 0
      %1958 = vmatprep.subr.bf16.mxu0 0
      %1959 = vmatpush1.bf16.msra.mxu0 0
      %1960 = vmatprep.subr.bf16.mxu0 0
      %1961 = vmatpush1.bf16.msra.mxu0 0
      %1962 = vmatprep.subr.bf16.mxu0 0
      %1963 = vmatpush1.bf16.msra.mxu0 0
      %1964 = vmatprep.subr.bf16.mxu0 0
      %1965 = vmatpush1.bf16.msra.mxu0 0
      %1966 = vmatprep.subr.bf16.mxu0 0
      %1967 = vmatpush1.bf16.msra.mxu0 0
      %1968 = vmatprep.subr.bf16.mxu0 0
      %1969 = vmatpush1.bf16.msra.mxu0 0
      %1970 = vmatprep.subr.bf16.mxu0 0
      %1971 = vmatpush1.bf16.msra.mxu0 0
      %1972 = vmatprep.subr.bf16.mxu0 0
      %1973 = vmatpush1.bf16.msra.mxu0 0
      %1974 = vmatprep.subr.bf16.mxu0 0
      %1975 = vmatpush1.bf16.msra.mxu0 0
      %1976 = vmatprep.subr.bf16.mxu0 0
      %1977 = vmatpush1.bf16.msra.mxu0 0
      %1978 = vmatprep.subr.bf16.mxu0 0
      %1979 = vmatpush1.bf16.msra.mxu0 0
      %1980 = vmatprep.subr.bf16.mxu0 0
      %1981 = vmatpush1.bf16.msra.mxu0 0
      %1982 = vmatprep.subr.bf16.mxu0 0
      %1983 = vmatpush1.bf16.msra.mxu0 0
      %1984 = vmatprep.subr.bf16.mxu0 0
      %1985 = vmatpush1.bf16.msra.mxu0 0
      %1986 = vmatprep.mubr.bf16.mxu0 0
      %1987 = vmatmul.mubr.bf16.gmra.mrb[0].mxu0 %v1288
      %v1988 = vpop.f32.mrb[0].mxu0
      %v1989 = vadd.f32 0.0, %v1988
      %v1990 = vpop.f32.mrb[0].mxu0
      %v1991 = vpop.f32.mrb[0].mxu0
      %v1992 = vadd.f32 0.0, %v1991
      %v1993 = vpop.f32.mrb[0].mxu0
      %1994 = vmatprep.mubr.bf16.mxu0 0
      %1995 = vmatmul.mubr.bf16.gmra.mrb[0].mxu0 %v1291
      %v1996 = vpop.f32.mrb[0].mxu0
      %v1997 = vadd.f32 0.0, %v1996
      %v1998 = vpop.f32.mrb[0].mxu0
      %v1999 = vpop.f32.mrb[0].mxu0
      %v2000 = vadd.f32 0.0, %v1999
      %v2001 = vpop.f32.mrb[0].mxu0
      %2002 = vmatprep.mubr.bf16.mxu0 0
      %2003 = vmatmul.mubr.bf16.gmra.mrb[0].mxu0 %v1294
      %v2004 = vpop.f32.mrb[0].mxu0
      %v2005 = vadd.f32 0.0, %v2004
      %v2006 = vpop.f32.mrb[0].mxu0
      %v2007 = vpop.f32.mrb[0].mxu0
      %v2008 = vadd.f32 0.0, %v2007
      %v2009 = vpop.f32.mrb[0].mxu0
      %2010 = vmatprep.mubr.bf16.mxu0 0
      %2011 = vmatmul.mubr.bf16.gmra.mrb[0].mxu0 %v1297
      %v2012 = vpop.f32.mrb[0].mxu0
      %v2013 = vadd.f32 0.0, %v2012
      %v2014 = vpop.f32.mrb[0].mxu0
      %v2015 = vpop.f32.mrb[0].mxu0
      %v2016 = vadd.f32 0.0, %v2015
      %v2017 = vpop.f32.mrb[0].mxu0
      %2018 = vmatprep.mubr.bf16.mxu0 0
      %2019 = vmatmul.mubr.bf16.gmra.mrb[0].mxu0 %v1300
      %v2020 = vpop.f32.mrb[0].mxu0
      %v2021 = vadd.f32 0.0, %v2020
      %v2022 = vpop.f32.mrb[0].mxu0
      %v2023 = vpop.f32.mrb[0].mxu0
      %v2024 = vadd.f32 0.0, %v2023
      %v2025 = vpop.f32.mrb[0].mxu0
      %2026 = vmatprep.mubr.bf16.mxu0 0
      %2027 = vmatmul.mubr.bf16.gmra.mrb[0].mxu0 %v1303
      %v2028 = vpop.f32.mrb[0].mxu0
      %v2029 = vadd.f32 0.0, %v2028
      %v2030 = vpop.f32.mrb[0].mxu0
      %v2031 = vpop.f32.mrb[0].mxu0
      %v2032 = vadd.f32 0.0, %v2031
      %v2033 = vpop.f32.mrb[0].mxu0
      %2034 = vmatprep.mubr.bf16.mxu0 0
      %2035 = vmatmul.mubr.bf16.gmra.mrb[0].mxu0 %v1306
      %v2036 = vpop.f32.mrb[0].mxu0
      %v2037 = vadd.f32 0.0, %v2036
      %v2038 = vpop.f32.mrb[0].mxu0
      %v2039 = vpop.f32.mrb[0].mxu0
      %v2040 = vadd.f32 0.0, %v2039
      %v2041 = vpop.f32.mrb[0].mxu0
      %2042 = vmatprep.mubr.bf16.mxu0 0
      %2043 = vmatmul.mubr.bf16.gmra.mrb[0].mxu0 %v1309
      %v2044 = vpop.f32.mrb[0].mxu0
      %v2045 = vadd.f32 0.0, %v2044
      %v2046 = vpop.f32.mrb[0].mxu0
      %v2047 = vpop.f32.mrb[0].mxu0
      %v2048 = vadd.f32 0.0, %v2047
      %v2049 = vpop.f32.mrb[0].mxu0
      %2050 = vmatprep.mubr.bf16.mxu0 0
      %2051 = vmatmul.mubr.bf16.gmra.mrb[0].mxu0 %v1312
      %v2052 = vpop.f32.mrb[0].mxu0
      %v2053 = vadd.f32 0.0, %v2052
      %v2054 = vpop.f32.mrb[0].mxu0
      %v2055 = vpop.f32.mrb[0].mxu0
      %v2056 = vadd.f32 0.0, %v2055
      %v2057 = vpop.f32.mrb[0].mxu0
      %2058 = vmatprep.mubr.bf16.mxu0 0
      %2059 = vmatmul.mubr.bf16.gmra.mrb[0].mxu0 %v1315
      %v2060 = vpop.f32.mrb[0].mxu0
      %v2061 = vadd.f32 0.0, %v2060
      %v2062 = vpop.f32.mrb[0].mxu0
      %v2063 = vpop.f32.mrb[0].mxu0
      %v2064 = vadd.f32 0.0, %v2063
      %v2065 = vpop.f32.mrb[0].mxu0
      %2066 = vmatprep.mubr.bf16.mxu0 0
      %2067 = vmatmul.mubr.bf16.gmra.mrb[0].mxu0 %v1318
      %v2068 = vpop.f32.mrb[0].mxu0
      %v2069 = vadd.f32 0.0, %v2068
      %v2070 = vpop.f32.mrb[0].mxu0
      %v2071 = vpop.f32.mrb[0].mxu0
      %v2072 = vadd.f32 0.0, %v2071
      %v2073 = vpop.f32.mrb[0].mxu0
      %2074 = vmatprep.mubr.bf16.mxu0 0
      %2075 = vmatmul.mubr.bf16.gmra.mrb[0].mxu0 %v1321
      %v2076 = vpop.f32.mrb[0].mxu0
      %v2077 = vadd.f32 0.0, %v2076
      %v2078 = vpop.f32.mrb[0].mxu0
      %v2079 = vpop.f32.mrb[0].mxu0
      %v2080 = vadd.f32 0.0, %v2079
      %v2081 = vpop.f32.mrb[0].mxu0
      %2082 = vmatprep.mubr.bf16.mxu0 0
      %2083 = vmatmul.mubr.bf16.gmra.mrb[0].mxu0 %v1324
      %v2084 = vpop.f32.mrb[0].mxu0
      %v2085 = vadd.f32 0.0, %v2084
      %v2086 = vpop.f32.mrb[0].mxu0
      %v2087 = vpop.f32.mrb[0].mxu0
      %v2088 = vadd.f32 0.0, %v2087
      %v2089 = vpop.f32.mrb[0].mxu0
      %2090 = vmatprep.mubr.bf16.mxu0 0
      %2091 = vmatmul.mubr.bf16.gmra.mrb[0].mxu0 %v1327
      %v2092 = vpop.f32.mrb[0].mxu0
      %v2093 = vadd.f32 0.0, %v2092
      %v2094 = vpop.f32.mrb[0].mxu0
      %v2095 = vpop.f32.mrb[0].mxu0
      %v2096 = vadd.f32 0.0, %v2095
      %v2097 = vpop.f32.mrb[0].mxu0
      %2098 = vmatprep.mubr.bf16.mxu0 0
      %2099 = vmatmul.mubr.bf16.gmra.mrb[0].mxu0 %v1330
      %v2100 = vpop.f32.mrb[0].mxu0
      %v2101 = vadd.f32 0.0, %v2100
      %v2102 = vpop.f32.mrb[0].mxu0
      %v2103 = vpop.f32.mrb[0].mxu0
      %v2104 = vadd.f32 0.0, %v2103
      %v2105 = vpop.f32.mrb[0].mxu0
      %2106 = vmatprep.mubr.bf16.mxu0 0
      %2107 = vmatmul.mubr.bf16.gmra.mrb[0].mxu0 %v1949
      %v2108 = vpop.f32.mrb[0].mxu0
      %v2109 = vadd.f32 0.0, %v2108
      %v2110 = vpop.f32.mrb[0].mxu0
      %v2111 = vpop.f32.mrb[0].mxu0
      %v2112 = vadd.f32 0.0, %v2111
      %v2113 = vpop.f32.mrb[0].mxu0
      %2114 = vdwg.mxu0
      %v2115 = vadd.f32 %v1909, %v1989
      %v2116 = vadd.f32 %v1910, %v1992
      %v2117 = vadd.f32 %v1911, %v1997
      %v2118 = vadd.f32 %v1912, %v2000
      %v2119 = vadd.f32 %v1913, %v2005
      %v2120 = vadd.f32 %v1914, %v2008
      %v2121 = vadd.f32 %v1915, %v2013
      %v2122 = vadd.f32 %v1916, %v2016
      %v2123 = vadd.f32 %v1917, %v2021
      %v2124 = vadd.f32 %v1918, %v2024
      %v2125 = vadd.f32 %v1919, %v2029
      %v2126 = vadd.f32 %v1920, %v2032
      %v2127 = vadd.f32 %v1921, %v2037
      %v2128 = vadd.f32 %v1922, %v2040
      %v2129 = vadd.f32 %v1923, %v2045
      %v2130 = vadd.f32 %v1924, %v2048
      %v2131 = vadd.f32 %v1925, %v2053
      %v2132 = vadd.f32 %v1926, %v2056
      %v2133 = vadd.f32 %v1927, %v2061
      %v2134 = vadd.f32 %v1928, %v2064
      %v2135 = vadd.f32 %v1929, %v2069
      %v2136 = vadd.f32 %v1930, %v2072
      %v2137 = vadd.f32 %v1931, %v2077
      %v2138 = vadd.f32 %v1932, %v2080
      %v2139 = vadd.f32 %v1933, %v2085
      %v2140 = vadd.f32 %v1934, %v2088
      %v2141 = vadd.f32 %v1935, %v2093
      %v2142 = vadd.f32 %v1936, %v2096
      %v2143 = vadd.f32 %v1937, %v2101
      %v2144 = vadd.f32 %v1938, %v2104
      %v2145 = vadd.f32 %v1939, %v2109
      %v2146 = vadd.f32 %v1940, %v2112
      %s2147 = scalar_lea.vmem %s1, 24
      %v2148 = vld [vmem:[%s2147] sm:$0xf]
      %v2150 = vsel %vm791, %v593, 0
      %v2153 = vsel %vm840, %v2148, 0
      %2155 = vmatprep.subr.bf16.mxu0 0
      %2156 = vmatpush1.bf16.msra.mxu0 %v2153
      %2157 = vmatprep.subr.bf16.mxu0 0
      %2158 = vmatpush1.bf16.msra.mxu0 0
      %2159 = vmatprep.subr.bf16.mxu0 0
      %2160 = vmatpush1.bf16.msra.mxu0 0
      %2161 = vmatprep.subr.bf16.mxu0 0
      %2162 = vmatpush1.bf16.msra.mxu0 0
      %2163 = vmatprep.subr.bf16.mxu0 0
      %2164 = vmatpush1.bf16.msra.mxu0 0
      %2165 = vmatprep.subr.bf16.mxu0 0
      %2166 = vmatpush1.bf16.msra.mxu0 0
      %2167 = vmatprep.subr.bf16.mxu0 0
      %2168 = vmatpush1.bf16.msra.mxu0 0
      %2169 = vmatprep.subr.bf16.mxu0 0
      %2170 = vmatpush1.bf16.msra.mxu0 0
      %2171 = vmatprep.subr.bf16.mxu0 0
      %2172 = vmatpush1.bf16.msra.mxu0 0
      %2173 = vmatprep.subr.bf16.mxu0 0
      %2174 = vmatpush1.bf16.msra.mxu0 0
      %2175 = vmatprep.subr.bf16.mxu0 0
      %2176 = vmatpush1.bf16.msra.mxu0 0
      %2177 = vmatprep.subr.bf16.mxu0 0
      %2178 = vmatpush1.bf16.msra.mxu0 0
      %2179 = vmatprep.subr.bf16.mxu0 0
      %2180 = vmatpush1.bf16.msra.mxu0 0
      %2181 = vmatprep.subr.bf16.mxu0 0
      %2182 = vmatpush1.bf16.msra.mxu0 0
      %2183 = vmatprep.subr.bf16.mxu0 0
      %2184 = vmatpush1.bf16.msra.mxu0 0
      %2185 = vmatprep.subr.bf16.mxu0 0
      %2186 = vmatpush1.bf16.msra.mxu0 0
      %2187 = vmatprep.mubr.bf16.mxu0 0
      %2188 = vmatmul.mubr.bf16.gmra.mrb[0].mxu0 %v1009
      %v2189 = vpop.f32.mrb[0].mxu0
      %v2190 = vadd.f32 0.0, %v2189
      %v2191 = vpop.f32.mrb[0].mxu0
      %v2192 = vpop.f32.mrb[0].mxu0
      %v2193 = vadd.f32 0.0, %v2192
      %v2194 = vpop.f32.mrb[0].mxu0
      %2195 = vmatprep.mubr.bf16.mxu0 0
      %2196 = vmatmul.mubr.bf16.gmra.mrb[0].mxu0 %v1011
      %v2197 = vpop.f32.mrb[0].mxu0
      %v2198 = vadd.f32 0.0, %v2197
      %v2199 = vpop.f32.mrb[0].mxu0
      %v2200 = vpop.f32.mrb[0].mxu0
      %v2201 = vadd.f32 0.0, %v2200
      %v2202 = vpop.f32.mrb[0].mxu0
      %2203 = vmatprep.mubr.bf16.mxu0 0
      %2204 = vmatmul.mubr.bf16.gmra.mrb[0].mxu0 %v1013
      %v2205 = vpop.f32.mrb[0].mxu0
      %v2206 = vadd.f32 0.0, %v2205
      %v2207 = vpop.f32.mrb[0].mxu0
      %v2208 = vpop.f32.mrb[0].mxu0
      %v2209 = vadd.f32 0.0, %v2208
      %v2210 = vpop.f32.mrb[0].mxu0
      %2211 = vmatprep.mubr.bf16.mxu0 0
      %2212 = vmatmul.mubr.bf16.gmra.mrb[0].mxu0 %v1015
      %v2213 = vpop.f32.mrb[0].mxu0
      %v2214 = vadd.f32 0.0, %v2213
      %v2215 = vpop.f32.mrb[0].mxu0
      %v2216 = vpop.f32.mrb[0].mxu0
      %v2217 = vadd.f32 0.0, %v2216
      %v2218 = vpop.f32.mrb[0].mxu0
      %2219 = vmatprep.mubr.bf16.mxu0 0
      %2220 = vmatmul.mubr.bf16.gmra.mrb[0].mxu0 %v1017
      %v2221 = vpop.f32.mrb[0].mxu0
      %v2222 = vadd.f32 0.0, %v2221
      %v2223 = vpop.f32.mrb[0].mxu0
      %v2224 = vpop.f32.mrb[0].mxu0
      %v2225 = vadd.f32 0.0, %v2224
      %v2226 = vpop.f32.mrb[0].mxu0
      %2227 = vmatprep.mubr.bf16.mxu0 0
      %2228 = vmatmul.mubr.bf16.gmra.mrb[0].mxu0 %v1019
      %v2229 = vpop.f32.mrb[0].mxu0
      %v2230 = vadd.f32 0.0, %v2229
      %v2231 = vpop.f32.mrb[0].mxu0
      %v2232 = vpop.f32.mrb[0].mxu0
      %v2233 = vadd.f32 0.0, %v2232
      %v2234 = vpop.f32.mrb[0].mxu0
      %2235 = vmatprep.mubr.bf16.mxu0 0
      %2236 = vmatmul.mubr.bf16.gmra.mrb[0].mxu0 %v1021
      %v2237 = vpop.f32.mrb[0].mxu0
      %v2238 = vadd.f32 0.0, %v2237
      %v2239 = vpop.f32.mrb[0].mxu0
      %v2240 = vpop.f32.mrb[0].mxu0
      %v2241 = vadd.f32 0.0, %v2240
      %v2242 = vpop.f32.mrb[0].mxu0
      %2243 = vmatprep.mubr.bf16.mxu0 0
      %2244 = vmatmul.mubr.bf16.gmra.mrb[0].mxu0 %v1023
      %v2245 = vpop.f32.mrb[0].mxu0
      %v2246 = vadd.f32 0.0, %v2245
      %v2247 = vpop.f32.mrb[0].mxu0
      %v2248 = vpop.f32.mrb[0].mxu0
      %v2249 = vadd.f32 0.0, %v2248
      %v2250 = vpop.f32.mrb[0].mxu0
      %2251 = vmatprep.mubr.bf16.mxu0 0
      %2252 = vmatmul.mubr.bf16.gmra.mrb[0].mxu0 %v1025
      %v2253 = vpop.f32.mrb[0].mxu0
      %v2254 = vadd.f32 0.0, %v2253
      %v2255 = vpop.f32.mrb[0].mxu0
      %v2256 = vpop.f32.mrb[0].mxu0
      %v2257 = vadd.f32 0.0, %v2256
      %v2258 = vpop.f32.mrb[0].mxu0
      %2259 = vmatprep.mubr.bf16.mxu0 0
      %2260 = vmatmul.mubr.bf16.gmra.mrb[0].mxu0 %v1027
      %v2261 = vpop.f32.mrb[0].mxu0
      %v2262 = vadd.f32 0.0, %v2261
      %v2263 = vpop.f32.mrb[0].mxu0
      %v2264 = vpop.f32.mrb[0].mxu0
      %v2265 = vadd.f32 0.0, %v2264
      %v2266 = vpop.f32.mrb[0].mxu0
      %2267 = vmatprep.mubr.bf16.mxu0 0
      %2268 = vmatmul.mubr.bf16.gmra.mrb[0].mxu0 %v1029
      %v2269 = vpop.f32.mrb[0].mxu0
      %v2270 = vadd.f32 0.0, %v2269
      %v2271 = vpop.f32.mrb[0].mxu0
      %v2272 = vpop.f32.mrb[0].mxu0
      %v2273 = vadd.f32 0.0, %v2272
      %v2274 = vpop.f32.mrb[0].mxu0
      %2275 = vmatprep.mubr.bf16.mxu0 0
      %2276 = vmatmul.mubr.bf16.gmra.mrb[0].mxu0 %v1031
      %v2277 = vpop.f32.mrb[0].mxu0
      %v2278 = vadd.f32 0.0, %v2277
      %v2279 = vpop.f32.mrb[0].mxu0
      %v2280 = vpop.f32.mrb[0].mxu0
      %v2281 = vadd.f32 0.0, %v2280
      %v2282 = vpop.f32.mrb[0].mxu0
      %2283 = vmatprep.mubr.bf16.mxu0 0
      %2284 = vmatmul.mubr.bf16.gmra.mrb[0].mxu0 %v1033
      %v2285 = vpop.f32.mrb[0].mxu0
      %v2286 = vadd.f32 0.0, %v2285
      %v2287 = vpop.f32.mrb[0].mxu0
      %v2288 = vpop.f32.mrb[0].mxu0
      %v2289 = vadd.f32 0.0, %v2288
      %v2290 = vpop.f32.mrb[0].mxu0
      %2291 = vmatprep.mubr.bf16.mxu0 0
      %2292 = vmatmul.mubr.bf16.gmra.mrb[0].mxu0 %v1035
      %v2293 = vpop.f32.mrb[0].mxu0
      %v2294 = vadd.f32 0.0, %v2293
      %v2295 = vpop.f32.mrb[0].mxu0
      %v2296 = vpop.f32.mrb[0].mxu0
      %v2297 = vadd.f32 0.0, %v2296
      %v2298 = vpop.f32.mrb[0].mxu0
      %2299 = vmatprep.mubr.bf16.mxu0 0
      %2300 = vmatmul.mubr.bf16.gmra.mrb[0].mxu0 %v1531
      %v2301 = vpop.f32.mrb[0].mxu0
      %v2302 = vadd.f32 0.0, %v2301
      %v2303 = vpop.f32.mrb[0].mxu0
      %v2304 = vpop.f32.mrb[0].mxu0
      %v2305 = vadd.f32 0.0, %v2304
      %v2306 = vpop.f32.mrb[0].mxu0
      %2307 = vmatprep.mubr.bf16.mxu0 0
      %2308 = vmatmul.mubr.bf16.gmra.mrb[0].mxu0 %v2150
      %v2309 = vpop.f32.mrb[0].mxu0
      %v2310 = vadd.f32 0.0, %v2309
      %v2311 = vpop.f32.mrb[0].mxu0
      %v2312 = vpop.f32.mrb[0].mxu0
      %v2313 = vadd.f32 0.0, %v2312
      %v2314 = vpop.f32.mrb[0].mxu0
      %2315 = vdwg.mxu0
      %v2316 = vadd.f32 %v2115, %v2190
      %v2317 = vadd.f32 %v2116, %v2193
      %v2318 = vadd.f32 %v2117, %v2198
      %v2319 = vadd.f32 %v2118, %v2201
      %v2320 = vadd.f32 %v2119, %v2206
      %v2321 = vadd.f32 %v2120, %v2209
      %v2322 = vadd.f32 %v2121, %v2214
      %v2323 = vadd.f32 %v2122, %v2217
      %v2324 = vadd.f32 %v2123, %v2222
      %v2325 = vadd.f32 %v2124, %v2225
      %v2326 = vadd.f32 %v2125, %v2230
      %v2327 = vadd.f32 %v2126, %v2233
      %v2328 = vadd.f32 %v2127, %v2238
      %v2329 = vadd.f32 %v2128, %v2241
      %v2330 = vadd.f32 %v2129, %v2246
      %v2331 = vadd.f32 %v2130, %v2249
      %v2332 = vadd.f32 %v2131, %v2254
      %v2333 = vadd.f32 %v2132, %v2257
      %v2334 = vadd.f32 %v2133, %v2262
      %v2335 = vadd.f32 %v2134, %v2265
      %v2336 = vadd.f32 %v2135, %v2270
      %v2337 = vadd.f32 %v2136, %v2273
      %v2338 = vadd.f32 %v2137, %v2278
      %v2339 = vadd.f32 %v2138, %v2281
      %v2340 = vadd.f32 %v2139, %v2286
      %v2341 = vadd.f32 %v2140, %v2289
      %v2342 = vadd.f32 %v2141, %v2294
      %v2343 = vadd.f32 %v2142, %v2297
      %v2344 = vadd.f32 %v2143, %v2302
      %v2345 = vadd.f32 %v2144, %v2305
      %v2346 = vadd.f32 %v2145, %v2310
      %v2347 = vadd.f32 %v2146, %v2313
      %v2348 = vshrl.u32 %v593, 16
      %v2350 = vshll.u32 %v593, 16
      %v2352 = vrot.slane %v2350, 1
      %v2353 = vor.u32 %v2348, %v2352
      %v2355 = vshll.u32 %v594, 16
      %v2357 = vrot.slane %v2355, 1
      %v2358 = vsel %vm596, %v2353, %v2357
      %s2359 = scalar_lea.vmem %s1, 28
      %v2360 = vld [vmem:[%s2359] sm:$0xf]
      %v2362 = vsel %vm791, %v2358, 0
      %v2365 = vsel %vm840, %v2360, 0
      %2367 = vmatprep.subr.bf16.mxu0 0
      %2368 = vmatpush1.bf16.msra.mxu0 %v2365
      %2369 = vmatprep.subr.bf16.mxu0 0
      %2370 = vmatpush1.bf16.msra.mxu0 0
      %2371 = vmatprep.subr.bf16.mxu0 0
      %2372 = vmatpush1.bf16.msra.mxu0 0
      %2373 = vmatprep.subr.bf16.mxu0 0
      %2374 = vmatpush1.bf16.msra.mxu0 0
      %2375 = vmatprep.subr.bf16.mxu0 0
      %2376 = vmatpush1.bf16.msra.mxu0 0
      %2377 = vmatprep.subr.bf16.mxu0 0
      %2378 = vmatpush1.bf16.msra.mxu0 0
      %2379 = vmatprep.subr.bf16.mxu0 0
      %2380 = vmatpush1.bf16.msra.mxu0 0
      %2381 = vmatprep.subr.bf16.mxu0 0
      %2382 = vmatpush1.bf16.msra.mxu0 0
      %2383 = vmatprep.subr.bf16.mxu0 0
      %2384 = vmatpush1.bf16.msra.mxu0 0
      %2385 = vmatprep.subr.bf16.mxu0 0
      %2386 = vmatpush1.bf16.msra.mxu0 0
      %2387 = vmatprep.subr.bf16.mxu0 0
      %2388 = vmatpush1.bf16.msra.mxu0 0
      %2389 = vmatprep.subr.bf16.mxu0 0
      %2390 = vmatpush1.bf16.msra.mxu0 0
      %2391 = vmatprep.subr.bf16.mxu0 0
      %2392 = vmatpush1.bf16.msra.mxu0 0
      %2393 = vmatprep.subr.bf16.mxu0 0
      %2394 = vmatpush1.bf16.msra.mxu0 0
      %2395 = vmatprep.subr.bf16.mxu0 0
      %2396 = vmatpush1.bf16.msra.mxu0 0
      %2397 = vmatprep.subr.bf16.mxu0 0
      %2398 = vmatpush1.bf16.msra.mxu0 0
      %2399 = vmatprep.mubr.bf16.mxu0 0
      %2400 = vmatmul.mubr.bf16.gmra.mrb[0].mxu0 %v799
      %v2401 = vpop.f32.mrb[0].mxu0
      %v2402 = vadd.f32 0.0, %v2401
      %v2403 = vpop.f32.mrb[0].mxu0
      %v2404 = vpop.f32.mrb[0].mxu0
      %v2405 = vadd.f32 0.0, %v2404
      %v2406 = vpop.f32.mrb[0].mxu0
      %2407 = vmatprep.mubr.bf16.mxu0 0
      %2408 = vmatmul.mubr.bf16.gmra.mrb[0].mxu0 %v802
      %v2409 = vpop.f32.mrb[0].mxu0
      %v2410 = vadd.f32 0.0, %v2409
      %v2411 = vpop.f32.mrb[0].mxu0
      %v2412 = vpop.f32.mrb[0].mxu0
      %v2413 = vadd.f32 0.0, %v2412
      %v2414 = vpop.f32.mrb[0].mxu0
      %2415 = vmatprep.mubr.bf16.mxu0 0
      %2416 = vmatmul.mubr.bf16.gmra.mrb[0].mxu0 %v805
      %v2417 = vpop.f32.mrb[0].mxu0
      %v2418 = vadd.f32 0.0, %v2417
      %v2419 = vpop.f32.mrb[0].mxu0
      %v2420 = vpop.f32.mrb[0].mxu0
      %v2421 = vadd.f32 0.0, %v2420
      %v2422 = vpop.f32.mrb[0].mxu0
      %2423 = vmatprep.mubr.bf16.mxu0 0
      %2424 = vmatmul.mubr.bf16.gmra.mrb[0].mxu0 %v808
      %v2425 = vpop.f32.mrb[0].mxu0
      %v2426 = vadd.f32 0.0, %v2425
      %v2427 = vpop.f32.mrb[0].mxu0
      %v2428 = vpop.f32.mrb[0].mxu0
      %v2429 = vadd.f32 0.0, %v2428
      %v2430 = vpop.f32.mrb[0].mxu0
      %2431 = vmatprep.mubr.bf16.mxu0 0
      %2432 = vmatmul.mubr.bf16.gmra.mrb[0].mxu0 %v811
      %v2433 = vpop.f32.mrb[0].mxu0
      %v2434 = vadd.f32 0.0, %v2433
      %v2435 = vpop.f32.mrb[0].mxu0
      %v2436 = vpop.f32.mrb[0].mxu0
      %v2437 = vadd.f32 0.0, %v2436
      %v2438 = vpop.f32.mrb[0].mxu0
      %2439 = vmatprep.mubr.bf16.mxu0 0
      %2440 = vmatmul.mubr.bf16.gmra.mrb[0].mxu0 %v814
      %v2441 = vpop.f32.mrb[0].mxu0
      %v2442 = vadd.f32 0.0, %v2441
      %v2443 = vpop.f32.mrb[0].mxu0
      %v2444 = vpop.f32.mrb[0].mxu0
      %v2445 = vadd.f32 0.0, %v2444
      %v2446 = vpop.f32.mrb[0].mxu0
      %2447 = vmatprep.mubr.bf16.mxu0 0
      %2448 = vmatmul.mubr.bf16.gmra.mrb[0].mxu0 %v817
      %v2449 = vpop.f32.mrb[0].mxu0
      %v2450 = vadd.f32 0.0, %v2449
      %v2451 = vpop.f32.mrb[0].mxu0
      %v2452 = vpop.f32.mrb[0].mxu0
      %v2453 = vadd.f32 0.0, %v2452
      %v2454 = vpop.f32.mrb[0].mxu0
      %2455 = vmatprep.mubr.bf16.mxu0 0
      %2456 = vmatmul.mubr.bf16.gmra.mrb[0].mxu0 %v820
      %v2457 = vpop.f32.mrb[0].mxu0
      %v2458 = vadd.f32 0.0, %v2457
      %v2459 = vpop.f32.mrb[0].mxu0
      %v2460 = vpop.f32.mrb[0].mxu0
      %v2461 = vadd.f32 0.0, %v2460
      %v2462 = vpop.f32.mrb[0].mxu0
      %2463 = vmatprep.mubr.bf16.mxu0 0
      %2464 = vmatmul.mubr.bf16.gmra.mrb[0].mxu0 %v823
      %v2465 = vpop.f32.mrb[0].mxu0
      %v2466 = vadd.f32 0.0, %v2465
      %v2467 = vpop.f32.mrb[0].mxu0
      %v2468 = vpop.f32.mrb[0].mxu0
      %v2469 = vadd.f32 0.0, %v2468
      %v2470 = vpop.f32.mrb[0].mxu0
      %2471 = vmatprep.mubr.bf16.mxu0 0
      %2472 = vmatmul.mubr.bf16.gmra.mrb[0].mxu0 %v826
      %v2473 = vpop.f32.mrb[0].mxu0
      %v2474 = vadd.f32 0.0, %v2473
      %v2475 = vpop.f32.mrb[0].mxu0
      %v2476 = vpop.f32.mrb[0].mxu0
      %v2477 = vadd.f32 0.0, %v2476
      %v2478 = vpop.f32.mrb[0].mxu0
      %2479 = vmatprep.mubr.bf16.mxu0 0
      %2480 = vmatmul.mubr.bf16.gmra.mrb[0].mxu0 %v829
      %v2481 = vpop.f32.mrb[0].mxu0
      %v2482 = vadd.f32 0.0, %v2481
      %v2483 = vpop.f32.mrb[0].mxu0
      %v2484 = vpop.f32.mrb[0].mxu0
      %v2485 = vadd.f32 0.0, %v2484
      %v2486 = vpop.f32.mrb[0].mxu0
      %2487 = vmatprep.mubr.bf16.mxu0 0
      %2488 = vmatmul.mubr.bf16.gmra.mrb[0].mxu0 %v832
      %v2489 = vpop.f32.mrb[0].mxu0
      %v2490 = vadd.f32 0.0, %v2489
      %v2491 = vpop.f32.mrb[0].mxu0
      %v2492 = vpop.f32.mrb[0].mxu0
      %v2493 = vadd.f32 0.0, %v2492
      %v2494 = vpop.f32.mrb[0].mxu0
      %2495 = vmatprep.mubr.bf16.mxu0 0
      %2496 = vmatmul.mubr.bf16.gmra.mrb[0].mxu0 %v835
      %v2497 = vpop.f32.mrb[0].mxu0
      %v2498 = vadd.f32 0.0, %v2497
      %v2499 = vpop.f32.mrb[0].mxu0
      %v2500 = vpop.f32.mrb[0].mxu0
      %v2501 = vadd.f32 0.0, %v2500
      %v2502 = vpop.f32.mrb[0].mxu0
      %2503 = vmatprep.mubr.bf16.mxu0 0
      %2504 = vmatmul.mubr.bf16.gmra.mrb[0].mxu0 %v838
      %v2505 = vpop.f32.mrb[0].mxu0
      %v2506 = vadd.f32 0.0, %v2505
      %v2507 = vpop.f32.mrb[0].mxu0
      %v2508 = vpop.f32.mrb[0].mxu0
      %v2509 = vadd.f32 0.0, %v2508
      %v2510 = vpop.f32.mrb[0].mxu0
      %2511 = vmatprep.mubr.bf16.mxu0 0
      %2512 = vmatmul.mubr.bf16.gmra.mrb[0].mxu0 %v1743
      %v2513 = vpop.f32.mrb[0].mxu0
      %v2514 = vadd.f32 0.0, %v2513
      %v2515 = vpop.f32.mrb[0].mxu0
      %v2516 = vpop.f32.mrb[0].mxu0
      %v2517 = vadd.f32 0.0, %v2516
      %v2518 = vpop.f32.mrb[0].mxu0
      %2519 = vmatprep.mubr.bf16.mxu0 0
      %2520 = vmatmul.mubr.bf16.gmra.mrb[0].mxu0 %v2362
      %v2521 = vpop.f32.mrb[0].mxu0
      %v2522 = vadd.f32 0.0, %v2521
      %v2523 = vpop.f32.mrb[0].mxu0
      %v2524 = vpop.f32.mrb[0].mxu0
      %v2525 = vadd.f32 0.0, %v2524
      %v2526 = vpop.f32.mrb[0].mxu0
      %2527 = vdwg.mxu0
      %v2528 = vadd.f32 %v2316, %v2402
      %v2529 = vadd.f32 %v2317, %v2405
      %v2530 = vadd.f32 %v2318, %v2410
      %v2531 = vadd.f32 %v2319, %v2413
      %v2532 = vadd.f32 %v2320, %v2418
      %v2533 = vadd.f32 %v2321, %v2421
      %v2534 = vadd.f32 %v2322, %v2426
      %v2535 = vadd.f32 %v2323, %v2429
      %v2536 = vadd.f32 %v2324, %v2434
      %v2537 = vadd.f32 %v2325, %v2437
      %v2538 = vadd.f32 %v2326, %v2442
      %v2539 = vadd.f32 %v2327, %v2445
      %v2540 = vadd.f32 %v2328, %v2450
      %v2541 = vadd.f32 %v2329, %v2453
      %v2542 = vadd.f32 %v2330, %v2458
      %v2543 = vadd.f32 %v2331, %v2461
      %v2544 = vadd.f32 %v2332, %v2466
      %v2545 = vadd.f32 %v2333, %v2469
      %v2546 = vadd.f32 %v2334, %v2474
      %v2547 = vadd.f32 %v2335, %v2477
      %v2548 = vadd.f32 %v2336, %v2482
      %v2549 = vadd.f32 %v2337, %v2485
      %v2550 = vadd.f32 %v2338, %v2490
      %v2551 = vadd.f32 %v2339, %v2493
      %v2552 = vadd.f32 %v2340, %v2498
      %v2553 = vadd.f32 %v2341, %v2501
      %v2554 = vadd.f32 %v2342, %v2506
      %v2555 = vadd.f32 %v2343, %v2509
      %v2556 = vadd.f32 %v2344, %v2514
      %v2557 = vadd.f32 %v2345, %v2517
      %v2558 = vadd.f32 %v2346, %v2522
      %v2559 = vadd.f32 %v2347, %v2525
      %v2562 = vrot.slane %v593, 1
      %v2563 = vrot.slane %v594, 1
      %v2564 = vsel %vm1233, %v2562, %v2563
      %s2565 = scalar_lea.vmem %s1, 32
      %v2566 = vld [vmem:[%s2565] sm:$0xf]
      %v2568 = vsel %vm791, %v2564, 0
      %v2571 = vsel %vm840, %v2566, 0
      %2573 = vmatprep.subr.bf16.mxu0 0
      %2574 = vmatpush1.bf16.msra.mxu0 %v2571
      %2575 = vmatprep.subr.bf16.mxu0 0
      %2576 = vmatpush1.bf16.msra.mxu0 0
      %2577 = vmatprep.subr.bf16.mxu0 0
      %2578 = vmatpush1.bf16.msra.mxu0 0
      %2579 = vmatprep.subr.bf16.mxu0 0
      %2580 = vmatpush1.bf16.msra.mxu0 0
      %2581 = vmatprep.subr.bf16.mxu0 0
      %2582 = vmatpush1.bf16.msra.mxu0 0
      %2583 = vmatprep.subr.bf16.mxu0 0
      %2584 = vmatpush1.bf16.msra.mxu0 0
      %2585 = vmatprep.subr.bf16.mxu0 0
      %2586 = vmatpush1.bf16.msra.mxu0 0
      %2587 = vmatprep.subr.bf16.mxu0 0
      %2588 = vmatpush1.bf16.msra.mxu0 0
      %2589 = vmatprep.subr.bf16.mxu0 0
      %2590 = vmatpush1.bf16.msra.mxu0 0
      %2591 = vmatprep.subr.bf16.mxu0 0
      %2592 = vmatpush1.bf16.msra.mxu0 0
      %2593 = vmatprep.subr.bf16.mxu0 0
      %2594 = vmatpush1.bf16.msra.mxu0 0
      %2595 = vmatprep.subr.bf16.mxu0 0
      %2596 = vmatpush1.bf16.msra.mxu0 0
      %2597 = vmatprep.subr.bf16.mxu0 0
      %2598 = vmatpush1.bf16.msra.mxu0 0
      %2599 = vmatprep.subr.bf16.mxu0 0
      %2600 = vmatpush1.bf16.msra.mxu0 0
      %2601 = vmatprep.subr.bf16.mxu0 0
      %2602 = vmatpush1.bf16.msra.mxu0 0
      %2603 = vmatprep.subr.bf16.mxu0 0
      %2604 = vmatpush1.bf16.msra.mxu0 0
      %2605 = vmatprep.mubr.bf16.mxu0 0
      %2606 = vmatmul.mubr.bf16.gmra.mrb[0].mxu0 %v1291
      %v2607 = vpop.f32.mrb[0].mxu0
      %v2608 = vadd.f32 0.0, %v2607
      %v2609 = vpop.f32.mrb[0].mxu0
      %v2610 = vpop.f32.mrb[0].mxu0
      %v2611 = vadd.f32 0.0, %v2610
      %v2612 = vpop.f32.mrb[0].mxu0
      %2613 = vmatprep.mubr.bf16.mxu0 0
      %2614 = vmatmul.mubr.bf16.gmra.mrb[0].mxu0 %v1294
      %v2615 = vpop.f32.mrb[0].mxu0
      %v2616 = vadd.f32 0.0, %v2615
      %v2617 = vpop.f32.mrb[0].mxu0
      %v2618 = vpop.f32.mrb[0].mxu0
      %v2619 = vadd.f32 0.0, %v2618
      %v2620 = vpop.f32.mrb[0].mxu0
      %2621 = vmatprep.mubr.bf16.mxu0 0
      %2622 = vmatmul.mubr.bf16.gmra.mrb[0].mxu0 %v1297
      %v2623 = vpop.f32.mrb[0].mxu0
      %v2624 = vadd.f32 0.0, %v2623
      %v2625 = vpop.f32.mrb[0].mxu0
      %v2626 = vpop.f32.mrb[0].mxu0
      %v2627 = vadd.f32 0.0, %v2626
      %v2628 = vpop.f32.mrb[0].mxu0
      %2629 = vmatprep.mubr.bf16.mxu0 0
      %2630 = vmatmul.mubr.bf16.gmra.mrb[0].mxu0 %v1300
      %v2631 = vpop.f32.mrb[0].mxu0
      %v2632 = vadd.f32 0.0, %v2631
      %v2633 = vpop.f32.mrb[0].mxu0
      %v2634 = vpop.f32.mrb[0].mxu0
      %v2635 = vadd.f32 0.0, %v2634
      %v2636 = vpop.f32.mrb[0].mxu0
      %2637 = vmatprep.mubr.bf16.mxu0 0
      %2638 = vmatmul.mubr.bf16.gmra.mrb[0].mxu0 %v1303
      %v2639 = vpop.f32.mrb[0].mxu0
      %v2640 = vadd.f32 0.0, %v2639
      %v2641 = vpop.f32.mrb[0].mxu0
      %v2642 = vpop.f32.mrb[0].mxu0
      %v2643 = vadd.f32 0.0, %v2642
      %v2644 = vpop.f32.mrb[0].mxu0
      %2645 = vmatprep.mubr.bf16.mxu0 0
      %2646 = vmatmul.mubr.bf16.gmra.mrb[0].mxu0 %v1306
      %v2647 = vpop.f32.mrb[0].mxu0
      %v2648 = vadd.f32 0.0, %v2647
      %v2649 = vpop.f32.mrb[0].mxu0
      %v2650 = vpop.f32.mrb[0].mxu0
      %v2651 = vadd.f32 0.0, %v2650
      %v2652 = vpop.f32.mrb[0].mxu0
      %2653 = vmatprep.mubr.bf16.mxu0 0
      %2654 = vmatmul.mubr.bf16.gmra.mrb[0].mxu0 %v1309
      %v2655 = vpop.f32.mrb[0].mxu0
      %v2656 = vadd.f32 0.0, %v2655
      %v2657 = vpop.f32.mrb[0].mxu0
      %v2658 = vpop.f32.mrb[0].mxu0
      %v2659 = vadd.f32 0.0, %v2658
      %v2660 = vpop.f32.mrb[0].mxu0
      %2661 = vmatprep.mubr.bf16.mxu0 0
      %2662 = vmatmul.mubr.bf16.gmra.mrb[0].mxu0 %v1312
      %v2663 = vpop.f32.mrb[0].mxu0
      %v2664 = vadd.f32 0.0, %v2663
      %v2665 = vpop.f32.mrb[0].mxu0
      %v2666 = vpop.f32.mrb[0].mxu0
      %v2667 = vadd.f32 0.0, %v2666
      %v2668 = vpop.f32.mrb[0].mxu0
      %2669 = vmatprep.mubr.bf16.mxu0 0
      %2670 = vmatmul.mubr.bf16.gmra.mrb[0].mxu0 %v1315
      %v2671 = vpop.f32.mrb[0].mxu0
      %v2672 = vadd.f32 0.0, %v2671
      %v2673 = vpop.f32.mrb[0].mxu0
      %v2674 = vpop.f32.mrb[0].mxu0
      %v2675 = vadd.f32 0.0, %v2674
      %v2676 = vpop.f32.mrb[0].mxu0
      %2677 = vmatprep.mubr.bf16.mxu0 0
      %2678 = vmatmul.mubr.bf16.gmra.mrb[0].mxu0 %v1318
      %v2679 = vpop.f32.mrb[0].mxu0
      %v2680 = vadd.f32 0.0, %v2679
      %v2681 = vpop.f32.mrb[0].mxu0
      %v2682 = vpop.f32.mrb[0].mxu0
      %v2683 = vadd.f32 0.0, %v2682
      %v2684 = vpop.f32.mrb[0].mxu0
      %2685 = vmatprep.mubr.bf16.mxu0 0
      %2686 = vmatmul.mubr.bf16.gmra.mrb[0].mxu0 %v1321
      %v2687 = vpop.f32.mrb[0].mxu0
      %v2688 = vadd.f32 0.0, %v2687
      %v2689 = vpop.f32.mrb[0].mxu0
      %v2690 = vpop.f32.mrb[0].mxu0
      %v2691 = vadd.f32 0.0, %v2690
      %v2692 = vpop.f32.mrb[0].mxu0
      %2693 = vmatprep.mubr.bf16.mxu0 0
      %2694 = vmatmul.mubr.bf16.gmra.mrb[0].mxu0 %v1324
      %v2695 = vpop.f32.mrb[0].mxu0
      %v2696 = vadd.f32 0.0, %v2695
      %v2697 = vpop.f32.mrb[0].mxu0
      %v2698 = vpop.f32.mrb[0].mxu0
      %v2699 = vadd.f32 0.0, %v2698
      %v2700 = vpop.f32.mrb[0].mxu0
      %2701 = vmatprep.mubr.bf16.mxu0 0
      %2702 = vmatmul.mubr.bf16.gmra.mrb[0].mxu0 %v1327
      %v2703 = vpop.f32.mrb[0].mxu0
      %v2704 = vadd.f32 0.0, %v2703
      %v2705 = vpop.f32.mrb[0].mxu0
      %v2706 = vpop.f32.mrb[0].mxu0
      %v2707 = vadd.f32 0.0, %v2706
      %v2708 = vpop.f32.mrb[0].mxu0
      %2709 = vmatprep.mubr.bf16.mxu0 0
      %2710 = vmatmul.mubr.bf16.gmra.mrb[0].mxu0 %v1330
      %v2711 = vpop.f32.mrb[0].mxu0
      %v2712 = vadd.f32 0.0, %v2711
      %v2713 = vpop.f32.mrb[0].mxu0
      %v2714 = vpop.f32.mrb[0].mxu0
      %v2715 = vadd.f32 0.0, %v2714
      %v2716 = vpop.f32.mrb[0].mxu0
      %2717 = vmatprep.mubr.bf16.mxu0 0
      %2718 = vmatmul.mubr.bf16.gmra.mrb[0].mxu0 %v1949
      %v2719 = vpop.f32.mrb[0].mxu0
      %v2720 = vadd.f32 0.0, %v2719
      %v2721 = vpop.f32.mrb[0].mxu0
      %v2722 = vpop.f32.mrb[0].mxu0
      %v2723 = vadd.f32 0.0, %v2722
      %v2724 = vpop.f32.mrb[0].mxu0
      %2725 = vmatprep.mubr.bf16.mxu0 0
      %2726 = vmatmul.mubr.bf16.gmra.mrb[0].mxu0 %v2568
      %v2727 = vpop.f32.mrb[0].mxu0
      %v2728 = vadd.f32 0.0, %v2727
      %v2729 = vpop.f32.mrb[0].mxu0
      %v2730 = vpop.f32.mrb[0].mxu0
      %v2731 = vadd.f32 0.0, %v2730
      %v2732 = vpop.f32.mrb[0].mxu0
      %2733 = vdwg.mxu0
      %v2734 = vadd.f32 %v2528, %v2608
      %v2735 = vadd.f32 %v2529, %v2611
      %v2736 = vadd.f32 %v2530, %v2616
      %v2737 = vadd.f32 %v2531, %v2619
      %v2738 = vadd.f32 %v2532, %v2624
      %v2739 = vadd.f32 %v2533, %v2627
      %v2740 = vadd.f32 %v2534, %v2632
      %v2741 = vadd.f32 %v2535, %v2635
      %v2742 = vadd.f32 %v2536, %v2640
      %v2743 = vadd.f32 %v2537, %v2643
      %v2744 = vadd.f32 %v2538, %v2648
      %v2745 = vadd.f32 %v2539, %v2651
      %v2746 = vadd.f32 %v2540, %v2656
      %v2747 = vadd.f32 %v2541, %v2659
      %v2748 = vadd.f32 %v2542, %v2664
      %v2749 = vadd.f32 %v2543, %v2667
      %v2750 = vadd.f32 %v2544, %v2672
      %v2751 = vadd.f32 %v2545, %v2675
      %v2752 = vadd.f32 %v2546, %v2680
      %v2753 = vadd.f32 %v2547, %v2683
      %v2754 = vadd.f32 %v2548, %v2688
      %v2755 = vadd.f32 %v2549, %v2691
      %v2756 = vadd.f32 %v2550, %v2696
      %v2757 = vadd.f32 %v2551, %v2699
      %v2758 = vadd.f32 %v2552, %v2704
      %v2759 = vadd.f32 %v2553, %v2707
      %v2760 = vadd.f32 %v2554, %v2712
      %v2761 = vadd.f32 %v2555, %v2715
      %v2762 = vadd.f32 %v2556, %v2720
      %v2763 = vadd.f32 %v2557, %v2723
      %v2764 = vadd.f32 %v2558, %v2728
      %v2765 = vadd.f32 %v2559, %v2731
      %v2766 = vpack.c.bf16 %v2735, %v2734
      %v2767 = vpack.c.bf16 %v2737, %v2736
      %v2768 = vpack.c.bf16 %v2739, %v2738
      %v2769 = vpack.c.bf16 %v2741, %v2740
      %v2770 = vpack.c.bf16 %v2743, %v2742
      %v2771 = vpack.c.bf16 %v2745, %v2744
      %v2772 = vpack.c.bf16 %v2747, %v2746
      %v2773 = vpack.c.bf16 %v2749, %v2748
      %v2774 = vpack.c.bf16 %v2751, %v2750
      %v2775 = vpack.c.bf16 %v2753, %v2752
      %v2776 = vpack.c.bf16 %v2755, %v2754
      %v2777 = vpack.c.bf16 %v2757, %v2756
      %v2778 = vpack.c.bf16 %v2759, %v2758
      %v2779 = vpack.c.bf16 %v2761, %v2760
      %v2780 = vpack.c.bf16 %v2763, %v2762
      %v2781 = vpack.c.bf16 %v2765, %v2764
      %v2798 = vunpack.c.l.b16 %v2766
      %v2799 = vunpack.c.h.b16 %v2766
      %v2800 = vunpack.c.l.b16 %v2767
      %v2801 = vunpack.c.h.b16 %v2767
      %v2802 = vunpack.c.l.b16 %v2768
      %v2803 = vunpack.c.h.b16 %v2768
      %v2804 = vunpack.c.l.b16 %v2769
      %v2805 = vunpack.c.h.b16 %v2769
      %v2806 = vunpack.c.l.b16 %v2770
      %v2807 = vunpack.c.h.b16 %v2770
      %v2808 = vunpack.c.l.b16 %v2771
      %v2809 = vunpack.c.h.b16 %v2771
      %v2810 = vunpack.c.l.b16 %v2772
      %v2811 = vunpack.c.h.b16 %v2772
      %v2812 = vunpack.c.l.b16 %v2773
      %v2813 = vunpack.c.h.b16 %v2773
      %v2814 = vunpack.c.l.b16 %v2774
      %v2815 = vunpack.c.h.b16 %v2774
      %v2816 = vunpack.c.l.b16 %v2775
      %v2817 = vunpack.c.h.b16 %v2775
      %v2818 = vunpack.c.l.b16 %v2776
      %v2819 = vunpack.c.h.b16 %v2776
      %v2820 = vunpack.c.l.b16 %v2777
      %v2821 = vunpack.c.h.b16 %v2777
      %v2822 = vunpack.c.l.b16 %v2778
      %v2823 = vunpack.c.h.b16 %v2778
      %v2824 = vunpack.c.l.b16 %v2779
      %v2825 = vunpack.c.h.b16 %v2779
      %v2826 = vunpack.c.l.b16 %v2780
      %v2827 = vunpack.c.h.b16 %v2780
      %v2828 = vunpack.c.l.b16 %v2781
      %v2829 = vunpack.c.h.b16 %v2781
      %v2830 = vpack.c.b16 %v2798, %v2798
      %v2831 = vpack.c.b16 %v2799, %v2799
      %v2832 = vpack.c.b16 %v2800, %v2800
      %v2833 = vpack.c.b16 %v2801, %v2801
      %v2834 = vpack.c.b16 %v2802, %v2802
      %v2835 = vpack.c.b16 %v2803, %v2803
      %v2836 = vpack.c.b16 %v2804, %v2804
      %v2837 = vpack.c.b16 %v2805, %v2805
      %v2838 = vpack.c.b16 %v2806, %v2806
      %v2839 = vpack.c.b16 %v2807, %v2807
      %v2840 = vpack.c.b16 %v2808, %v2808
      %v2841 = vpack.c.b16 %v2809, %v2809
      %v2842 = vpack.c.b16 %v2810, %v2810
      %v2843 = vpack.c.b16 %v2811, %v2811
      %v2844 = vpack.c.b16 %v2812, %v2812
      %v2845 = vpack.c.b16 %v2813, %v2813
      %v2846 = vpack.c.b16 %v2814, %v2814
      %v2847 = vpack.c.b16 %v2815, %v2815
      %v2848 = vpack.c.b16 %v2816, %v2816
      %v2849 = vpack.c.b16 %v2817, %v2817
      %v2850 = vpack.c.b16 %v2818, %v2818
      %v2851 = vpack.c.b16 %v2819, %v2819
      %v2852 = vpack.c.b16 %v2820, %v2820
      %v2853 = vpack.c.b16 %v2821, %v2821
      %v2854 = vpack.c.b16 %v2822, %v2822
      %v2855 = vpack.c.b16 %v2823, %v2823
      %v2856 = vpack.c.b16 %v2824, %v2824
      %v2857 = vpack.c.b16 %v2825, %v2825
      %v2858 = vpack.c.b16 %v2826, %v2826
      %v2859 = vpack.c.b16 %v2827, %v2827
      %v2860 = vpack.c.b16 %v2828, %v2828
      %v2861 = vpack.c.b16 %v2829, %v2829
      %vm2894 = vcmask 27648
      %2895 = vst.msk [vmem:[%s264] sm:$0xf] %vm2894, %v2830
      %2896 = vst.msk [vmem:[%s264 + $0x4] sm:$0xf] %vm2894, %v2831
      %2897 = vst.msk [vmem:[%s264 + $0x8] sm:$0xf] %vm2894, %v2832
      %2898 = vst.msk [vmem:[%s264 + $0xc] sm:$0xf] %vm2894, %v2833
      %2899 = vst.msk [vmem:[%s264 + $0x10] sm:$0xf] %vm2894, %v2834
      %2900 = vst.msk [vmem:[%s264 + $0x14] sm:$0xf] %vm2894, %v2835
      %2901 = vst.msk [vmem:[%s264 + $0x18] sm:$0xf] %vm2894, %v2836
      %2902 = vst.msk [vmem:[%s264 + $0x1c] sm:$0xf] %vm2894, %v2837
      %2903 = vst.msk [vmem:[%s264 + $0x20] sm:$0xf] %vm2894, %v2838
      %2904 = vst.msk [vmem:[%s264 + $0x24] sm:$0xf] %vm2894, %v2839
      %2905 = vst.msk [vmem:[%s264 + $0x28] sm:$0xf] %vm2894, %v2840
      %2906 = vst.msk [vmem:[%s264 + $0x2c] sm:$0xf] %vm2894, %v2841
      %2907 = vst.msk [vmem:[%s264 + $0x30] sm:$0xf] %vm2894, %v2842
      %2908 = vst.msk [vmem:[%s264 + $0x34] sm:$0xf] %vm2894, %v2843
      %2909 = vst.msk [vmem:[%s264 + $0x38] sm:$0xf] %vm2894, %v2844
      %2910 = vst.msk [vmem:[%s264 + $0x3c] sm:$0xf] %vm2894, %v2845
      %2911 = vst.msk [vmem:[%s264 + $0x40] sm:$0xf] %vm2894, %v2846
      %2912 = vst.msk [vmem:[%s264 + $0x44] sm:$0xf] %vm2894, %v2847
      %2913 = vst.msk [vmem:[%s264 + $0x48] sm:$0xf] %vm2894, %v2848
      %2914 = vst.msk [vmem:[%s264 + $0x4c] sm:$0xf] %vm2894, %v2849
      %2915 = vst.msk [vmem:[%s264 + $0x50] sm:$0xf] %vm2894, %v2850
      %2916 = vst.msk [vmem:[%s264 + $0x54] sm:$0xf] %vm2894, %v2851
      %2917 = vst.msk [vmem:[%s264 + $0x58] sm:$0xf] %vm2894, %v2852
      %2918 = vst.msk [vmem:[%s264 + $0x5c] sm:$0xf] %vm2894, %v2853
      %2919 = vst.msk [vmem:[%s264 + $0x60] sm:$0xf] %vm2894, %v2854
      %2920 = vst.msk [vmem:[%s264 + $0x64] sm:$0xf] %vm2894, %v2855
      %2921 = vst.msk [vmem:[%s264 + $0x68] sm:$0xf] %vm2894, %v2856
      %2922 = vst.msk [vmem:[%s264 + $0x6c] sm:$0xf] %vm2894, %v2857
      %2923 = vst.msk [vmem:[%s264 + $0x70] sm:$0xf] %vm2894, %v2858
      %2924 = vst.msk [vmem:[%s264 + $0x74] sm:$0xf] %vm2894, %v2859
      %2925 = vst.msk [vmem:[%s264 + $0x78] sm:$0xf] %vm2894, %v2860
      %2926 = vst.msk [vmem:[%s264 + $0x7c] sm:$0xf] %vm2894, %v2861
      %vm2927 = vcmask 31744
      %v2928 = vsel %vm2927, %v2734, 0.0
      %v2929 = vsel %vm2927, %v2735, 0.0
      %v2930 = vadd.f32 %v2928, %v2929
      %v2931 = vsel %vm2927, %v2736, 0.0
      %v2932 = vadd.f32 %v2930, %v2931
      %v2933 = vsel %vm2927, %v2737, 0.0
      %v2934 = vadd.f32 %v2932, %v2933
      %v2935 = vsel %vm2927, %v2738, 0.0
      %v2936 = vadd.f32 %v2934, %v2935
      %v2937 = vsel %vm2927, %v2739, 0.0
      %v2938 = vadd.f32 %v2936, %v2937
      %v2939 = vsel %vm2927, %v2740, 0.0
      %v2940 = vadd.f32 %v2938, %v2939
      %v2941 = vsel %vm2927, %v2741, 0.0
      %v2942 = vadd.f32 %v2940, %v2941
      %v2943 = vsel %vm2927, %v2742, 0.0
      %v2944 = vadd.f32 %v2942, %v2943
      %v2945 = vsel %vm2927, %v2743, 0.0
      %v2946 = vadd.f32 %v2944, %v2945
      %v2947 = vsel %vm2927, %v2744, 0.0
      %v2948 = vadd.f32 %v2946, %v2947
      %v2949 = vsel %vm2927, %v2745, 0.0
      %v2950 = vadd.f32 %v2948, %v2949
      %v2951 = vsel %vm2927, %v2746, 0.0
      %v2952 = vadd.f32 %v2950, %v2951
      %v2953 = vsel %vm2927, %v2747, 0.0
      %v2954 = vadd.f32 %v2952, %v2953
      %v2955 = vsel %vm2927, %v2748, 0.0
      %v2956 = vadd.f32 %v2954, %v2955
      %v2957 = vsel %vm2927, %v2749, 0.0
      %v2958 = vadd.f32 %v2956, %v2957
      %v2959 = vsel %vm2927, %v2750, 0.0
      %v2960 = vadd.f32 %v2958, %v2959
      %v2961 = vsel %vm2927, %v2751, 0.0
      %v2962 = vadd.f32 %v2960, %v2961
      %v2963 = vsel %vm2927, %v2752, 0.0
      %v2964 = vadd.f32 %v2962, %v2963
      %v2965 = vsel %vm2927, %v2753, 0.0
      %v2966 = vadd.f32 %v2964, %v2965
      %v2967 = vsel %vm2927, %v2754, 0.0
      %v2968 = vadd.f32 %v2966, %v2967
      %v2969 = vsel %vm2927, %v2755, 0.0
      %v2970 = vadd.f32 %v2968, %v2969
      %v2971 = vsel %vm2927, %v2756, 0.0
      %v2972 = vadd.f32 %v2970, %v2971
      %v2973 = vsel %vm2927, %v2757, 0.0
      %v2974 = vadd.f32 %v2972, %v2973
      %v2975 = vsel %vm2927, %v2758, 0.0
      %v2976 = vadd.f32 %v2974, %v2975
      %v2977 = vsel %vm2927, %v2759, 0.0
      %v2978 = vadd.f32 %v2976, %v2977
      %v2979 = vsel %vm2927, %v2760, 0.0
      %v2980 = vadd.f32 %v2978, %v2979
      %v2981 = vsel %vm2927, %v2761, 0.0
      %v2982 = vadd.f32 %v2980, %v2981
      %v2983 = vsel %vm2927, %v2762, 0.0
      %v2984 = vadd.f32 %v2982, %v2983
      %v2985 = vsel %vm2927, %v2763, 0.0
      %v2986 = vadd.f32 %v2984, %v2985
      %v2987 = vsel %vm2927, %v2764, 0.0
      %v2988 = vadd.f32 %v2986, %v2987
      %v2989 = vsel %vm2927, %v2765, 0.0
      %v2990 = vadd.f32 %v2988, %v2989
      %2991 = vst.msk [vmem:[%s269] sm:$0xff] %vm2927, %v2990
      %v2992 = vmul.f32 %v2734, %v2734
      %v2993 = vmul.f32 %v2735, %v2735
      %v2994 = vmul.f32 %v2736, %v2736
      %v2995 = vmul.f32 %v2737, %v2737
      %v2996 = vmul.f32 %v2738, %v2738
      %v2997 = vmul.f32 %v2739, %v2739
      %v2998 = vmul.f32 %v2740, %v2740
      %v2999 = vmul.f32 %v2741, %v2741
      %v3000 = vmul.f32 %v2742, %v2742
      %v3001 = vmul.f32 %v2743, %v2743
      %v3002 = vmul.f32 %v2744, %v2744
      %v3003 = vmul.f32 %v2745, %v2745
      %v3004 = vmul.f32 %v2746, %v2746
      %v3005 = vmul.f32 %v2747, %v2747
      %v3006 = vmul.f32 %v2748, %v2748
      %v3007 = vmul.f32 %v2749, %v2749
      %v3008 = vmul.f32 %v2750, %v2750
      %v3009 = vmul.f32 %v2751, %v2751
      %v3010 = vmul.f32 %v2752, %v2752
      %v3011 = vmul.f32 %v2753, %v2753
      %v3012 = vmul.f32 %v2754, %v2754
      %v3013 = vmul.f32 %v2755, %v2755
      %v3014 = vmul.f32 %v2756, %v2756
      %v3015 = vmul.f32 %v2757, %v2757
      %v3016 = vmul.f32 %v2758, %v2758
      %v3017 = vmul.f32 %v2759, %v2759
      %v3018 = vmul.f32 %v2760, %v2760
      %v3019 = vmul.f32 %v2761, %v2761
      %v3020 = vmul.f32 %v2762, %v2762
      %v3021 = vmul.f32 %v2763, %v2763
      %v3022 = vmul.f32 %v2764, %v2764
      %v3023 = vmul.f32 %v2765, %v2765
      %v3024 = vsel %vm2927, %v2992, 0.0
      %v3025 = vsel %vm2927, %v2993, 0.0
      %v3026 = vadd.f32 %v3024, %v3025
      %v3027 = vsel %vm2927, %v2994, 0.0
      %v3028 = vadd.f32 %v3026, %v3027
      %v3029 = vsel %vm2927, %v2995, 0.0
      %v3030 = vadd.f32 %v3028, %v3029
      %v3031 = vsel %vm2927, %v2996, 0.0
      %v3032 = vadd.f32 %v3030, %v3031
      %v3033 = vsel %vm2927, %v2997, 0.0
      %v3034 = vadd.f32 %v3032, %v3033
      %v3035 = vsel %vm2927, %v2998, 0.0
      %v3036 = vadd.f32 %v3034, %v3035
      %v3037 = vsel %vm2927, %v2999, 0.0
      %v3038 = vadd.f32 %v3036, %v3037
      %v3039 = vsel %vm2927, %v3000, 0.0
      %v3040 = vadd.f32 %v3038, %v3039
      %v3041 = vsel %vm2927, %v3001, 0.0
      %v3042 = vadd.f32 %v3040, %v3041
      %v3043 = vsel %vm2927, %v3002, 0.0
      %v3044 = vadd.f32 %v3042, %v3043
      %v3045 = vsel %vm2927, %v3003, 0.0
      %v3046 = vadd.f32 %v3044, %v3045
      %v3047 = vsel %vm2927, %v3004, 0.0
      %v3048 = vadd.f32 %v3046, %v3047
      %v3049 = vsel %vm2927, %v3005, 0.0
      %v3050 = vadd.f32 %v3048, %v3049
      %v3051 = vsel %vm2927, %v3006, 0.0
      %v3052 = vadd.f32 %v3050, %v3051
      %v3053 = vsel %vm2927, %v3007, 0.0
      %v3054 = vadd.f32 %v3052, %v3053
      %v3055 = vsel %vm2927, %v3008, 0.0
      %v3056 = vadd.f32 %v3054, %v3055
      %v3057 = vsel %vm2927, %v3009, 0.0
      %v3058 = vadd.f32 %v3056, %v3057
      %v3059 = vsel %vm2927, %v3010, 0.0
      %v3060 = vadd.f32 %v3058, %v3059
      %v3061 = vsel %vm2927, %v3011, 0.0
      %v3062 = vadd.f32 %v3060, %v3061
      %v3063 = vsel %vm2927, %v3012, 0.0
      %v3064 = vadd.f32 %v3062, %v3063
      %v3065 = vsel %vm2927, %v3013, 0.0
      %v3066 = vadd.f32 %v3064, %v3065
      %v3067 = vsel %vm2927, %v3014, 0.0
      %v3068 = vadd.f32 %v3066, %v3067
      %v3069 = vsel %vm2927, %v3015, 0.0
      %v3070 = vadd.f32 %v3068, %v3069
      %v3071 = vsel %vm2927, %v3016, 0.0
      %v3072 = vadd.f32 %v3070, %v3071
      %v3073 = vsel %vm2927, %v3017, 0.0
      %v3074 = vadd.f32 %v3072, %v3073
      %v3075 = vsel %vm2927, %v3018, 0.0
      %v3076 = vadd.f32 %v3074, %v3075
      %v3077 = vsel %vm2927, %v3019, 0.0
      %v3078 = vadd.f32 %v3076, %v3077
      %v3079 = vsel %vm2927, %v3020, 0.0
      %v3080 = vadd.f32 %v3078, %v3079
      %v3081 = vsel %vm2927, %v3021, 0.0
      %v3082 = vadd.f32 %v3080, %v3081
      %v3083 = vsel %vm2927, %v3022, 0.0
      %v3084 = vadd.f32 %v3082, %v3083
      %v3085 = vsel %vm2927, %v3023, 0.0
      %v3086 = vadd.f32 %v3084, %v3085
      %3087 = vst.msk [vmem:[%s273] sm:$0xff] %vm2927, %v3086
      %s3088 = smul.u32 32, %s18
      %p3089 = scmp.lt.s32.totalorder %s3088, 63
      %s3090 = scalar_select %p3089, %s3088, 63
      %s3091 = smul.addr %s3090, 4
      %s3092 = scalar_lea.vmem %s4, %s3091
      %p3093 = scmp.lt.s32.totalorder %s18, 1
      %s3094 = scalar_select %p3093, %s18, 1
      %s3095 = smul.addr %s3094, 8
      %s3096 = scalar_lea.vmem %s5, %s3095
      %p3097 = scmp.lt.s32.totalorder %s18, 1
      %s3098 = scalar_select %p3097, %s18, 1
      %s3099 = smul.addr %s3098, 8
      %s3100 = scalar_lea.vmem %s6, %s3099
      // Predicated region
      $region37: #{upconvblock_forward.7} parent=35 // pred_check
        %p3101 = pneg %p125
      $region38: #{upconvblock_forward.7} parent=35 // pred_check_branch
        %3103 = sbr.rel (%p3101) target = $region40
      $region39: #{upconvblock_forward.7} parent=35 // pred_region
        %s3104 = smul.u32 32, %s18
      $region40: #{upconvblock_forward.7} parent=35 // pred_fallthru
        _
      // Predicated region
      $region41: #{upconvblock_forward.7} parent=35 // pred_check
        %p3105 = pneg %p151
      $region42: #{upconvblock_forward.7} parent=35 // pred_check_branch
        %3107 = sbr.rel (%p3105) target = $region44
      $region43: #{upconvblock_forward.7} parent=35 // pred_region
        _
      $region44: #{upconvblock_forward.7} parent=35 // pred_fallthru
        _
      // Predicated region
      $region45: #{upconvblock_forward.7} parent=35 // pred_check
        %p3108 = pneg %p177
      $region46: #{upconvblock_forward.7} parent=35 // pred_check_branch
        %3110 = sbr.rel (%p3108) target = $region48
      $region47: #{upconvblock_forward.7} parent=35 // pred_region
        _
      $region48: #{upconvblock_forward.7} parent=35 // pred_fallthru
        _
    $region36: #{upconvblock_forward.7} parent=5 // pred_fallthru
      _
    %p3111 = scmp.le.s32.totalorder 2, %s13
    // Predicated region
    $region49: #{upconvblock_forward.7} parent=5 // pred_check
      %p3112 = pneg %p3111
    $region50: #{upconvblock_forward.7} parent=5 // pred_check_branch
      %3114 = sbr.rel (%p3112) target = $region52
    $region51: #{upconvblock_forward.7} parent=5 // pred_region
      %s3115 = ssub.s32 %s13, 2
      // Predicated region
      $region53: #{upconvblock_forward.7} parent=51 // pred_check
        %p3116 = pneg %p131
      $region54: #{upconvblock_forward.7} parent=51 // pred_check_branch
        %3118 = sbr.rel (%p3116) target = $region56
      $region55: #{upconvblock_forward.7} parent=51 // pred_region
        %s3119 = smul.u32 32, %s19
        %p3120 = scmp.lt.s32.totalorder %s3119, 63
        %s3121 = scalar_select %p3120, %s3119, 63
        %s3122 = smul.addr %s3121, 4
        %s3123 = scalar_lea.vmem %s4, %s3122
      $region56: #{upconvblock_forward.7} parent=51 // pred_fallthru
        _
      // Predicated region
      $region57: #{upconvblock_forward.7} parent=51 // pred_check
        %p3124 = pneg %p157
      $region58: #{upconvblock_forward.7} parent=51 // pred_check_branch
        %3126 = sbr.rel (%p3124) target = $region60
      $region59: #{upconvblock_forward.7} parent=51 // pred_region
        %p3127 = scmp.lt.s32.totalorder %s19, 1
        %s3128 = scalar_select %p3127, %s19, 1
        %s3129 = smul.addr %s3128, 8
        %s3130 = scalar_lea.vmem %s5, %s3129
      $region60: #{upconvblock_forward.7} parent=51 // pred_fallthru
        _
      // Predicated region
      $region61: #{upconvblock_forward.7} parent=51 // pred_check
        %p3131 = pneg %p183
      $region62: #{upconvblock_forward.7} parent=51 // pred_check_branch
        %3133 = sbr.rel (%p3131) target = $region64
      $region63: #{upconvblock_forward.7} parent=51 // pred_region
        %p3134 = scmp.lt.s32.totalorder %s19, 1
        %s3135 = scalar_select %p3134, %s19, 1
        %s3136 = smul.addr %s3135, 8
        %s3137 = scalar_lea.vmem %s6, %s3136
      $region64: #{upconvblock_forward.7} parent=51 // pred_fallthru
        _
    $region52: #{upconvblock_forward.7} parent=5 // pred_fallthru
      _
  $region6: #{upconvblock_forward.7} parent=0 // loop_footer
    %s17 = sadd.s32 1, %s13
  $region7: #{upconvblock_forward.7} parent=0 // loop_footer_branch
    %12 = sbr.rel target = $region3
  $region8: #{upconvblock_forward.7} parent=0 // loop_exit
    _

// kernel: upconvblock_forward.8
$region0: #{upconvblock_forward.8}
  #allocation0 [shape = 'u32[]', space=smem, size = 0x4, offset = 0x4, fixed_abs, tag = 'smem constant byte address 0x4 - core index']
  #allocation1 [shape = 'u32[144,128]{1,0:T(1,128)}', space=vmem, size = 0x12000, scoped, tag = 'internal scratch']
  %s0 = inlined_call_operand.vmem [shape: bf16[2,18,18,4], index: 0, kind: input, shape index: {}]
  %s1 = inlined_call_operand.vmem [shape: bf16[9,4,4], index: 1, kind: input, shape index: {}]
  %s2 = inlined_call_operand.vmem [shape: f32[1,4], index: 2, kind: input, shape index: {}]
  %s3 = inlined_call_operand.vmem [shape: f32[1,4], index: 3, kind: input, shape index: {}]
  %s4 = inlined_call_operand.vmem [shape: f32[512,4], index: 4, kind: output, shape index: {0}]
  %s5 = inlined_call_operand.vmem [shape: f32[16,4], index: 5, kind: output, shape index: {1}]
  %s6 = inlined_call_operand.vmem [shape: f32[16,4], index: 6, kind: output, shape index: {2}]
  %7 = xla_tuple %s4, %s5, %s6
  %s8 = sld [smem:[#allocation0]]
  $region65: #{upconvblock_forward.8} parent=0
    _
  %s10 = ssub.s32 1, %s8
  %s11 = scalar_select 0, %s10, %s8
  loop: start=0, step=1, limit=4
  $region2: #{upconvblock_forward.8} parent=0 // loop_pre_header
    _
  $region3: #{upconvblock_forward.8} parent=0 // loop_header
    %s13 = sphi 0, %s17
    %p14 = scmp.ge.s32.totalorder %s13, 4
    %s23 = sphi 0, %s25
    %s26 = sphi 0, %s23
    %s27 = sphi 0, %s26
    %s43 = sphi 0, %s27
    %s47 = sphi 0, %s47
    %s49 = sphi 0, %s47
    %s50 = sphi 0, %s49
    %s64 = sphi 0, %s50
    %s68 = sphi 0, %s68
    %s70 = sphi 0, %s68
    %s71 = sphi 0, %s70
    %s85 = sphi 0, %s71
    %s89 = sphi 0, %s89
    %s91 = sphi 0, %s89
    %s92 = sphi 0, %s91
    %s106 = sphi 0, %s92
    %s112 = sphi 0, %s114
    %s115 = sphi 0, %s112
    %s116 = sphi 0, %s115
    %s132 = sphi 0, %s116
    %s138 = sphi 0, %s140
    %s141 = sphi 0, %s138
    %s142 = sphi 0, %s141
    %s158 = sphi 0, %s142
    %s164 = sphi 0, %s166
    %s167 = sphi 0, %s164
    %s168 = sphi 0, %s167
    %s184 = sphi 0, %s168
  $region4: #{upconvblock_forward.8} parent=0 // loop_header_branch
    %16 = sbr.rel (%p14) target = $region8
  $region5: #{upconvblock_forward.8} parent=0 // loop_body
    %s18 = ssub.s32 %s13, 1
    %s19 = ssub.s32 %s13, 2
    %s20 = sadd.s32 %s13, 1
    %s21 = ssub.s32 %s13, %s20
    %p22 = scmp.eq.s32.totalorder %s21, 0
    %s24 = sadd.s32 %s23, 1
    %s25 = scalar_select %p22, %s23, %s24
    %p28 = pneg %p22
    %p29 = scmp.eq.s32.totalorder %s13, 1
    %p30 = por %p28, %p29
    %p31 = scmp.ne.s32.totalorder %s23, %s26
    %p32 = scmp.eq.s32.totalorder %s13, 0
    %p33 = por %p31, %p32
    %p34 = scmp.ne.s32.totalorder %s23, %s26
    %p35 = scmp.eq.s32.totalorder %s18, 1
    %p36 = por %p34, %p35
    %p37 = scmp.ne.s32.totalorder %s26, %s27
    %p38 = scmp.eq.s32.totalorder %s18, 0
    %p39 = por %p37, %p38
    %p40 = scmp.ne.s32.totalorder %s26, %s27
    %p41 = scmp.eq.s32.totalorder %s19, 1
    %p42 = por %p40, %p41
    %p44 = scmp.ne.s32.totalorder %s27, %s43
    %p45 = scmp.eq.s32.totalorder %s19, 0
    %p46 = por %p44, %p45
    %s48 = sadd.s32 %s47, 1
    %p51 = scmp.eq.s32.totalorder %s13, 1
    %p52 = scmp.ne.s32.totalorder %s47, %s49
    %p53 = scmp.eq.s32.totalorder %s13, 0
    %p54 = por %p52, %p53
    %p55 = scmp.ne.s32.totalorder %s47, %s49
    %p56 = scmp.eq.s32.totalorder %s18, 1
    %p57 = por %p55, %p56
    %p58 = scmp.ne.s32.totalorder %s49, %s50
    %p59 = scmp.eq.s32.totalorder %s18, 0
    %p60 = por %p58, %p59
    %p61 = scmp.ne.s32.totalorder %s49, %s50
    %p62 = scmp.eq.s32.totalorder %s19, 1
    %p63 = por %p61, %p62
    %p65 = scmp.ne.s32.totalorder %s50, %s64
    %p66 = scmp.eq.s32.totalorder %s19, 0
    %p67 = por %p65, %p66
    %s69 = sadd.s32 %s68, 1
    %p72 = scmp.eq.s32.totalorder %s13, 1
    %p73 = scmp.ne.s32.totalorder %s68, %s70
    %p74 = scmp.eq.s32.totalorder %s13, 0
    %p75 = por %p73, %p74
    %p76 = scmp.ne.s32.totalorder %s68, %s70
    %p77 = scmp.eq.s32.totalorder %s18, 1
    %p78 = por %p76, %p77
    %p79 = scmp.ne.s32.totalorder %s70, %s71
    %p80 = scmp.eq.s32.totalorder %s18, 0
    %p81 = por %p79, %p80
    %p82 = scmp.ne.s32.totalorder %s70, %s71
    %p83 = scmp.eq.s32.totalorder %s19, 1
    %p84 = por %p82, %p83
    %p86 = scmp.ne.s32.totalorder %s71, %s85
    %p87 = scmp.eq.s32.totalorder %s19, 0
    %p88 = por %p86, %p87
    %s90 = sadd.s32 %s89, 1
    %p93 = scmp.eq.s32.totalorder %s13, 1
    %p94 = scmp.ne.s32.totalorder %s89, %s91
    %p95 = scmp.eq.s32.totalorder %s13, 0
    %p96 = por %p94, %p95
    %p97 = scmp.ne.s32.totalorder %s89, %s91
    %p98 = scmp.eq.s32.totalorder %s18, 1
    %p99 = por %p97, %p98
    %p100 = scmp.ne.s32.totalorder %s91, %s92
    %p101 = scmp.eq.s32.totalorder %s18, 0
    %p102 = por %p100, %p101
    %p103 = scmp.ne.s32.totalorder %s91, %s92
    %p104 = scmp.eq.s32.totalorder %s19, 1
    %p105 = por %p103, %p104
    %p107 = scmp.ne.s32.totalorder %s92, %s106
    %p108 = scmp.eq.s32.totalorder %s19, 0
    %p109 = por %p107, %p108
    %s110 = ssub.s32 %s13, %s20
    %p111 = scmp.eq.s32.totalorder %s110, 0
    %s113 = sadd.s32 %s112, 1
    %s114 = scalar_select %p111, %s112, %s113
    %p117 = pneg %p111
    %p118 = scmp.eq.s32.totalorder %s13, 1
    %p119 = por %p117, %p118
    %p120 = scmp.ne.s32.totalorder %s112, %s115
    %p121 = scmp.eq.s32.totalorder %s13, 0
    %p122 = por %p120, %p121
    %p123 = scmp.ne.s32.totalorder %s112, %s115
    %p124 = scmp.eq.s32.totalorder %s18, 1
    %p125 = por %p123, %p124
    %p126 = scmp.ne.s32.totalorder %s115, %s116
    %p127 = scmp.eq.s32.totalorder %s18, 0
    %p128 = por %p126, %p127
    %p129 = scmp.ne.s32.totalorder %s115, %s116
    %p130 = scmp.eq.s32.totalorder %s19, 1
    %p131 = por %p129, %p130
    %p133 = scmp.ne.s32.totalorder %s116, %s132
    %p134 = scmp.eq.s32.totalorder %s19, 0
    %p135 = por %p133, %p134
    %s136 = ssub.s32 %s13, %s20
    %p137 = scmp.eq.s32.totalorder %s136, 0
    %s139 = sadd.s32 %s138, 1
    %s140 = scalar_select %p137, %s138, %s139
    %p143 = pneg %p137
    %p144 = scmp.eq.s32.totalorder %s13, 1
    %p145 = por %p143, %p144
    %p146 = scmp.ne.s32.totalorder %s138, %s141
    %p147 = scmp.eq.s32.totalorder %s13, 0
    %p148 = por %p146, %p147
    %p149 = scmp.ne.s32.totalorder %s138, %s141
    %p150 = scmp.eq.s32.totalorder %s18, 1
    %p151 = por %p149, %p150
    %p152 = scmp.ne.s32.totalorder %s141, %s142
    %p153 = scmp.eq.s32.totalorder %s18, 0
    %p154 = por %p152, %p153
    %p155 = scmp.ne.s32.totalorder %s141, %s142
    %p156 = scmp.eq.s32.totalorder %s19, 1
    %p157 = por %p155, %p156
    %p159 = scmp.ne.s32.totalorder %s142, %s158
    %p160 = scmp.eq.s32.totalorder %s19, 0
    %p161 = por %p159, %p160
    %s162 = ssub.s32 %s13, %s20
    %p163 = scmp.eq.s32.totalorder %s162, 0
    %s165 = sadd.s32 %s164, 1
    %s166 = scalar_select %p163, %s164, %s165
    %p169 = pneg %p163
    %p170 = scmp.eq.s32.totalorder %s13, 1
    %p171 = por %p169, %p170
    %p172 = scmp.ne.s32.totalorder %s164, %s167
    %p173 = scmp.eq.s32.totalorder %s13, 0
    %p174 = por %p172, %p173
    %p175 = scmp.ne.s32.totalorder %s164, %s167
    %p176 = scmp.eq.s32.totalorder %s18, 1
    %p177 = por %p175, %p176
    %p178 = scmp.ne.s32.totalorder %s167, %s168
    %p179 = scmp.eq.s32.totalorder %s18, 0
    %p180 = por %p178, %p179
    %p181 = scmp.ne.s32.totalorder %s167, %s168
    %p182 = scmp.eq.s32.totalorder %s19, 1
    %p183 = por %p181, %p182
    %p185 = scmp.ne.s32.totalorder %s168, %s184
    %p186 = scmp.eq.s32.totalorder %s19, 0
    %p187 = por %p185, %p186
    %p188 = scmp.le.s32.totalorder 1, %s13
    %p189 = scmp.lt.s32.totalorder %s13, 3
    %p190 = pnand %p188, %p189
    %p191 = pneg %p190
    // Predicated region
    $region9: #{upconvblock_forward.8} parent=5 // pred_check
      _
    $region10: #{upconvblock_forward.8} parent=5 // pred_check_branch
      %193 = sbr.rel (%p190) target = $region12
    $region11: #{upconvblock_forward.8} parent=5 // pred_region
      %s194 = ssub.s32 %s13, 1
      // Predicated region
      $region13: #{upconvblock_forward.8} parent=11 // pred_check
        %p195 = pneg %p60
      $region14: #{upconvblock_forward.8} parent=11 // pred_check_branch
        %197 = sbr.rel (%p195) target = $region16
      $region15: #{upconvblock_forward.8} parent=11 // pred_region
        _
      $region16: #{upconvblock_forward.8} parent=11 // pred_fallthru
        _
      // Predicated region
      $region17: #{upconvblock_forward.8} parent=11 // pred_check
        %p198 = pneg %p81
      $region18: #{upconvblock_forward.8} parent=11 // pred_check_branch
        %200 = sbr.rel (%p198) target = $region20
      $region19: #{upconvblock_forward.8} parent=11 // pred_region
        _
      $region20: #{upconvblock_forward.8} parent=11 // pred_fallthru
        _
      // Predicated region
      $region21: #{upconvblock_forward.8} parent=11 // pred_check
        %p201 = pneg %p102
      $region22: #{upconvblock_forward.8} parent=11 // pred_check_branch
        %203 = sbr.rel (%p201) target = $region24
      $region23: #{upconvblock_forward.8} parent=11 // pred_region
        _
      $region24: #{upconvblock_forward.8} parent=11 // pred_fallthru
        _
    $region12: #{upconvblock_forward.8} parent=5 // pred_fallthru
      _
    %p204 = scmp.lt.s32.totalorder %s13, 2
    // Predicated region
    $region25: #{upconvblock_forward.8} parent=5 // pred_check
      %p205 = pneg %p204
    $region26: #{upconvblock_forward.8} parent=5 // pred_check_branch
      %207 = sbr.rel (%p205) target = $region28
    $region27: #{upconvblock_forward.8} parent=5 // pred_region
      // Predicated region
      $region29: #{upconvblock_forward.8} parent=27 // pred_check
        %p208 = pneg %p33
      $region30: #{upconvblock_forward.8} parent=27 // pred_check_branch
        %210 = sbr.rel (%p208) target = $region32
      $region31: #{upconvblock_forward.8} parent=27 // pred_region
        %p211 = scmp.lt.s32.totalorder %s13, 1
        %s212 = scalar_select %p211, %s13, 1
        %s213 = smul.addr %s212, 54
        %s214 = smul.addr %s213, 4
        %s215 = scalar_lea.vmem %s0, %s214
      $region32: #{upconvblock_forward.8} parent=27 // pred_fallthru
        _
    $region28: #{upconvblock_forward.8} parent=5 // pred_fallthru
      _
    %p216 = scmp.le.s32.totalorder 1, %s13
    %p217 = scmp.lt.s32.totalorder %s13, 3
    %p218 = pnand %p216, %p217
    %p219 = pneg %p218
    // Predicated region
    $region33: #{upconvblock_forward.8} parent=5 // pred_check
      _
    $region34: #{upconvblock_forward.8} parent=5 // pred_check_branch
      %221 = sbr.rel (%p218) target = $region36
    $region35: #{upconvblock_forward.8} parent=5 // pred_region
      %s222 = ssub.s32 %s13, 1
      %p223 = scmp.lt.s32.totalorder %s18, 1
      %s224 = scalar_select %p223, %s18, 1
      %s225 = smul.addr %s224, 54
      %s226 = smul.addr %s225, 4
      %s227 = scalar_lea.vmem %s0, %s226
      %p228 = pneg %p39
      %p229 = pneg %p36
      %p230 = pneg %p60
      %p231 = pneg %p57
      %p232 = pneg %p81
      %p233 = pneg %p78
      %p234 = pneg %p102
      %p235 = pneg %p99
      %p236 = pneg %p128
      %p237 = pneg %p125
      %s238 = smul.u32 32, %s18
      %p239 = scmp.lt.s32.totalorder %s238, 63
      %s240 = scalar_select %p239, %s238, 63
      %s241 = smul.addr %s240, 8
      %s242 = scalar_lea.vmem %s4, %s241
      %p243 = pneg %p154
      %p244 = pneg %p151
      %p245 = scmp.lt.s32.totalorder %s18, 1
      %s246 = scalar_select %p245, %s18, 1
      %s247 = smul.addr %s246, 8
      %s248 = scalar_lea.vmem %s5, %s247
      %p249 = pneg %p180
      %p250 = pneg %p177
      %p251 = scmp.lt.s32.totalorder %s18, 1
      %s252 = scalar_select %p251, %s18, 1
      %s253 = smul.addr %s252, 8
      %s254 = scalar_lea.vmem %s6, %s253
      %p255 = scmp.lt.s32.totalorder %s18, 1
      %s256 = scalar_select %p255, %s18, 1
      %s257 = smul.addr %s256, 54
      %s258 = smul.addr %s257, 4
      %s259 = scalar_lea.vmem %s0, %s258
      %s260 = smul.u32 32, %s18
      %p261 = scmp.lt.s32.totalorder %s260, 63
      %s262 = scalar_select %p261, %s260, 63
      %s263 = smul.addr %s262, 8
      %s264 = scalar_lea.vmem %s4, %s263
      %s265 = smul.u32 32, %s18
      %p266 = scmp.lt.s32.totalorder %s18, 1
      %s267 = scalar_select %p266, %s18, 1
      %s268 = smul.addr %s267, 8
      %s269 = scalar_lea.vmem %s5, %s268
      %p270 = scmp.lt.s32.totalorder %s18, 1
      %s271 = scalar_select %p270, %s18, 1
      %s272 = smul.addr %s271, 8
      %s273 = scalar_lea.vmem %s6, %s272
      %v275 = vld [vmem:[%s259] sm:$0xf]
      %v276 = vld [vmem:[%s259 + $0x4] sm:$0xf]
      %v277 = vld [vmem:[%s259 + $0x8] sm:$0x1]
      %v278 = vld [vmem:[%s259 + $0xc] sm:$0xf]
      %v279 = vld [vmem:[%s259 + $0x10] sm:$0xf]
      %v280 = vld [vmem:[%s259 + $0x14] sm:$0x1]
      %v281 = vld [vmem:[%s259 + $0x18] sm:$0xf]
      %v282 = vld [vmem:[%s259 + $0x1c] sm:$0xf]
      %v283 = vld [vmem:[%s259 + $0x20] sm:$0x1]
      %v284 = vld [vmem:[%s259 + $0x24] sm:$0xf]
      %v285 = vld [vmem:[%s259 + $0x28] sm:$0xf]
      %v286 = vld [vmem:[%s259 + $0x2c] sm:$0x1]
      %v287 = vld [vmem:[%s259 + $0x30] sm:$0xf]
      %v288 = vld [vmem:[%s259 + $0x34] sm:$0xf]
      %v289 = vld [vmem:[%s259 + $0x38] sm:$0x1]
      %v290 = vld [vmem:[%s259 + $0x3c] sm:$0xf]
      %v291 = vld [vmem:[%s259 + $0x40] sm:$0xf]
      %v292 = vld [vmem:[%s259 + $0x44] sm:$0x1]
      %v293 = vld [vmem:[%s259 + $0x48] sm:$0xf]
      %v294 = vld [vmem:[%s259 + $0x4c] sm:$0xf]
      %v295 = vld [vmem:[%s259 + $0x50] sm:$0x1]
      %v296 = vld [vmem:[%s259 + $0x54] sm:$0xf]
      %v297 = vld [vmem:[%s259 + $0x58] sm:$0xf]
      %v298 = vld [vmem:[%s259 + $0x5c] sm:$0x1]
      %v299 = vld [vmem:[%s259 + $0x60] sm:$0xf]
      %v300 = vld [vmem:[%s259 + $0x64] sm:$0xf]
      %v301 = vld [vmem:[%s259 + $0x68] sm:$0x1]
      %v302 = vld [vmem:[%s259 + $0x6c] sm:$0xf]
      %v303 = vld [vmem:[%s259 + $0x70] sm:$0xf]
      %v304 = vld [vmem:[%s259 + $0x74] sm:$0x1]
      %v305 = vld [vmem:[%s259 + $0x78] sm:$0xf]
      %v306 = vld [vmem:[%s259 + $0x7c] sm:$0xf]
      %v307 = vld [vmem:[%s259 + $0x80] sm:$0x1]
      %v308 = vld [vmem:[%s259 + $0x84] sm:$0xf]
      %v309 = vld [vmem:[%s259 + $0x88] sm:$0xf]
      %v310 = vld [vmem:[%s259 + $0x8c] sm:$0x1]
      %v311 = vld [vmem:[%s259 + $0x90] sm:$0xf]
      %v312 = vld [vmem:[%s259 + $0x94] sm:$0xf]
      %v313 = vld [vmem:[%s259 + $0x98] sm:$0x1]
      %v314 = vld [vmem:[%s259 + $0x9c] sm:$0xf]
      %v315 = vld [vmem:[%s259 + $0xa0] sm:$0xf]
      %v316 = vld [vmem:[%s259 + $0xa4] sm:$0x1]
      %v317 = vld [vmem:[%s259 + $0xa8] sm:$0xf]
      %v318 = vld [vmem:[%s259 + $0xac] sm:$0xf]
      %v319 = vld [vmem:[%s259 + $0xb0] sm:$0x1]
      %v320 = vld [vmem:[%s259 + $0xb4] sm:$0xf]
      %v321 = vld [vmem:[%s259 + $0xb8] sm:$0xf]
      %v322 = vld [vmem:[%s259 + $0xbc] sm:$0x1]
      %v323 = vld [vmem:[%s259 + $0xc0] sm:$0xf]
      %v324 = vld [vmem:[%s259 + $0xc4] sm:$0xf]
      %v325 = vld [vmem:[%s259 + $0xc8] sm:$0x1]
      %v326 = vld [vmem:[%s259 + $0xcc] sm:$0xf]
      %v327 = vld [vmem:[%s259 + $0xd0] sm:$0xf]
      %v328 = vld [vmem:[%s259 + $0xd4] sm:$0x1]
      %v329 = vld [vmem:[%s2] sm:$0x1]
      %v330 = vld [vmem:[%s3] sm:$0x1]
      %v331 = vunpack.c.l.bf16 %v275
      %v332 = vunpack.c.l.bf16 %v276
      %v333 = vunpack.c.l.bf16 %v277
      %v334 = vunpack.c.l.bf16 %v278
      %v335 = vunpack.c.l.bf16 %v279
      %v336 = vunpack.c.l.bf16 %v280
      %v337 = vunpack.c.l.bf16 %v281
      %v338 = vunpack.c.l.bf16 %v282
      %v339 = vunpack.c.l.bf16 %v283
      %v340 = vunpack.c.l.bf16 %v284
      %v341 = vunpack.c.l.bf16 %v285
      %v342 = vunpack.c.l.bf16 %v286
      %v343 = vunpack.c.l.bf16 %v287
      %v344 = vunpack.c.l.bf16 %v288
      %v345 = vunpack.c.l.bf16 %v289
      %v346 = vunpack.c.l.bf16 %v290
      %v347 = vunpack.c.l.bf16 %v291
      %v348 = vunpack.c.l.bf16 %v292
      %v349 = vunpack.c.l.bf16 %v293
      %v350 = vunpack.c.l.bf16 %v294
      %v351 = vunpack.c.l.bf16 %v295
      %v352 = vunpack.c.l.bf16 %v296
      %v353 = vunpack.c.l.bf16 %v297
      %v354 = vunpack.c.l.bf16 %v298
      %v355 = vunpack.c.l.bf16 %v299
      %v356 = vunpack.c.l.bf16 %v300
      %v357 = vunpack.c.l.bf16 %v301
      %v358 = vunpack.c.l.bf16 %v302
      %v359 = vunpack.c.l.bf16 %v303
      %v360 = vunpack.c.l.bf16 %v304
      %v361 = vunpack.c.l.bf16 %v305
      %v362 = vunpack.c.l.bf16 %v306
      %v363 = vunpack.c.l.bf16 %v307
      %v364 = vunpack.c.l.bf16 %v308
      %v365 = vunpack.c.l.bf16 %v309
      %v366 = vunpack.c.l.bf16 %v310
      %v367 = vunpack.c.l.bf16 %v311
      %v368 = vunpack.c.l.bf16 %v312
      %v369 = vunpack.c.l.bf16 %v313
      %v370 = vunpack.c.l.bf16 %v314
      %v371 = vunpack.c.l.bf16 %v315
      %v372 = vunpack.c.l.bf16 %v316
      %v373 = vunpack.c.l.bf16 %v317
      %v374 = vunpack.c.l.bf16 %v318
      %v375 = vunpack.c.l.bf16 %v319
      %v376 = vunpack.c.l.bf16 %v320
      %v377 = vunpack.c.l.bf16 %v321
      %v378 = vunpack.c.l.bf16 %v322
      %v379 = vunpack.c.l.bf16 %v323
      %v380 = vunpack.c.l.bf16 %v324
      %v381 = vunpack.c.l.bf16 %v325
      %v382 = vunpack.c.l.bf16 %v326
      %v383 = vunpack.c.l.bf16 %v327
      %v384 = vunpack.c.l.bf16 %v328
      %v386 = vlaneseq
      %v387 = vshrl.u32 %v386, 7
      %v388 = vsub.s32 0, %v387
      %v389 = vrot.slane %v329, %v388
      %v391 = vmul.f32 %v331, %v389
      %v392 = vmul.f32 %v332, %v389
      %v393 = vmul.f32 %v333, %v389
      %v394 = vmul.f32 %v334, %v389
      %v395 = vmul.f32 %v335, %v389
      %v396 = vmul.f32 %v336, %v389
      %v397 = vmul.f32 %v337, %v389
      %v398 = vmul.f32 %v338, %v389
      %v399 = vmul.f32 %v339, %v389
      %v400 = vmul.f32 %v340, %v389
      %v401 = vmul.f32 %v341, %v389
      %v402 = vmul.f32 %v342, %v389
      %v403 = vmul.f32 %v343, %v389
      %v404 = vmul.f32 %v344, %v389
      %v405 = vmul.f32 %v345, %v389
      %v406 = vmul.f32 %v346, %v389
      %v407 = vmul.f32 %v347, %v389
      %v408 = vmul.f32 %v348, %v389
      %v409 = vmul.f32 %v349, %v389
      %v410 = vmul.f32 %v350, %v389
      %v411 = vmul.f32 %v351, %v389
      %v412 = vmul.f32 %v352, %v389
      %v413 = vmul.f32 %v353, %v389
      %v414 = vmul.f32 %v354, %v389
      %v415 = vmul.f32 %v355, %v389
      %v416 = vmul.f32 %v356, %v389
      %v417 = vmul.f32 %v357, %v389
      %v418 = vmul.f32 %v358, %v389
      %v419 = vmul.f32 %v359, %v389
      %v420 = vmul.f32 %v360, %v389
      %v421 = vmul.f32 %v361, %v389
      %v422 = vmul.f32 %v362, %v389
      %v423 = vmul.f32 %v363, %v389
      %v424 = vmul.f32 %v364, %v389
      %v425 = vmul.f32 %v365, %v389
      %v426 = vmul.f32 %v366, %v389
      %v427 = vmul.f32 %v367, %v389
      %v428 = vmul.f32 %v368, %v389
      %v429 = vmul.f32 %v369, %v389
      %v430 = vmul.f32 %v370, %v389
      %v431 = vmul.f32 %v371, %v389
      %v432 = vmul.f32 %v372, %v389
      %v433 = vmul.f32 %v373, %v389
      %v434 = vmul.f32 %v374, %v389
      %v435 = vmul.f32 %v375, %v389
      %v436 = vmul.f32 %v376, %v389
      %v437 = vmul.f32 %v377, %v389
      %v438 = vmul.f32 %v378, %v389
      %v439 = vmul.f32 %v379, %v389
      %v440 = vmul.f32 %v380, %v389
      %v441 = vmul.f32 %v381, %v389
      %v442 = vmul.f32 %v382, %v389
      %v443 = vmul.f32 %v383, %v389
      %v444 = vmul.f32 %v384, %v389
      %v446 = vlaneseq
      %v447 = vshrl.u32 %v446, 7
      %v448 = vsub.s32 0, %v447
      %v449 = vrot.slane %v330, %v448
      %v451 = vadd.f32 %v391, %v449
      %v452 = vadd.f32 %v392, %v449
      %v453 = vadd.f32 %v393, %v449
      %v454 = vadd.f32 %v394, %v449
      %v455 = vadd.f32 %v395, %v449
      %v456 = vadd.f32 %v396, %v449
      %v457 = vadd.f32 %v397, %v449
      %v458 = vadd.f32 %v398, %v449
      %v459 = vadd.f32 %v399, %v449
      %v460 = vadd.f32 %v400, %v449
      %v461 = vadd.f32 %v401, %v449
      %v462 = vadd.f32 %v402, %v449
      %v463 = vadd.f32 %v403, %v449
      %v464 = vadd.f32 %v404, %v449
      %v465 = vadd.f32 %v405, %v449
      %v466 = vadd.f32 %v406, %v449
      %v467 = vadd.f32 %v407, %v449
      %v468 = vadd.f32 %v408, %v449
      %v469 = vadd.f32 %v409, %v449
      %v470 = vadd.f32 %v410, %v449
      %v471 = vadd.f32 %v411, %v449
      %v472 = vadd.f32 %v412, %v449
      %v473 = vadd.f32 %v413, %v449
      %v474 = vadd.f32 %v414, %v449
      %v475 = vadd.f32 %v415, %v449
      %v476 = vadd.f32 %v416, %v449
      %v477 = vadd.f32 %v417, %v449
      %v478 = vadd.f32 %v418, %v449
      %v479 = vadd.f32 %v419, %v449
      %v480 = vadd.f32 %v420, %v449
      %v481 = vadd.f32 %v421, %v449
      %v482 = vadd.f32 %v422, %v449
      %v483 = vadd.f32 %v423, %v449
      %v484 = vadd.f32 %v424, %v449
      %v485 = vadd.f32 %v425, %v449
      %v486 = vadd.f32 %v426, %v449
      %v487 = vadd.f32 %v427, %v449
      %v488 = vadd.f32 %v428, %v449
      %v489 = vadd.f32 %v429, %v449
      %v490 = vadd.f32 %v430, %v449
      %v491 = vadd.f32 %v431, %v449
      %v492 = vadd.f32 %v432, %v449
      %v493 = vadd.f32 %v433, %v449
      %v494 = vadd.f32 %v434, %v449
      %v495 = vadd.f32 %v435, %v449
      %v496 = vadd.f32 %v436, %v449
      %v497 = vadd.f32 %v437, %v449
      %v498 = vadd.f32 %v438, %v449
      %v499 = vadd.f32 %v439, %v449
      %v500 = vadd.f32 %v440, %v449
      %v501 = vadd.f32 %v441, %v449
      %v502 = vadd.f32 %v442, %v449
      %v503 = vadd.f32 %v443, %v449
      %v504 = vadd.f32 %v444, %v449
      %v505 = vmax.f32 %v451, 0.0
      %v506 = vmax.f32 %v452, 0.0
      %v507 = vmax.f32 %v453, 0.0
      %v508 = vmax.f32 %v454, 0.0
      %v509 = vmax.f32 %v455, 0.0
      %v510 = vmax.f32 %v456, 0.0
      %v511 = vmax.f32 %v457, 0.0
      %v512 = vmax.f32 %v458, 0.0
      %v513 = vmax.f32 %v459, 0.0
      %v514 = vmax.f32 %v460, 0.0
      %v515 = vmax.f32 %v461, 0.0
      %v516 = vmax.f32 %v462, 0.0
      %v517 = vmax.f32 %v463, 0.0
      %v518 = vmax.f32 %v464, 0.0
      %v519 = vmax.f32 %v465, 0.0
      %v520 = vmax.f32 %v466, 0.0
      %v521 = vmax.f32 %v467, 0.0
      %v522 = vmax.f32 %v468, 0.0
      %v523 = vmax.f32 %v469, 0.0
      %v524 = vmax.f32 %v470, 0.0
      %v525 = vmax.f32 %v471, 0.0
      %v526 = vmax.f32 %v472, 0.0
      %v527 = vmax.f32 %v473, 0.0
      %v528 = vmax.f32 %v474, 0.0
      %v529 = vmax.f32 %v475, 0.0
      %v530 = vmax.f32 %v476, 0.0
      %v531 = vmax.f32 %v477, 0.0
      %v532 = vmax.f32 %v478, 0.0
      %v533 = vmax.f32 %v479, 0.0
      %v534 = vmax.f32 %v480, 0.0
      %v535 = vmax.f32 %v481, 0.0
      %v536 = vmax.f32 %v482, 0.0
      %v537 = vmax.f32 %v483, 0.0
      %v538 = vmax.f32 %v484, 0.0
      %v539 = vmax.f32 %v485, 0.0
      %v540 = vmax.f32 %v486, 0.0
      %v541 = vmax.f32 %v487, 0.0
      %v542 = vmax.f32 %v488, 0.0
      %v543 = vmax.f32 %v489, 0.0
      %v544 = vmax.f32 %v490, 0.0
      %v545 = vmax.f32 %v491, 0.0
      %v546 = vmax.f32 %v492, 0.0
      %v547 = vmax.f32 %v493, 0.0
      %v548 = vmax.f32 %v494, 0.0
      %v549 = vmax.f32 %v495, 0.0
      %v550 = vmax.f32 %v496, 0.0
      %v551 = vmax.f32 %v497, 0.0
      %v552 = vmax.f32 %v498, 0.0
      %v553 = vmax.f32 %v499, 0.0
      %v554 = vmax.f32 %v500, 0.0
      %v555 = vmax.f32 %v501, 0.0
      %v556 = vmax.f32 %v502, 0.0
      %v557 = vmax.f32 %v503, 0.0
      %v558 = vmax.f32 %v504, 0.0
      %v559 = vpack.c.bf16 %v506, %v505
      %v560 = vpack.c.bf16 %v507, %v507
      %v561 = vpack.c.bf16 %v509, %v508
      %v562 = vpack.c.bf16 %v510, %v510
      %v563 = vpack.c.bf16 %v512, %v511
      %v564 = vpack.c.bf16 %v513, %v513
      %v565 = vpack.c.bf16 %v515, %v514
      %v566 = vpack.c.bf16 %v516, %v516
      %v567 = vpack.c.bf16 %v518, %v517
      %v568 = vpack.c.bf16 %v519, %v519
      %v569 = vpack.c.bf16 %v521, %v520
      %v570 = vpack.c.bf16 %v522, %v522
      %v571 = vpack.c.bf16 %v524, %v523
      %v572 = vpack.c.bf16 %v525, %v525
      %v573 = vpack.c.bf16 %v527, %v526
      %v574 = vpack.c.bf16 %v528, %v528
      %v575 = vpack.c.bf16 %v530, %v529
      %v576 = vpack.c.bf16 %v531, %v531
      %v577 = vpack.c.bf16 %v533, %v532
      %v578 = vpack.c.bf16 %v534, %v534
      %v579 = vpack.c.bf16 %v536, %v535
      %v580 = vpack.c.bf16 %v537, %v537
      %v581 = vpack.c.bf16 %v539, %v538
      %v582 = vpack.c.bf16 %v540, %v540
      %v583 = vpack.c.bf16 %v542, %v541
      %v584 = vpack.c.bf16 %v543, %v543
      %v585 = vpack.c.bf16 %v545, %v544
      %v586 = vpack.c.bf16 %v546, %v546
      %v587 = vpack.c.bf16 %v548, %v547
      %v588 = vpack.c.bf16 %v549, %v549
      %v589 = vpack.c.bf16 %v551, %v550
      %v590 = vpack.c.bf16 %v552, %v552
      %v591 = vpack.c.bf16 %v554, %v553
      %v592 = vpack.c.bf16 %v555, %v555
      %v593 = vpack.c.bf16 %v557, %v556
      %v594 = vpack.c.bf16 %v558, %v558
      %v595 = vld [vmem:[%s1] sm:$0x3]
      %vm596 = vsmask.f32 7424
      %v598 = vshrl.u32 %v559, 16
      %v600 = vshll.u32 %v559, 16
      %v602 = vrot.slane %v600, 1
      %v603 = vor.u32 %v598, %v602
      %v605 = vshll.u32 %v560, 16
      %v607 = vrot.slane %v605, 1
      %v608 = vsel %vm596, %v603, %v607
      %v610 = vshrl.u32 %v561, 16
      %v612 = vshll.u32 %v561, 16
      %v614 = vrot.slane %v612, 1
      %v615 = vor.u32 %v610, %v614
      %v617 = vshll.u32 %v562, 16
      %v619 = vrot.slane %v617, 1
      %v620 = vsel %vm596, %v615, %v619
      %v622 = vshrl.u32 %v563, 16
      %v624 = vshll.u32 %v563, 16
      %v626 = vrot.slane %v624, 1
      %v627 = vor.u32 %v622, %v626
      %v629 = vshll.u32 %v564, 16
      %v631 = vrot.slane %v629, 1
      %v632 = vsel %vm596, %v627, %v631
      %v634 = vshrl.u32 %v565, 16
      %v636 = vshll.u32 %v565, 16
      %v638 = vrot.slane %v636, 1
      %v639 = vor.u32 %v634, %v638
      %v641 = vshll.u32 %v566, 16
      %v643 = vrot.slane %v641, 1
      %v644 = vsel %vm596, %v639, %v643
      %v646 = vshrl.u32 %v567, 16
      %v648 = vshll.u32 %v567, 16
      %v650 = vrot.slane %v648, 1
      %v651 = vor.u32 %v646, %v650
      %v653 = vshll.u32 %v568, 16
      %v655 = vrot.slane %v653, 1
      %v656 = vsel %vm596, %v651, %v655
      %v658 = vshrl.u32 %v569, 16
      %v660 = vshll.u32 %v569, 16
      %v662 = vrot.slane %v660, 1
      %v663 = vor.u32 %v658, %v662
      %v665 = vshll.u32 %v570, 16
      %v667 = vrot.slane %v665, 1
      %v668 = vsel %vm596, %v663, %v667
      %v670 = vshrl.u32 %v571, 16
      %v672 = vshll.u32 %v571, 16
      %v674 = vrot.slane %v672, 1
      %v675 = vor.u32 %v670, %v674
      %v677 = vshll.u32 %v572, 16
      %v679 = vrot.slane %v677, 1
      %v680 = vsel %vm596, %v675, %v679
      %v682 = vshrl.u32 %v573, 16
      %v684 = vshll.u32 %v573, 16
      %v686 = vrot.slane %v684, 1
      %v687 = vor.u32 %v682, %v686
      %v689 = vshll.u32 %v574, 16
      %v691 = vrot.slane %v689, 1
      %v692 = vsel %vm596, %v687, %v691
      %v694 = vshrl.u32 %v575, 16
      %v696 = vshll.u32 %v575, 16
      %v698 = vrot.slane %v696, 1
      %v699 = vor.u32 %v694, %v698
      %v701 = vshll.u32 %v576, 16
      %v703 = vrot.slane %v701, 1
      %v704 = vsel %vm596, %v699, %v703
      %v706 = vshrl.u32 %v577, 16
      %v708 = vshll.u32 %v577, 16
      %v710 = vrot.slane %v708, 1
      %v711 = vor.u32 %v706, %v710
      %v713 = vshll.u32 %v578, 16
      %v715 = vrot.slane %v713, 1
      %v716 = vsel %vm596, %v711, %v715
      %v718 = vshrl.u32 %v579, 16
      %v720 = vshll.u32 %v579, 16
      %v722 = vrot.slane %v720, 1
      %v723 = vor.u32 %v718, %v722
      %v725 = vshll.u32 %v580, 16
      %v727 = vrot.slane %v725, 1
      %v728 = vsel %vm596, %v723, %v727
      %v730 = vshrl.u32 %v581, 16
      %v732 = vshll.u32 %v581, 16
      %v734 = vrot.slane %v732, 1
      %v735 = vor.u32 %v730, %v734
      %v737 = vshll.u32 %v582, 16
      %v739 = vrot.slane %v737, 1
      %v740 = vsel %vm596, %v735, %v739
      %v742 = vshrl.u32 %v583, 16
      %v744 = vshll.u32 %v583, 16
      %v746 = vrot.slane %v744, 1
      %v747 = vor.u32 %v742, %v746
      %v749 = vshll.u32 %v584, 16
      %v751 = vrot.slane %v749, 1
      %v752 = vsel %vm596, %v747, %v751
      %v754 = vshrl.u32 %v585, 16
      %v756 = vshll.u32 %v585, 16
      %v758 = vrot.slane %v756, 1
      %v759 = vor.u32 %v754, %v758
      %v761 = vshll.u32 %v586, 16
      %v763 = vrot.slane %v761, 1
      %v764 = vsel %vm596, %v759, %v763
      %v766 = vshrl.u32 %v587, 16
      %v768 = vshll.u32 %v587, 16
      %v770 = vrot.slane %v768, 1
      %v771 = vor.u32 %v766, %v770
      %v773 = vshll.u32 %v588, 16
      %v775 = vrot.slane %v773, 1
      %v776 = vsel %vm596, %v771, %v775
      %v778 = vshrl.u32 %v589, 16
      %v780 = vshll.u32 %v589, 16
      %v782 = vrot.slane %v780, 1
      %v783 = vor.u32 %v778, %v782
      %v785 = vshll.u32 %v590, 16
      %v787 = vrot.slane %v785, 1
      %v788 = vsel %vm596, %v783, %v787
      %s789 = scalar_lea.vmem %s1, 2
      %v790 = vld [vmem:[%s789] sm:$0x3]
      %vm791 = vcmask 31744
      %v793 = vsel %vm791, %v608, 0
      %v796 = vsel %vm791, %v620, 0
      %v799 = vsel %vm791, %v632, 0
      %v802 = vsel %vm791, %v644, 0
      %v805 = vsel %vm791, %v656, 0
      %v808 = vsel %vm791, %v668, 0
      %v811 = vsel %vm791, %v680, 0
      %v814 = vsel %vm791, %v692, 0
      %v817 = vsel %vm791, %v704, 0
      %v820 = vsel %vm791, %v716, 0
      %v823 = vsel %vm791, %v728, 0
      %v826 = vsel %vm791, %v740, 0
      %v829 = vsel %vm791, %v752, 0
      %v832 = vsel %vm791, %v764, 0
      %v835 = vsel %vm791, %v776, 0
      %v838 = vsel %vm791, %v788, 0
      %vm840 = vcmask 1041408
      %v842 = vsel %vm840, %v790, 0
      %844 = vmatprep.subr.bf16.mxu0 0
      %845 = vmatpush1.bf16.msra.mxu0 %v842
      %846 = vmatprep.subr.bf16.mxu0 0
      %847 = vmatpush1.bf16.msra.mxu0 0
      %848 = vmatprep.subr.bf16.mxu0 0
      %849 = vmatpush1.bf16.msra.mxu0 0
      %850 = vmatprep.subr.bf16.mxu0 0
      %851 = vmatpush1.bf16.msra.mxu0 0
      %852 = vmatprep.subr.bf16.mxu0 0
      %853 = vmatpush1.bf16.msra.mxu0 0
      %854 = vmatprep.subr.bf16.mxu0 0
      %855 = vmatpush1.bf16.msra.mxu0 0
      %856 = vmatprep.subr.bf16.mxu0 0
      %857 = vmatpush1.bf16.msra.mxu0 0
      %858 = vmatprep.subr.bf16.mxu0 0
      %859 = vmatpush1.bf16.msra.mxu0 0
      %860 = vmatprep.subr.bf16.mxu0 0
      %861 = vmatpush1.bf16.msra.mxu0 0
      %862 = vmatprep.subr.bf16.mxu0 0
      %863 = vmatpush1.bf16.msra.mxu0 0
      %864 = vmatprep.subr.bf16.mxu0 0
      %865 = vmatpush1.bf16.msra.mxu0 0
      %866 = vmatprep.subr.bf16.mxu0 0
      %867 = vmatpush1.bf16.msra.mxu0 0
      %868 = vmatprep.subr.bf16.mxu0 0
      %869 = vmatpush1.bf16.msra.mxu0 0
      %870 = vmatprep.subr.bf16.mxu0 0
      %871 = vmatpush1.bf16.msra.mxu0 0
      %872 = vmatprep.subr.bf16.mxu0 0
      %873 = vmatpush1.bf16.msra.mxu0 0
      %874 = vmatprep.subr.bf16.mxu0 0
      %875 = vmatpush1.bf16.msra.mxu0 0
      %876 = vmatprep.mubr.bf16.mxu0 0
      %877 = vmatmul.mubr.bf16.gmra.mrb[0].mxu0 %v793
      %v878 = vpop.f32.mrb[0].mxu0
      %v879 = vadd.f32 0.0, %v878
      %v880 = vpop.f32.mrb[0].mxu0
      %v881 = vpop.f32.mrb[0].mxu0
      %v882 = vadd.f32 0.0, %v881
      %v883 = vpop.f32.mrb[0].mxu0
      %884 = vmatprep.mubr.bf16.mxu0 0
      %885 = vmatmul.mubr.bf16.gmra.mrb[0].mxu0 %v796
      %v886 = vpop.f32.mrb[0].mxu0
      %v887 = vadd.f32 0.0, %v886
      %v888 = vpop.f32.mrb[0].mxu0
      %v889 = vpop.f32.mrb[0].mxu0
      %v890 = vadd.f32 0.0, %v889
      %v891 = vpop.f32.mrb[0].mxu0
      %892 = vmatprep.mubr.bf16.mxu0 0
      %893 = vmatmul.mubr.bf16.gmra.mrb[0].mxu0 %v799
      %v894 = vpop.f32.mrb[0].mxu0
      %v895 = vadd.f32 0.0, %v894
      %v896 = vpop.f32.mrb[0].mxu0
      %v897 = vpop.f32.mrb[0].mxu0
      %v898 = vadd.f32 0.0, %v897
      %v899 = vpop.f32.mrb[0].mxu0
      %900 = vmatprep.mubr.bf16.mxu0 0
      %901 = vmatmul.mubr.bf16.gmra.mrb[0].mxu0 %v802
      %v902 = vpop.f32.mrb[0].mxu0
      %v903 = vadd.f32 0.0, %v902
      %v904 = vpop.f32.mrb[0].mxu0
      %v905 = vpop.f32.mrb[0].mxu0
      %v906 = vadd.f32 0.0, %v905
      %v907 = vpop.f32.mrb[0].mxu0
      %908 = vmatprep.mubr.bf16.mxu0 0
      %909 = vmatmul.mubr.bf16.gmra.mrb[0].mxu0 %v805
      %v910 = vpop.f32.mrb[0].mxu0
      %v911 = vadd.f32 0.0, %v910
      %v912 = vpop.f32.mrb[0].mxu0
      %v913 = vpop.f32.mrb[0].mxu0
      %v914 = vadd.f32 0.0, %v913
      %v915 = vpop.f32.mrb[0].mxu0
      %916 = vmatprep.mubr.bf16.mxu0 0
      %917 = vmatmul.mubr.bf16.gmra.mrb[0].mxu0 %v808
      %v918 = vpop.f32.mrb[0].mxu0
      %v919 = vadd.f32 0.0, %v918
      %v920 = vpop.f32.mrb[0].mxu0
      %v921 = vpop.f32.mrb[0].mxu0
      %v922 = vadd.f32 0.0, %v921
      %v923 = vpop.f32.mrb[0].mxu0
      %924 = vmatprep.mubr.bf16.mxu0 0
      %925 = vmatmul.mubr.bf16.gmra.mrb[0].mxu0 %v811
      %v926 = vpop.f32.mrb[0].mxu0
      %v927 = vadd.f32 0.0, %v926
      %v928 = vpop.f32.mrb[0].mxu0
      %v929 = vpop.f32.mrb[0].mxu0
      %v930 = vadd.f32 0.0, %v929
      %v931 = vpop.f32.mrb[0].mxu0
      %932 = vmatprep.mubr.bf16.mxu0 0
      %933 = vmatmul.mubr.bf16.gmra.mrb[0].mxu0 %v814
      %v934 = vpop.f32.mrb[0].mxu0
      %v935 = vadd.f32 0.0, %v934
      %v936 = vpop.f32.mrb[0].mxu0
      %v937 = vpop.f32.mrb[0].mxu0
      %v938 = vadd.f32 0.0, %v937
      %v939 = vpop.f32.mrb[0].mxu0
      %940 = vmatprep.mubr.bf16.mxu0 0
      %941 = vmatmul.mubr.bf16.gmra.mrb[0].mxu0 %v817
      %v942 = vpop.f32.mrb[0].mxu0
      %v943 = vadd.f32 0.0, %v942
      %v944 = vpop.f32.mrb[0].mxu0
      %v945 = vpop.f32.mrb[0].mxu0
      %v946 = vadd.f32 0.0, %v945
      %v947 = vpop.f32.mrb[0].mxu0
      %948 = vmatprep.mubr.bf16.mxu0 0
      %949 = vmatmul.mubr.bf16.gmra.mrb[0].mxu0 %v820
      %v950 = vpop.f32.mrb[0].mxu0
      %v951 = vadd.f32 0.0, %v950
      %v952 = vpop.f32.mrb[0].mxu0
      %v953 = vpop.f32.mrb[0].mxu0
      %v954 = vadd.f32 0.0, %v953
      %v955 = vpop.f32.mrb[0].mxu0
      %956 = vmatprep.mubr.bf16.mxu0 0
      %957 = vmatmul.mubr.bf16.gmra.mrb[0].mxu0 %v823
      %v958 = vpop.f32.mrb[0].mxu0
      %v959 = vadd.f32 0.0, %v958
      %v960 = vpop.f32.mrb[0].mxu0
      %v961 = vpop.f32.mrb[0].mxu0
      %v962 = vadd.f32 0.0, %v961
      %v963 = vpop.f32.mrb[0].mxu0
      %964 = vmatprep.mubr.bf16.mxu0 0
      %965 = vmatmul.mubr.bf16.gmra.mrb[0].mxu0 %v826
      %v966 = vpop.f32.mrb[0].mxu0
      %v967 = vadd.f32 0.0, %v966
      %v968 = vpop.f32.mrb[0].mxu0
      %v969 = vpop.f32.mrb[0].mxu0
      %v970 = vadd.f32 0.0, %v969
      %v971 = vpop.f32.mrb[0].mxu0
      %972 = vmatprep.mubr.bf16.mxu0 0
      %973 = vmatmul.mubr.bf16.gmra.mrb[0].mxu0 %v829
      %v974 = vpop.f32.mrb[0].mxu0
      %v975 = vadd.f32 0.0, %v974
      %v976 = vpop.f32.mrb[0].mxu0
      %v977 = vpop.f32.mrb[0].mxu0
      %v978 = vadd.f32 0.0, %v977
      %v979 = vpop.f32.mrb[0].mxu0
      %980 = vmatprep.mubr.bf16.mxu0 0
      %981 = vmatmul.mubr.bf16.gmra.mrb[0].mxu0 %v832
      %v982 = vpop.f32.mrb[0].mxu0
      %v983 = vadd.f32 0.0, %v982
      %v984 = vpop.f32.mrb[0].mxu0
      %v985 = vpop.f32.mrb[0].mxu0
      %v986 = vadd.f32 0.0, %v985
      %v987 = vpop.f32.mrb[0].mxu0
      %988 = vmatprep.mubr.bf16.mxu0 0
      %989 = vmatmul.mubr.bf16.gmra.mrb[0].mxu0 %v835
      %v990 = vpop.f32.mrb[0].mxu0
      %v991 = vadd.f32 0.0, %v990
      %v992 = vpop.f32.mrb[0].mxu0
      %v993 = vpop.f32.mrb[0].mxu0
      %v994 = vadd.f32 0.0, %v993
      %v995 = vpop.f32.mrb[0].mxu0
      %996 = vmatprep.mubr.bf16.mxu0 0
      %997 = vmatmul.mubr.bf16.gmra.mrb[0].mxu0 %v838
      %v998 = vpop.f32.mrb[0].mxu0
      %v999 = vadd.f32 0.0, %v998
      %v1000 = vpop.f32.mrb[0].mxu0
      %v1001 = vpop.f32.mrb[0].mxu0
      %v1002 = vadd.f32 0.0, %v1001
      %v1003 = vpop.f32.mrb[0].mxu0
      %1004 = vdwg.mxu0
      %v1005 = vsel %vm791, %v559, 0
      %v1007 = vsel %vm791, %v561, 0
      %v1009 = vsel %vm791, %v563, 0
      %v1011 = vsel %vm791, %v565, 0
      %v1013 = vsel %vm791, %v567, 0
      %v1015 = vsel %vm791, %v569, 0
      %v1017 = vsel %vm791, %v571, 0
      %v1019 = vsel %vm791, %v573, 0
      %v1021 = vsel %vm791, %v575, 0
      %v1023 = vsel %vm791, %v577, 0
      %v1025 = vsel %vm791, %v579, 0
      %v1027 = vsel %vm791, %v581, 0
      %v1029 = vsel %vm791, %v583, 0
      %v1031 = vsel %vm791, %v585, 0
      %v1033 = vsel %vm791, %v587, 0
      %v1035 = vsel %vm791, %v589, 0
      %v1038 = vsel %vm840, %v595, 0
      %1040 = vmatprep.subr.bf16.mxu0 0
      %1041 = vmatpush1.bf16.msra.mxu0 %v1038
      %1042 = vmatprep.subr.bf16.mxu0 0
      %1043 = vmatpush1.bf16.msra.mxu0 0
      %1044 = vmatprep.subr.bf16.mxu0 0
      %1045 = vmatpush1.bf16.msra.mxu0 0
      %1046 = vmatprep.subr.bf16.mxu0 0
      %1047 = vmatpush1.bf16.msra.mxu0 0
      %1048 = vmatprep.subr.bf16.mxu0 0
      %1049 = vmatpush1.bf16.msra.mxu0 0
      %1050 = vmatprep.subr.bf16.mxu0 0
      %1051 = vmatpush1.bf16.msra.mxu0 0
      %1052 = vmatprep.subr.bf16.mxu0 0
      %1053 = vmatpush1.bf16.msra.mxu0 0
      %1054 = vmatprep.subr.bf16.mxu0 0
      %1055 = vmatpush1.bf16.msra.mxu0 0
      %1056 = vmatprep.subr.bf16.mxu0 0
      %1057 = vmatpush1.bf16.msra.mxu0 0
      %1058 = vmatprep.subr.bf16.mxu0 0
      %1059 = vmatpush1.bf16.msra.mxu0 0
      %1060 = vmatprep.subr.bf16.mxu0 0
      %1061 = vmatpush1.bf16.msra.mxu0 0
      %1062 = vmatprep.subr.bf16.mxu0 0
      %1063 = vmatpush1.bf16.msra.mxu0 0
      %1064 = vmatprep.subr.bf16.mxu0 0
      %1065 = vmatpush1.bf16.msra.mxu0 0
      %1066 = vmatprep.subr.bf16.mxu0 0
      %1067 = vmatpush1.bf16.msra.mxu0 0
      %1068 = vmatprep.subr.bf16.mxu0 0
      %1069 = vmatpush1.bf16.msra.mxu0 0
      %1070 = vmatprep.subr.bf16.mxu0 0
      %1071 = vmatpush1.bf16.msra.mxu0 0
      %1072 = vmatprep.mubr.bf16.mxu0 0
      %1073 = vmatmul.mubr.bf16.gmra.mrb[0].mxu0 %v1005
      %v1074 = vpop.f32.mrb[0].mxu0
      %v1075 = vadd.f32 %v879, %v1074
      %v1076 = vpop.f32.mrb[0].mxu0
      %v1077 = vpop.f32.mrb[0].mxu0
      %v1078 = vadd.f32 %v882, %v1077
      %v1079 = vpop.f32.mrb[0].mxu0
      %1080 = vmatprep.mubr.bf16.mxu0 0
      %1081 = vmatmul.mubr.bf16.gmra.mrb[0].mxu0 %v1007
      %v1082 = vpop.f32.mrb[0].mxu0
      %v1083 = vadd.f32 %v887, %v1082
      %v1084 = vpop.f32.mrb[0].mxu0
      %v1085 = vpop.f32.mrb[0].mxu0
      %v1086 = vadd.f32 %v890, %v1085
      %v1087 = vpop.f32.mrb[0].mxu0
      %1088 = vmatprep.mubr.bf16.mxu0 0
      %1089 = vmatmul.mubr.bf16.gmra.mrb[0].mxu0 %v1009
      %v1090 = vpop.f32.mrb[0].mxu0
      %v1091 = vadd.f32 %v895, %v1090
      %v1092 = vpop.f32.mrb[0].mxu0
      %v1093 = vpop.f32.mrb[0].mxu0
      %v1094 = vadd.f32 %v898, %v1093
      %v1095 = vpop.f32.mrb[0].mxu0
      %1096 = vmatprep.mubr.bf16.mxu0 0
      %1097 = vmatmul.mubr.bf16.gmra.mrb[0].mxu0 %v1011
      %v1098 = vpop.f32.mrb[0].mxu0
      %v1099 = vadd.f32 %v903, %v1098
      %v1100 = vpop.f32.mrb[0].mxu0
      %v1101 = vpop.f32.mrb[0].mxu0
      %v1102 = vadd.f32 %v906, %v1101
      %v1103 = vpop.f32.mrb[0].mxu0
      %1104 = vmatprep.mubr.bf16.mxu0 0
      %1105 = vmatmul.mubr.bf16.gmra.mrb[0].mxu0 %v1013
      %v1106 = vpop.f32.mrb[0].mxu0
      %v1107 = vadd.f32 %v911, %v1106
      %v1108 = vpop.f32.mrb[0].mxu0
      %v1109 = vpop.f32.mrb[0].mxu0
      %v1110 = vadd.f32 %v914, %v1109
      %v1111 = vpop.f32.mrb[0].mxu0
      %1112 = vmatprep.mubr.bf16.mxu0 0
      %1113 = vmatmul.mubr.bf16.gmra.mrb[0].mxu0 %v1015
      %v1114 = vpop.f32.mrb[0].mxu0
      %v1115 = vadd.f32 %v919, %v1114
      %v1116 = vpop.f32.mrb[0].mxu0
      %v1117 = vpop.f32.mrb[0].mxu0
      %v1118 = vadd.f32 %v922, %v1117
      %v1119 = vpop.f32.mrb[0].mxu0
      %1120 = vmatprep.mubr.bf16.mxu0 0
      %1121 = vmatmul.mubr.bf16.gmra.mrb[0].mxu0 %v1017
      %v1122 = vpop.f32.mrb[0].mxu0
      %v1123 = vadd.f32 %v927, %v1122
      %v1124 = vpop.f32.mrb[0].mxu0
      %v1125 = vpop.f32.mrb[0].mxu0
      %v1126 = vadd.f32 %v930, %v1125
      %v1127 = vpop.f32.mrb[0].mxu0
      %1128 = vmatprep.mubr.bf16.mxu0 0
      %1129 = vmatmul.mubr.bf16.gmra.mrb[0].mxu0 %v1019
      %v1130 = vpop.f32.mrb[0].mxu0
      %v1131 = vadd.f32 %v935, %v1130
      %v1132 = vpop.f32.mrb[0].mxu0
      %v1133 = vpop.f32.mrb[0].mxu0
      %v1134 = vadd.f32 %v938, %v1133
      %v1135 = vpop.f32.mrb[0].mxu0
      %1136 = vmatprep.mubr.bf16.mxu0 0
      %1137 = vmatmul.mubr.bf16.gmra.mrb[0].mxu0 %v1021
      %v1138 = vpop.f32.mrb[0].mxu0
      %v1139 = vadd.f32 %v943, %v1138
      %v1140 = vpop.f32.mrb[0].mxu0
      %v1141 = vpop.f32.mrb[0].mxu0
      %v1142 = vadd.f32 %v946, %v1141
      %v1143 = vpop.f32.mrb[0].mxu0
      %1144 = vmatprep.mubr.bf16.mxu0 0
      %1145 = vmatmul.mubr.bf16.gmra.mrb[0].mxu0 %v1023
      %v1146 = vpop.f32.mrb[0].mxu0
      %v1147 = vadd.f32 %v951, %v1146
      %v1148 = vpop.f32.mrb[0].mxu0
      %v1149 = vpop.f32.mrb[0].mxu0
      %v1150 = vadd.f32 %v954, %v1149
      %v1151 = vpop.f32.mrb[0].mxu0
      %1152 = vmatprep.mubr.bf16.mxu0 0
      %1153 = vmatmul.mubr.bf16.gmra.mrb[0].mxu0 %v1025
      %v1154 = vpop.f32.mrb[0].mxu0
      %v1155 = vadd.f32 %v959, %v1154
      %v1156 = vpop.f32.mrb[0].mxu0
      %v1157 = vpop.f32.mrb[0].mxu0
      %v1158 = vadd.f32 %v962, %v1157
      %v1159 = vpop.f32.mrb[0].mxu0
      %1160 = vmatprep.mubr.bf16.mxu0 0
      %1161 = vmatmul.mubr.bf16.gmra.mrb[0].mxu0 %v1027
      %v1162 = vpop.f32.mrb[0].mxu0
      %v1163 = vadd.f32 %v967, %v1162
      %v1164 = vpop.f32.mrb[0].mxu0
      %v1165 = vpop.f32.mrb[0].mxu0
      %v1166 = vadd.f32 %v970, %v1165
      %v1167 = vpop.f32.mrb[0].mxu0
      %1168 = vmatprep.mubr.bf16.mxu0 0
      %1169 = vmatmul.mubr.bf16.gmra.mrb[0].mxu0 %v1029
      %v1170 = vpop.f32.mrb[0].mxu0
      %v1171 = vadd.f32 %v975, %v1170
      %v1172 = vpop.f32.mrb[0].mxu0
      %v1173 = vpop.f32.mrb[0].mxu0
      %v1174 = vadd.f32 %v978, %v1173
      %v1175 = vpop.f32.mrb[0].mxu0
      %1176 = vmatprep.mubr.bf16.mxu0 0
      %1177 = vmatmul.mubr.bf16.gmra.mrb[0].mxu0 %v1031
      %v1178 = vpop.f32.mrb[0].mxu0
      %v1179 = vadd.f32 %v983, %v1178
      %v1180 = vpop.f32.mrb[0].mxu0
      %v1181 = vpop.f32.mrb[0].mxu0
      %v1182 = vadd.f32 %v986, %v1181
      %v1183 = vpop.f32.mrb[0].mxu0
      %1184 = vmatprep.mubr.bf16.mxu0 0
      %1185 = vmatmul.mubr.bf16.gmra.mrb[0].mxu0 %v1033
      %v1186 = vpop.f32.mrb[0].mxu0
      %v1187 = vadd.f32 %v991, %v1186
      %v1188 = vpop.f32.mrb[0].mxu0
      %v1189 = vpop.f32.mrb[0].mxu0
      %v1190 = vadd.f32 %v994, %v1189
      %v1191 = vpop.f32.mrb[0].mxu0
      %1192 = vmatprep.mubr.bf16.mxu0 0
      %1193 = vmatmul.mubr.bf16.gmra.mrb[0].mxu0 %v1035
      %v1194 = vpop.f32.mrb[0].mxu0
      %v1195 = vadd.f32 %v999, %v1194
      %v1196 = vpop.f32.mrb[0].mxu0
      %v1197 = vpop.f32.mrb[0].mxu0
      %v1198 = vadd.f32 %v1002, %v1197
      %v1199 = vpop.f32.mrb[0].mxu0
      %1200 = vdwg.mxu0
      %vm1233 = vcmask 1046528
      %v1234 = vrot.slane %v559, 1
      %v1235 = vrot.slane %v560, 1
      %v1236 = vsel %vm1233, %v1234, %v1235
      %v1237 = vrot.slane %v561, 1
      %v1238 = vrot.slane %v562, 1
      %v1239 = vsel %vm1233, %v1237, %v1238
      %v1240 = vrot.slane %v563, 1
      %v1241 = vrot.slane %v564, 1
      %v1242 = vsel %vm1233, %v1240, %v1241
      %v1243 = vrot.slane %v565, 1
      %v1244 = vrot.slane %v566, 1
      %v1245 = vsel %vm1233, %v1243, %v1244
      %v1246 = vrot.slane %v567, 1
      %v1247 = vrot.slane %v568, 1
      %v1248 = vsel %vm1233, %v1246, %v1247
      %v1249 = vrot.slane %v569, 1
      %v1250 = vrot.slane %v570, 1
      %v1251 = vsel %vm1233, %v1249, %v1250
      %v1252 = vrot.slane %v571, 1
      %v1253 = vrot.slane %v572, 1
      %v1254 = vsel %vm1233, %v1252, %v1253
      %v1255 = vrot.slane %v573, 1
      %v1256 = vrot.slane %v574, 1
      %v1257 = vsel %vm1233, %v1255, %v1256
      %v1258 = vrot.slane %v575, 1
      %v1259 = vrot.slane %v576, 1
      %v1260 = vsel %vm1233, %v1258, %v1259
      %v1261 = vrot.slane %v577, 1
      %v1262 = vrot.slane %v578, 1
      %v1263 = vsel %vm1233, %v1261, %v1262
      %v1264 = vrot.slane %v579, 1
      %v1265 = vrot.slane %v580, 1
      %v1266 = vsel %vm1233, %v1264, %v1265
      %v1267 = vrot.slane %v581, 1
      %v1268 = vrot.slane %v582, 1
      %v1269 = vsel %vm1233, %v1267, %v1268
      %v1270 = vrot.slane %v583, 1
      %v1271 = vrot.slane %v584, 1
      %v1272 = vsel %vm1233, %v1270, %v1271
      %v1273 = vrot.slane %v585, 1
      %v1274 = vrot.slane %v586, 1
      %v1275 = vsel %vm1233, %v1273, %v1274
      %v1276 = vrot.slane %v587, 1
      %v1277 = vrot.slane %v588, 1
      %v1278 = vsel %vm1233, %v1276, %v1277
      %v1279 = vrot.slane %v589, 1
      %v1280 = vrot.slane %v590, 1
      %v1281 = vsel %vm1233, %v1279, %v1280
      %s1282 = scalar_lea.vmem %s1, 4
      %v1283 = vld [vmem:[%s1282] sm:$0x3]
      %v1285 = vsel %vm791, %v1236, 0
      %v1288 = vsel %vm791, %v1239, 0
      %v1291 = vsel %vm791, %v1242, 0
      %v1294 = vsel %vm791, %v1245, 0
      %v1297 = vsel %vm791, %v1248, 0
      %v1300 = vsel %vm791, %v1251, 0
      %v1303 = vsel %vm791, %v1254, 0
      %v1306 = vsel %vm791, %v1257, 0
      %v1309 = vsel %vm791, %v1260, 0
      %v1312 = vsel %vm791, %v1263, 0
      %v1315 = vsel %vm791, %v1266, 0
      %v1318 = vsel %vm791, %v1269, 0
      %v1321 = vsel %vm791, %v1272, 0
      %v1324 = vsel %vm791, %v1275, 0
      %v1327 = vsel %vm791, %v1278, 0
      %v1330 = vsel %vm791, %v1281, 0
      %v1333 = vsel %vm840, %v1283, 0
      %1335 = vmatprep.subr.bf16.mxu0 0
      %1336 = vmatpush1.bf16.msra.mxu0 %v1333
      %1337 = vmatprep.subr.bf16.mxu0 0
      %1338 = vmatpush1.bf16.msra.mxu0 0
      %1339 = vmatprep.subr.bf16.mxu0 0
      %1340 = vmatpush1.bf16.msra.mxu0 0
      %1341 = vmatprep.subr.bf16.mxu0 0
      %1342 = vmatpush1.bf16.msra.mxu0 0
      %1343 = vmatprep.subr.bf16.mxu0 0
      %1344 = vmatpush1.bf16.msra.mxu0 0
      %1345 = vmatprep.subr.bf16.mxu0 0
      %1346 = vmatpush1.bf16.msra.mxu0 0
      %1347 = vmatprep.subr.bf16.mxu0 0
      %1348 = vmatpush1.bf16.msra.mxu0 0
      %1349 = vmatprep.subr.bf16.mxu0 0
      %1350 = vmatpush1.bf16.msra.mxu0 0
      %1351 = vmatprep.subr.bf16.mxu0 0
      %1352 = vmatpush1.bf16.msra.mxu0 0
      %1353 = vmatprep.subr.bf16.mxu0 0
      %1354 = vmatpush1.bf16.msra.mxu0 0
      %1355 = vmatprep.subr.bf16.mxu0 0
      %1356 = vmatpush1.bf16.msra.mxu0 0
      %1357 = vmatprep.subr.bf16.mxu0 0
      %1358 = vmatpush1.bf16.msra.mxu0 0
      %1359 = vmatprep.subr.bf16.mxu0 0
      %1360 = vmatpush1.bf16.msra.mxu0 0
      %1361 = vmatprep.subr.bf16.mxu0 0
      %1362 = vmatpush1.bf16.msra.mxu0 0
      %1363 = vmatprep.subr.bf16.mxu0 0
      %1364 = vmatpush1.bf16.msra.mxu0 0
      %1365 = vmatprep.subr.bf16.mxu0 0
      %1366 = vmatpush1.bf16.msra.mxu0 0
      %1367 = vmatprep.mubr.bf16.mxu0 0
      %1368 = vmatmul.mubr.bf16.gmra.mrb[0].mxu0 %v1285
      %v1369 = vpop.f32.mrb[0].mxu0
      %v1370 = vadd.f32 0.0, %v1369
      %v1371 = vpop.f32.mrb[0].mxu0
      %v1372 = vpop.f32.mrb[0].mxu0
      %v1373 = vadd.f32 0.0, %v1372
      %v1374 = vpop.f32.mrb[0].mxu0
      %1375 = vmatprep.mubr.bf16.mxu0 0
      %1376 = vmatmul.mubr.bf16.gmra.mrb[0].mxu0 %v1288
      %v1377 = vpop.f32.mrb[0].mxu0
      %v1378 = vadd.f32 0.0, %v1377
      %v1379 = vpop.f32.mrb[0].mxu0
      %v1380 = vpop.f32.mrb[0].mxu0
      %v1381 = vadd.f32 0.0, %v1380
      %v1382 = vpop.f32.mrb[0].mxu0
      %1383 = vmatprep.mubr.bf16.mxu0 0
      %1384 = vmatmul.mubr.bf16.gmra.mrb[0].mxu0 %v1291
      %v1385 = vpop.f32.mrb[0].mxu0
      %v1386 = vadd.f32 0.0, %v1385
      %v1387 = vpop.f32.mrb[0].mxu0
      %v1388 = vpop.f32.mrb[0].mxu0
      %v1389 = vadd.f32 0.0, %v1388
      %v1390 = vpop.f32.mrb[0].mxu0
      %1391 = vmatprep.mubr.bf16.mxu0 0
      %1392 = vmatmul.mubr.bf16.gmra.mrb[0].mxu0 %v1294
      %v1393 = vpop.f32.mrb[0].mxu0
      %v1394 = vadd.f32 0.0, %v1393
      %v1395 = vpop.f32.mrb[0].mxu0
      %v1396 = vpop.f32.mrb[0].mxu0
      %v1397 = vadd.f32 0.0, %v1396
      %v1398 = vpop.f32.mrb[0].mxu0
      %1399 = vmatprep.mubr.bf16.mxu0 0
      %1400 = vmatmul.mubr.bf16.gmra.mrb[0].mxu0 %v1297
      %v1401 = vpop.f32.mrb[0].mxu0
      %v1402 = vadd.f32 0.0, %v1401
      %v1403 = vpop.f32.mrb[0].mxu0
      %v1404 = vpop.f32.mrb[0].mxu0
      %v1405 = vadd.f32 0.0, %v1404
      %v1406 = vpop.f32.mrb[0].mxu0
      %1407 = vmatprep.mubr.bf16.mxu0 0
      %1408 = vmatmul.mubr.bf16.gmra.mrb[0].mxu0 %v1300
      %v1409 = vpop.f32.mrb[0].mxu0
      %v1410 = vadd.f32 0.0, %v1409
      %v1411 = vpop.f32.mrb[0].mxu0
      %v1412 = vpop.f32.mrb[0].mxu0
      %v1413 = vadd.f32 0.0, %v1412
      %v1414 = vpop.f32.mrb[0].mxu0
      %1415 = vmatprep.mubr.bf16.mxu0 0
      %1416 = vmatmul.mubr.bf16.gmra.mrb[0].mxu0 %v1303
      %v1417 = vpop.f32.mrb[0].mxu0
      %v1418 = vadd.f32 0.0, %v1417
      %v1419 = vpop.f32.mrb[0].mxu0
      %v1420 = vpop.f32.mrb[0].mxu0
      %v1421 = vadd.f32 0.0, %v1420
      %v1422 = vpop.f32.mrb[0].mxu0
      %1423 = vmatprep.mubr.bf16.mxu0 0
      %1424 = vmatmul.mubr.bf16.gmra.mrb[0].mxu0 %v1306
      %v1425 = vpop.f32.mrb[0].mxu0
      %v1426 = vadd.f32 0.0, %v1425
      %v1427 = vpop.f32.mrb[0].mxu0
      %v1428 = vpop.f32.mrb[0].mxu0
      %v1429 = vadd.f32 0.0, %v1428
      %v1430 = vpop.f32.mrb[0].mxu0
      %1431 = vmatprep.mubr.bf16.mxu0 0
      %1432 = vmatmul.mubr.bf16.gmra.mrb[0].mxu0 %v1309
      %v1433 = vpop.f32.mrb[0].mxu0
      %v1434 = vadd.f32 0.0, %v1433
      %v1435 = vpop.f32.mrb[0].mxu0
      %v1436 = vpop.f32.mrb[0].mxu0
      %v1437 = vadd.f32 0.0, %v1436
      %v1438 = vpop.f32.mrb[0].mxu0
      %1439 = vmatprep.mubr.bf16.mxu0 0
      %1440 = vmatmul.mubr.bf16.gmra.mrb[0].mxu0 %v1312
      %v1441 = vpop.f32.mrb[0].mxu0
      %v1442 = vadd.f32 0.0, %v1441
      %v1443 = vpop.f32.mrb[0].mxu0
      %v1444 = vpop.f32.mrb[0].mxu0
      %v1445 = vadd.f32 0.0, %v1444
      %v1446 = vpop.f32.mrb[0].mxu0
      %1447 = vmatprep.mubr.bf16.mxu0 0
      %1448 = vmatmul.mubr.bf16.gmra.mrb[0].mxu0 %v1315
      %v1449 = vpop.f32.mrb[0].mxu0
      %v1450 = vadd.f32 0.0, %v1449
      %v1451 = vpop.f32.mrb[0].mxu0
      %v1452 = vpop.f32.mrb[0].mxu0
      %v1453 = vadd.f32 0.0, %v1452
      %v1454 = vpop.f32.mrb[0].mxu0
      %1455 = vmatprep.mubr.bf16.mxu0 0
      %1456 = vmatmul.mubr.bf16.gmra.mrb[0].mxu0 %v1318
      %v1457 = vpop.f32.mrb[0].mxu0
      %v1458 = vadd.f32 0.0, %v1457
      %v1459 = vpop.f32.mrb[0].mxu0
      %v1460 = vpop.f32.mrb[0].mxu0
      %v1461 = vadd.f32 0.0, %v1460
      %v1462 = vpop.f32.mrb[0].mxu0
      %1463 = vmatprep.mubr.bf16.mxu0 0
      %1464 = vmatmul.mubr.bf16.gmra.mrb[0].mxu0 %v1321
      %v1465 = vpop.f32.mrb[0].mxu0
      %v1466 = vadd.f32 0.0, %v1465
      %v1467 = vpop.f32.mrb[0].mxu0
      %v1468 = vpop.f32.mrb[0].mxu0
      %v1469 = vadd.f32 0.0, %v1468
      %v1470 = vpop.f32.mrb[0].mxu0
      %1471 = vmatprep.mubr.bf16.mxu0 0
      %1472 = vmatmul.mubr.bf16.gmra.mrb[0].mxu0 %v1324
      %v1473 = vpop.f32.mrb[0].mxu0
      %v1474 = vadd.f32 0.0, %v1473
      %v1475 = vpop.f32.mrb[0].mxu0
      %v1476 = vpop.f32.mrb[0].mxu0
      %v1477 = vadd.f32 0.0, %v1476
      %v1478 = vpop.f32.mrb[0].mxu0
      %1479 = vmatprep.mubr.bf16.mxu0 0
      %1480 = vmatmul.mubr.bf16.gmra.mrb[0].mxu0 %v1327
      %v1481 = vpop.f32.mrb[0].mxu0
      %v1482 = vadd.f32 0.0, %v1481
      %v1483 = vpop.f32.mrb[0].mxu0
      %v1484 = vpop.f32.mrb[0].mxu0
      %v1485 = vadd.f32 0.0, %v1484
      %v1486 = vpop.f32.mrb[0].mxu0
      %1487 = vmatprep.mubr.bf16.mxu0 0
      %1488 = vmatmul.mubr.bf16.gmra.mrb[0].mxu0 %v1330
      %v1489 = vpop.f32.mrb[0].mxu0
      %v1490 = vadd.f32 0.0, %v1489
      %v1491 = vpop.f32.mrb[0].mxu0
      %v1492 = vpop.f32.mrb[0].mxu0
      %v1493 = vadd.f32 0.0, %v1492
      %v1494 = vpop.f32.mrb[0].mxu0
      %1495 = vdwg.mxu0
      %v1496 = vadd.f32 %v1075, %v1370
      %v1497 = vadd.f32 %v1078, %v1373
      %v1498 = vadd.f32 %v1083, %v1378
      %v1499 = vadd.f32 %v1086, %v1381
      %v1500 = vadd.f32 %v1091, %v1386
      %v1501 = vadd.f32 %v1094, %v1389
      %v1502 = vadd.f32 %v1099, %v1394
      %v1503 = vadd.f32 %v1102, %v1397
      %v1504 = vadd.f32 %v1107, %v1402
      %v1505 = vadd.f32 %v1110, %v1405
      %v1506 = vadd.f32 %v1115, %v1410
      %v1507 = vadd.f32 %v1118, %v1413
      %v1508 = vadd.f32 %v1123, %v1418
      %v1509 = vadd.f32 %v1126, %v1421
      %v1510 = vadd.f32 %v1131, %v1426
      %v1511 = vadd.f32 %v1134, %v1429
      %v1512 = vadd.f32 %v1139, %v1434
      %v1513 = vadd.f32 %v1142, %v1437
      %v1514 = vadd.f32 %v1147, %v1442
      %v1515 = vadd.f32 %v1150, %v1445
      %v1516 = vadd.f32 %v1155, %v1450
      %v1517 = vadd.f32 %v1158, %v1453
      %v1518 = vadd.f32 %v1163, %v1458
      %v1519 = vadd.f32 %v1166, %v1461
      %v1520 = vadd.f32 %v1171, %v1466
      %v1521 = vadd.f32 %v1174, %v1469
      %v1522 = vadd.f32 %v1179, %v1474
      %v1523 = vadd.f32 %v1182, %v1477
      %v1524 = vadd.f32 %v1187, %v1482
      %v1525 = vadd.f32 %v1190, %v1485
      %v1526 = vadd.f32 %v1195, %v1490
      %v1527 = vadd.f32 %v1198, %v1493
      %s1528 = scalar_lea.vmem %s1, 6
      %v1529 = vld [vmem:[%s1528] sm:$0x3]
      %v1531 = vsel %vm791, %v591, 0
      %v1534 = vsel %vm840, %v1529, 0
      %1536 = vmatprep.subr.bf16.mxu0 0
      %1537 = vmatpush1.bf16.msra.mxu0 %v1534
      %1538 = vmatprep.subr.bf16.mxu0 0
      %1539 = vmatpush1.bf16.msra.mxu0 0
      %1540 = vmatprep.subr.bf16.mxu0 0
      %1541 = vmatpush1.bf16.msra.mxu0 0
      %1542 = vmatprep.subr.bf16.mxu0 0
      %1543 = vmatpush1.bf16.msra.mxu0 0
      %1544 = vmatprep.subr.bf16.mxu0 0
      %1545 = vmatpush1.bf16.msra.mxu0 0
      %1546 = vmatprep.subr.bf16.mxu0 0
      %1547 = vmatpush1.bf16.msra.mxu0 0
      %1548 = vmatprep.subr.bf16.mxu0 0
      %1549 = vmatpush1.bf16.msra.mxu0 0
      %1550 = vmatprep.subr.bf16.mxu0 0
      %1551 = vmatpush1.bf16.msra.mxu0 0
      %1552 = vmatprep.subr.bf16.mxu0 0
      %1553 = vmatpush1.bf16.msra.mxu0 0
      %1554 = vmatprep.subr.bf16.mxu0 0
      %1555 = vmatpush1.bf16.msra.mxu0 0
      %1556 = vmatprep.subr.bf16.mxu0 0
      %1557 = vmatpush1.bf16.msra.mxu0 0
      %1558 = vmatprep.subr.bf16.mxu0 0
      %1559 = vmatpush1.bf16.msra.mxu0 0
      %1560 = vmatprep.subr.bf16.mxu0 0
      %1561 = vmatpush1.bf16.msra.mxu0 0
      %1562 = vmatprep.subr.bf16.mxu0 0
      %1563 = vmatpush1.bf16.msra.mxu0 0
      %1564 = vmatprep.subr.bf16.mxu0 0
      %1565 = vmatpush1.bf16.msra.mxu0 0
      %1566 = vmatprep.subr.bf16.mxu0 0
      %1567 = vmatpush1.bf16.msra.mxu0 0
      %1568 = vmatprep.mubr.bf16.mxu0 0
      %1569 = vmatmul.mubr.bf16.gmra.mrb[0].mxu0 %v1007
      %v1570 = vpop.f32.mrb[0].mxu0
      %v1571 = vadd.f32 0.0, %v1570
      %v1572 = vpop.f32.mrb[0].mxu0
      %v1573 = vpop.f32.mrb[0].mxu0
      %v1574 = vadd.f32 0.0, %v1573
      %v1575 = vpop.f32.mrb[0].mxu0
      %1576 = vmatprep.mubr.bf16.mxu0 0
      %1577 = vmatmul.mubr.bf16.gmra.mrb[0].mxu0 %v1009
      %v1578 = vpop.f32.mrb[0].mxu0
      %v1579 = vadd.f32 0.0, %v1578
      %v1580 = vpop.f32.mrb[0].mxu0
      %v1581 = vpop.f32.mrb[0].mxu0
      %v1582 = vadd.f32 0.0, %v1581
      %v1583 = vpop.f32.mrb[0].mxu0
      %1584 = vmatprep.mubr.bf16.mxu0 0
      %1585 = vmatmul.mubr.bf16.gmra.mrb[0].mxu0 %v1011
      %v1586 = vpop.f32.mrb[0].mxu0
      %v1587 = vadd.f32 0.0, %v1586
      %v1588 = vpop.f32.mrb[0].mxu0
      %v1589 = vpop.f32.mrb[0].mxu0
      %v1590 = vadd.f32 0.0, %v1589
      %v1591 = vpop.f32.mrb[0].mxu0
      %1592 = vmatprep.mubr.bf16.mxu0 0
      %1593 = vmatmul.mubr.bf16.gmra.mrb[0].mxu0 %v1013
      %v1594 = vpop.f32.mrb[0].mxu0
      %v1595 = vadd.f32 0.0, %v1594
      %v1596 = vpop.f32.mrb[0].mxu0
      %v1597 = vpop.f32.mrb[0].mxu0
      %v1598 = vadd.f32 0.0, %v1597
      %v1599 = vpop.f32.mrb[0].mxu0
      %1600 = vmatprep.mubr.bf16.mxu0 0
      %1601 = vmatmul.mubr.bf16.gmra.mrb[0].mxu0 %v1015
      %v1602 = vpop.f32.mrb[0].mxu0
      %v1603 = vadd.f32 0.0, %v1602
      %v1604 = vpop.f32.mrb[0].mxu0
      %v1605 = vpop.f32.mrb[0].mxu0
      %v1606 = vadd.f32 0.0, %v1605
      %v1607 = vpop.f32.mrb[0].mxu0
      %1608 = vmatprep.mubr.bf16.mxu0 0
      %1609 = vmatmul.mubr.bf16.gmra.mrb[0].mxu0 %v1017
      %v1610 = vpop.f32.mrb[0].mxu0
      %v1611 = vadd.f32 0.0, %v1610
      %v1612 = vpop.f32.mrb[0].mxu0
      %v1613 = vpop.f32.mrb[0].mxu0
      %v1614 = vadd.f32 0.0, %v1613
      %v1615 = vpop.f32.mrb[0].mxu0
      %1616 = vmatprep.mubr.bf16.mxu0 0
      %1617 = vmatmul.mubr.bf16.gmra.mrb[0].mxu0 %v1019
      %v1618 = vpop.f32.mrb[0].mxu0
      %v1619 = vadd.f32 0.0, %v1618
      %v1620 = vpop.f32.mrb[0].mxu0
      %v1621 = vpop.f32.mrb[0].mxu0
      %v1622 = vadd.f32 0.0, %v1621
      %v1623 = vpop.f32.mrb[0].mxu0
      %1624 = vmatprep.mubr.bf16.mxu0 0
      %1625 = vmatmul.mubr.bf16.gmra.mrb[0].mxu0 %v1021
      %v1626 = vpop.f32.mrb[0].mxu0
      %v1627 = vadd.f32 0.0, %v1626
      %v1628 = vpop.f32.mrb[0].mxu0
      %v1629 = vpop.f32.mrb[0].mxu0
      %v1630 = vadd.f32 0.0, %v1629
      %v1631 = vpop.f32.mrb[0].mxu0
      %1632 = vmatprep.mubr.bf16.mxu0 0
      %1633 = vmatmul.mubr.bf16.gmra.mrb[0].mxu0 %v1023
      %v1634 = vpop.f32.mrb[0].mxu0
      %v1635 = vadd.f32 0.0, %v1634
      %v1636 = vpop.f32.mrb[0].mxu0
      %v1637 = vpop.f32.mrb[0].mxu0
      %v1638 = vadd.f32 0.0, %v1637
      %v1639 = vpop.f32.mrb[0].mxu0
      %1640 = vmatprep.mubr.bf16.mxu0 0
      %1641 = vmatmul.mubr.bf16.gmra.mrb[0].mxu0 %v1025
      %v1642 = vpop.f32.mrb[0].mxu0
      %v1643 = vadd.f32 0.0, %v1642
      %v1644 = vpop.f32.mrb[0].mxu0
      %v1645 = vpop.f32.mrb[0].mxu0
      %v1646 = vadd.f32 0.0, %v1645
      %v1647 = vpop.f32.mrb[0].mxu0
      %1648 = vmatprep.mubr.bf16.mxu0 0
      %1649 = vmatmul.mubr.bf16.gmra.mrb[0].mxu0 %v1027
      %v1650 = vpop.f32.mrb[0].mxu0
      %v1651 = vadd.f32 0.0, %v1650
      %v1652 = vpop.f32.mrb[0].mxu0
      %v1653 = vpop.f32.mrb[0].mxu0
      %v1654 = vadd.f32 0.0, %v1653
      %v1655 = vpop.f32.mrb[0].mxu0
      %1656 = vmatprep.mubr.bf16.mxu0 0
      %1657 = vmatmul.mubr.bf16.gmra.mrb[0].mxu0 %v1029
      %v1658 = vpop.f32.mrb[0].mxu0
      %v1659 = vadd.f32 0.0, %v1658
      %v1660 = vpop.f32.mrb[0].mxu0
      %v1661 = vpop.f32.mrb[0].mxu0
      %v1662 = vadd.f32 0.0, %v1661
      %v1663 = vpop.f32.mrb[0].mxu0
      %1664 = vmatprep.mubr.bf16.mxu0 0
      %1665 = vmatmul.mubr.bf16.gmra.mrb[0].mxu0 %v1031
      %v1666 = vpop.f32.mrb[0].mxu0
      %v1667 = vadd.f32 0.0, %v1666
      %v1668 = vpop.f32.mrb[0].mxu0
      %v1669 = vpop.f32.mrb[0].mxu0
      %v1670 = vadd.f32 0.0, %v1669
      %v1671 = vpop.f32.mrb[0].mxu0
      %1672 = vmatprep.mubr.bf16.mxu0 0
      %1673 = vmatmul.mubr.bf16.gmra.mrb[0].mxu0 %v1033
      %v1674 = vpop.f32.mrb[0].mxu0
      %v1675 = vadd.f32 0.0, %v1674
      %v1676 = vpop.f32.mrb[0].mxu0
      %v1677 = vpop.f32.mrb[0].mxu0
      %v1678 = vadd.f32 0.0, %v1677
      %v1679 = vpop.f32.mrb[0].mxu0
      %1680 = vmatprep.mubr.bf16.mxu0 0
      %1681 = vmatmul.mubr.bf16.gmra.mrb[0].mxu0 %v1035
      %v1682 = vpop.f32.mrb[0].mxu0
      %v1683 = vadd.f32 0.0, %v1682
      %v1684 = vpop.f32.mrb[0].mxu0
      %v1685 = vpop.f32.mrb[0].mxu0
      %v1686 = vadd.f32 0.0, %v1685
      %v1687 = vpop.f32.mrb[0].mxu0
      %1688 = vmatprep.mubr.bf16.mxu0 0
      %1689 = vmatmul.mubr.bf16.gmra.mrb[0].mxu0 %v1531
      %v1690 = vpop.f32.mrb[0].mxu0
      %v1691 = vadd.f32 0.0, %v1690
      %v1692 = vpop.f32.mrb[0].mxu0
      %v1693 = vpop.f32.mrb[0].mxu0
      %v1694 = vadd.f32 0.0, %v1693
      %v1695 = vpop.f32.mrb[0].mxu0
      %1696 = vdwg.mxu0
      %v1697 = vadd.f32 %v1496, %v1571
      %v1698 = vadd.f32 %v1497, %v1574
      %v1699 = vadd.f32 %v1498, %v1579
      %v1700 = vadd.f32 %v1499, %v1582
      %v1701 = vadd.f32 %v1500, %v1587
      %v1702 = vadd.f32 %v1501, %v1590
      %v1703 = vadd.f32 %v1502, %v1595
      %v1704 = vadd.f32 %v1503, %v1598
      %v1705 = vadd.f32 %v1504, %v1603
      %v1706 = vadd.f32 %v1505, %v1606
      %v1707 = vadd.f32 %v1506, %v1611
      %v1708 = vadd.f32 %v1507, %v1614
      %v1709 = vadd.f32 %v1508, %v1619
      %v1710 = vadd.f32 %v1509, %v1622
      %v1711 = vadd.f32 %v1510, %v1627
      %v1712 = vadd.f32 %v1511, %v1630
      %v1713 = vadd.f32 %v1512, %v1635
      %v1714 = vadd.f32 %v1513, %v1638
      %v1715 = vadd.f32 %v1514, %v1643
      %v1716 = vadd.f32 %v1515, %v1646
      %v1717 = vadd.f32 %v1516, %v1651
      %v1718 = vadd.f32 %v1517, %v1654
      %v1719 = vadd.f32 %v1518, %v1659
      %v1720 = vadd.f32 %v1519, %v1662
      %v1721 = vadd.f32 %v1520, %v1667
      %v1722 = vadd.f32 %v1521, %v1670
      %v1723 = vadd.f32 %v1522, %v1675
      %v1724 = vadd.f32 %v1523, %v1678
      %v1725 = vadd.f32 %v1524, %v1683
      %v1726 = vadd.f32 %v1525, %v1686
      %v1727 = vadd.f32 %v1526, %v1691
      %v1728 = vadd.f32 %v1527, %v1694
      %v1729 = vshrl.u32 %v591, 16
      %v1731 = vshll.u32 %v591, 16
      %v1733 = vrot.slane %v1731, 1
      %v1734 = vor.u32 %v1729, %v1733
      %v1736 = vshll.u32 %v592, 16
      %v1738 = vrot.slane %v1736, 1
      %v1739 = vsel %vm596, %v1734, %v1738
      %s1740 = scalar_lea.vmem %s1, 8
      %v1741 = vld [vmem:[%s1740] sm:$0x3]
      %v1743 = vsel %vm791, %v1739, 0
      %v1746 = vsel %vm840, %v1741, 0
      %1748 = vmatprep.subr.bf16.mxu0 0
      %1749 = vmatpush1.bf16.msra.mxu0 %v1746
      %1750 = vmatprep.subr.bf16.mxu0 0
      %1751 = vmatpush1.bf16.msra.mxu0 0
      %1752 = vmatprep.subr.bf16.mxu0 0
      %1753 = vmatpush1.bf16.msra.mxu0 0
      %1754 = vmatprep.subr.bf16.mxu0 0
      %1755 = vmatpush1.bf16.msra.mxu0 0
      %1756 = vmatprep.subr.bf16.mxu0 0
      %1757 = vmatpush1.bf16.msra.mxu0 0
      %1758 = vmatprep.subr.bf16.mxu0 0
      %1759 = vmatpush1.bf16.msra.mxu0 0
      %1760 = vmatprep.subr.bf16.mxu0 0
      %1761 = vmatpush1.bf16.msra.mxu0 0
      %1762 = vmatprep.subr.bf16.mxu0 0
      %1763 = vmatpush1.bf16.msra.mxu0 0
      %1764 = vmatprep.subr.bf16.mxu0 0
      %1765 = vmatpush1.bf16.msra.mxu0 0
      %1766 = vmatprep.subr.bf16.mxu0 0
      %1767 = vmatpush1.bf16.msra.mxu0 0
      %1768 = vmatprep.subr.bf16.mxu0 0
      %1769 = vmatpush1.bf16.msra.mxu0 0
      %1770 = vmatprep.subr.bf16.mxu0 0
      %1771 = vmatpush1.bf16.msra.mxu0 0
      %1772 = vmatprep.subr.bf16.mxu0 0
      %1773 = vmatpush1.bf16.msra.mxu0 0
      %1774 = vmatprep.subr.bf16.mxu0 0
      %1775 = vmatpush1.bf16.msra.mxu0 0
      %1776 = vmatprep.subr.bf16.mxu0 0
      %1777 = vmatpush1.bf16.msra.mxu0 0
      %1778 = vmatprep.subr.bf16.mxu0 0
      %1779 = vmatpush1.bf16.msra.mxu0 0
      %1780 = vmatprep.mubr.bf16.mxu0 0
      %1781 = vmatmul.mubr.bf16.gmra.mrb[0].mxu0 %v796
      %v1782 = vpop.f32.mrb[0].mxu0
      %v1783 = vadd.f32 0.0, %v1782
      %v1784 = vpop.f32.mrb[0].mxu0
      %v1785 = vpop.f32.mrb[0].mxu0
      %v1786 = vadd.f32 0.0, %v1785
      %v1787 = vpop.f32.mrb[0].mxu0
      %1788 = vmatprep.mubr.bf16.mxu0 0
      %1789 = vmatmul.mubr.bf16.gmra.mrb[0].mxu0 %v799
      %v1790 = vpop.f32.mrb[0].mxu0
      %v1791 = vadd.f32 0.0, %v1790
      %v1792 = vpop.f32.mrb[0].mxu0
      %v1793 = vpop.f32.mrb[0].mxu0
      %v1794 = vadd.f32 0.0, %v1793
      %v1795 = vpop.f32.mrb[0].mxu0
      %1796 = vmatprep.mubr.bf16.mxu0 0
      %1797 = vmatmul.mubr.bf16.gmra.mrb[0].mxu0 %v802
      %v1798 = vpop.f32.mrb[0].mxu0
      %v1799 = vadd.f32 0.0, %v1798
      %v1800 = vpop.f32.mrb[0].mxu0
      %v1801 = vpop.f32.mrb[0].mxu0
      %v1802 = vadd.f32 0.0, %v1801
      %v1803 = vpop.f32.mrb[0].mxu0
      %1804 = vmatprep.mubr.bf16.mxu0 0
      %1805 = vmatmul.mubr.bf16.gmra.mrb[0].mxu0 %v805
      %v1806 = vpop.f32.mrb[0].mxu0
      %v1807 = vadd.f32 0.0, %v1806
      %v1808 = vpop.f32.mrb[0].mxu0
      %v1809 = vpop.f32.mrb[0].mxu0
      %v1810 = vadd.f32 0.0, %v1809
      %v1811 = vpop.f32.mrb[0].mxu0
      %1812 = vmatprep.mubr.bf16.mxu0 0
      %1813 = vmatmul.mubr.bf16.gmra.mrb[0].mxu0 %v808
      %v1814 = vpop.f32.mrb[0].mxu0
      %v1815 = vadd.f32 0.0, %v1814
      %v1816 = vpop.f32.mrb[0].mxu0
      %v1817 = vpop.f32.mrb[0].mxu0
      %v1818 = vadd.f32 0.0, %v1817
      %v1819 = vpop.f32.mrb[0].mxu0
      %1820 = vmatprep.mubr.bf16.mxu0 0
      %1821 = vmatmul.mubr.bf16.gmra.mrb[0].mxu0 %v811
      %v1822 = vpop.f32.mrb[0].mxu0
      %v1823 = vadd.f32 0.0, %v1822
      %v1824 = vpop.f32.mrb[0].mxu0
      %v1825 = vpop.f32.mrb[0].mxu0
      %v1826 = vadd.f32 0.0, %v1825
      %v1827 = vpop.f32.mrb[0].mxu0
      %1828 = vmatprep.mubr.bf16.mxu0 0
      %1829 = vmatmul.mubr.bf16.gmra.mrb[0].mxu0 %v814
      %v1830 = vpop.f32.mrb[0].mxu0
      %v1831 = vadd.f32 0.0, %v1830
      %v1832 = vpop.f32.mrb[0].mxu0
      %v1833 = vpop.f32.mrb[0].mxu0
      %v1834 = vadd.f32 0.0, %v1833
      %v1835 = vpop.f32.mrb[0].mxu0
      %1836 = vmatprep.mubr.bf16.mxu0 0
      %1837 = vmatmul.mubr.bf16.gmra.mrb[0].mxu0 %v817
      %v1838 = vpop.f32.mrb[0].mxu0
      %v1839 = vadd.f32 0.0, %v1838
      %v1840 = vpop.f32.mrb[0].mxu0
      %v1841 = vpop.f32.mrb[0].mxu0
      %v1842 = vadd.f32 0.0, %v1841
      %v1843 = vpop.f32.mrb[0].mxu0
      %1844 = vmatprep.mubr.bf16.mxu0 0
      %1845 = vmatmul.mubr.bf16.gmra.mrb[0].mxu0 %v820
      %v1846 = vpop.f32.mrb[0].mxu0
      %v1847 = vadd.f32 0.0, %v1846
      %v1848 = vpop.f32.mrb[0].mxu0
      %v1849 = vpop.f32.mrb[0].mxu0
      %v1850 = vadd.f32 0.0, %v1849
      %v1851 = vpop.f32.mrb[0].mxu0
      %1852 = vmatprep.mubr.bf16.mxu0 0
      %1853 = vmatmul.mubr.bf16.gmra.mrb[0].mxu0 %v823
      %v1854 = vpop.f32.mrb[0].mxu0
      %v1855 = vadd.f32 0.0, %v1854
      %v1856 = vpop.f32.mrb[0].mxu0
      %v1857 = vpop.f32.mrb[0].mxu0
      %v1858 = vadd.f32 0.0, %v1857
      %v1859 = vpop.f32.mrb[0].mxu0
      %1860 = vmatprep.mubr.bf16.mxu0 0
      %1861 = vmatmul.mubr.bf16.gmra.mrb[0].mxu0 %v826
      %v1862 = vpop.f32.mrb[0].mxu0
      %v1863 = vadd.f32 0.0, %v1862
      %v1864 = vpop.f32.mrb[0].mxu0
      %v1865 = vpop.f32.mrb[0].mxu0
      %v1866 = vadd.f32 0.0, %v1865
      %v1867 = vpop.f32.mrb[0].mxu0
      %1868 = vmatprep.mubr.bf16.mxu0 0
      %1869 = vmatmul.mubr.bf16.gmra.mrb[0].mxu0 %v829
      %v1870 = vpop.f32.mrb[0].mxu0
      %v1871 = vadd.f32 0.0, %v1870
      %v1872 = vpop.f32.mrb[0].mxu0
      %v1873 = vpop.f32.mrb[0].mxu0
      %v1874 = vadd.f32 0.0, %v1873
      %v1875 = vpop.f32.mrb[0].mxu0
      %1876 = vmatprep.mubr.bf16.mxu0 0
      %1877 = vmatmul.mubr.bf16.gmra.mrb[0].mxu0 %v832
      %v1878 = vpop.f32.mrb[0].mxu0
      %v1879 = vadd.f32 0.0, %v1878
      %v1880 = vpop.f32.mrb[0].mxu0
      %v1881 = vpop.f32.mrb[0].mxu0
      %v1882 = vadd.f32 0.0, %v1881
      %v1883 = vpop.f32.mrb[0].mxu0
      %1884 = vmatprep.mubr.bf16.mxu0 0
      %1885 = vmatmul.mubr.bf16.gmra.mrb[0].mxu0 %v835
      %v1886 = vpop.f32.mrb[0].mxu0
      %v1887 = vadd.f32 0.0, %v1886
      %v1888 = vpop.f32.mrb[0].mxu0
      %v1889 = vpop.f32.mrb[0].mxu0
      %v1890 = vadd.f32 0.0, %v1889
      %v1891 = vpop.f32.mrb[0].mxu0
      %1892 = vmatprep.mubr.bf16.mxu0 0
      %1893 = vmatmul.mubr.bf16.gmra.mrb[0].mxu0 %v838
      %v1894 = vpop.f32.mrb[0].mxu0
      %v1895 = vadd.f32 0.0, %v1894
      %v1896 = vpop.f32.mrb[0].mxu0
      %v1897 = vpop.f32.mrb[0].mxu0
      %v1898 = vadd.f32 0.0, %v1897
      %v1899 = vpop.f32.mrb[0].mxu0
      %1900 = vmatprep.mubr.bf16.mxu0 0
      %1901 = vmatmul.mubr.bf16.gmra.mrb[0].mxu0 %v1743
      %v1902 = vpop.f32.mrb[0].mxu0
      %v1903 = vadd.f32 0.0, %v1902
      %v1904 = vpop.f32.mrb[0].mxu0
      %v1905 = vpop.f32.mrb[0].mxu0
      %v1906 = vadd.f32 0.0, %v1905
      %v1907 = vpop.f32.mrb[0].mxu0
      %1908 = vdwg.mxu0
      %v1909 = vadd.f32 %v1697, %v1783
      %v1910 = vadd.f32 %v1698, %v1786
      %v1911 = vadd.f32 %v1699, %v1791
      %v1912 = vadd.f32 %v1700, %v1794
      %v1913 = vadd.f32 %v1701, %v1799
      %v1914 = vadd.f32 %v1702, %v1802
      %v1915 = vadd.f32 %v1703, %v1807
      %v1916 = vadd.f32 %v1704, %v1810
      %v1917 = vadd.f32 %v1705, %v1815
      %v1918 = vadd.f32 %v1706, %v1818
      %v1919 = vadd.f32 %v1707, %v1823
      %v1920 = vadd.f32 %v1708, %v1826
      %v1921 = vadd.f32 %v1709, %v1831
      %v1922 = vadd.f32 %v1710, %v1834
      %v1923 = vadd.f32 %v1711, %v1839
      %v1924 = vadd.f32 %v1712, %v1842
      %v1925 = vadd.f32 %v1713, %v1847
      %v1926 = vadd.f32 %v1714, %v1850
      %v1927 = vadd.f32 %v1715, %v1855
      %v1928 = vadd.f32 %v1716, %v1858
      %v1929 = vadd.f32 %v1717, %v1863
      %v1930 = vadd.f32 %v1718, %v1866
      %v1931 = vadd.f32 %v1719, %v1871
      %v1932 = vadd.f32 %v1720, %v1874
      %v1933 = vadd.f32 %v1721, %v1879
      %v1934 = vadd.f32 %v1722, %v1882
      %v1935 = vadd.f32 %v1723, %v1887
      %v1936 = vadd.f32 %v1724, %v1890
      %v1937 = vadd.f32 %v1725, %v1895
      %v1938 = vadd.f32 %v1726, %v1898
      %v1939 = vadd.f32 %v1727, %v1903
      %v1940 = vadd.f32 %v1728, %v1906
      %v1943 = vrot.slane %v591, 1
      %v1944 = vrot.slane %v592, 1
      %v1945 = vsel %vm1233, %v1943, %v1944
      %s1946 = scalar_lea.vmem %s1, 10
      %v1947 = vld [vmem:[%s1946] sm:$0x3]
      %v1949 = vsel %vm791, %v1945, 0
      %v1952 = vsel %vm840, %v1947, 0
      %1954 = vmatprep.subr.bf16.mxu0 0
      %1955 = vmatpush1.bf16.msra.mxu0 %v1952
      %1956 = vmatprep.subr.bf16.mxu0 0
      %1957 = vmatpush1.bf16.msra.mxu0 0
      %1958 = vmatprep.subr.bf16.mxu0 0
      %1959 = vmatpush1.bf16.msra.mxu0 0
      %1960 = vmatprep.subr.bf16.mxu0 0
      %1961 = vmatpush1.bf16.msra.mxu0 0
      %1962 = vmatprep.subr.bf16.mxu0 0
      %1963 = vmatpush1.bf16.msra.mxu0 0
      %1964 = vmatprep.subr.bf16.mxu0 0
      %1965 = vmatpush1.bf16.msra.mxu0 0
      %1966 = vmatprep.subr.bf16.mxu0 0
      %1967 = vmatpush1.bf16.msra.mxu0 0
      %1968 = vmatprep.subr.bf16.mxu0 0
      %1969 = vmatpush1.bf16.msra.mxu0 0
      %1970 = vmatprep.subr.bf16.mxu0 0
      %1971 = vmatpush1.bf16.msra.mxu0 0
      %1972 = vmatprep.subr.bf16.mxu0 0
      %1973 = vmatpush1.bf16.msra.mxu0 0
      %1974 = vmatprep.subr.bf16.mxu0 0
      %1975 = vmatpush1.bf16.msra.mxu0 0
      %1976 = vmatprep.subr.bf16.mxu0 0
      %1977 = vmatpush1.bf16.msra.mxu0 0
      %1978 = vmatprep.subr.bf16.mxu0 0
      %1979 = vmatpush1.bf16.msra.mxu0 0
      %1980 = vmatprep.subr.bf16.mxu0 0
      %1981 = vmatpush1.bf16.msra.mxu0 0
      %1982 = vmatprep.subr.bf16.mxu0 0
      %1983 = vmatpush1.bf16.msra.mxu0 0
      %1984 = vmatprep.subr.bf16.mxu0 0
      %1985 = vmatpush1.bf16.msra.mxu0 0
      %1986 = vmatprep.mubr.bf16.mxu0 0
      %1987 = vmatmul.mubr.bf16.gmra.mrb[0].mxu0 %v1288
      %v1988 = vpop.f32.mrb[0].mxu0
      %v1989 = vadd.f32 0.0, %v1988
      %v1990 = vpop.f32.mrb[0].mxu0
      %v1991 = vpop.f32.mrb[0].mxu0
      %v1992 = vadd.f32 0.0, %v1991
      %v1993 = vpop.f32.mrb[0].mxu0
      %1994 = vmatprep.mubr.bf16.mxu0 0
      %1995 = vmatmul.mubr.bf16.gmra.mrb[0].mxu0 %v1291
      %v1996 = vpop.f32.mrb[0].mxu0
      %v1997 = vadd.f32 0.0, %v1996
      %v1998 = vpop.f32.mrb[0].mxu0
      %v1999 = vpop.f32.mrb[0].mxu0
      %v2000 = vadd.f32 0.0, %v1999
      %v2001 = vpop.f32.mrb[0].mxu0
      %2002 = vmatprep.mubr.bf16.mxu0 0
      %2003 = vmatmul.mubr.bf16.gmra.mrb[0].mxu0 %v1294
      %v2004 = vpop.f32.mrb[0].mxu0
      %v2005 = vadd.f32 0.0, %v2004
      %v2006 = vpop.f32.mrb[0].mxu0
      %v2007 = vpop.f32.mrb[0].mxu0
      %v2008 = vadd.f32 0.0, %v2007
      %v2009 = vpop.f32.mrb[0].mxu0
      %2010 = vmatprep.mubr.bf16.mxu0 0
      %2011 = vmatmul.mubr.bf16.gmra.mrb[0].mxu0 %v1297
      %v2012 = vpop.f32.mrb[0].mxu0
      %v2013 = vadd.f32 0.0, %v2012
      %v2014 = vpop.f32.mrb[0].mxu0
      %v2015 = vpop.f32.mrb[0].mxu0
      %v2016 = vadd.f32 0.0, %v2015
      %v2017 = vpop.f32.mrb[0].mxu0
      %2018 = vmatprep.mubr.bf16.mxu0 0
      %2019 = vmatmul.mubr.bf16.gmra.mrb[0].mxu0 %v1300
      %v2020 = vpop.f32.mrb[0].mxu0
      %v2021 = vadd.f32 0.0, %v2020
      %v2022 = vpop.f32.mrb[0].mxu0
      %v2023 = vpop.f32.mrb[0].mxu0
      %v2024 = vadd.f32 0.0, %v2023
      %v2025 = vpop.f32.mrb[0].mxu0
      %2026 = vmatprep.mubr.bf16.mxu0 0
      %2027 = vmatmul.mubr.bf16.gmra.mrb[0].mxu0 %v1303
      %v2028 = vpop.f32.mrb[0].mxu0
      %v2029 = vadd.f32 0.0, %v2028
      %v2030 = vpop.f32.mrb[0].mxu0
      %v2031 = vpop.f32.mrb[0].mxu0
      %v2032 = vadd.f32 0.0, %v2031
      %v2033 = vpop.f32.mrb[0].mxu0
      %2034 = vmatprep.mubr.bf16.mxu0 0
      %2035 = vmatmul.mubr.bf16.gmra.mrb[0].mxu0 %v1306
      %v2036 = vpop.f32.mrb[0].mxu0
      %v2037 = vadd.f32 0.0, %v2036
      %v2038 = vpop.f32.mrb[0].mxu0
      %v2039 = vpop.f32.mrb[0].mxu0
      %v2040 = vadd.f32 0.0, %v2039
      %v2041 = vpop.f32.mrb[0].mxu0
      %2042 = vmatprep.mubr.bf16.mxu0 0
      %2043 = vmatmul.mubr.bf16.gmra.mrb[0].mxu0 %v1309
      %v2044 = vpop.f32.mrb[0].mxu0
      %v2045 = vadd.f32 0.0, %v2044
      %v2046 = vpop.f32.mrb[0].mxu0
      %v2047 = vpop.f32.mrb[0].mxu0
      %v2048 = vadd.f32 0.0, %v2047
      %v2049 = vpop.f32.mrb[0].mxu0
      %2050 = vmatprep.mubr.bf16.mxu0 0
      %2051 = vmatmul.mubr.bf16.gmra.mrb[0].mxu0 %v1312
      %v2052 = vpop.f32.mrb[0].mxu0
      %v2053 = vadd.f32 0.0, %v2052
      %v2054 = vpop.f32.mrb[0].mxu0
      %v2055 = vpop.f32.mrb[0].mxu0
      %v2056 = vadd.f32 0.0, %v2055
      %v2057 = vpop.f32.mrb[0].mxu0
      %2058 = vmatprep.mubr.bf16.mxu0 0
      %2059 = vmatmul.mubr.bf16.gmra.mrb[0].mxu0 %v1315
      %v2060 = vpop.f32.mrb[0].mxu0
      %v2061 = vadd.f32 0.0, %v2060
      %v2062 = vpop.f32.mrb[0].mxu0
      %v2063 = vpop.f32.mrb[0].mxu0
      %v2064 = vadd.f32 0.0, %v2063
      %v2065 = vpop.f32.mrb[0].mxu0
      %2066 = vmatprep.mubr.bf16.mxu0 0
      %2067 = vmatmul.mubr.bf16.gmra.mrb[0].mxu0 %v1318
      %v2068 = vpop.f32.mrb[0].mxu0
      %v2069 = vadd.f32 0.0, %v2068
      %v2070 = vpop.f32.mrb[0].mxu0
      %v2071 = vpop.f32.mrb[0].mxu0
      %v2072 = vadd.f32 0.0, %v2071
      %v2073 = vpop.f32.mrb[0].mxu0
      %2074 = vmatprep.mubr.bf16.mxu0 0
      %2075 = vmatmul.mubr.bf16.gmra.mrb[0].mxu0 %v1321
      %v2076 = vpop.f32.mrb[0].mxu0
      %v2077 = vadd.f32 0.0, %v2076
      %v2078 = vpop.f32.mrb[0].mxu0
      %v2079 = vpop.f32.mrb[0].mxu0
      %v2080 = vadd.f32 0.0, %v2079
      %v2081 = vpop.f32.mrb[0].mxu0
      %2082 = vmatprep.mubr.bf16.mxu0 0
      %2083 = vmatmul.mubr.bf16.gmra.mrb[0].mxu0 %v1324
      %v2084 = vpop.f32.mrb[0].mxu0
      %v2085 = vadd.f32 0.0, %v2084
      %v2086 = vpop.f32.mrb[0].mxu0
      %v2087 = vpop.f32.mrb[0].mxu0
      %v2088 = vadd.f32 0.0, %v2087
      %v2089 = vpop.f32.mrb[0].mxu0
      %2090 = vmatprep.mubr.bf16.mxu0 0
      %2091 = vmatmul.mubr.bf16.gmra.mrb[0].mxu0 %v1327
      %v2092 = vpop.f32.mrb[0].mxu0
      %v2093 = vadd.f32 0.0, %v2092
      %v2094 = vpop.f32.mrb[0].mxu0
      %v2095 = vpop.f32.mrb[0].mxu0
      %v2096 = vadd.f32 0.0, %v2095
      %v2097 = vpop.f32.mrb[0].mxu0
      %2098 = vmatprep.mubr.bf16.mxu0 0
      %2099 = vmatmul.mubr.bf16.gmra.mrb[0].mxu0 %v1330
      %v2100 = vpop.f32.mrb[0].mxu0
      %v2101 = vadd.f32 0.0, %v2100
      %v2102 = vpop.f32.mrb[0].mxu0
      %v2103 = vpop.f32.mrb[0].mxu0
      %v2104 = vadd.f32 0.0, %v2103
      %v2105 = vpop.f32.mrb[0].mxu0
      %2106 = vmatprep.mubr.bf16.mxu0 0
      %2107 = vmatmul.mubr.bf16.gmra.mrb[0].mxu0 %v1949
      %v2108 = vpop.f32.mrb[0].mxu0
      %v2109 = vadd.f32 0.0, %v2108
      %v2110 = vpop.f32.mrb[0].mxu0
      %v2111 = vpop.f32.mrb[0].mxu0
      %v2112 = vadd.f32 0.0, %v2111
      %v2113 = vpop.f32.mrb[0].mxu0
      %2114 = vdwg.mxu0
      %v2115 = vadd.f32 %v1909, %v1989
      %v2116 = vadd.f32 %v1910, %v1992
      %v2117 = vadd.f32 %v1911, %v1997
      %v2118 = vadd.f32 %v1912, %v2000
      %v2119 = vadd.f32 %v1913, %v2005
      %v2120 = vadd.f32 %v1914, %v2008
      %v2121 = vadd.f32 %v1915, %v2013
      %v2122 = vadd.f32 %v1916, %v2016
      %v2123 = vadd.f32 %v1917, %v2021
      %v2124 = vadd.f32 %v1918, %v2024
      %v2125 = vadd.f32 %v1919, %v2029
      %v2126 = vadd.f32 %v1920, %v2032
      %v2127 = vadd.f32 %v1921, %v2037
      %v2128 = vadd.f32 %v1922, %v2040
      %v2129 = vadd.f32 %v1923, %v2045
      %v2130 = vadd.f32 %v1924, %v2048
      %v2131 = vadd.f32 %v1925, %v2053
      %v2132 = vadd.f32 %v1926, %v2056
      %v2133 = vadd.f32 %v1927, %v2061
      %v2134 = vadd.f32 %v1928, %v2064
      %v2135 = vadd.f32 %v1929, %v2069
      %v2136 = vadd.f32 %v1930, %v2072
      %v2137 = vadd.f32 %v1931, %v2077
      %v2138 = vadd.f32 %v1932, %v2080
      %v2139 = vadd.f32 %v1933, %v2085
      %v2140 = vadd.f32 %v1934, %v2088
      %v2141 = vadd.f32 %v1935, %v2093
      %v2142 = vadd.f32 %v1936, %v2096
      %v2143 = vadd.f32 %v1937, %v2101
      %v2144 = vadd.f32 %v1938, %v2104
      %v2145 = vadd.f32 %v1939, %v2109
      %v2146 = vadd.f32 %v1940, %v2112
      %s2147 = scalar_lea.vmem %s1, 12
      %v2148 = vld [vmem:[%s2147] sm:$0x3]
      %v2150 = vsel %vm791, %v593, 0
      %v2153 = vsel %vm840, %v2148, 0
      %2155 = vmatprep.subr.bf16.mxu0 0
      %2156 = vmatpush1.bf16.msra.mxu0 %v2153
      %2157 = vmatprep.subr.bf16.mxu0 0
      %2158 = vmatpush1.bf16.msra.mxu0 0
      %2159 = vmatprep.subr.bf16.mxu0 0
      %2160 = vmatpush1.bf16.msra.mxu0 0
      %2161 = vmatprep.subr.bf16.mxu0 0
      %2162 = vmatpush1.bf16.msra.mxu0 0
      %2163 = vmatprep.subr.bf16.mxu0 0
      %2164 = vmatpush1.bf16.msra.mxu0 0
      %2165 = vmatprep.subr.bf16.mxu0 0
      %2166 = vmatpush1.bf16.msra.mxu0 0
      %2167 = vmatprep.subr.bf16.mxu0 0
      %2168 = vmatpush1.bf16.msra.mxu0 0
      %2169 = vmatprep.subr.bf16.mxu0 0
      %2170 = vmatpush1.bf16.msra.mxu0 0
      %2171 = vmatprep.subr.bf16.mxu0 0
      %2172 = vmatpush1.bf16.msra.mxu0 0
      %2173 = vmatprep.subr.bf16.mxu0 0
      %2174 = vmatpush1.bf16.msra.mxu0 0
      %2175 = vmatprep.subr.bf16.mxu0 0
      %2176 = vmatpush1.bf16.msra.mxu0 0
      %2177 = vmatprep.subr.bf16.mxu0 0
      %2178 = vmatpush1.bf16.msra.mxu0 0
      %2179 = vmatprep.subr.bf16.mxu0 0
      %2180 = vmatpush1.bf16.msra.mxu0 0
      %2181 = vmatprep.subr.bf16.mxu0 0
      %2182 = vmatpush1.bf16.msra.mxu0 0
      %2183 = vmatprep.subr.bf16.mxu0 0
      %2184 = vmatpush1.bf16.msra.mxu0 0
      %2185 = vmatprep.subr.bf16.mxu0 0
      %2186 = vmatpush1.bf16.msra.mxu0 0
      %2187 = vmatprep.mubr.bf16.mxu0 0
      %2188 = vmatmul.mubr.bf16.gmra.mrb[0].mxu0 %v1009
      %v2189 = vpop.f32.mrb[0].mxu0
      %v2190 = vadd.f32 0.0, %v2189
      %v2191 = vpop.f32.mrb[0].mxu0
      %v2192 = vpop.f32.mrb[0].mxu0
      %v2193 = vadd.f32 0.0, %v2192
      %v2194 = vpop.f32.mrb[0].mxu0
      %2195 = vmatprep.mubr.bf16.mxu0 0
      %2196 = vmatmul.mubr.bf16.gmra.mrb[0].mxu0 %v1011
      %v2197 = vpop.f32.mrb[0].mxu0
      %v2198 = vadd.f32 0.0, %v2197
      %v2199 = vpop.f32.mrb[0].mxu0
      %v2200 = vpop.f32.mrb[0].mxu0
      %v2201 = vadd.f32 0.0, %v2200
      %v2202 = vpop.f32.mrb[0].mxu0
      %2203 = vmatprep.mubr.bf16.mxu0 0
      %2204 = vmatmul.mubr.bf16.gmra.mrb[0].mxu0 %v1013
      %v2205 = vpop.f32.mrb[0].mxu0
      %v2206 = vadd.f32 0.0, %v2205
      %v2207 = vpop.f32.mrb[0].mxu0
      %v2208 = vpop.f32.mrb[0].mxu0
      %v2209 = vadd.f32 0.0, %v2208
      %v2210 = vpop.f32.mrb[0].mxu0
      %2211 = vmatprep.mubr.bf16.mxu0 0
      %2212 = vmatmul.mubr.bf16.gmra.mrb[0].mxu0 %v1015
      %v2213 = vpop.f32.mrb[0].mxu0
      %v2214 = vadd.f32 0.0, %v2213
      %v2215 = vpop.f32.mrb[0].mxu0
      %v2216 = vpop.f32.mrb[0].mxu0
      %v2217 = vadd.f32 0.0, %v2216
      %v2218 = vpop.f32.mrb[0].mxu0
      %2219 = vmatprep.mubr.bf16.mxu0 0
      %2220 = vmatmul.mubr.bf16.gmra.mrb[0].mxu0 %v1017
      %v2221 = vpop.f32.mrb[0].mxu0
      %v2222 = vadd.f32 0.0, %v2221
      %v2223 = vpop.f32.mrb[0].mxu0
      %v2224 = vpop.f32.mrb[0].mxu0
      %v2225 = vadd.f32 0.0, %v2224
      %v2226 = vpop.f32.mrb[0].mxu0
      %2227 = vmatprep.mubr.bf16.mxu0 0
      %2228 = vmatmul.mubr.bf16.gmra.mrb[0].mxu0 %v1019
      %v2229 = vpop.f32.mrb[0].mxu0
      %v2230 = vadd.f32 0.0, %v2229
      %v2231 = vpop.f32.mrb[0].mxu0
      %v2232 = vpop.f32.mrb[0].mxu0
      %v2233 = vadd.f32 0.0, %v2232
      %v2234 = vpop.f32.mrb[0].mxu0
      %2235 = vmatprep.mubr.bf16.mxu0 0
      %2236 = vmatmul.mubr.bf16.gmra.mrb[0].mxu0 %v1021
      %v2237 = vpop.f32.mrb[0].mxu0
      %v2238 = vadd.f32 0.0, %v2237
      %v2239 = vpop.f32.mrb[0].mxu0
      %v2240 = vpop.f32.mrb[0].mxu0
      %v2241 = vadd.f32 0.0, %v2240
      %v2242 = vpop.f32.mrb[0].mxu0
      %2243 = vmatprep.mubr.bf16.mxu0 0
      %2244 = vmatmul.mubr.bf16.gmra.mrb[0].mxu0 %v1023
      %v2245 = vpop.f32.mrb[0].mxu0
      %v2246 = vadd.f32 0.0, %v2245
      %v2247 = vpop.f32.mrb[0].mxu0
      %v2248 = vpop.f32.mrb[0].mxu0
      %v2249 = vadd.f32 0.0, %v2248
      %v2250 = vpop.f32.mrb[0].mxu0
      %2251 = vmatprep.mubr.bf16.mxu0 0
      %2252 = vmatmul.mubr.bf16.gmra.mrb[0].mxu0 %v1025
      %v2253 = vpop.f32.mrb[0].mxu0
      %v2254 = vadd.f32 0.0, %v2253
      %v2255 = vpop.f32.mrb[0].mxu0
      %v2256 = vpop.f32.mrb[0].mxu0
      %v2257 = vadd.f32 0.0, %v2256
      %v2258 = vpop.f32.mrb[0].mxu0
      %2259 = vmatprep.mubr.bf16.mxu0 0
      %2260 = vmatmul.mubr.bf16.gmra.mrb[0].mxu0 %v1027
      %v2261 = vpop.f32.mrb[0].mxu0
      %v2262 = vadd.f32 0.0, %v2261
      %v2263 = vpop.f32.mrb[0].mxu0
      %v2264 = vpop.f32.mrb[0].mxu0
      %v2265 = vadd.f32 0.0, %v2264
      %v2266 = vpop.f32.mrb[0].mxu0
      %2267 = vmatprep.mubr.bf16.mxu0 0
      %2268 = vmatmul.mubr.bf16.gmra.mrb[0].mxu0 %v1029
      %v2269 = vpop.f32.mrb[0].mxu0
      %v2270 = vadd.f32 0.0, %v2269
      %v2271 = vpop.f32.mrb[0].mxu0
      %v2272 = vpop.f32.mrb[0].mxu0
      %v2273 = vadd.f32 0.0, %v2272
      %v2274 = vpop.f32.mrb[0].mxu0
      %2275 = vmatprep.mubr.bf16.mxu0 0
      %2276 = vmatmul.mubr.bf16.gmra.mrb[0].mxu0 %v1031
      %v2277 = vpop.f32.mrb[0].mxu0
      %v2278 = vadd.f32 0.0, %v2277
      %v2279 = vpop.f32.mrb[0].mxu0
      %v2280 = vpop.f32.mrb[0].mxu0
      %v2281 = vadd.f32 0.0, %v2280
      %v2282 = vpop.f32.mrb[0].mxu0
      %2283 = vmatprep.mubr.bf16.mxu0 0
      %2284 = vmatmul.mubr.bf16.gmra.mrb[0].mxu0 %v1033
      %v2285 = vpop.f32.mrb[0].mxu0
      %v2286 = vadd.f32 0.0, %v2285
      %v2287 = vpop.f32.mrb[0].mxu0
      %v2288 = vpop.f32.mrb[0].mxu0
      %v2289 = vadd.f32 0.0, %v2288
      %v2290 = vpop.f32.mrb[0].mxu0
      %2291 = vmatprep.mubr.bf16.mxu0 0
      %2292 = vmatmul.mubr.bf16.gmra.mrb[0].mxu0 %v1035
      %v2293 = vpop.f32.mrb[0].mxu0
      %v2294 = vadd.f32 0.0, %v2293
      %v2295 = vpop.f32.mrb[0].mxu0
      %v2296 = vpop.f32.mrb[0].mxu0
      %v2297 = vadd.f32 0.0, %v2296
      %v2298 = vpop.f32.mrb[0].mxu0
      %2299 = vmatprep.mubr.bf16.mxu0 0
      %2300 = vmatmul.mubr.bf16.gmra.mrb[0].mxu0 %v1531
      %v2301 = vpop.f32.mrb[0].mxu0
      %v2302 = vadd.f32 0.0, %v2301
      %v2303 = vpop.f32.mrb[0].mxu0
      %v2304 = vpop.f32.mrb[0].mxu0
      %v2305 = vadd.f32 0.0, %v2304
      %v2306 = vpop.f32.mrb[0].mxu0
      %2307 = vmatprep.mubr.bf16.mxu0 0
      %2308 = vmatmul.mubr.bf16.gmra.mrb[0].mxu0 %v2150
      %v2309 = vpop.f32.mrb[0].mxu0
      %v2310 = vadd.f32 0.0, %v2309
      %v2311 = vpop.f32.mrb[0].mxu0
      %v2312 = vpop.f32.mrb[0].mxu0
      %v2313 = vadd.f32 0.0, %v2312
      %v2314 = vpop.f32.mrb[0].mxu0
      %2315 = vdwg.mxu0
      %v2316 = vadd.f32 %v2115, %v2190
      %v2317 = vadd.f32 %v2116, %v2193
      %v2318 = vadd.f32 %v2117, %v2198
      %v2319 = vadd.f32 %v2118, %v2201
      %v2320 = vadd.f32 %v2119, %v2206
      %v2321 = vadd.f32 %v2120, %v2209
      %v2322 = vadd.f32 %v2121, %v2214
      %v2323 = vadd.f32 %v2122, %v2217
      %v2324 = vadd.f32 %v2123, %v2222
      %v2325 = vadd.f32 %v2124, %v2225
      %v2326 = vadd.f32 %v2125, %v2230
      %v2327 = vadd.f32 %v2126, %v2233
      %v2328 = vadd.f32 %v2127, %v2238
      %v2329 = vadd.f32 %v2128, %v2241
      %v2330 = vadd.f32 %v2129, %v2246
      %v2331 = vadd.f32 %v2130, %v2249
      %v2332 = vadd.f32 %v2131, %v2254
      %v2333 = vadd.f32 %v2132, %v2257
      %v2334 = vadd.f32 %v2133, %v2262
      %v2335 = vadd.f32 %v2134, %v2265
      %v2336 = vadd.f32 %v2135, %v2270
      %v2337 = vadd.f32 %v2136, %v2273
      %v2338 = vadd.f32 %v2137, %v2278
      %v2339 = vadd.f32 %v2138, %v2281
      %v2340 = vadd.f32 %v2139, %v2286
      %v2341 = vadd.f32 %v2140, %v2289
      %v2342 = vadd.f32 %v2141, %v2294
      %v2343 = vadd.f32 %v2142, %v2297
      %v2344 = vadd.f32 %v2143, %v2302
      %v2345 = vadd.f32 %v2144, %v2305
      %v2346 = vadd.f32 %v2145, %v2310
      %v2347 = vadd.f32 %v2146, %v2313
      %v2348 = vshrl.u32 %v593, 16
      %v2350 = vshll.u32 %v593, 16
      %v2352 = vrot.slane %v2350, 1
      %v2353 = vor.u32 %v2348, %v2352
      %v2355 = vshll.u32 %v594, 16
      %v2357 = vrot.slane %v2355, 1
      %v2358 = vsel %vm596, %v2353, %v2357
      %s2359 = scalar_lea.vmem %s1, 14
      %v2360 = vld [vmem:[%s2359] sm:$0x3]
      %v2362 = vsel %vm791, %v2358, 0
      %v2365 = vsel %vm840, %v2360, 0
      %2367 = vmatprep.subr.bf16.mxu0 0
      %2368 = vmatpush1.bf16.msra.mxu0 %v2365
      %2369 = vmatprep.subr.bf16.mxu0 0
      %2370 = vmatpush1.bf16.msra.mxu0 0
      %2371 = vmatprep.subr.bf16.mxu0 0
      %2372 = vmatpush1.bf16.msra.mxu0 0
      %2373 = vmatprep.subr.bf16.mxu0 0
      %2374 = vmatpush1.bf16.msra.mxu0 0
      %2375 = vmatprep.subr.bf16.mxu0 0
      %2376 = vmatpush1.bf16.msra.mxu0 0
      %2377 = vmatprep.subr.bf16.mxu0 0
      %2378 = vmatpush1.bf16.msra.mxu0 0
      %2379 = vmatprep.subr.bf16.mxu0 0
      %2380 = vmatpush1.bf16.msra.mxu0 0
      %2381 = vmatprep.subr.bf16.mxu0 0
      %2382 = vmatpush1.bf16.msra.mxu0 0
      %2383 = vmatprep.subr.bf16.mxu0 0
      %2384 = vmatpush1.bf16.msra.mxu0 0
      %2385 = vmatprep.subr.bf16.mxu0 0
      %2386 = vmatpush1.bf16.msra.mxu0 0
      %2387 = vmatprep.subr.bf16.mxu0 0
      %2388 = vmatpush1.bf16.msra.mxu0 0
      %2389 = vmatprep.subr.bf16.mxu0 0
      %2390 = vmatpush1.bf16.msra.mxu0 0
      %2391 = vmatprep.subr.bf16.mxu0 0
      %2392 = vmatpush1.bf16.msra.mxu0 0
      %2393 = vmatprep.subr.bf16.mxu0 0
      %2394 = vmatpush1.bf16.msra.mxu0 0
      %2395 = vmatprep.subr.bf16.mxu0 0
      %2396 = vmatpush1.bf16.msra.mxu0 0
      %2397 = vmatprep.subr.bf16.mxu0 0
      %2398 = vmatpush1.bf16.msra.mxu0 0
      %2399 = vmatprep.mubr.bf16.mxu0 0
      %2400 = vmatmul.mubr.bf16.gmra.mrb[0].mxu0 %v799
      %v2401 = vpop.f32.mrb[0].mxu0
      %v2402 = vadd.f32 0.0, %v2401
      %v2403 = vpop.f32.mrb[0].mxu0
      %v2404 = vpop.f32.mrb[0].mxu0
      %v2405 = vadd.f32 0.0, %v2404
      %v2406 = vpop.f32.mrb[0].mxu0
      %2407 = vmatprep.mubr.bf16.mxu0 0
      %2408 = vmatmul.mubr.bf16.gmra.mrb[0].mxu0 %v802
      %v2409 = vpop.f32.mrb[0].mxu0
      %v2410 = vadd.f32 0.0, %v2409
      %v2411 = vpop.f32.mrb[0].mxu0
      %v2412 = vpop.f32.mrb[0].mxu0
      %v2413 = vadd.f32 0.0, %v2412
      %v2414 = vpop.f32.mrb[0].mxu0
      %2415 = vmatprep.mubr.bf16.mxu0 0
      %2416 = vmatmul.mubr.bf16.gmra.mrb[0].mxu0 %v805
      %v2417 = vpop.f32.mrb[0].mxu0
      %v2418 = vadd.f32 0.0, %v2417
      %v2419 = vpop.f32.mrb[0].mxu0
      %v2420 = vpop.f32.mrb[0].mxu0
      %v2421 = vadd.f32 0.0, %v2420
      %v2422 = vpop.f32.mrb[0].mxu0
      %2423 = vmatprep.mubr.bf16.mxu0 0
      %2424 = vmatmul.mubr.bf16.gmra.mrb[0].mxu0 %v808
      %v2425 = vpop.f32.mrb[0].mxu0
      %v2426 = vadd.f32 0.0, %v2425
      %v2427 = vpop.f32.mrb[0].mxu0
      %v2428 = vpop.f32.mrb[0].mxu0
      %v2429 = vadd.f32 0.0, %v2428
      %v2430 = vpop.f32.mrb[0].mxu0
      %2431 = vmatprep.mubr.bf16.mxu0 0
      %2432 = vmatmul.mubr.bf16.gmra.mrb[0].mxu0 %v811
      %v2433 = vpop.f32.mrb[0].mxu0
      %v2434 = vadd.f32 0.0, %v2433
      %v2435 = vpop.f32.mrb[0].mxu0
      %v2436 = vpop.f32.mrb[0].mxu0
      %v2437 = vadd.f32 0.0, %v2436
      %v2438 = vpop.f32.mrb[0].mxu0
      %2439 = vmatprep.mubr.bf16.mxu0 0
      %2440 = vmatmul.mubr.bf16.gmra.mrb[0].mxu0 %v814
      %v2441 = vpop.f32.mrb[0].mxu0
      %v2442 = vadd.f32 0.0, %v2441
      %v2443 = vpop.f32.mrb[0].mxu0
      %v2444 = vpop.f32.mrb[0].mxu0
      %v2445 = vadd.f32 0.0, %v2444
      %v2446 = vpop.f32.mrb[0].mxu0
      %2447 = vmatprep.mubr.bf16.mxu0 0
      %2448 = vmatmul.mubr.bf16.gmra.mrb[0].mxu0 %v817
      %v2449 = vpop.f32.mrb[0].mxu0
      %v2450 = vadd.f32 0.0, %v2449
      %v2451 = vpop.f32.mrb[0].mxu0
      %v2452 = vpop.f32.mrb[0].mxu0
      %v2453 = vadd.f32 0.0, %v2452
      %v2454 = vpop.f32.mrb[0].mxu0
      %2455 = vmatprep.mubr.bf16.mxu0 0
      %2456 = vmatmul.mubr.bf16.gmra.mrb[0].mxu0 %v820
      %v2457 = vpop.f32.mrb[0].mxu0
      %v2458 = vadd.f32 0.0, %v2457
      %v2459 = vpop.f32.mrb[0].mxu0
      %v2460 = vpop.f32.mrb[0].mxu0
      %v2461 = vadd.f32 0.0, %v2460
      %v2462 = vpop.f32.mrb[0].mxu0
      %2463 = vmatprep.mubr.bf16.mxu0 0
      %2464 = vmatmul.mubr.bf16.gmra.mrb[0].mxu0 %v823
      %v2465 = vpop.f32.mrb[0].mxu0
      %v2466 = vadd.f32 0.0, %v2465
      %v2467 = vpop.f32.mrb[0].mxu0
      %v2468 = vpop.f32.mrb[0].mxu0
      %v2469 = vadd.f32 0.0, %v2468
      %v2470 = vpop.f32.mrb[0].mxu0
      %2471 = vmatprep.mubr.bf16.mxu0 0
      %2472 = vmatmul.mubr.bf16.gmra.mrb[0].mxu0 %v826
      %v2473 = vpop.f32.mrb[0].mxu0
      %v2474 = vadd.f32 0.0, %v2473
      %v2475 = vpop.f32.mrb[0].mxu0
      %v2476 = vpop.f32.mrb[0].mxu0
      %v2477 = vadd.f32 0.0, %v2476
      %v2478 = vpop.f32.mrb[0].mxu0
      %2479 = vmatprep.mubr.bf16.mxu0 0
      %2480 = vmatmul.mubr.bf16.gmra.mrb[0].mxu0 %v829
      %v2481 = vpop.f32.mrb[0].mxu0
      %v2482 = vadd.f32 0.0, %v2481
      %v2483 = vpop.f32.mrb[0].mxu0
      %v2484 = vpop.f32.mrb[0].mxu0
      %v2485 = vadd.f32 0.0, %v2484
      %v2486 = vpop.f32.mrb[0].mxu0
      %2487 = vmatprep.mubr.bf16.mxu0 0
      %2488 = vmatmul.mubr.bf16.gmra.mrb[0].mxu0 %v832
      %v2489 = vpop.f32.mrb[0].mxu0
      %v2490 = vadd.f32 0.0, %v2489
      %v2491 = vpop.f32.mrb[0].mxu0
      %v2492 = vpop.f32.mrb[0].mxu0
      %v2493 = vadd.f32 0.0, %v2492
      %v2494 = vpop.f32.mrb[0].mxu0
      %2495 = vmatprep.mubr.bf16.mxu0 0
      %2496 = vmatmul.mubr.bf16.gmra.mrb[0].mxu0 %v835
      %v2497 = vpop.f32.mrb[0].mxu0
      %v2498 = vadd.f32 0.0, %v2497
      %v2499 = vpop.f32.mrb[0].mxu0
      %v2500 = vpop.f32.mrb[0].mxu0
      %v2501 = vadd.f32 0.0, %v2500
      %v2502 = vpop.f32.mrb[0].mxu0
      %2503 = vmatprep.mubr.bf16.mxu0 0
      %2504 = vmatmul.mubr.bf16.gmra.mrb[0].mxu0 %v838
      %v2505 = vpop.f32.mrb[0].mxu0
      %v2506 = vadd.f32 0.0, %v2505
      %v2507 = vpop.f32.mrb[0].mxu0
      %v2508 = vpop.f32.mrb[0].mxu0
      %v2509 = vadd.f32 0.0, %v2508
      %v2510 = vpop.f32.mrb[0].mxu0
      %2511 = vmatprep.mubr.bf16.mxu0 0
      %2512 = vmatmul.mubr.bf16.gmra.mrb[0].mxu0 %v1743
      %v2513 = vpop.f32.mrb[0].mxu0
      %v2514 = vadd.f32 0.0, %v2513
      %v2515 = vpop.f32.mrb[0].mxu0
      %v2516 = vpop.f32.mrb[0].mxu0
      %v2517 = vadd.f32 0.0, %v2516
      %v2518 = vpop.f32.mrb[0].mxu0
      %2519 = vmatprep.mubr.bf16.mxu0 0
      %2520 = vmatmul.mubr.bf16.gmra.mrb[0].mxu0 %v2362
      %v2521 = vpop.f32.mrb[0].mxu0
      %v2522 = vadd.f32 0.0, %v2521
      %v2523 = vpop.f32.mrb[0].mxu0
      %v2524 = vpop.f32.mrb[0].mxu0
      %v2525 = vadd.f32 0.0, %v2524
      %v2526 = vpop.f32.mrb[0].mxu0
      %2527 = vdwg.mxu0
      %v2528 = vadd.f32 %v2316, %v2402
      %v2529 = vadd.f32 %v2317, %v2405
      %v2530 = vadd.f32 %v2318, %v2410
      %v2531 = vadd.f32 %v2319, %v2413
      %v2532 = vadd.f32 %v2320, %v2418
      %v2533 = vadd.f32 %v2321, %v2421
      %v2534 = vadd.f32 %v2322, %v2426
      %v2535 = vadd.f32 %v2323, %v2429
      %v2536 = vadd.f32 %v2324, %v2434
      %v2537 = vadd.f32 %v2325, %v2437
      %v2538 = vadd.f32 %v2326, %v2442
      %v2539 = vadd.f32 %v2327, %v2445
      %v2540 = vadd.f32 %v2328, %v2450
      %v2541 = vadd.f32 %v2329, %v2453
      %v2542 = vadd.f32 %v2330, %v2458
      %v2543 = vadd.f32 %v2331, %v2461
      %v2544 = vadd.f32 %v2332, %v2466
      %v2545 = vadd.f32 %v2333, %v2469
      %v2546 = vadd.f32 %v2334, %v2474
      %v2547 = vadd.f32 %v2335, %v2477
      %v2548 = vadd.f32 %v2336, %v2482
      %v2549 = vadd.f32 %v2337, %v2485
      %v2550 = vadd.f32 %v2338, %v2490
      %v2551 = vadd.f32 %v2339, %v2493
      %v2552 = vadd.f32 %v2340, %v2498
      %v2553 = vadd.f32 %v2341, %v2501
      %v2554 = vadd.f32 %v2342, %v2506
      %v2555 = vadd.f32 %v2343, %v2509
      %v2556 = vadd.f32 %v2344, %v2514
      %v2557 = vadd.f32 %v2345, %v2517
      %v2558 = vadd.f32 %v2346, %v2522
      %v2559 = vadd.f32 %v2347, %v2525
      %v2562 = vrot.slane %v593, 1
      %v2563 = vrot.slane %v594, 1
      %v2564 = vsel %vm1233, %v2562, %v2563
      %s2565 = scalar_lea.vmem %s1, 16
      %v2566 = vld [vmem:[%s2565] sm:$0x3]
      %v2568 = vsel %vm791, %v2564, 0
      %v2571 = vsel %vm840, %v2566, 0
      %2573 = vmatprep.subr.bf16.mxu0 0
      %2574 = vmatpush1.bf16.msra.mxu0 %v2571
      %2575 = vmatprep.subr.bf16.mxu0 0
      %2576 = vmatpush1.bf16.msra.mxu0 0
      %2577 = vmatprep.subr.bf16.mxu0 0
      %2578 = vmatpush1.bf16.msra.mxu0 0
      %2579 = vmatprep.subr.bf16.mxu0 0
      %2580 = vmatpush1.bf16.msra.mxu0 0
      %2581 = vmatprep.subr.bf16.mxu0 0
      %2582 = vmatpush1.bf16.msra.mxu0 0
      %2583 = vmatprep.subr.bf16.mxu0 0
      %2584 = vmatpush1.bf16.msra.mxu0 0
      %2585 = vmatprep.subr.bf16.mxu0 0
      %2586 = vmatpush1.bf16.msra.mxu0 0
      %2587 = vmatprep.subr.bf16.mxu0 0
      %2588 = vmatpush1.bf16.msra.mxu0 0
      %2589 = vmatprep.subr.bf16.mxu0 0
      %2590 = vmatpush1.bf16.msra.mxu0 0
      %2591 = vmatprep.subr.bf16.mxu0 0
      %2592 = vmatpush1.bf16.msra.mxu0 0
      %2593 = vmatprep.subr.bf16.mxu0 0
      %2594 = vmatpush1.bf16.msra.mxu0 0
      %2595 = vmatprep.subr.bf16.mxu0 0
      %2596 = vmatpush1.bf16.msra.mxu0 0
      %2597 = vmatprep.subr.bf16.mxu0 0
      %2598 = vmatpush1.bf16.msra.mxu0 0
      %2599 = vmatprep.subr.bf16.mxu0 0
      %2600 = vmatpush1.bf16.msra.mxu0 0
      %2601 = vmatprep.subr.bf16.mxu0 0
      %2602 = vmatpush1.bf16.msra.mxu0 0
      %2603 = vmatprep.subr.bf16.mxu0 0
      %2604 = vmatpush1.bf16.msra.mxu0 0
      %2605 = vmatprep.mubr.bf16.mxu0 0
      %2606 = vmatmul.mubr.bf16.gmra.mrb[0].mxu0 %v1291
      %v2607 = vpop.f32.mrb[0].mxu0
      %v2608 = vadd.f32 0.0, %v2607
      %v2609 = vpop.f32.mrb[0].mxu0
      %v2610 = vpop.f32.mrb[0].mxu0
      %v2611 = vadd.f32 0.0, %v2610
      %v2612 = vpop.f32.mrb[0].mxu0
      %2613 = vmatprep.mubr.bf16.mxu0 0
      %2614 = vmatmul.mubr.bf16.gmra.mrb[0].mxu0 %v1294
      %v2615 = vpop.f32.mrb[0].mxu0
      %v2616 = vadd.f32 0.0, %v2615
      %v2617 = vpop.f32.mrb[0].mxu0
      %v2618 = vpop.f32.mrb[0].mxu0
      %v2619 = vadd.f32 0.0, %v2618
      %v2620 = vpop.f32.mrb[0].mxu0
      %2621 = vmatprep.mubr.bf16.mxu0 0
      %2622 = vmatmul.mubr.bf16.gmra.mrb[0].mxu0 %v1297
      %v2623 = vpop.f32.mrb[0].mxu0
      %v2624 = vadd.f32 0.0, %v2623
      %v2625 = vpop.f32.mrb[0].mxu0
      %v2626 = vpop.f32.mrb[0].mxu0
      %v2627 = vadd.f32 0.0, %v2626
      %v2628 = vpop.f32.mrb[0].mxu0
      %2629 = vmatprep.mubr.bf16.mxu0 0
      %2630 = vmatmul.mubr.bf16.gmra.mrb[0].mxu0 %v1300
      %v2631 = vpop.f32.mrb[0].mxu0
      %v2632 = vadd.f32 0.0, %v2631
      %v2633 = vpop.f32.mrb[0].mxu0
      %v2634 = vpop.f32.mrb[0].mxu0
      %v2635 = vadd.f32 0.0, %v2634
      %v2636 = vpop.f32.mrb[0].mxu0
      %2637 = vmatprep.mubr.bf16.mxu0 0
      %2638 = vmatmul.mubr.bf16.gmra.mrb[0].mxu0 %v1303
      %v2639 = vpop.f32.mrb[0].mxu0
      %v2640 = vadd.f32 0.0, %v2639
      %v2641 = vpop.f32.mrb[0].mxu0
      %v2642 = vpop.f32.mrb[0].mxu0
      %v2643 = vadd.f32 0.0, %v2642
      %v2644 = vpop.f32.mrb[0].mxu0
      %2645 = vmatprep.mubr.bf16.mxu0 0
      %2646 = vmatmul.mubr.bf16.gmra.mrb[0].mxu0 %v1306
      %v2647 = vpop.f32.mrb[0].mxu0
      %v2648 = vadd.f32 0.0, %v2647
      %v2649 = vpop.f32.mrb[0].mxu0
      %v2650 = vpop.f32.mrb[0].mxu0
      %v2651 = vadd.f32 0.0, %v2650
      %v2652 = vpop.f32.mrb[0].mxu0
      %2653 = vmatprep.mubr.bf16.mxu0 0
      %2654 = vmatmul.mubr.bf16.gmra.mrb[0].mxu0 %v1309
      %v2655 = vpop.f32.mrb[0].mxu0
      %v2656 = vadd.f32 0.0, %v2655
      %v2657 = vpop.f32.mrb[0].mxu0
      %v2658 = vpop.f32.mrb[0].mxu0
      %v2659 = vadd.f32 0.0, %v2658
      %v2660 = vpop.f32.mrb[0].mxu0
      %2661 = vmatprep.mubr.bf16.mxu0 0
      %2662 = vmatmul.mubr.bf16.gmra.mrb[0].mxu0 %v1312
      %v2663 = vpop.f32.mrb[0].mxu0
      %v2664 = vadd.f32 0.0, %v2663
      %v2665 = vpop.f32.mrb[0].mxu0
      %v2666 = vpop.f32.mrb[0].mxu0
      %v2667 = vadd.f32 0.0, %v2666
      %v2668 = vpop.f32.mrb[0].mxu0
      %2669 = vmatprep.mubr.bf16.mxu0 0
      %2670 = vmatmul.mubr.bf16.gmra.mrb[0].mxu0 %v1315
      %v2671 = vpop.f32.mrb[0].mxu0
      %v2672 = vadd.f32 0.0, %v2671
      %v2673 = vpop.f32.mrb[0].mxu0
      %v2674 = vpop.f32.mrb[0].mxu0
      %v2675 = vadd.f32 0.0, %v2674
      %v2676 = vpop.f32.mrb[0].mxu0
      %2677 = vmatprep.mubr.bf16.mxu0 0
      %2678 = vmatmul.mubr.bf16.gmra.mrb[0].mxu0 %v1318
      %v2679 = vpop.f32.mrb[0].mxu0
      %v2680 = vadd.f32 0.0, %v2679
      %v2681 = vpop.f32.mrb[0].mxu0
      %v2682 = vpop.f32.mrb[0].mxu0
      %v2683 = vadd.f32 0.0, %v2682
      %v2684 = vpop.f32.mrb[0].mxu0
      %2685 = vmatprep.mubr.bf16.mxu0 0
      %2686 = vmatmul.mubr.bf16.gmra.mrb[0].mxu0 %v1321
      %v2687 = vpop.f32.mrb[0].mxu0
      %v2688 = vadd.f32 0.0, %v2687
      %v2689 = vpop.f32.mrb[0].mxu0
      %v2690 = vpop.f32.mrb[0].mxu0
      %v2691 = vadd.f32 0.0, %v2690
      %v2692 = vpop.f32.mrb[0].mxu0
      %2693 = vmatprep.mubr.bf16.mxu0 0
      %2694 = vmatmul.mubr.bf16.gmra.mrb[0].mxu0 %v1324
      %v2695 = vpop.f32.mrb[0].mxu0
      %v2696 = vadd.f32 0.0, %v2695
      %v2697 = vpop.f32.mrb[0].mxu0
      %v2698 = vpop.f32.mrb[0].mxu0
      %v2699 = vadd.f32 0.0, %v2698
      %v2700 = vpop.f32.mrb[0].mxu0
      %2701 = vmatprep.mubr.bf16.mxu0 0
      %2702 = vmatmul.mubr.bf16.gmra.mrb[0].mxu0 %v1327
      %v2703 = vpop.f32.mrb[0].mxu0
      %v2704 = vadd.f32 0.0, %v2703
      %v2705 = vpop.f32.mrb[0].mxu0
      %v2706 = vpop.f32.mrb[0].mxu0
      %v2707 = vadd.f32 0.0, %v2706
      %v2708 = vpop.f32.mrb[0].mxu0
      %2709 = vmatprep.mubr.bf16.mxu0 0
      %2710 = vmatmul.mubr.bf16.gmra.mrb[0].mxu0 %v1330
      %v2711 = vpop.f32.mrb[0].mxu0
      %v2712 = vadd.f32 0.0, %v2711
      %v2713 = vpop.f32.mrb[0].mxu0
      %v2714 = vpop.f32.mrb[0].mxu0
      %v2715 = vadd.f32 0.0, %v2714
      %v2716 = vpop.f32.mrb[0].mxu0
      %2717 = vmatprep.mubr.bf16.mxu0 0
      %2718 = vmatmul.mubr.bf16.gmra.mrb[0].mxu0 %v1949
      %v2719 = vpop.f32.mrb[0].mxu0
      %v2720 = vadd.f32 0.0, %v2719
      %v2721 = vpop.f32.mrb[0].mxu0
      %v2722 = vpop.f32.mrb[0].mxu0
      %v2723 = vadd.f32 0.0, %v2722
      %v2724 = vpop.f32.mrb[0].mxu0
      %2725 = vmatprep.mubr.bf16.mxu0 0
      %2726 = vmatmul.mubr.bf16.gmra.mrb[0].mxu0 %v2568
      %v2727 = vpop.f32.mrb[0].mxu0
      %v2728 = vadd.f32 0.0, %v2727
      %v2729 = vpop.f32.mrb[0].mxu0
      %v2730 = vpop.f32.mrb[0].mxu0
      %v2731 = vadd.f32 0.0, %v2730
      %v2732 = vpop.f32.mrb[0].mxu0
      %2733 = vdwg.mxu0
      %v2734 = vadd.f32 %v2528, %v2608
      %v2735 = vadd.f32 %v2529, %v2611
      %v2736 = vadd.f32 %v2530, %v2616
      %v2737 = vadd.f32 %v2531, %v2619
      %v2738 = vadd.f32 %v2532, %v2624
      %v2739 = vadd.f32 %v2533, %v2627
      %v2740 = vadd.f32 %v2534, %v2632
      %v2741 = vadd.f32 %v2535, %v2635
      %v2742 = vadd.f32 %v2536, %v2640
      %v2743 = vadd.f32 %v2537, %v2643
      %v2744 = vadd.f32 %v2538, %v2648
      %v2745 = vadd.f32 %v2539, %v2651
      %v2746 = vadd.f32 %v2540, %v2656
      %v2747 = vadd.f32 %v2541, %v2659
      %v2748 = vadd.f32 %v2542, %v2664
      %v2749 = vadd.f32 %v2543, %v2667
      %v2750 = vadd.f32 %v2544, %v2672
      %v2751 = vadd.f32 %v2545, %v2675
      %v2752 = vadd.f32 %v2546, %v2680
      %v2753 = vadd.f32 %v2547, %v2683
      %v2754 = vadd.f32 %v2548, %v2688
      %v2755 = vadd.f32 %v2549, %v2691
      %v2756 = vadd.f32 %v2550, %v2696
      %v2757 = vadd.f32 %v2551, %v2699
      %v2758 = vadd.f32 %v2552, %v2704
      %v2759 = vadd.f32 %v2553, %v2707
      %v2760 = vadd.f32 %v2554, %v2712
      %v2761 = vadd.f32 %v2555, %v2715
      %v2762 = vadd.f32 %v2556, %v2720
      %v2763 = vadd.f32 %v2557, %v2723
      %v2764 = vadd.f32 %v2558, %v2728
      %v2765 = vadd.f32 %v2559, %v2731
      %2766 = vst.msk [vmem:[%s264] sm:$0xff] %vm791, %v2734
      %2767 = vst.msk [vmem:[%s264 + $0x8] sm:$0xff] %vm791, %v2735
      %2768 = vst.msk [vmem:[%s264 + $0x10] sm:$0xff] %vm791, %v2736
      %2769 = vst.msk [vmem:[%s264 + $0x18] sm:$0xff] %vm791, %v2737
      %2770 = vst.msk [vmem:[%s264 + $0x20] sm:$0xff] %vm791, %v2738
      %2771 = vst.msk [vmem:[%s264 + $0x28] sm:$0xff] %vm791, %v2739
      %2772 = vst.msk [vmem:[%s264 + $0x30] sm:$0xff] %vm791, %v2740
      %2773 = vst.msk [vmem:[%s264 + $0x38] sm:$0xff] %vm791, %v2741
      %2774 = vst.msk [vmem:[%s264 + $0x40] sm:$0xff] %vm791, %v2742
      %2775 = vst.msk [vmem:[%s264 + $0x48] sm:$0xff] %vm791, %v2743
      %2776 = vst.msk [vmem:[%s264 + $0x50] sm:$0xff] %vm791, %v2744
      %2777 = vst.msk [vmem:[%s264 + $0x58] sm:$0xff] %vm791, %v2745
      %2778 = vst.msk [vmem:[%s264 + $0x60] sm:$0xff] %vm791, %v2746
      %2779 = vst.msk [vmem:[%s264 + $0x68] sm:$0xff] %vm791, %v2747
      %2780 = vst.msk [vmem:[%s264 + $0x70] sm:$0xff] %vm791, %v2748
      %2781 = vst.msk [vmem:[%s264 + $0x78] sm:$0xff] %vm791, %v2749
      %2782 = vst.msk [vmem:[%s264 + $0x80] sm:$0xff] %vm791, %v2750
      %2783 = vst.msk [vmem:[%s264 + $0x88] sm:$0xff] %vm791, %v2751
      %2784 = vst.msk [vmem:[%s264 + $0x90] sm:$0xff] %vm791, %v2752
      %2785 = vst.msk [vmem:[%s264 + $0x98] sm:$0xff] %vm791, %v2753
      %2786 = vst.msk [vmem:[%s264 + $0xa0] sm:$0xff] %vm791, %v2754
      %2787 = vst.msk [vmem:[%s264 + $0xa8] sm:$0xff] %vm791, %v2755
      %2788 = vst.msk [vmem:[%s264 + $0xb0] sm:$0xff] %vm791, %v2756
      %2789 = vst.msk [vmem:[%s264 + $0xb8] sm:$0xff] %vm791, %v2757
      %2790 = vst.msk [vmem:[%s264 + $0xc0] sm:$0xff] %vm791, %v2758
      %2791 = vst.msk [vmem:[%s264 + $0xc8] sm:$0xff] %vm791, %v2759
      %2792 = vst.msk [vmem:[%s264 + $0xd0] sm:$0xff] %vm791, %v2760
      %2793 = vst.msk [vmem:[%s264 + $0xd8] sm:$0xff] %vm791, %v2761
      %2794 = vst.msk [vmem:[%s264 + $0xe0] sm:$0xff] %vm791, %v2762
      %2795 = vst.msk [vmem:[%s264 + $0xe8] sm:$0xff] %vm791, %v2763
      %2796 = vst.msk [vmem:[%s264 + $0xf0] sm:$0xff] %vm791, %v2764
      %2797 = vst.msk [vmem:[%s264 + $0xf8] sm:$0xff] %vm791, %v2765
      %v2798 = vsel %vm791, %v2734, 0.0
      %v2799 = vsel %vm791, %v2735, 0.0
      %v2800 = vadd.f32 %v2798, %v2799
      %v2801 = vsel %vm791, %v2736, 0.0
      %v2802 = vadd.f32 %v2800, %v2801
      %v2803 = vsel %vm791, %v2737, 0.0
      %v2804 = vadd.f32 %v2802, %v2803
      %v2805 = vsel %vm791, %v2738, 0.0
      %v2806 = vadd.f32 %v2804, %v2805
      %v2807 = vsel %vm791, %v2739, 0.0
      %v2808 = vadd.f32 %v2806, %v2807
      %v2809 = vsel %vm791, %v2740, 0.0
      %v2810 = vadd.f32 %v2808, %v2809
      %v2811 = vsel %vm791, %v2741, 0.0
      %v2812 = vadd.f32 %v2810, %v2811
      %v2813 = vsel %vm791, %v2742, 0.0
      %v2814 = vadd.f32 %v2812, %v2813
      %v2815 = vsel %vm791, %v2743, 0.0
      %v2816 = vadd.f32 %v2814, %v2815
      %v2817 = vsel %vm791, %v2744, 0.0
      %v2818 = vadd.f32 %v2816, %v2817
      %v2819 = vsel %vm791, %v2745, 0.0
      %v2820 = vadd.f32 %v2818, %v2819
      %v2821 = vsel %vm791, %v2746, 0.0
      %v2822 = vadd.f32 %v2820, %v2821
      %v2823 = vsel %vm791, %v2747, 0.0
      %v2824 = vadd.f32 %v2822, %v2823
      %v2825 = vsel %vm791, %v2748, 0.0
      %v2826 = vadd.f32 %v2824, %v2825
      %v2827 = vsel %vm791, %v2749, 0.0
      %v2828 = vadd.f32 %v2826, %v2827
      %v2829 = vsel %vm791, %v2750, 0.0
      %v2830 = vadd.f32 %v2828, %v2829
      %v2831 = vsel %vm791, %v2751, 0.0
      %v2832 = vadd.f32 %v2830, %v2831
      %v2833 = vsel %vm791, %v2752, 0.0
      %v2834 = vadd.f32 %v2832, %v2833
      %v2835 = vsel %vm791, %v2753, 0.0
      %v2836 = vadd.f32 %v2834, %v2835
      %v2837 = vsel %vm791, %v2754, 0.0
      %v2838 = vadd.f32 %v2836, %v2837
      %v2839 = vsel %vm791, %v2755, 0.0
      %v2840 = vadd.f32 %v2838, %v2839
      %v2841 = vsel %vm791, %v2756, 0.0
      %v2842 = vadd.f32 %v2840, %v2841
      %v2843 = vsel %vm791, %v2757, 0.0
      %v2844 = vadd.f32 %v2842, %v2843
      %v2845 = vsel %vm791, %v2758, 0.0
      %v2846 = vadd.f32 %v2844, %v2845
      %v2847 = vsel %vm791, %v2759, 0.0
      %v2848 = vadd.f32 %v2846, %v2847
      %v2849 = vsel %vm791, %v2760, 0.0
      %v2850 = vadd.f32 %v2848, %v2849
      %v2851 = vsel %vm791, %v2761, 0.0
      %v2852 = vadd.f32 %v2850, %v2851
      %v2853 = vsel %vm791, %v2762, 0.0
      %v2854 = vadd.f32 %v2852, %v2853
      %v2855 = vsel %vm791, %v2763, 0.0
      %v2856 = vadd.f32 %v2854, %v2855
      %v2857 = vsel %vm791, %v2764, 0.0
      %v2858 = vadd.f32 %v2856, %v2857
      %v2859 = vsel %vm791, %v2765, 0.0
      %v2860 = vadd.f32 %v2858, %v2859
      %2861 = vst.msk [vmem:[%s269] sm:$0xff] %vm791, %v2860
      %v2862 = vmul.f32 %v2734, %v2734
      %v2863 = vmul.f32 %v2735, %v2735
      %v2864 = vmul.f32 %v2736, %v2736
      %v2865 = vmul.f32 %v2737, %v2737
      %v2866 = vmul.f32 %v2738, %v2738
      %v2867 = vmul.f32 %v2739, %v2739
      %v2868 = vmul.f32 %v2740, %v2740
      %v2869 = vmul.f32 %v2741, %v2741
      %v2870 = vmul.f32 %v2742, %v2742
      %v2871 = vmul.f32 %v2743, %v2743
      %v2872 = vmul.f32 %v2744, %v2744
      %v2873 = vmul.f32 %v2745, %v2745
      %v2874 = vmul.f32 %v2746, %v2746
      %v2875 = vmul.f32 %v2747, %v2747
      %v2876 = vmul.f32 %v2748, %v2748
      %v2877 = vmul.f32 %v2749, %v2749
      %v2878 = vmul.f32 %v2750, %v2750
      %v2879 = vmul.f32 %v2751, %v2751
      %v2880 = vmul.f32 %v2752, %v2752
      %v2881 = vmul.f32 %v2753, %v2753
      %v2882 = vmul.f32 %v2754, %v2754
      %v2883 = vmul.f32 %v2755, %v2755
      %v2884 = vmul.f32 %v2756, %v2756
      %v2885 = vmul.f32 %v2757, %v2757
      %v2886 = vmul.f32 %v2758, %v2758
      %v2887 = vmul.f32 %v2759, %v2759
      %v2888 = vmul.f32 %v2760, %v2760
      %v2889 = vmul.f32 %v2761, %v2761
      %v2890 = vmul.f32 %v2762, %v2762
      %v2891 = vmul.f32 %v2763, %v2763
      %v2892 = vmul.f32 %v2764, %v2764
      %v2893 = vmul.f32 %v2765, %v2765
      %v2894 = vsel %vm791, %v2862, 0.0
      %v2895 = vsel %vm791, %v2863, 0.0
      %v2896 = vadd.f32 %v2894, %v2895
      %v2897 = vsel %vm791, %v2864, 0.0
      %v2898 = vadd.f32 %v2896, %v2897
      %v2899 = vsel %vm791, %v2865, 0.0
      %v2900 = vadd.f32 %v2898, %v2899
      %v2901 = vsel %vm791, %v2866, 0.0
      %v2902 = vadd.f32 %v2900, %v2901
      %v2903 = vsel %vm791, %v2867, 0.0
      %v2904 = vadd.f32 %v2902, %v2903
      %v2905 = vsel %vm791, %v2868, 0.0
      %v2906 = vadd.f32 %v2904, %v2905
      %v2907 = vsel %vm791, %v2869, 0.0
      %v2908 = vadd.f32 %v2906, %v2907
      %v2909 = vsel %vm791, %v2870, 0.0
      %v2910 = vadd.f32 %v2908, %v2909
      %v2911 = vsel %vm791, %v2871, 0.0
      %v2912 = vadd.f32 %v2910, %v2911
      %v2913 = vsel %vm791, %v2872, 0.0
      %v2914 = vadd.f32 %v2912, %v2913
      %v2915 = vsel %vm791, %v2873, 0.0
      %v2916 = vadd.f32 %v2914, %v2915
      %v2917 = vsel %vm791, %v2874, 0.0
      %v2918 = vadd.f32 %v2916, %v2917
      %v2919 = vsel %vm791, %v2875, 0.0
      %v2920 = vadd.f32 %v2918, %v2919
      %v2921 = vsel %vm791, %v2876, 0.0
      %v2922 = vadd.f32 %v2920, %v2921
      %v2923 = vsel %vm791, %v2877, 0.0
      %v2924 = vadd.f32 %v2922, %v2923
      %v2925 = vsel %vm791, %v2878, 0.0
      %v2926 = vadd.f32 %v2924, %v2925
      %v2927 = vsel %vm791, %v2879, 0.0
      %v2928 = vadd.f32 %v2926, %v2927
      %v2929 = vsel %vm791, %v2880, 0.0
      %v2930 = vadd.f32 %v2928, %v2929
      %v2931 = vsel %vm791, %v2881, 0.0
      %v2932 = vadd.f32 %v2930, %v2931
      %v2933 = vsel %vm791, %v2882, 0.0
      %v2934 = vadd.f32 %v2932, %v2933
      %v2935 = vsel %vm791, %v2883, 0.0
      %v2936 = vadd.f32 %v2934, %v2935
      %v2937 = vsel %vm791, %v2884, 0.0
      %v2938 = vadd.f32 %v2936, %v2937
      %v2939 = vsel %vm791, %v2885, 0.0
      %v2940 = vadd.f32 %v2938, %v2939
      %v2941 = vsel %vm791, %v2886, 0.0
      %v2942 = vadd.f32 %v2940, %v2941
      %v2943 = vsel %vm791, %v2887, 0.0
      %v2944 = vadd.f32 %v2942, %v2943
      %v2945 = vsel %vm791, %v2888, 0.0
      %v2946 = vadd.f32 %v2944, %v2945
      %v2947 = vsel %vm791, %v2889, 0.0
      %v2948 = vadd.f32 %v2946, %v2947
      %v2949 = vsel %vm791, %v2890, 0.0
      %v2950 = vadd.f32 %v2948, %v2949
      %v2951 = vsel %vm791, %v2891, 0.0
      %v2952 = vadd.f32 %v2950, %v2951
      %v2953 = vsel %vm791, %v2892, 0.0
      %v2954 = vadd.f32 %v2952, %v2953
      %v2955 = vsel %vm791, %v2893, 0.0
      %v2956 = vadd.f32 %v2954, %v2955
      %2957 = vst.msk [vmem:[%s273] sm:$0xff] %vm791, %v2956
      %s2958 = smul.u32 32, %s18
      %p2959 = scmp.lt.s32.totalorder %s2958, 63
      %s2960 = scalar_select %p2959, %s2958, 63
      %s2961 = smul.addr %s2960, 8
      %s2962 = scalar_lea.vmem %s4, %s2961
      %p2963 = scmp.lt.s32.totalorder %s18, 1
      %s2964 = scalar_select %p2963, %s18, 1
      %s2965 = smul.addr %s2964, 8
      %s2966 = scalar_lea.vmem %s5, %s2965
      %p2967 = scmp.lt.s32.totalorder %s18, 1
      %s2968 = scalar_select %p2967, %s18, 1
      %s2969 = smul.addr %s2968, 8
      %s2970 = scalar_lea.vmem %s6, %s2969
      // Predicated region
      $region37: #{upconvblock_forward.8} parent=35 // pred_check
        %p2971 = pneg %p125
      $region38: #{upconvblock_forward.8} parent=35 // pred_check_branch
        %2973 = sbr.rel (%p2971) target = $region40
      $region39: #{upconvblock_forward.8} parent=35 // pred_region
        %s2974 = smul.u32 32, %s18
      $region40: #{upconvblock_forward.8} parent=35 // pred_fallthru
        _
      // Predicated region
      $region41: #{upconvblock_forward.8} parent=35 // pred_check
        %p2975 = pneg %p151
      $region42: #{upconvblock_forward.8} parent=35 // pred_check_branch
        %2977 = sbr.rel (%p2975) target = $region44
      $region43: #{upconvblock_forward.8} parent=35 // pred_region
        _
      $region44: #{upconvblock_forward.8} parent=35 // pred_fallthru
        _
      // Predicated region
      $region45: #{upconvblock_forward.8} parent=35 // pred_check
        %p2978 = pneg %p177
      $region46: #{upconvblock_forward.8} parent=35 // pred_check_branch
        %2980 = sbr.rel (%p2978) target = $region48
      $region47: #{upconvblock_forward.8} parent=35 // pred_region
        _
      $region48: #{upconvblock_forward.8} parent=35 // pred_fallthru
        _
    $region36: #{upconvblock_forward.8} parent=5 // pred_fallthru
      _
    %p2981 = scmp.le.s32.totalorder 2, %s13
    // Predicated region
    $region49: #{upconvblock_forward.8} parent=5 // pred_check
      %p2982 = pneg %p2981
    $region50: #{upconvblock_forward.8} parent=5 // pred_check_branch
      %2984 = sbr.rel (%p2982) target = $region52
    $region51: #{upconvblock_forward.8} parent=5 // pred_region
      %s2985 = ssub.s32 %s13, 2
      // Predicated region
      $region53: #{upconvblock_forward.8} parent=51 // pred_check
        %p2986 = pneg %p131
      $region54: #{upconvblock_forward.8} parent=51 // pred_check_branch
        %2988 = sbr.rel (%p2986) target = $region56
      $region55: #{upconvblock_forward.8} parent=51 // pred_region
        %s2989 = smul.u32 32, %s19
        %p2990 = scmp.lt.s32.totalorder %s2989, 63
        %s2991 = scalar_select %p2990, %s2989, 63
        %s2992 = smul.addr %s2991, 8
        %s2993 = scalar_lea.vmem %s4, %s2992
      $region56: #{upconvblock_forward.8} parent=51 // pred_fallthru
        _
      // Predicated region
      $region57: #{upconvblock_forward.8} parent=51 // pred_check
        %p2994 = pneg %p157
      $region58: #{upconvblock_forward.8} parent=51 // pred_check_branch
        %2996 = sbr.rel (%p2994) target = $region60
      $region59: #{upconvblock_forward.8} parent=51 // pred_region
        %p2997 = scmp.lt.s32.totalorder %s19, 1
        %s2998 = scalar_select %p2997, %s19, 1
        %s2999 = smul.addr %s2998, 8
        %s3000 = scalar_lea.vmem %s5, %s2999
      $region60: #{upconvblock_forward.8} parent=51 // pred_fallthru
        _
      // Predicated region
      $region61: #{upconvblock_forward.8} parent=51 // pred_check
        %p3001 = pneg %p183
      $region62: #{upconvblock_forward.8} parent=51 // pred_check_branch
        %3003 = sbr.rel (%p3001) target = $region64
      $region63: #{upconvblock_forward.8} parent=51 // pred_region
        %p3004 = scmp.lt.s32.totalorder %s19, 1
        %s3005 = scalar_select %p3004, %s19, 1
        %s3006 = smul.addr %s3005, 8
        %s3007 = scalar_lea.vmem %s6, %s3006
      $region64: #{upconvblock_forward.8} parent=51 // pred_fallthru
        _
    $region52: #{upconvblock_forward.8} parent=5 // pred_fallthru
      _
  $region6: #{upconvblock_forward.8} parent=0 // loop_footer
    %s17 = sadd.s32 1, %s13
  $region7: #{upconvblock_forward.8} parent=0 // loop_footer_branch
    %12 = sbr.rel target = $region3
  $region8: #{upconvblock_forward.8} parent=0 // loop_exit
    _

</llo_original>
